<compile_context>
chip_gen: v5e
topology: v5e:2x2
jax: 0.10.0
libtpu: 0.0.40
codegen_flags: <defaults>
</compile_context>

<pallas_src>
import functools
import math

import jax
import jax.numpy as jnp
from jax.experimental import pallas as pl
from jax.experimental.pallas import tpu as pltpu


_LN_EPS = 1e-5  # PyTorch nn.LayerNorm default


# ----------------------------------------------------------------------------
# small helpers
# ----------------------------------------------------------------------------
def _row_tile(rows, max_tile=512):
    """Single max-size tile for small M; only split when rows exceed max_tile."""
    if rows <= max_tile or rows % 8 != 0:
        return rows
    for t in range(max_tile - max_tile % 8, 7, -8):
        if rows % t == 0:
            return t
    return rows


def _col_tile(cols, max_tile=512):
    """Lane-dense (multiple of 128) column tile; split into >=2 tiles when cols > 128."""
    if cols <= 128 or cols % 128 != 0:
        return cols
    cap = min(max_tile, (cols // 2) // 128 * 128)
    for t in range(cap, 127, -128):
        if cols % t == 0:
            return t
    return cols


def _const_spec(a):
    """Full-array block whose index never changes => fetched once, stays resident."""
    zeros = (0,) * a.ndim
    return pl.BlockSpec(a.shape, lambda *_args, _z=zeros: _z)


def _r(v):  # bias / LN params -> 2-D (1, N) so they tile cleanly
    return v.reshape(1, -1)


def _layernorm(x, g, b, eps=_LN_EPS):
    mean = jnp.mean(x, axis=-1, keepdims=True)
    var = jnp.mean(jnp.square(x - mean), axis=-1, keepdims=True)
    return (x - mean) * jax.lax.rsqrt(var + eps) * g + b


def _mm(x, w_ref, b_ref):
    return (jnp.dot(x, w_ref[...].astype(jnp.float32), preferred_element_type=jnp.float32)
            + b_ref[...].astype(jnp.float32))


# ----------------------------------------------------------------------------
# generic tiled linear (vocab projection)
# ----------------------------------------------------------------------------
def _linear_tile_kernel(x_ref, w_ref, b_ref, o_ref):
    o_ref[...] = _mm(x_ref[...].astype(jnp.float32), w_ref, b_ref).astype(o_ref.dtype)


def linear_tiled(x, w, b):
    """y = x @ w + b.  Grid = (N tiles, M tiles): the (large) weight tile is the OUTER axis,
    so each weight tile is DMA'd exactly once and stays resident across the inner row loop."""
    M, K = x.shape
    N = w.shape[1]
    tm, tn = _row_tile(M), _col_tile(N)
    return pl.pallas_call(
        _linear_tile_kernel,
        out_shape=jax.ShapeDtypeStruct((M, N), jnp.float32),
        grid=(N // tn, M // tm),
        in_specs=[pl.BlockSpec((tm, K), lambda j, i: (i, 0)),
                  pl.BlockSpec((K, tn), lambda j, i: (0, j)),
                  pl.BlockSpec((1, tn), lambda j, i: (0, j))],
        out_specs=pl.BlockSpec((tm, tn), lambda j, i: (i, j)),
        compiler_params=pltpu.CompilerParams(
            dimension_semantics=("parallel", "parallel")),
    )(x, w, b.reshape(1, N))


# ----------------------------------------------------------------------------
# fused multi-head attention block (proj + attn + out-proj + residual + LN)
# ----------------------------------------------------------------------------
def _mha_core(xq, xkv, resid, wq_ref, bq_ref, wk_ref, bk_ref, wv_ref, bv_ref,
              wo_ref, bo_ref, g_ref, b_ref, num_heads, eps):
    heads = []
    # TODO(synk): move heads onto a grid axis / fori_loop if num_heads grows beyond ~8.
    for h in range(num_heads):
        # per-head projections via (H, E, Dh) weight slabs: full-E contraction, no
        # lane-slicing of activations at Dh offsets.  (scale pre-folded into wq/bq)
        qh = (jnp.dot(xq, wq_ref[h].astype(jnp.float32),
                      preferred_element_type=jnp.float32)
              + bq_ref[h].astype(jnp.float32))
        kh = (jnp.dot(xkv, wk_ref[h].astype(jnp.float32),
                      preferred_element_type=jnp.float32)
              + bk_ref[h].astype(jnp.float32))
        vh = (jnp.dot(xkv, wv_ref[h].astype(jnp.float32),
                      preferred_element_type=jnp.float32)
              + bv_ref[h].astype(jnp.float32))
        s = jax.lax.dot_general(qh, kh, (((1,), (1,)), ((), ())),
                                preferred_element_type=jnp.float32)   # QK^T, no k.T copy
        s = s - jnp.max(s, axis=-1, keepdims=True)
        e = jnp.exp(s)
        p = e / jnp.sum(e, axis=-1, keepdims=True)       # exact divide (parity w/ PyTorch)
        heads.append(jnp.dot(p, vh, preferred_element_type=jnp.float32))
    # merge heads once, then a single (Sq,E)x(E,E) output projection (K = E, not Dh)
    o_cat = jnp.concatenate(heads, axis=-1) if num_heads > 1 else heads[0]
    y = (resid
         + jnp.dot(o_cat, wo_ref[...].astype(jnp.float32),
                   preferred_element_type=jnp.float32)
         + bo_ref[...].astype(jnp.float32))
    return _layernorm(y, g_ref[...].astype(jnp.float32),
                      b_ref[...].astype(jnp.float32), eps)


def _mha_self_kernel(x_ref, wq_ref, bq_ref, wk_ref, bk_ref, wv_ref, bv_ref,
                     wo_ref, bo_ref, g_ref, b_ref, o_ref, *, num_heads, eps):
    x = x_ref[0].astype(jnp.float32)                      # query == key == value == residual
    o_ref[0] = _mha_core(x, x, x, wq_ref, bq_ref, wk_ref, bk_ref, wv_ref, bv_ref,
                         wo_ref, bo_ref, g_ref, b_ref, num_heads, eps).astype(o_ref.dtype)


def _mha_cross_kernel(xq_ref, mem_ref, wq_ref, bq_ref, wk_ref, bk_ref, wv_ref, bv_ref,
                      wo_ref, bo_ref, g_ref, b_ref, o_ref, *, num_heads, eps):
    xq = xq_ref[0].astype(jnp.float32)
    mem = mem_ref[0].astype(jnp.float32)
    o_ref[0] = _mha_core(xq, mem, xq, wq_ref, bq_ref, wk_ref, bk_ref, wv_ref, bv_ref,
                         wo_ref, bo_ref, g_ref, b_ref, num_heads, eps).astype(o_ref.dtype)


def mha_block(x_q, memory, ap, ln_g, ln_b, num_heads, *, self_attn):
    """MultiheadAttention + residual + LayerNorm (post-norm) in one pallas_call, grid=(B,)."""
    B, Sq, E = x_q.shape
    weights = (ap["wq3"], ap["bq3"], ap["wk3"], ap["bk3"], ap["wv3"], ap["bv3"],
               ap["wo"], _r(ap["bo"]), _r(ln_g), _r(ln_b))
    if self_attn:
        kernel = functools.partial(_mha_self_kernel, num_heads=num_heads, eps=_LN_EPS)
        acts = (x_q,)
    else:
        kernel = functools.partial(_mha_cross_kernel, num_heads=num_heads, eps=_LN_EPS)
        acts = (x_q, memory)
    act_specs = [pl.BlockSpec((1,) + a.shape[1:], lambda b: (b, 0, 0)) for a in acts]
    return pl.pallas_call(
        kernel,
        out_shape=jax.ShapeDtypeStruct((B, Sq, E), jnp.float32),
        grid=(B,),
        in_specs=act_specs + [_const_spec(w) for w in weights],
        out_specs=pl.BlockSpec((1, Sq, E), lambda b: (b, 0, 0)),
        compiler_params=pltpu.CompilerParams(dimension_semantics=("parallel",)),
    )(*acts, *weights)


# ----------------------------------------------------------------------------
# fused FFN block (w1 + ReLU + w2 + residual + LayerNorm)
# ----------------------------------------------------------------------------
def _ffn_block_kernel(x_ref, w1_ref, b1_ref, w2_ref, b2_ref, g_ref, b_ref, o_ref, *, eps):
    x = x_ref[...].astype(jnp.float32)
    h = jnp.maximum(_mm(x, w1_ref, b1_ref), 0.0)          # (rows, 4E) never leaves VMEM
    y = _mm(h, w2_ref, b2_ref) + x                        # residual
    o_ref[...] = _layernorm(y, g_ref[...].astype(jnp.float32),
                            b_ref[...].astype(jnp.float32), eps).astype(o_ref.dtype)


def ffn_block(x, w1, b1, w2, b2, g, b):
    # TODO(synk): at production E (768+) tile the 4E hidden dim ("arbitrary" grid axis +
    # VMEM accumulator) and set vmem_limit_bytes explicitly for v7x's 64 MiB VMEM.
    M, E = x.shape
    F = w1.shape[1]
    tm = _row_tile(M)
    return pl.pallas_call(
        functools.partial(_ffn_block_kernel, eps=_LN_EPS),
        out_shape=jax.ShapeDtypeStruct((M, E), jnp.float32),
        grid=(M // tm,),
        in_specs=[pl.BlockSpec((tm, E), lambda i: (i, 0)),
                  pl.BlockSpec((E, F), lambda i: (0, 0)),
                  pl.BlockSpec((1, F), lambda i: (0, 0)),
                  pl.BlockSpec((F, E), lambda i: (0, 0)),
                  pl.BlockSpec((1, E), lambda i: (0, 0)),
                  pl.BlockSpec((1, E), lambda i: (0, 0)),
                  pl.BlockSpec((1, E), lambda i: (0, 0))],
        out_specs=pl.BlockSpec((tm, E), lambda i: (i, 0)),
        compiler_params=pltpu.CompilerParams(dimension_semantics=("parallel",)),
    )(x, w1, _r(b1), w2, _r(b2), _r(g), _r(b))


# ----------------------------------------------------------------------------
# fused brand conditioning + quality scorer + image heads (one kernel)
# ----------------------------------------------------------------------------
def _cond_heads_kernel(bp_ref, ct_ref,
                       p1w, p1b, p2w, p2b, ng, nb,
                       f1w, f1b, f2w, f2b,
                       q1w, q1b, q2w, q2b,
                       l1w, l1b, l2w, l2b, l3w, l3b,
                       c1w, c1b, c2w, c2b,
                       t1w, t1b, t2w, t2b,
                       cond_ref, qual_ref, layout_ref, color_ref, typo_ref,
                       *, style_dim, eps):
    bp = bp_ref[...].astype(jnp.float32)
    ct = ct_ref[...].astype(jnp.float32)
    # BrandConditioningLayer: brand_projector -> brand_norm
    h = jnp.maximum(_mm(bp, p1w, p1b), 0.0)
    bc = _layernorm(_mm(h, p2w, p2b), ng[...].astype(jnp.float32),
                    nb[...].astype(jnp.float32), eps)
    # conditioning_fusion(concat([brand_cond, ct_emb])) realized by row-splitting the weight
    f1 = f1w[...].astype(jnp.float32)
    h2 = jnp.maximum(
        jnp.dot(bc, f1[:style_dim, :], preferred_element_type=jnp.float32)
        + jnp.dot(ct, f1[style_dim:, :], preferred_element_type=jnp.float32)
        + f1b[...].astype(jnp.float32), 0.0)
    cond = _mm(h2, f2w, f2b)
    cond_ref[...] = cond.astype(cond_ref.dtype)
    # quality scorer (consumes conditioning while it is still in VMEM)
    hq = jnp.maximum(_mm(cond, q1w, q1b), 0.0)
    qual_ref[...] = jax.nn.sigmoid(_mm(hq, q2w, q2b)).astype(qual_ref.dtype)
    # ImageLayoutGenerator: layout / color / typography heads
    hl = jnp.maximum(_mm(cond, l1w, l1b), 0.0)
    hl = jnp.maximum(_mm(hl, l2w, l2b), 0.0)
    layout_ref[...] = _mm(hl, l3w, l3b).astype(layout_ref.dtype)
    hc = jnp.maximum(_mm(cond, c1w, c1b), 0.0)
    color_ref[...] = jax.nn.sigmoid(_mm(hc, c2w, c2b)).astype(color_ref.dtype)
    ht = jnp.maximum(_mm(cond, t1w, t1b), 0.0)
    typo_ref[...] = _mm(ht, t2w, t2b).astype(typo_ref.dtype)


def conditioning_and_heads(brand_profile, ct_emb, p):
    B = brand_profile.shape[0]
    hidden = p["cf_w2"].shape[1]
    style = p["bp_w2"].shape[1]
    image_dim = p["lg_w3"].shape[1]
    n_color = p["cg_w2"].shape[1]
    n_typo = p["tg_w2"].shape[1]
    args = (brand_profile, ct_emb,
            p["bp_w1"], _r(p["bp_b1"]), p["bp_w2"], _r(p["bp_b2"]),
            _r(p["bn_g"]), _r(p["bn_b"]),
            p["cf_w1"], _r(p["cf_b1"]), p["cf_w2"], _r(p["cf_b2"]),
            p["qs_w1"], _r(p["qs_b1"]), p["qs_w2"], _r(p["qs_b2"]),
            p["lg_w1"], _r(p["lg_b1"]), p["lg_w2"], _r(p["lg_b2"]),
            p["lg_w3"], _r(p["lg_b3"]),
            p["cg_w1"], _r(p["cg_b1"]), p["cg_w2"], _r(p["cg_b2"]),
            p["tg_w1"], _r(p["tg_b1"]), p["tg_w2"], _r(p["tg_b2"]))
    out_shapes = (jax.ShapeDtypeStruct((B, hidden), jnp.float32),
                  jax.ShapeDtypeStruct((B, 1), jnp.float32),
                  jax.ShapeDtypeStruct((B, image_dim), jnp.float32),
                  jax.ShapeDtypeStruct((B, n_color), jnp.float32),
                  jax.ShapeDtypeStruct((B, n_typo), jnp.float32))
    return pl.pallas_call(
        functools.partial(_cond_heads_kernel, style_dim=style, eps=_LN_EPS),
        out_shape=out_shapes,
        grid=(1,),
        in_specs=[_const_spec(a) for a in args],
        out_specs=tuple(pl.BlockSpec(s.shape, lambda i: (0, 0)) for s in out_shapes),
    )(*args)


# ----------------------------------------------------------------------------
# model composition
# ----------------------------------------------------------------------------
def transformer_decoder_layer(x, memory, p, num_heads):
    """nn.TransformerDecoderLayer: batch_first, post-norm, ReLU FFN, eval-mode dropout."""
    # TODO(synk): no causal/tgt mask — matches the reference, which calls layer(h, h) unmasked.
    x = mha_block(x, x, p["self_attn"], p["ln1_g"], p["ln1_b"], num_heads, self_attn=True)
    x = mha_block(x, memory, p["cross_attn"], p["ln2_g"], p["ln2_b"], num_heads,
                  self_attn=False)
    B, S, E = x.shape
    x = ffn_block(x.reshape(B * S, E), p["ff_w1"], p["ff_b1"], p["ff_w2"], p["ff_b2"],
                  p["ln3_g"], p["ln3_b"]).reshape(B, S, E)
    return x


def content_generator_forward(params, brand_profile, content_type_ids, input_ids,
                              num_heads, generate_images=True):
    # ---- BrandConditioningLayer + quality scorer + image heads (one fused kernel) ----
    ct_emb = params["ct_emb"][content_type_ids]              # embedding gather (JAX glue)
    conditioning, quality, layout, color, typo = conditioning_and_heads(
        brand_profile, ct_emb, params)
    outputs = {"conditioning_vector": conditioning}

    # ---- TextGenerator ----
    if input_ids is not None:
        B, S = input_ids.shape
        E = conditioning.shape[-1]
        tok = params["text_emb"][input_ids]                   # embedding gather (JAX glue)
        pos = params["pos_enc"][:S][None, :, :]
        hidden = tok + pos + conditioning[:, None, :]
        for lp in params["layers"]:
            hidden = transformer_decoder_layer(hidden, hidden, lp, num_heads)
        vocab = params["out_w"].shape[1]
        logits = linear_tiled(hidden.reshape(B * S, E), params["out_w"], params["out_b"])
        outputs["text_logits"] = logits.reshape(B, S, vocab)

    # ---- ImageLayoutGenerator outputs ----
    if generate_images:
        outputs["layout_features"] = layout
        outputs["color_scheme"] = color.reshape(-1, 5, 3)
        outputs["typography_params"] = typo

    outputs["quality_score"] = quality
    return outputs


# ----------------------------------------------------------------------------
# deterministic parameter init (synthetic; mirrors module __init__ shapes)
# ----------------------------------------------------------------------------
def _init_linear(key, fan_in, fan_out, dtype=jnp.float32):
    kw, kb = jax.random.split(key)
    w = (jax.random.normal(kw, (fan_in, fan_out), jnp.float32) * 0.02).astype(dtype)
    b = jax.random.normal(kb, (fan_out,), jnp.float32) * 0.02
    return w, b


def _prep_attn(keys, hidden, num_heads, weight_dtype):
    """Per-head (H, E, Dh) weight slabs with the softmax scale folded into Q (one-time)."""
    E, H = hidden, num_heads
    Dh = E // H
    scale = 1.0 / math.sqrt(Dh)
    wq, bq = _init_linear(next(keys), E, E)
    wk, bk = _init_linear(next(keys), E, E)
    wv, bv = _init_linear(next(keys), E, E)
    wo, bo = _init_linear(next(keys), E, E)

    def to3(w):                                   # (E, H*Dh) -> (H, E, Dh)
        return jnp.transpose(w.reshape(E, H, Dh), (1, 0, 2))

    return dict(
        wq3=(to3(wq) * scale).astype(weight_dtype),
        bq3=bq.reshape(H, 1, Dh) * scale,
        wk3=to3(wk).astype(weight_dtype), bk3=bk.reshape(H, 1, Dh),
        wv3=to3(wv).astype(weight_dtype), bv3=bv.reshape(H, 1, Dh),
        wo=wo.astype(weight_dtype), bo=bo)


def init_params(key, *, hidden, num_layers, num_heads, brand_dim, style_dim, layout_dim,
                image_dim, vocab, max_seq, n_content_types, weight_dtype=jnp.float32):
    # weight_dtype=jnp.bfloat16 halves weight HBM reads on v6e/v7x (kernels accumulate in
    # f32); the default float32 keeps numerical parity with the PyTorch reference.
    keys = iter(jax.random.split(key, 200))
    p = {}
    # BrandConditioningLayer
    p["bp_w1"], p["bp_b1"] = _init_linear(next(keys), brand_dim, hidden, weight_dtype)
    p["bp_w2"], p["bp_b2"] = _init_linear(next(keys), hidden, style_dim, weight_dtype)
    p["bn_g"] = jnp.ones((style_dim,), jnp.float32)
    p["bn_b"] = jnp.zeros((style_dim,), jnp.float32)
    p["ct_emb"] = jax.random.normal(next(keys), (n_content_types, style_dim), jnp.float32) * 0.02
    p["cf_w1"], p["cf_b1"] = _init_linear(next(keys), style_dim * 2, hidden, weight_dtype)
    p["cf_w2"], p["cf_b2"] = _init_linear(next(keys), hidden, hidden, weight_dtype)
    # TextGenerator
    p["text_emb"] = jax.random.normal(next(keys), (vocab, hidden), jnp.float32) * 0.02
    p["pos_enc"] = jax.random.normal(next(keys), (max_seq, hidden), jnp.float32) * 0.02
    layers = []
    for _ in range(num_layers):
        lp = {"self_attn": _prep_attn(keys, hidden, num_heads, weight_dtype),
              "cross_attn": _prep_attn(keys, hidden, num_heads, weight_dtype)}
        lp["ff_w1"], lp["ff_b1"] = _init_linear(next(keys), hidden, hidden * 4, weight_dtype)
        lp["ff_w2"], lp["ff_b2"] = _init_linear(next(keys), hidden * 4, hidden, weight_dtype)
        for n in ("ln1", "ln2", "ln3"):
            lp[f"{n}_g"] = jnp.ones((hidden,), jnp.float32)
            lp[f"{n}_b"] = jnp.zeros((hidden,), jnp.float32)
        layers.append(lp)
    p["layers"] = layers
    p["out_w"], p["out_b"] = _init_linear(next(keys), hidden, vocab, weight_dtype)
    # ImageLayoutGenerator
    p["lg_w1"], p["lg_b1"] = _init_linear(next(keys), hidden, hidden, weight_dtype)
    p["lg_w2"], p["lg_b2"] = _init_linear(next(keys), hidden, layout_dim, weight_dtype)
    p["lg_w3"], p["lg_b3"] = _init_linear(next(keys), layout_dim, image_dim, weight_dtype)
    p["cg_w1"], p["cg_b1"] = _init_linear(next(keys), hidden, hidden // 2, weight_dtype)
    p["cg_w2"], p["cg_b2"] = _init_linear(next(keys), hidden // 2, 15, weight_dtype)
    p["tg_w1"], p["tg_b1"] = _init_linear(next(keys), hidden, hidden // 2, weight_dtype)
    p["tg_w2"], p["tg_b2"] = _init_linear(next(keys), hidden // 2, 64, weight_dtype)
    # quality scorer
    p["qs_w1"], p["qs_b1"] = _init_linear(next(keys), hidden, hidden // 2, weight_dtype)
    p["qs_w2"], p["qs_b2"] = _init_linear(next(keys), hidden // 2, 1, weight_dtype)
    return p


# ----------------------------------------------------------------------------
if __name__ == "__main__":
    # Small, lane-friendly config consistent with ContentGeneratorArgs structure.
    HIDDEN = 128
    NUM_LAYERS = 2
    NUM_HEADS = 4
    MAX_SEQ = 32
    VOCAB = 512
    IMAGE_DIM = 128
    LAYOUT_DIM = 64
    BRAND_DIM = 128
    STYLE_DIM = 64
    N_CONTENT_TYPES = 5
    BATCH, SEQ = 2, 8

    params = init_params(
        jax.random.PRNGKey(42), hidden=HIDDEN, num_layers=NUM_LAYERS, num_heads=NUM_HEADS,
        brand_dim=BRAND_DIM, style_dim=STYLE_DIM, layout_dim=LAYOUT_DIM,
        image_dim=IMAGE_DIM, vocab=VOCAB, max_seq=MAX_SEQ,
        n_content_types=N_CONTENT_TYPES)

    k_bp, k_ct, k_ids = jax.random.split(jax.random.PRNGKey(0), 3)
    brand_profile = jax.random.normal(k_bp, (BATCH, BRAND_DIM), jnp.float32)
    content_type_ids = jax.random.randint(k_ct, (BATCH,), 0, N_CONTENT_TYPES, jnp.int32)
    input_ids = jax.random.randint(k_ids, (BATCH, SEQ), 0, VOCAB, jnp.int32)

    fwd = jax.jit(functools.partial(content_generator_forward,
                                    num_heads=NUM_HEADS, generate_images=True))
    outputs = jax.block_until_ready(fwd(params, brand_profile, content_type_ids, input_ids))

    assert outputs["conditioning_vector"].shape == (BATCH, HIDDEN)
    assert outputs["text_logits"].shape == (BATCH, SEQ, VOCAB)
    assert outputs["layout_features"].shape == (BATCH, IMAGE_DIM)
    assert outputs["color_scheme"].shape == (BATCH, 5, 3)
    assert outputs["typography_params"].shape == (BATCH, 64)
    assert outputs["quality_score"].shape == (BATCH, 1)
    assert bool(jnp.all(jnp.isfinite(outputs["text_logits"])))
    # TODO(synk): dropout layers are identity here (eval mode); train-mode dropout is stochastic.
    print("KERNEL_OK")
</pallas_src>

<mosaic_0001>
module attributes {stable_mosaic.version = 11 : i64} {
  func.func @_ffn_block_kernel(%arg0: i32, %arg1: memref<16x128xf32, #tpu.memory_space<vmem>>, %arg2: memref<128x512xf32, #tpu.memory_space<vmem>>, %arg3: memref<1x512xf32, #tpu.memory_space<vmem>>, %arg4: memref<512x128xf32, #tpu.memory_space<vmem>>, %arg5: memref<1x128xf32, #tpu.memory_space<vmem>>, %arg6: memref<1x128xf32, #tpu.memory_space<vmem>>, %arg7: memref<1x128xf32, #tpu.memory_space<vmem>>, %arg8: memref<16x128xf32, #tpu.memory_space<vmem>>) attributes {dimension_semantics = [#tpu.dimension_semantics<parallel>], iteration_bounds = array<i64: 1>, scalar_prefetch = 0 : i64, scratch_operands = 0 : i64, tpu.core_type = #tpu.core_type<tc>, window_params = [{transform_indices = @transform_0, window_bounds = array<i64: 16, 128>}, {pipeline_mode = #tpu.pipeline_mode<synchronous>, transform_indices = @transform_1, window_bounds = array<i64: 128, 512>}, {pipeline_mode = #tpu.pipeline_mode<synchronous>, transform_indices = @transform_2, window_bounds = array<i64: 1, 512>}, {pipeline_mode = #tpu.pipeline_mode<synchronous>, transform_indices = @transform_3, window_bounds = array<i64: 512, 128>}, {pipeline_mode = #tpu.pipeline_mode<synchronous>, transform_indices = @transform_4, window_bounds = array<i64: 1, 128>}, {pipeline_mode = #tpu.pipeline_mode<synchronous>, transform_indices = @transform_5, window_bounds = array<i64: 1, 128>}, {pipeline_mode = #tpu.pipeline_mode<synchronous>, transform_indices = @transform_6, window_bounds = array<i64: 1, 128>}, {transform_indices = @transform_7, window_bounds = array<i64: 16, 128>}]} {
    %c0 = arith.constant 0 : index
    %c0_0 = arith.constant 0 : index
    %0 = vector.load %arg1[%c0, %c0_0] : memref<16x128xf32, #tpu.memory_space<vmem>>, vector<16x128xf32>
    %c0_1 = arith.constant 0 : index
    %c0_2 = arith.constant 0 : index
    %1 = vector.load %arg2[%c0_1, %c0_2] : memref<128x512xf32, #tpu.memory_space<vmem>>, vector<128x512xf32>
    %cst = arith.constant dense<0.000000e+00> : vector<16x512xf32>
    %2 = tpu.matmul %0, %1, %cst {dimension_numbers = #tpu.dot_dimension_numbers<[1], [0], [0], [1], [0, 0, 1, 1], [], []>} : vector<16x128xf32>, vector<128x512xf32>, vector<16x512xf32> -> vector<16x512xf32>
    %c0_3 = arith.constant 0 : index
    %c0_4 = arith.constant 0 : index
    %3 = vector.load %arg3[%c0_3, %c0_4] : memref<1x512xf32, #tpu.memory_space<vmem>>, vector<1x512xf32>
    %4 = vector.broadcast %3 : vector<1x512xf32> to vector<16x512xf32>
    %5 = arith.addf %2, %4 : vector<16x512xf32>
    %cst_5 = arith.constant 0.000000e+00 : f32
    %6 = vector.broadcast %cst_5 : f32 to vector<16x512xf32>
    %7 = arith.maximumf %5, %6 : vector<16x512xf32>
    %c0_6 = arith.constant 0 : index
    %c0_7 = arith.constant 0 : index
    %8 = vector.load %arg4[%c0_6, %c0_7] : memref<512x128xf32, #tpu.memory_space<vmem>>, vector<512x128xf32>
    %cst_8 = arith.constant dense<0.000000e+00> : vector<16x128xf32>
    %9 = tpu.matmul %7, %8, %cst_8 {dimension_numbers = #tpu.dot_dimension_numbers<[1], [0], [0], [1], [0, 0, 1, 1], [], []>} : vector<16x512xf32>, vector<512x128xf32>, vector<16x128xf32> -> vector<16x128xf32>
    %c0_9 = arith.constant 0 : index
    %c0_10 = arith.constant 0 : index
    %10 = vector.load %arg5[%c0_9, %c0_10] : memref<1x128xf32, #tpu.memory_space<vmem>>, vector<1x128xf32>
    %11 = vector.broadcast %10 : vector<1x128xf32> to vector<16x128xf32>
    %12 = arith.addf %9, %11 : vector<16x128xf32>
    %13 = arith.addf %12, %0 : vector<16x128xf32>
    %c0_11 = arith.constant 0 : index
    %c0_12 = arith.constant 0 : index
    %14 = vector.load %arg6[%c0_11, %c0_12] : memref<1x128xf32, #tpu.memory_space<vmem>>, vector<1x128xf32>
    %c0_13 = arith.constant 0 : index
    %c0_14 = arith.constant 0 : index
    %15 = vector.load %arg7[%c0_13, %c0_14] : memref<1x128xf32, #tpu.memory_space<vmem>>, vector<1x128xf32>
    %cst_15 = arith.constant dense<0.000000e+00> : vector<16xf32>
    %16 = vector.multi_reduction <add>, %13, %cst_15 [1] : vector<16x128xf32> to vector<16xf32>
    %17 = vector.shape_cast %16 : vector<16xf32> to vector<16x1xf32>
    %cst_16 = arith.constant 1.280000e+02 : f32
    %18 = vector.broadcast %cst_16 : f32 to vector<16x1xf32>
    %19 = arith.divf %17, %18 : vector<16x1xf32>
    %20 = vector.broadcast %19 : vector<16x1xf32> to vector<16x128xf32>
    %21 = arith.subf %13, %20 : vector<16x128xf32>
    %22 = arith.mulf %21, %21 : vector<16x128xf32>
    %cst_17 = arith.constant dense<0.000000e+00> : vector<16xf32>
    %23 = vector.multi_reduction <add>, %22, %cst_17 [1] : vector<16x128xf32> to vector<16xf32>
    %24 = vector.shape_cast %23 : vector<16xf32> to vector<16x1xf32>
    %cst_18 = arith.constant 1.280000e+02 : f32
    %25 = vector.broadcast %cst_18 : f32 to vector<16x1xf32>
    %26 = arith.divf %24, %25 : vector<16x1xf32>
    %27 = vector.broadcast %19 : vector<16x1xf32> to vector<16x128xf32>
    %28 = arith.subf %13, %27 : vector<16x128xf32>
    %cst_19 = arith.constant 9.99999974E-6 : f32
    %29 = vector.broadcast %cst_19 : f32 to vector<16x1xf32>
    %30 = arith.addf %26, %29 : vector<16x1xf32>
    %31 = math.rsqrt %30 : vector<16x1xf32>
    %32 = vector.broadcast %31 : vector<16x1xf32> to vector<16x128xf32>
    %33 = arith.mulf %28, %32 : vector<16x128xf32>
    %34 = vector.broadcast %14 : vector<1x128xf32> to vector<16x128xf32>
    %35 = arith.mulf %33, %34 : vector<16x128xf32>
    %36 = vector.broadcast %15 : vector<1x128xf32> to vector<16x128xf32>
    %37 = arith.addf %35, %36 : vector<16x128xf32>
    %c0_20 = arith.constant 0 : index
    %c0_21 = arith.constant 0 : index
    %38 = vector.load %arg8[%c0_20, %c0_21] : memref<16x128xf32, #tpu.memory_space<vmem>>, vector<16x128xf32>
    tpu.vector_store %arg8[%c0_20, %c0_21], %37 {strides = array<i32>} : memref<16x128xf32, #tpu.memory_space<vmem>>, vector<16x128xf32>,
    return
  }
  func.func @transform_0(%arg0: i32) -> (i32, i32) {
    %c0_i32 = arith.constant 0 : i32
    %c0_i32_0 = arith.constant 0 : i32
    return %arg0, %c0_i32 : i32, i32
  }
  func.func @transform_1(%arg0: i32) -> (i32, i32) {
    %c0_i32 = arith.constant 0 : i32
    %c0_i32_0 = arith.constant 0 : i32
    %c0_i32_1 = arith.constant 0 : i32
    return %c0_i32, %c0_i32_0 : i32, i32
  }
  func.func @transform_2(%arg0: i32) -> (i32, i32) {
    %c0_i32 = arith.constant 0 : i32
    %c0_i32_0 = arith.constant 0 : i32
    %c0_i32_1 = arith.constant 0 : i32
    return %c0_i32, %c0_i32_0 : i32, i32
  }
  func.func @transform_3(%arg0: i32) -> (i32, i32) {
    %c0_i32 = arith.constant 0 : i32
    %c0_i32_0 = arith.constant 0 : i32
    %c0_i32_1 = arith.constant 0 : i32
    return %c0_i32, %c0_i32_0 : i32, i32
  }
  func.func @transform_4(%arg0: i32) -> (i32, i32) {
    %c0_i32 = arith.constant 0 : i32
    %c0_i32_0 = arith.constant 0 : i32
    %c0_i32_1 = arith.constant 0 : i32
    return %c0_i32, %c0_i32_0 : i32, i32
  }
  func.func @transform_5(%arg0: i32) -> (i32, i32) {
    %c0_i32 = arith.constant 0 : i32
    %c0_i32_0 = arith.constant 0 : i32
    %c0_i32_1 = arith.constant 0 : i32
    return %c0_i32, %c0_i32_0 : i32, i32
  }
  func.func @transform_6(%arg0: i32) -> (i32, i32) {
    %c0_i32 = arith.constant 0 : i32
    %c0_i32_0 = arith.constant 0 : i32
    %c0_i32_1 = arith.constant 0 : i32
    return %c0_i32, %c0_i32_0 : i32, i32
  }
  func.func @transform_7(%arg0: i32) -> (i32, i32) {
    %c0_i32 = arith.constant 0 : i32
    %c0_i32_0 = arith.constant 0 : i32
    return %arg0, %c0_i32 : i32, i32
  }
}

module attributes {stable_mosaic.version = 11 : i64} {
  func.func @_mha_cross_kernel(%arg0: i32, %arg1: memref<1x8x128xf32, #tpu.memory_space<vmem>>, %arg2: memref<1x8x128xf32, #tpu.memory_space<vmem>>, %arg3: memref<4x128x32xf32, #tpu.memory_space<vmem>>, %arg4: memref<4x1x32xf32, #tpu.memory_space<vmem>>, %arg5: memref<4x128x32xf32, #tpu.memory_space<vmem>>, %arg6: memref<4x1x32xf32, #tpu.memory_space<vmem>>, %arg7: memref<4x128x32xf32, #tpu.memory_space<vmem>>, %arg8: memref<4x1x32xf32, #tpu.memory_space<vmem>>, %arg9: memref<128x128xf32, #tpu.memory_space<vmem>>, %arg10: memref<1x128xf32, #tpu.memory_space<vmem>>, %arg11: memref<1x128xf32, #tpu.memory_space<vmem>>, %arg12: memref<1x128xf32, #tpu.memory_space<vmem>>, %arg13: memref<1x8x128xf32, #tpu.memory_space<vmem>>) attributes {dimension_semantics = [#tpu.dimension_semantics<parallel>], iteration_bounds = array<i64: 2>, scalar_prefetch = 0 : i64, scratch_operands = 0 : i64, tpu.core_type = #tpu.core_type<tc>, window_params = [{transform_indices = @transform_0, window_bounds = array<i64: 1, 8, 128>}, {transform_indices = @transform_1, window_bounds = array<i64: 1, 8, 128>}, {pipeline_mode = #tpu.pipeline_mode<synchronous>, transform_indices = @transform_2, window_bounds = array<i64: 4, 128, 32>}, {pipeline_mode = #tpu.pipeline_mode<synchronous>, transform_indices = @transform_3, window_bounds = array<i64: 4, 1, 32>}, {pipeline_mode = #tpu.pipeline_mode<synchronous>, transform_indices = @transform_4, window_bounds = array<i64: 4, 128, 32>}, {pipeline_mode = #tpu.pipeline_mode<synchronous>, transform_indices = @transform_5, window_bounds = array<i64: 4, 1, 32>}, {pipeline_mode = #tpu.pipeline_mode<synchronous>, transform_indices = @transform_6, window_bounds = array<i64: 4, 128, 32>}, {pipeline_mode = #tpu.pipeline_mode<synchronous>, transform_indices = @transform_7, window_bounds = array<i64: 4, 1, 32>}, {pipeline_mode = #tpu.pipeline_mode<synchronous>, transform_indices = @transform_8, window_bounds = array<i64: 128, 128>}, {pipeline_mode = #tpu.pipeline_mode<synchronous>, transform_indices = @transform_9, window_bounds = array<i64: 1, 128>}, {pipeline_mode = #tpu.pipeline_mode<synchronous>, transform_indices = @transform_10, window_bounds = array<i64: 1, 128>}, {pipeline_mode = #tpu.pipeline_mode<synchronous>, transform_indices = @transform_11, window_bounds = array<i64: 1, 128>}, {transform_indices = @transform_12, window_bounds = array<i64: 1, 8, 128>}]} {
    %c0 = arith.constant 0 : index
    %c0_0 = arith.constant 0 : index
    %c0_1 = arith.constant 0 : index
    %0 = vector.load %arg1[%c0, %c0_0, %c0_1] : memref<1x8x128xf32, #tpu.memory_space<vmem>>, vector<1x8x128xf32>
    %1 = vector.shape_cast %0 : vector<1x8x128xf32> to vector<8x128xf32>
    %c0_2 = arith.constant 0 : index
    %c0_3 = arith.constant 0 : index
    %c0_4 = arith.constant 0 : index
    %2 = vector.load %arg2[%c0_2, %c0_3, %c0_4] : memref<1x8x128xf32, #tpu.memory_space<vmem>>, vector<1x8x128xf32>
    %3 = vector.shape_cast %2 : vector<1x8x128xf32> to vector<8x128xf32>
    %c0_5 = arith.constant 0 : index
    %c0_6 = arith.constant 0 : index
    %c0_7 = arith.constant 0 : index
    %4 = vector.load %arg3[%c0_5, %c0_6, %c0_7] : memref<4x128x32xf32, #tpu.memory_space<vmem>>, vector<1x128x32xf32>
    %5 = vector.shape_cast %4 : vector<1x128x32xf32> to vector<128x32xf32>
    %cst = arith.constant dense<0.000000e+00> : vector<8x32xf32>
    %6 = tpu.matmul %1, %5, %cst {dimension_numbers = #tpu.dot_dimension_numbers<[1], [0], [0], [1], [0, 0, 1, 1], [], []>} : vector<8x128xf32>, vector<128x32xf32>, vector<8x32xf32> -> vector<8x32xf32>
    %c0_8 = arith.constant 0 : index
    %c0_9 = arith.constant 0 : index
    %c0_10 = arith.constant 0 : index
    %7 = vector.load %arg4[%c0_8, %c0_9, %c0_10] : memref<4x1x32xf32, #tpu.memory_space<vmem>>, vector<1x1x32xf32>
    %8 = vector.shape_cast %7 : vector<1x1x32xf32> to vector<1x32xf32>
    %9 = vector.broadcast %8 : vector<1x32xf32> to vector<8x32xf32>
    %10 = arith.addf %6, %9 : vector<8x32xf32>
    %c0_11 = arith.constant 0 : index
    %c0_12 = arith.constant 0 : index
    %c0_13 = arith.constant 0 : index
    %11 = vector.load %arg5[%c0_11, %c0_12, %c0_13] : memref<4x128x32xf32, #tpu.memory_space<vmem>>, vector<1x128x32xf32>
    %12 = vector.shape_cast %11 : vector<1x128x32xf32> to vector<128x32xf32>
    %cst_14 = arith.constant dense<0.000000e+00> : vector<8x32xf32>
    %13 = tpu.matmul %3, %12, %cst_14 {dimension_numbers = #tpu.dot_dimension_numbers<[1], [0], [0], [1], [0, 0, 1, 1], [], []>} : vector<8x128xf32>, vector<128x32xf32>, vector<8x32xf32> -> vector<8x32xf32>
    %c0_15 = arith.constant 0 : index
    %c0_16 = arith.constant 0 : index
    %c0_17 = arith.constant 0 : index
    %14 = vector.load %arg6[%c0_15, %c0_16, %c0_17] : memref<4x1x32xf32, #tpu.memory_space<vmem>>, vector<1x1x32xf32>
    %15 = vector.shape_cast %14 : vector<1x1x32xf32> to vector<1x32xf32>
    %16 = vector.broadcast %15 : vector<1x32xf32> to vector<8x32xf32>
    %17 = arith.addf %13, %16 : vector<8x32xf32>
    %c0_18 = arith.constant 0 : index
    %c0_19 = arith.constant 0 : index
    %c0_20 = arith.constant 0 : index
    %18 = vector.load %arg7[%c0_18, %c0_19, %c0_20] : memref<4x128x32xf32, #tpu.memory_space<vmem>>, vector<1x128x32xf32>
    %19 = vector.shape_cast %18 : vector<1x128x32xf32> to vector<128x32xf32>
    %cst_21 = arith.constant dense<0.000000e+00> : vector<8x32xf32>
    %20 = tpu.matmul %3, %19, %cst_21 {dimension_numbers = #tpu.dot_dimension_numbers<[1], [0], [0], [1], [0, 0, 1, 1], [], []>} : vector<8x128xf32>, vector<128x32xf32>, vector<8x32xf32> -> vector<8x32xf32>
    %c0_22 = arith.constant 0 : index
    %c0_23 = arith.constant 0 : index
    %c0_24 = arith.constant 0 : index
    %21 = vector.load %arg8[%c0_22, %c0_23, %c0_24] : memref<4x1x32xf32, #tpu.memory_space<vmem>>, vector<1x1x32xf32>
    %22 = vector.shape_cast %21 : vector<1x1x32xf32> to vector<1x32xf32>
    %23 = vector.broadcast %22 : vector<1x32xf32> to vector<8x32xf32>
    %24 = arith.addf %20, %23 : vector<8x32xf32>
    %cst_25 = arith.constant dense<0.000000e+00> : vector<8x8xf32>
    %25 = tpu.matmul %10, %17, %cst_25 {dimension_numbers = #tpu.dot_dimension_numbers<[1], [1], [0], [0], [0, 0, 1, 0], [], []>} : vector<8x32xf32>, vector<8x32xf32>, vector<8x8xf32> -> vector<8x8xf32>
    %cst_26 = arith.constant dense<0xFF800000> : vector<8xf32>
    %26 = vector.multi_reduction <maximumf>, %25, %cst_26 [1] : vector<8x8xf32> to vector<8xf32>
    %27 = vector.shape_cast %26 : vector<8xf32> to vector<8x1xf32>
    %28 = vector.broadcast %27 : vector<8x1xf32> to vector<8x8xf32>
    %29 = arith.subf %25, %28 : vector<8x8xf32>
    %30 = math.exp %29 : vector<8x8xf32>
    %cst_27 = arith.constant dense<0.000000e+00> : vector<8xf32>
    %31 = vector.multi_reduction <add>, %30, %cst_27 [1] : vector<8x8xf32> to vector<8xf32>
    %32 = vector.shape_cast %31 : vector<8xf32> to vector<8x1xf32>
    %33 = vector.broadcast %32 : vector<8x1xf32> to vector<8x8xf32>
    %34 = arith.divf %30, %33 : vector<8x8xf32>
    %cst_28 = arith.constant dense<0.000000e+00> : vector<8x32xf32>
    %35 = tpu.matmul %34, %24, %cst_28 {dimension_numbers = #tpu.dot_dimension_numbers<[1], [0], [0], [1], [0, 0, 1, 1], [], []>} : vector<8x8xf32>, vector<8x32xf32>, vector<8x32xf32> -> vector<8x32xf32>
    %c1 = arith.constant 1 : index
    %c0_29 = arith.constant 0 : index
    %c0_30 = arith.constant 0 : index
    %36 = vector.load %arg3[%c1, %c0_29, %c0_30] : memref<4x128x32xf32, #tpu.memory_space<vmem>>, vector<1x128x32xf32>
    %37 = vector.shape_cast %36 : vector<1x128x32xf32> to vector<128x32xf32>
    %cst_31 = arith.constant dense<0.000000e+00> : vector<8x32xf32>
    %38 = tpu.matmul %1, %37, %cst_31 {dimension_numbers = #tpu.dot_dimension_numbers<[1], [0], [0], [1], [0, 0, 1, 1], [], []>} : vector<8x128xf32>, vector<128x32xf32>, vector<8x32xf32> -> vector<8x32xf32>
    %c1_32 = arith.constant 1 : index
    %c0_33 = arith.constant 0 : index
    %c0_34 = arith.constant 0 : index
    %39 = vector.load %arg4[%c1_32, %c0_33, %c0_34] : memref<4x1x32xf32, #tpu.memory_space<vmem>>, vector<1x1x32xf32>
    %40 = vector.shape_cast %39 : vector<1x1x32xf32> to vector<1x32xf32>
    %41 = vector.broadcast %40 : vector<1x32xf32> to vector<8x32xf32>
    %42 = arith.addf %38, %41 : vector<8x32xf32>
    %c1_35 = arith.constant 1 : index
    %c0_36 = arith.constant 0 : index
    %c0_37 = arith.constant 0 : index
    %43 = vector.load %arg5[%c1_35, %c0_36, %c0_37] : memref<4x128x32xf32, #tpu.memory_space<vmem>>, vector<1x128x32xf32>
    %44 = vector.shape_cast %43 : vector<1x128x32xf32> to vector<128x32xf32>
    %cst_38 = arith.constant dense<0.000000e+00> : vector<8x32xf32>
    %45 = tpu.matmul %3, %44, %cst_38 {dimension_numbers = #tpu.dot_dimension_numbers<[1], [0], [0], [1], [0, 0, 1, 1], [], []>} : vector<8x128xf32>, vector<128x32xf32>, vector<8x32xf32> -> vector<8x32xf32>
    %c1_39 = arith.constant 1 : index
    %c0_40 = arith.constant 0 : index
    %c0_41 = arith.constant 0 : index
    %46 = vector.load %arg6[%c1_39, %c0_40, %c0_41] : memref<4x1x32xf32, #tpu.memory_space<vmem>>, vector<1x1x32xf32>
    %47 = vector.shape_cast %46 : vector<1x1x32xf32> to vector<1x32xf32>
    %48 = vector.broadcast %47 : vector<1x32xf32> to vector<8x32xf32>
    %49 = arith.addf %45, %48 : vector<8x32xf32>
    %c1_42 = arith.constant 1 : index
    %c0_43 = arith.constant 0 : index
    %c0_44 = arith.constant 0 : index
    %50 = vector.load %arg7[%c1_42, %c0_43, %c0_44] : memref<4x128x32xf32, #tpu.memory_space<vmem>>, vector<1x128x32xf32>
    %51 = vector.shape_cast %50 : vector<1x128x32xf32> to vector<128x32xf32>
    %cst_45 = arith.constant dense<0.000000e+00> : vector<8x32xf32>
    %52 = tpu.matmul %3, %51, %cst_45 {dimension_numbers = #tpu.dot_dimension_numbers<[1], [0], [0], [1], [0, 0, 1, 1], [], []>} : vector<8x128xf32>, vector<128x32xf32>, vector<8x32xf32> -> vector<8x32xf32>
    %c1_46 = arith.constant 1 : index
    %c0_47 = arith.constant 0 : index
    %c0_48 = arith.constant 0 : index
    %53 = vector.load %arg8[%c1_46, %c0_47, %c0_48] : memref<4x1x32xf32, #tpu.memory_space<vmem>>, vector<1x1x32xf32>
    %54 = vector.shape_cast %53 : vector<1x1x32xf32> to vector<1x32xf32>
    %55 = vector.broadcast %54 : vector<1x32xf32> to vector<8x32xf32>
    %56 = arith.addf %52, %55 : vector<8x32xf32>
    %cst_49 = arith.constant dense<0.000000e+00> : vector<8x8xf32>
    %57 = tpu.matmul %42, %49, %cst_49 {dimension_numbers = #tpu.dot_dimension_numbers<[1], [1], [0], [0], [0, 0, 1, 0], [], []>} : vector<8x32xf32>, vector<8x32xf32>, vector<8x8xf32> -> vector<8x8xf32>
    %cst_50 = arith.constant dense<0xFF800000> : vector<8xf32>
    %58 = vector.multi_reduction <maximumf>, %57, %cst_50 [1] : vector<8x8xf32> to vector<8xf32>
    %59 = vector.shape_cast %58 : vector<8xf32> to vector<8x1xf32>
    %60 = vector.broadcast %59 : vector<8x1xf32> to vector<8x8xf32>
    %61 = arith.subf %57, %60 : vector<8x8xf32>
    %62 = math.exp %61 : vector<8x8xf32>
    %cst_51 = arith.constant dense<0.000000e+00> : vector<8xf32>
    %63 = vector.multi_reduction <add>, %62, %cst_51 [1] : vector<8x8xf32> to vector<8xf32>
    %64 = vector.shape_cast %63 : vector<8xf32> to vector<8x1xf32>
    %65 = vector.broadcast %64 : vector<8x1xf32> to vector<8x8xf32>
    %66 = arith.divf %62, %65 : vector<8x8xf32>
    %cst_52 = arith.constant dense<0.000000e+00> : vector<8x32xf32>
    %67 = tpu.matmul %66, %56, %cst_52 {dimension_numbers = #tpu.dot_dimension_numbers<[1], [0], [0], [1], [0, 0, 1, 1], [], []>} : vector<8x8xf32>, vector<8x32xf32>, vector<8x32xf32> -> vector<8x32xf32>
    %c2 = arith.constant 2 : index
    %c0_53 = arith.constant 0 : index
    %c0_54 = arith.constant 0 : index
    %68 = vector.load %arg3[%c2, %c0_53, %c0_54] : memref<4x128x32xf32, #tpu.memory_space<vmem>>, vector<1x128x32xf32>
    %69 = vector.shape_cast %68 : vector<1x128x32xf32> to vector<128x32xf32>
    %cst_55 = arith.constant dense<0.000000e+00> : vector<8x32xf32>
    %70 = tpu.matmul %1, %69, %cst_55 {dimension_numbers = #tpu.dot_dimension_numbers<[1], [0], [0], [1], [0, 0, 1, 1], [], []>} : vector<8x128xf32>, vector<128x32xf32>, vector<8x32xf32> -> vector<8x32xf32>
    %c2_56 = arith.constant 2 : index
    %c0_57 = arith.constant 0 : index
    %c0_58 = arith.constant 0 : index
    %71 = vector.load %arg4[%c2_56, %c0_57, %c0_58] : memref<4x1x32xf32, #tpu.memory_space<vmem>>, vector<1x1x32xf32>
    %72 = vector.shape_cast %71 : vector<1x1x32xf32> to vector<1x32xf32>
    %73 = vector.broadcast %72 : vector<1x32xf32> to vector<8x32xf32>
    %74 = arith.addf %70, %73 : vector<8x32xf32>
    %c2_59 = arith.constant 2 : index
    %c0_60 = arith.constant 0 : index
    %c0_61 = arith.constant 0 : index
    %75 = vector.load %arg5[%c2_59, %c0_60, %c0_61] : memref<4x128x32xf32, #tpu.memory_space<vmem>>, vector<1x128x32xf32>
    %76 = vector.shape_cast %75 : vector<1x128x32xf32> to vector<128x32xf32>
    %cst_62 = arith.constant dense<0.000000e+00> : vector<8x32xf32>
    %77 = tpu.matmul %3, %76, %cst_62 {dimension_numbers = #tpu.dot_dimension_numbers<[1], [0], [0], [1], [0, 0, 1, 1], [], []>} : vector<8x128xf32>, vector<128x32xf32>, vector<8x32xf32> -> vector<8x32xf32>
    %c2_63 = arith.constant 2 : index
    %c0_64 = arith.constant 0 : index
    %c0_65 = arith.constant 0 : index
    %78 = vector.load %arg6[%c2_63, %c0_64, %c0_65] : memref<4x1x32xf32, #tpu.memory_space<vmem>>, vector<1x1x32xf32>
    %79 = vector.shape_cast %78 : vector<1x1x32xf32> to vector<1x32xf32>
    %80 = vector.broadcast %79 : vector<1x32xf32> to vector<8x32xf32>
    %81 = arith.addf %77, %80 : vector<8x32xf32>
    %c2_66 = arith.constant 2 : index
    %c0_67 = arith.constant 0 : index
    %c0_68 = arith.constant 0 : index
    %82 = vector.load %arg7[%c2_66, %c0_67, %c0_68] : memref<4x128x32xf32, #tpu.memory_space<vmem>>, vector<1x128x32xf32>
    %83 = vector.shape_cast %82 : vector<1x128x32xf32> to vector<128x32xf32>
    %cst_69 = arith.constant dense<0.000000e+00> : vector<8x32xf32>
    %84 = tpu.matmul %3, %83, %cst_69 {dimension_numbers = #tpu.dot_dimension_numbers<[1], [0], [0], [1], [0, 0, 1, 1], [], []>} : vector<8x128xf32>, vector<128x32xf32>, vector<8x32xf32> -> vector<8x32xf32>
    %c2_70 = arith.constant 2 : index
    %c0_71 = arith.constant 0 : index
    %c0_72 = arith.constant 0 : index
    %85 = vector.load %arg8[%c2_70, %c0_71, %c0_72] : memref<4x1x32xf32, #tpu.memory_space<vmem>>, vector<1x1x32xf32>
    %86 = vector.shape_cast %85 : vector<1x1x32xf32> to vector<1x32xf32>
    %87 = vector.broadcast %86 : vector<1x32xf32> to vector<8x32xf32>
    %88 = arith.addf %84, %87 : vector<8x32xf32>
    %cst_73 = arith.constant dense<0.000000e+00> : vector<8x8xf32>
    %89 = tpu.matmul %74, %81, %cst_73 {dimension_numbers = #tpu.dot_dimension_numbers<[1], [1], [0], [0], [0, 0, 1, 0], [], []>} : vector<8x32xf32>, vector<8x32xf32>, vector<8x8xf32> -> vector<8x8xf32>
    %cst_74 = arith.constant dense<0xFF800000> : vector<8xf32>
    %90 = vector.multi_reduction <maximumf>, %89, %cst_74 [1] : vector<8x8xf32> to vector<8xf32>
    %91 = vector.shape_cast %90 : vector<8xf32> to vector<8x1xf32>
    %92 = vector.broadcast %91 : vector<8x1xf32> to vector<8x8xf32>
    %93 = arith.subf %89, %92 : vector<8x8xf32>
    %94 = math.exp %93 : vector<8x8xf32>
    %cst_75 = arith.constant dense<0.000000e+00> : vector<8xf32>
    %95 = vector.multi_reduction <add>, %94, %cst_75 [1] : vector<8x8xf32> to vector<8xf32>
    %96 = vector.shape_cast %95 : vector<8xf32> to vector<8x1xf32>
    %97 = vector.broadcast %96 : vector<8x1xf32> to vector<8x8xf32>
    %98 = arith.divf %94, %97 : vector<8x8xf32>
    %cst_76 = arith.constant dense<0.000000e+00> : vector<8x32xf32>
    %99 = tpu.matmul %98, %88, %cst_76 {dimension_numbers = #tpu.dot_dimension_numbers<[1], [0], [0], [1], [0, 0, 1, 1], [], []>} : vector<8x8xf32>, vector<8x32xf32>, vector<8x32xf32> -> vector<8x32xf32>
    %c3 = arith.constant 3 : index
    %c0_77 = arith.constant 0 : index
    %c0_78 = arith.constant 0 : index
    %100 = vector.load %arg3[%c3, %c0_77, %c0_78] : memref<4x128x32xf32, #tpu.memory_space<vmem>>, vector<1x128x32xf32>
    %101 = vector.shape_cast %100 : vector<1x128x32xf32> to vector<128x32xf32>
    %cst_79 = arith.constant dense<0.000000e+00> : vector<8x32xf32>
    %102 = tpu.matmul %1, %101, %cst_79 {dimension_numbers = #tpu.dot_dimension_numbers<[1], [0], [0], [1], [0, 0, 1, 1], [], []>} : vector<8x128xf32>, vector<128x32xf32>, vector<8x32xf32> -> vector<8x32xf32>
    %c3_80 = arith.constant 3 : index
    %c0_81 = arith.constant 0 : index
    %c0_82 = arith.constant 0 : index
    %103 = vector.load %arg4[%c3_80, %c0_81, %c0_82] : memref<4x1x32xf32, #tpu.memory_space<vmem>>, vector<1x1x32xf32>
    %104 = vector.shape_cast %103 : vector<1x1x32xf32> to vector<1x32xf32>
    %105 = vector.broadcast %104 : vector<1x32xf32> to vector<8x32xf32>
    %106 = arith.addf %102, %105 : vector<8x32xf32>
    %c3_83 = arith.constant 3 : index
    %c0_84 = arith.constant 0 : index
    %c0_85 = arith.constant 0 : index
    %107 = vector.load %arg5[%c3_83, %c0_84, %c0_85] : memref<4x128x32xf32, #tpu.memory_space<vmem>>, vector<1x128x32xf32>
    %108 = vector.shape_cast %107 : vector<1x128x32xf32> to vector<128x32xf32>
    %cst_86 = arith.constant dense<0.000000e+00> : vector<8x32xf32>
    %109 = tpu.matmul %3, %108, %cst_86 {dimension_numbers = #tpu.dot_dimension_numbers<[1], [0], [0], [1], [0, 0, 1, 1], [], []>} : vector<8x128xf32>, vector<128x32xf32>, vector<8x32xf32> -> vector<8x32xf32>
    %c3_87 = arith.constant 3 : index
    %c0_88 = arith.constant 0 : index
    %c0_89 = arith.constant 0 : index
    %110 = vector.load %arg6[%c3_87, %c0_88, %c0_89] : memref<4x1x32xf32, #tpu.memory_space<vmem>>, vector<1x1x32xf32>
    %111 = vector.shape_cast %110 : vector<1x1x32xf32> to vector<1x32xf32>
    %112 = vector.broadcast %111 : vector<1x32xf32> to vector<8x32xf32>
    %113 = arith.addf %109, %112 : vector<8x32xf32>
    %c3_90 = arith.constant 3 : index
    %c0_91 = arith.constant 0 : index
    %c0_92 = arith.constant 0 : index
    %114 = vector.load %arg7[%c3_90, %c0_91, %c0_92] : memref<4x128x32xf32, #tpu.memory_space<vmem>>, vector<1x128x32xf32>
    %115 = vector.shape_cast %114 : vector<1x128x32xf32> to vector<128x32xf32>
    %cst_93 = arith.constant dense<0.000000e+00> : vector<8x32xf32>
    %116 = tpu.matmul %3, %115, %cst_93 {dimension_numbers = #tpu.dot_dimension_numbers<[1], [0], [0], [1], [0, 0, 1, 1], [], []>} : vector<8x128xf32>, vector<128x32xf32>, vector<8x32xf32> -> vector<8x32xf32>
    %c3_94 = arith.constant 3 : index
    %c0_95 = arith.constant 0 : index
    %c0_96 = arith.constant 0 : index
    %117 = vector.load %arg8[%c3_94, %c0_95, %c0_96] : memref<4x1x32xf32, #tpu.memory_space<vmem>>, vector<1x1x32xf32>
    %118 = vector.shape_cast %117 : vector<1x1x32xf32> to vector<1x32xf32>
    %119 = vector.broadcast %118 : vector<1x32xf32> to vector<8x32xf32>
    %120 = arith.addf %116, %119 : vector<8x32xf32>
    %cst_97 = arith.constant dense<0.000000e+00> : vector<8x8xf32>
    %121 = tpu.matmul %106, %113, %cst_97 {dimension_numbers = #tpu.dot_dimension_numbers<[1], [1], [0], [0], [0, 0, 1, 0], [], []>} : vector<8x32xf32>, vector<8x32xf32>, vector<8x8xf32> -> vector<8x8xf32>
    %cst_98 = arith.constant dense<0xFF800000> : vector<8xf32>
    %122 = vector.multi_reduction <maximumf>, %121, %cst_98 [1] : vector<8x8xf32> to vector<8xf32>
    %123 = vector.shape_cast %122 : vector<8xf32> to vector<8x1xf32>
    %124 = vector.broadcast %123 : vector<8x1xf32> to vector<8x8xf32>
    %125 = arith.subf %121, %124 : vector<8x8xf32>
    %126 = math.exp %125 : vector<8x8xf32>
    %cst_99 = arith.constant dense<0.000000e+00> : vector<8xf32>
    %127 = vector.multi_reduction <add>, %126, %cst_99 [1] : vector<8x8xf32> to vector<8xf32>
    %128 = vector.shape_cast %127 : vector<8xf32> to vector<8x1xf32>
    %129 = vector.broadcast %128 : vector<8x1xf32> to vector<8x8xf32>
    %130 = arith.divf %126, %129 : vector<8x8xf32>
    %cst_100 = arith.constant dense<0.000000e+00> : vector<8x32xf32>
    %131 = tpu.matmul %130, %120, %cst_100 {dimension_numbers = #tpu.dot_dimension_numbers<[1], [0], [0], [1], [0, 0, 1, 1], [], []>} : vector<8x8xf32>, vector<8x32xf32>, vector<8x32xf32> -> vector<8x32xf32>
    %132 = tpu.concatenate %35, %67, %99, %131 in 1 : vector<8x32xf32>, vector<8x32xf32>, vector<8x32xf32>, vector<8x32xf32> -> vector<8x128xf32>
    %c0_101 = arith.constant 0 : index
    %c0_102 = arith.constant 0 : index
    %133 = vector.load %arg9[%c0_101, %c0_102] : memref<128x128xf32, #tpu.memory_space<vmem>>, vector<128x128xf32>
    %cst_103 = arith.constant dense<0.000000e+00> : vector<8x128xf32>
    %134 = tpu.matmul %132, %133, %cst_103 {dimension_numbers = #tpu.dot_dimension_numbers<[1], [0], [0], [1], [0, 0, 1, 1], [], []>} : vector<8x128xf32>, vector<128x128xf32>, vector<8x128xf32> -> vector<8x128xf32>
    %135 = arith.addf %1, %134 : vector<8x128xf32>
    %c0_104 = arith.constant 0 : index
    %c0_105 = arith.constant 0 : index
    %136 = vector.load %arg10[%c0_104, %c0_105] : memref<1x128xf32, #tpu.memory_space<vmem>>, vector<1x128xf32>
    %137 = vector.broadcast %136 : vector<1x128xf32> to vector<8x128xf32>
    %138 = arith.addf %135, %137 : vector<8x128xf32>
    %c0_106 = arith.constant 0 : index
    %c0_107 = arith.constant 0 : index
    %139 = vector.load %arg11[%c0_106, %c0_107] : memref<1x128xf32, #tpu.memory_space<vmem>>, vector<1x128xf32>
    %c0_108 = arith.constant 0 : index
    %c0_109 = arith.constant 0 : index
    %140 = vector.load %arg12[%c0_108, %c0_109] : memref<1x128xf32, #tpu.memory_space<vmem>>, vector<1x128xf32>
    %cst_110 = arith.constant dense<0.000000e+00> : vector<8xf32>
    %141 = vector.multi_reduction <add>, %138, %cst_110 [1] : vector<8x128xf32> to vector<8xf32>
    %142 = vector.shape_cast %141 : vector<8xf32> to vector<8x1xf32>
    %cst_111 = arith.constant 1.280000e+02 : f32
    %143 = vector.broadcast %cst_111 : f32 to vector<8x1xf32>
    %144 = arith.divf %142, %143 : vector<8x1xf32>
    %145 = vector.broadcast %144 : vector<8x1xf32> to vector<8x128xf32>
    %146 = arith.subf %138, %145 : vector<8x128xf32>
    %147 = arith.mulf %146, %146 : vector<8x128xf32>
    %cst_112 = arith.constant dense<0.000000e+00> : vector<8xf32>
    %148 = vector.multi_reduction <add>, %147, %cst_112 [1] : vector<8x128xf32> to vector<8xf32>
    %149 = vector.shape_cast %148 : vector<8xf32> to vector<8x1xf32>
    %cst_113 = arith.constant 1.280000e+02 : f32
    %150 = vector.broadcast %cst_113 : f32 to vector<8x1xf32>
    %151 = arith.divf %149, %150 : vector<8x1xf32>
    %152 = vector.broadcast %144 : vector<8x1xf32> to vector<8x128xf32>
    %153 = arith.subf %138, %152 : vector<8x128xf32>
    %cst_114 = arith.constant 9.99999974E-6 : f32
    %154 = vector.broadcast %cst_114 : f32 to vector<8x1xf32>
    %155 = arith.addf %151, %154 : vector<8x1xf32>
    %156 = math.rsqrt %155 : vector<8x1xf32>
    %157 = vector.broadcast %156 : vector<8x1xf32> to vector<8x128xf32>
    %158 = arith.mulf %153, %157 : vector<8x128xf32>
    %159 = vector.broadcast %139 : vector<1x128xf32> to vector<8x128xf32>
    %160 = arith.mulf %158, %159 : vector<8x128xf32>
    %161 = vector.broadcast %140 : vector<1x128xf32> to vector<8x128xf32>
    %162 = arith.addf %160, %161 : vector<8x128xf32>
    %c0_115 = arith.constant 0 : index
    %c0_116 = arith.constant 0 : index
    %c0_117 = arith.constant 0 : index
    %163 = vector.load %arg13[%c0_115, %c0_116, %c0_117] : memref<1x8x128xf32, #tpu.memory_space<vmem>>, vector<1x8x128xf32>
    %164 = vector.shape_cast %163 : vector<1x8x128xf32> to vector<8x128xf32>
    %165 = vector.shape_cast %162 : vector<8x128xf32> to vector<1x8x128xf32>
    tpu.vector_store %arg13[%c0_115, %c0_116, %c0_117], %165 {strides = array<i32>} : memref<1x8x128xf32, #tpu.memory_space<vmem>>, vector<1x8x128xf32>,
    return
  }
  func.func @transform_0(%arg0: i32) -> (i32, i32, i32) {
    %c0_i32 = arith.constant 0 : i32
    %c0_i32_0 = arith.constant 0 : i32
    %c0_i32_1 = arith.constant 0 : i32
    return %arg0, %c0_i32, %c0_i32_0 : i32, i32, i32
  }
  func.func @transform_1(%arg0: i32) -> (i32, i32, i32) {
    %c0_i32 = arith.constant 0 : i32
    %c0_i32_0 = arith.constant 0 : i32
    %c0_i32_1 = arith.constant 0 : i32
    return %arg0, %c0_i32, %c0_i32_0 : i32, i32, i32
  }
  func.func @transform_2(%arg0: i32) -> (i32, i32, i32) {
    %c0_i32 = arith.constant 0 : i32
    %c0_i32_0 = arith.constant 0 : i32
    %c0_i32_1 = arith.constant 0 : i32
    %c0_i32_2 = arith.constant 0 : i32
    return %c0_i32, %c0_i32_0, %c0_i32_1 : i32, i32, i32
  }
  func.func @transform_3(%arg0: i32) -> (i32, i32, i32) {
    %c0_i32 = arith.constant 0 : i32
    %c0_i32_0 = arith.constant 0 : i32
    %c0_i32_1 = arith.constant 0 : i32
    %c0_i32_2 = arith.constant 0 : i32
    return %c0_i32, %c0_i32_0, %c0_i32_1 : i32, i32, i32
  }
  func.func @transform_4(%arg0: i32) -> (i32, i32, i32) {
    %c0_i32 = arith.constant 0 : i32
    %c0_i32_0 = arith.constant 0 : i32
    %c0_i32_1 = arith.constant 0 : i32
    %c0_i32_2 = arith.constant 0 : i32
    return %c0_i32, %c0_i32_0, %c0_i32_1 : i32, i32, i32
  }
  func.func @transform_5(%arg0: i32) -> (i32, i32, i32) {
    %c0_i32 = arith.constant 0 : i32
    %c0_i32_0 = arith.constant 0 : i32
    %c0_i32_1 = arith.constant 0 : i32
    %c0_i32_2 = arith.constant 0 : i32
    return %c0_i32, %c0_i32_0, %c0_i32_1 : i32, i32, i32
  }
  func.func @transform_6(%arg0: i32) -> (i32, i32, i32) {
    %c0_i32 = arith.constant 0 : i32
    %c0_i32_0 = arith.constant 0 : i32
    %c0_i32_1 = arith.constant 0 : i32
    %c0_i32_2 = arith.constant 0 : i32
    return %c0_i32, %c0_i32_0, %c0_i32_1 : i32, i32, i32
  }
  func.func @transform_7(%arg0: i32) -> (i32, i32, i32) {
    %c0_i32 = arith.constant 0 : i32
    %c0_i32_0 = arith.constant 0 : i32
    %c0_i32_1 = arith.constant 0 : i32
    %c0_i32_2 = arith.constant 0 : i32
    return %c0_i32, %c0_i32_0, %c0_i32_1 : i32, i32, i32
  }
  func.func @transform_8(%arg0: i32) -> (i32, i32) {
    %c0_i32 = arith.constant 0 : i32
    %c0_i32_0 = arith.constant 0 : i32
    %c0_i32_1 = arith.constant 0 : i32
    return %c0_i32, %c0_i32_0 : i32, i32
  }
  func.func @transform_9(%arg0: i32) -> (i32, i32) {
    %c0_i32 = arith.constant 0 : i32
    %c0_i32_0 = arith.constant 0 : i32
    %c0_i32_1 = arith.constant 0 : i32
    return %c0_i32, %c0_i32_0 : i32, i32
  }
  func.func @transform_10(%arg0: i32) -> (i32, i32) {
    %c0_i32 = arith.constant 0 : i32
    %c0_i32_0 = arith.constant 0 : i32
    %c0_i32_1 = arith.constant 0 : i32
    return %c0_i32, %c0_i32_0 : i32, i32
  }
  func.func @transform_11(%arg0: i32) -> (i32, i32) {
    %c0_i32 = arith.constant 0 : i32
    %c0_i32_0 = arith.constant 0 : i32
    %c0_i32_1 = arith.constant 0 : i32
    return %c0_i32, %c0_i32_0 : i32, i32
  }
  func.func @transform_12(%arg0: i32) -> (i32, i32, i32) {
    %c0_i32 = arith.constant 0 : i32
    %c0_i32_0 = arith.constant 0 : i32
    %c0_i32_1 = arith.constant 0 : i32
    return %arg0, %c0_i32, %c0_i32_0 : i32, i32, i32
  }
}

module attributes {stable_mosaic.version = 11 : i64} {
  func.func @_cond_heads_kernel(%arg0: i32, %arg1: memref<2x128xf32, #tpu.memory_space<vmem>>, %arg2: memref<2x64xf32, #tpu.memory_space<vmem>>, %arg3: memref<128x128xf32, #tpu.memory_space<vmem>>, %arg4: memref<1x128xf32, #tpu.memory_space<vmem>>, %arg5: memref<128x64xf32, #tpu.memory_space<vmem>>, %arg6: memref<1x64xf32, #tpu.memory_space<vmem>>, %arg7: memref<1x64xf32, #tpu.memory_space<vmem>>, %arg8: memref<1x64xf32, #tpu.memory_space<vmem>>, %arg9: memref<128x128xf32, #tpu.memory_space<vmem>>, %arg10: memref<1x128xf32, #tpu.memory_space<vmem>>, %arg11: memref<128x128xf32, #tpu.memory_space<vmem>>, %arg12: memref<1x128xf32, #tpu.memory_space<vmem>>, %arg13: memref<128x64xf32, #tpu.memory_space<vmem>>, %arg14: memref<1x64xf32, #tpu.memory_space<vmem>>, %arg15: memref<64x1xf32, #tpu.memory_space<vmem>>, %arg16: memref<1x1xf32, #tpu.memory_space<vmem>>, %arg17: memref<128x128xf32, #tpu.memory_space<vmem>>, %arg18: memref<1x128xf32, #tpu.memory_space<vmem>>, %arg19: memref<128x64xf32, #tpu.memory_space<vmem>>, %arg20: memref<1x64xf32, #tpu.memory_space<vmem>>, %arg21: memref<64x128xf32, #tpu.memory_space<vmem>>, %arg22: memref<1x128xf32, #tpu.memory_space<vmem>>, %arg23: memref<128x64xf32, #tpu.memory_space<vmem>>, %arg24: memref<1x64xf32, #tpu.memory_space<vmem>>, %arg25: memref<64x15xf32, #tpu.memory_space<vmem>>, %arg26: memref<1x15xf32, #tpu.memory_space<vmem>>, %arg27: memref<128x64xf32, #tpu.memory_space<vmem>>, %arg28: memref<1x64xf32, #tpu.memory_space<vmem>>, %arg29: memref<64x64xf32, #tpu.memory_space<vmem>>, %arg30: memref<1x64xf32, #tpu.memory_space<vmem>>, %arg31: memref<2x128xf32, #tpu.memory_space<vmem>>, %arg32: memref<2x1xf32, #tpu.memory_space<vmem>>, %arg33: memref<2x128xf32, #tpu.memory_space<vmem>>, %arg34: memref<2x15xf32, #tpu.memory_space<vmem>>, %arg35: memref<2x64xf32, #tpu.memory_space<vmem>>) attributes {dimension_semantics = [#tpu.dimension_semantics<arbitrary>], iteration_bounds = array<i64: 1>, scalar_prefetch = 0 : i64, scratch_operands = 0 : i64, tpu.core_type = #tpu.core_type<tc>, window_params = [{pipeline_mode = #tpu.pipeline_mode<synchronous>, transform_indices = @transform_0, window_bounds = array<i64: 2, 128>}, {pipeline_mode = #tpu.pipeline_mode<synchronous>, transform_indices = @transform_1, window_bounds = array<i64: 2, 64>}, {pipeline_mode = #tpu.pipeline_mode<synchronous>, transform_indices = @transform_2, window_bounds = array<i64: 128, 128>}, {pipeline_mode = #tpu.pipeline_mode<synchronous>, transform_indices = @transform_3, window_bounds = array<i64: 1, 128>}, {pipeline_mode = #tpu.pipeline_mode<synchronous>, transform_indices = @transform_4, window_bounds = array<i64: 128, 64>}, {pipeline_mode = #tpu.pipeline_mode<synchronous>, transform_indices = @transform_5, window_bounds = array<i64: 1, 64>}, {pipeline_mode = #tpu.pipeline_mode<synchronous>, transform_indices = @transform_6, window_bounds = array<i64: 1, 64>}, {pipeline_mode = #tpu.pipeline_mode<synchronous>, transform_indices = @transform_7, window_bounds = array<i64: 1, 64>}, {pipeline_mode = #tpu.pipeline_mode<synchronous>, transform_indices = @transform_8, window_bounds = array<i64: 128, 128>}, {pipeline_mode = #tpu.pipeline_mode<synchronous>, transform_indices = @transform_9, window_bounds = array<i64: 1, 128>}, {pipeline_mode = #tpu.pipeline_mode<synchronous>, transform_indices = @transform_10, window_bounds = array<i64: 128, 128>}, {pipeline_mode = #tpu.pipeline_mode<synchronous>, transform_indices = @transform_11, window_bounds = array<i64: 1, 128>}, {pipeline_mode = #tpu.pipeline_mode<synchronous>, transform_indices = @transform_12, window_bounds = array<i64: 128, 64>}, {pipeline_mode = #tpu.pipeline_mode<synchronous>, transform_indices = @transform_13, window_bounds = array<i64: 1, 64>}, {pipeline_mode = #tpu.pipeline_mode<synchronous>, transform_indices = @transform_14, window_bounds = array<i64: 64, 1>}, {pipeline_mode = #tpu.pipeline_mode<synchronous>, transform_indices = @transform_15, window_bounds = array<i64: 1, 1>}, {pipeline_mode = #tpu.pipeline_mode<synchronous>, transform_indices = @transform_16, window_bounds = array<i64: 128, 128>}, {pipeline_mode = #tpu.pipeline_mode<synchronous>, transform_indices = @transform_17, window_bounds = array<i64: 1, 128>}, {pipeline_mode = #tpu.pipeline_mode<synchronous>, transform_indices = @transform_18, window_bounds = array<i64: 128, 64>}, {pipeline_mode = #tpu.pipeline_mode<synchronous>, transform_indices = @transform_19, window_bounds = array<i64: 1, 64>}, {pipeline_mode = #tpu.pipeline_mode<synchronous>, transform_indices = @transform_20, window_bounds = array<i64: 64, 128>}, {pipeline_mode = #tpu.pipeline_mode<synchronous>, transform_indices = @transform_21, window_bounds = array<i64: 1, 128>}, {pipeline_mode = #tpu.pipeline_mode<synchronous>, transform_indices = @transform_22, window_bounds = array<i64: 128, 64>}, {pipeline_mode = #tpu.pipeline_mode<synchronous>, transform_indices = @transform_23, window_bounds = array<i64: 1, 64>}, {pipeline_mode = #tpu.pipeline_mode<synchronous>, transform_indices = @transform_24, window_bounds = array<i64: 64, 15>}, {pipeline_mode = #tpu.pipeline_mode<synchronous>, transform_indices = @transform_25, window_bounds = array<i64: 1, 15>}, {pipeline_mode = #tpu.pipeline_mode<synchronous>, transform_indices = @transform_26, window_bounds = array<i64: 128, 64>}, {pipeline_mode = #tpu.pipeline_mode<synchronous>, transform_indices = @transform_27, window_bounds = array<i64: 1, 64>}, {pipeline_mode = #tpu.pipeline_mode<synchronous>, transform_indices = @transform_28, window_bounds = array<i64: 64, 64>}, {pipeline_mode = #tpu.pipeline_mode<synchronous>, transform_indices = @transform_29, window_bounds = array<i64: 1, 64>}, {pipeline_mode = #tpu.pipeline_mode<synchronous>, transform_indices = @transform_30, window_bounds = array<i64: 2, 128>}, {pipeline_mode = #tpu.pipeline_mode<synchronous>, transform_indices = @transform_31, window_bounds = array<i64: 2, 1>}, {pipeline_mode = #tpu.pipeline_mode<synchronous>, transform_indices = @transform_32, window_bounds = array<i64: 2, 128>}, {pipeline_mode = #tpu.pipeline_mode<synchronous>, transform_indices = @transform_33, window_bounds = array<i64: 2, 15>}, {pipeline_mode = #tpu.pipeline_mode<synchronous>, transform_indices = @transform_34, window_bounds = array<i64: 2, 64>}]} {
    %c0 = arith.constant 0 : index
    %c0_0 = arith.constant 0 : index
    %0 = vector.load %arg1[%c0, %c0_0] : memref<2x128xf32, #tpu.memory_space<vmem>>, vector<2x128xf32>
    %c0_1 = arith.constant 0 : index
    %c0_2 = arith.constant 0 : index
    %1 = vector.load %arg2[%c0_1, %c0_2] : memref<2x64xf32, #tpu.memory_space<vmem>>, vector<2x64xf32>
    %c0_3 = arith.constant 0 : index
    %c0_4 = arith.constant 0 : index
    %2 = vector.load %arg3[%c0_3, %c0_4] : memref<128x128xf32, #tpu.memory_space<vmem>>, vector<128x128xf32>
    %cst = arith.constant dense<0.000000e+00> : vector<2x128xf32>
    %3 = tpu.matmul %0, %2, %cst {dimension_numbers = #tpu.dot_dimension_numbers<[1], [0], [0], [1], [0, 0, 1, 1], [], []>} : vector<2x128xf32>, vector<128x128xf32>, vector<2x128xf32> -> vector<2x128xf32>
    %c0_5 = arith.constant 0 : index
    %c0_6 = arith.constant 0 : index
    %4 = vector.load %arg4[%c0_5, %c0_6] : memref<1x128xf32, #tpu.memory_space<vmem>>, vector<1x128xf32>
    %5 = vector.broadcast %4 : vector<1x128xf32> to vector<2x128xf32>
    %6 = arith.addf %3, %5 : vector<2x128xf32>
    %cst_7 = arith.constant 0.000000e+00 : f32
    %7 = vector.broadcast %cst_7 : f32 to vector<2x128xf32>
    %8 = arith.maximumf %6, %7 : vector<2x128xf32>
    %c0_8 = arith.constant 0 : index
    %c0_9 = arith.constant 0 : index
    %9 = vector.load %arg5[%c0_8, %c0_9] : memref<128x64xf32, #tpu.memory_space<vmem>>, vector<128x64xf32>
    %cst_10 = arith.constant dense<0.000000e+00> : vector<2x64xf32>
    %10 = tpu.matmul %8, %9, %cst_10 {dimension_numbers = #tpu.dot_dimension_numbers<[1], [0], [0], [1], [0, 0, 1, 1], [], []>} : vector<2x128xf32>, vector<128x64xf32>, vector<2x64xf32> -> vector<2x64xf32>
    %c0_11 = arith.constant 0 : index
    %c0_12 = arith.constant 0 : index
    %11 = vector.load %arg6[%c0_11, %c0_12] : memref<1x64xf32, #tpu.memory_space<vmem>>, vector<1x64xf32>
    %12 = vector.broadcast %11 : vector<1x64xf32> to vector<2x64xf32>
    %13 = arith.addf %10, %12 : vector<2x64xf32>
    %c0_13 = arith.constant 0 : index
    %c0_14 = arith.constant 0 : index
    %14 = vector.load %arg7[%c0_13, %c0_14] : memref<1x64xf32, #tpu.memory_space<vmem>>, vector<1x64xf32>
    %c0_15 = arith.constant 0 : index
    %c0_16 = arith.constant 0 : index
    %15 = vector.load %arg8[%c0_15, %c0_16] : memref<1x64xf32, #tpu.memory_space<vmem>>, vector<1x64xf32>
    %cst_17 = arith.constant dense<0.000000e+00> : vector<2xf32>
    %16 = vector.multi_reduction <add>, %13, %cst_17 [1] : vector<2x64xf32> to vector<2xf32>
    %17 = vector.shape_cast %16 : vector<2xf32> to vector<2x1xf32>
    %cst_18 = arith.constant 6.400000e+01 : f32
    %18 = vector.broadcast %cst_18 : f32 to vector<2x1xf32>
    %19 = arith.divf %17, %18 : vector<2x1xf32>
    %20 = vector.broadcast %19 : vector<2x1xf32> to vector<2x64xf32>
    %21 = arith.subf %13, %20 : vector<2x64xf32>
    %22 = arith.mulf %21, %21 : vector<2x64xf32>
    %cst_19 = arith.constant dense<0.000000e+00> : vector<2xf32>
    %23 = vector.multi_reduction <add>, %22, %cst_19 [1] : vector<2x64xf32> to vector<2xf32>
    %24 = vector.shape_cast %23 : vector<2xf32> to vector<2x1xf32>
    %cst_20 = arith.constant 6.400000e+01 : f32
    %25 = vector.broadcast %cst_20 : f32 to vector<2x1xf32>
    %26 = arith.divf %24, %25 : vector<2x1xf32>
    %27 = vector.broadcast %19 : vector<2x1xf32> to vector<2x64xf32>
    %28 = arith.subf %13, %27 : vector<2x64xf32>
    %cst_21 = arith.constant 9.99999974E-6 : f32
    %29 = vector.broadcast %cst_21 : f32 to vector<2x1xf32>
    %30 = arith.addf %26, %29 : vector<2x1xf32>
    %31 = math.rsqrt %30 : vector<2x1xf32>
    %32 = vector.broadcast %31 : vector<2x1xf32> to vector<2x64xf32>
    %33 = arith.mulf %28, %32 : vector<2x64xf32>
    %34 = vector.broadcast %14 : vector<1x64xf32> to vector<2x64xf32>
    %35 = arith.mulf %33, %34 : vector<2x64xf32>
    %36 = vector.broadcast %15 : vector<1x64xf32> to vector<2x64xf32>
    %37 = arith.addf %35, %36 : vector<2x64xf32>
    %c0_22 = arith.constant 0 : index
    %c0_23 = arith.constant 0 : index
    %38 = vector.load %arg9[%c0_22, %c0_23] : memref<128x128xf32, #tpu.memory_space<vmem>>, vector<128x128xf32>
    %39 = vector.extract_strided_slice %38 {offsets = [0, 0], sizes = [64, 128], strides = [1, 1]} : vector<128x128xf32> to vector<64x128xf32>
    %cst_24 = arith.constant dense<0.000000e+00> : vector<2x128xf32>
    %40 = tpu.matmul %37, %39, %cst_24 {dimension_numbers = #tpu.dot_dimension_numbers<[1], [0], [0], [1], [0, 0, 1, 1], [], []>} : vector<2x64xf32>, vector<64x128xf32>, vector<2x128xf32> -> vector<2x128xf32>
    %41 = vector.extract_strided_slice %38 {offsets = [64, 0], sizes = [64, 128], strides = [1, 1]} : vector<128x128xf32> to vector<64x128xf32>
    %cst_25 = arith.constant dense<0.000000e+00> : vector<2x128xf32>
    %42 = tpu.matmul %1, %41, %cst_25 {dimension_numbers = #tpu.dot_dimension_numbers<[1], [0], [0], [1], [0, 0, 1, 1], [], []>} : vector<2x64xf32>, vector<64x128xf32>, vector<2x128xf32> -> vector<2x128xf32>
    %43 = arith.addf %40, %42 : vector<2x128xf32>
    %c0_26 = arith.constant 0 : index
    %c0_27 = arith.constant 0 : index
    %44 = vector.load %arg10[%c0_26, %c0_27] : memref<1x128xf32, #tpu.memory_space<vmem>>, vector<1x128xf32>
    %45 = vector.broadcast %44 : vector<1x128xf32> to vector<2x128xf32>
    %46 = arith.addf %43, %45 : vector<2x128xf32>
    %cst_28 = arith.constant 0.000000e+00 : f32
    %47 = vector.broadcast %cst_28 : f32 to vector<2x128xf32>
    %48 = arith.maximumf %46, %47 : vector<2x128xf32>
    %c0_29 = arith.constant 0 : index
    %c0_30 = arith.constant 0 : index
    %49 = vector.load %arg11[%c0_29, %c0_30] : memref<128x128xf32, #tpu.memory_space<vmem>>, vector<128x128xf32>
    %cst_31 = arith.constant dense<0.000000e+00> : vector<2x128xf32>
    %50 = tpu.matmul %48, %49, %cst_31 {dimension_numbers = #tpu.dot_dimension_numbers<[1], [0], [0], [1], [0, 0, 1, 1], [], []>} : vector<2x128xf32>, vector<128x128xf32>, vector<2x128xf32> -> vector<2x128xf32>
    %c0_32 = arith.constant 0 : index
    %c0_33 = arith.constant 0 : index
    %51 = vector.load %arg12[%c0_32, %c0_33] : memref<1x128xf32, #tpu.memory_space<vmem>>, vector<1x128xf32>
    %52 = vector.broadcast %51 : vector<1x128xf32> to vector<2x128xf32>
    %53 = arith.addf %50, %52 : vector<2x128xf32>
    %c0_34 = arith.constant 0 : index
    %c0_35 = arith.constant 0 : index
    %54 = vector.load %arg31[%c0_34, %c0_35] : memref<2x128xf32, #tpu.memory_space<vmem>>, vector<2x128xf32>
    tpu.vector_store %arg31[%c0_34, %c0_35], %53 {strides = array<i32>} : memref<2x128xf32, #tpu.memory_space<vmem>>, vector<2x128xf32>,
    %c0_36 = arith.constant 0 : index
    %c0_37 = arith.constant 0 : index
    %55 = vector.load %arg13[%c0_36, %c0_37] : memref<128x64xf32, #tpu.memory_space<vmem>>, vector<128x64xf32>
    %cst_38 = arith.constant dense<0.000000e+00> : vector<2x64xf32>
    %56 = tpu.matmul %53, %55, %cst_38 {dimension_numbers = #tpu.dot_dimension_numbers<[1], [0], [0], [1], [0, 0, 1, 1], [], []>} : vector<2x128xf32>, vector<128x64xf32>, vector<2x64xf32> -> vector<2x64xf32>
    %c0_39 = arith.constant 0 : index
    %c0_40 = arith.constant 0 : index
    %57 = vector.load %arg14[%c0_39, %c0_40] : memref<1x64xf32, #tpu.memory_space<vmem>>, vector<1x64xf32>
    %58 = vector.broadcast %57 : vector<1x64xf32> to vector<2x64xf32>
    %59 = arith.addf %56, %58 : vector<2x64xf32>
    %cst_41 = arith.constant 0.000000e+00 : f32
    %60 = vector.broadcast %cst_41 : f32 to vector<2x64xf32>
    %61 = arith.maximumf %59, %60 : vector<2x64xf32>
    %c0_42 = arith.constant 0 : index
    %c0_43 = arith.constant 0 : index
    %62 = vector.load %arg15[%c0_42, %c0_43] : memref<64x1xf32, #tpu.memory_space<vmem>>, vector<64x1xf32>
    %cst_44 = arith.constant dense<0.000000e+00> : vector<2x1xf32>
    %63 = tpu.matmul %61, %62, %cst_44 {dimension_numbers = #tpu.dot_dimension_numbers<[1], [0], [0], [1], [0, 0, 1, 1], [], []>} : vector<2x64xf32>, vector<64x1xf32>, vector<2x1xf32> -> vector<2x1xf32>
    %c0_45 = arith.constant 0 : index
    %c0_46 = arith.constant 0 : index
    %64 = vector.load %arg16[%c0_45, %c0_46] : memref<1x1xf32, #tpu.memory_space<vmem>>, vector<1x1xf32>
    %65 = vector.broadcast %64 : vector<1x1xf32> to vector<2x1xf32>
    %66 = arith.addf %63, %65 : vector<2x1xf32>
    %67 = arith.negf %66 : vector<2x1xf32>
    %68 = math.exp %67 : vector<2x1xf32>
    %cst_47 = arith.constant 1.000000e+00 : f32
    %69 = vector.broadcast %cst_47 : f32 to vector<2x1xf32>
    %70 = arith.addf %69, %68 : vector<2x1xf32>
    %71 = arith.divf %69, %70 : vector<2x1xf32>
    %c0_48 = arith.constant 0 : index
    %c0_49 = arith.constant 0 : index
    %72 = vector.load %arg32[%c0_48, %c0_49] : memref<2x1xf32, #tpu.memory_space<vmem>>, vector<2x1xf32>
    tpu.vector_store %arg32[%c0_48, %c0_49], %71 {strides = array<i32>} : memref<2x1xf32, #tpu.memory_space<vmem>>, vector<2x1xf32>,
    %c0_50 = arith.constant 0 : index
    %c0_51 = arith.constant 0 : index
    %73 = vector.load %arg17[%c0_50, %c0_51] : memref<128x128xf32, #tpu.memory_space<vmem>>, vector<128x128xf32>
    %cst_52 = arith.constant dense<0.000000e+00> : vector<2x128xf32>
    %74 = tpu.matmul %53, %73, %cst_52 {dimension_numbers = #tpu.dot_dimension_numbers<[1], [0], [0], [1], [0, 0, 1, 1], [], []>} : vector<2x128xf32>, vector<128x128xf32>, vector<2x128xf32> -> vector<2x128xf32>
    %c0_53 = arith.constant 0 : index
    %c0_54 = arith.constant 0 : index
    %75 = vector.load %arg18[%c0_53, %c0_54] : memref<1x128xf32, #tpu.memory_space<vmem>>, vector<1x128xf32>
    %76 = vector.broadcast %75 : vector<1x128xf32> to vector<2x128xf32>
    %77 = arith.addf %74, %76 : vector<2x128xf32>
    %cst_55 = arith.constant 0.000000e+00 : f32
    %78 = vector.broadcast %cst_55 : f32 to vector<2x128xf32>
    %79 = arith.maximumf %77, %78 : vector<2x128xf32>
    %c0_56 = arith.constant 0 : index
    %c0_57 = arith.constant 0 : index
    %80 = vector.load %arg19[%c0_56, %c0_57] : memref<128x64xf32, #tpu.memory_space<vmem>>, vector<128x64xf32>
    %cst_58 = arith.constant dense<0.000000e+00> : vector<2x64xf32>
    %81 = tpu.matmul %79, %80, %cst_58 {dimension_numbers = #tpu.dot_dimension_numbers<[1], [0], [0], [1], [0, 0, 1, 1], [], []>} : vector<2x128xf32>, vector<128x64xf32>, vector<2x64xf32> -> vector<2x64xf32>
    %c0_59 = arith.constant 0 : index
    %c0_60 = arith.constant 0 : index
    %82 = vector.load %arg20[%c0_59, %c0_60] : memref<1x64xf32, #tpu.memory_space<vmem>>, vector<1x64xf32>
    %83 = vector.broadcast %82 : vector<1x64xf32> to vector<2x64xf32>
    %84 = arith.addf %81, %83 : vector<2x64xf32>
    %cst_61 = arith.constant 0.000000e+00 : f32
    %85 = vector.broadcast %cst_61 : f32 to vector<2x64xf32>
    %86 = arith.maximumf %84, %85 : vector<2x64xf32>
    %c0_62 = arith.constant 0 : index
    %c0_63 = arith.constant 0 : index
    %87 = vector.load %arg21[%c0_62, %c0_63] : memref<64x128xf32, #tpu.memory_space<vmem>>, vector<64x128xf32>
    %cst_64 = arith.constant dense<0.000000e+00> : vector<2x128xf32>
    %88 = tpu.matmul %86, %87, %cst_64 {dimension_numbers = #tpu.dot_dimension_numbers<[1], [0], [0], [1], [0, 0, 1, 1], [], []>} : vector<2x64xf32>, vector<64x128xf32>, vector<2x128xf32> -> vector<2x128xf32>
    %c0_65 = arith.constant 0 : index
    %c0_66 = arith.constant 0 : index
    %89 = vector.load %arg22[%c0_65, %c0_66] : memref<1x128xf32, #tpu.memory_space<vmem>>, vector<1x128xf32>
    %90 = vector.broadcast %89 : vector<1x128xf32> to vector<2x128xf32>
    %91 = arith.addf %88, %90 : vector<2x128xf32>
    %c0_67 = arith.constant 0 : index
    %c0_68 = arith.constant 0 : index
    %92 = vector.load %arg33[%c0_67, %c0_68] : memref<2x128xf32, #tpu.memory_space<vmem>>, vector<2x128xf32>
    tpu.vector_store %arg33[%c0_67, %c0_68], %91 {strides = array<i32>} : memref<2x128xf32, #tpu.memory_space<vmem>>, vector<2x128xf32>,
    %c0_69 = arith.constant 0 : index
    %c0_70 = arith.constant 0 : index
    %93 = vector.load %arg23[%c0_69, %c0_70] : memref<128x64xf32, #tpu.memory_space<vmem>>, vector<128x64xf32>
    %cst_71 = arith.constant dense<0.000000e+00> : vector<2x64xf32>
    %94 = tpu.matmul %53, %93, %cst_71 {dimension_numbers = #tpu.dot_dimension_numbers<[1], [0], [0], [1], [0, 0, 1, 1], [], []>} : vector<2x128xf32>, vector<128x64xf32>, vector<2x64xf32> -> vector<2x64xf32>
    %c0_72 = arith.constant 0 : index
    %c0_73 = arith.constant 0 : index
    %95 = vector.load %arg24[%c0_72, %c0_73] : memref<1x64xf32, #tpu.memory_space<vmem>>, vector<1x64xf32>
    %96 = vector.broadcast %95 : vector<1x64xf32> to vector<2x64xf32>
    %97 = arith.addf %94, %96 : vector<2x64xf32>
    %cst_74 = arith.constant 0.000000e+00 : f32
    %98 = vector.broadcast %cst_74 : f32 to vector<2x64xf32>
    %99 = arith.maximumf %97, %98 : vector<2x64xf32>
    %c0_75 = arith.constant 0 : index
    %c0_76 = arith.constant 0 : index
    %100 = vector.load %arg25[%c0_75, %c0_76] : memref<64x15xf32, #tpu.memory_space<vmem>>, vector<64x15xf32>
    %cst_77 = arith.constant dense<0.000000e+00> : vector<2x15xf32>
    %101 = tpu.matmul %99, %100, %cst_77 {dimension_numbers = #tpu.dot_dimension_numbers<[1], [0], [0], [1], [0, 0, 1, 1], [], []>} : vector<2x64xf32>, vector<64x15xf32>, vector<2x15xf32> -> vector<2x15xf32>
    %c0_78 = arith.constant 0 : index
    %c0_79 = arith.constant 0 : index
    %102 = vector.load %arg26[%c0_78, %c0_79] : memref<1x15xf32, #tpu.memory_space<vmem>>, vector<1x15xf32>
    %103 = vector.broadcast %102 : vector<1x15xf32> to vector<2x15xf32>
    %104 = arith.addf %101, %103 : vector<2x15xf32>
    %105 = arith.negf %104 : vector<2x15xf32>
    %106 = math.exp %105 : vector<2x15xf32>
    %cst_80 = arith.constant 1.000000e+00 : f32
    %107 = vector.broadcast %cst_80 : f32 to vector<2x15xf32>
    %108 = arith.addf %107, %106 : vector<2x15xf32>
    %109 = arith.divf %107, %108 : vector<2x15xf32>
    %c0_81 = arith.constant 0 : index
    %c0_82 = arith.constant 0 : index
    %110 = vector.load %arg34[%c0_81, %c0_82] : memref<2x15xf32, #tpu.memory_space<vmem>>, vector<2x15xf32>
    tpu.vector_store %arg34[%c0_81, %c0_82], %109 {strides = array<i32>} : memref<2x15xf32, #tpu.memory_space<vmem>>, vector<2x15xf32>,
    %c0_83 = arith.constant 0 : index
    %c0_84 = arith.constant 0 : index
    %111 = vector.load %arg27[%c0_83, %c0_84] : memref<128x64xf32, #tpu.memory_space<vmem>>, vector<128x64xf32>
    %cst_85 = arith.constant dense<0.000000e+00> : vector<2x64xf32>
    %112 = tpu.matmul %53, %111, %cst_85 {dimension_numbers = #tpu.dot_dimension_numbers<[1], [0], [0], [1], [0, 0, 1, 1], [], []>} : vector<2x128xf32>, vector<128x64xf32>, vector<2x64xf32> -> vector<2x64xf32>
    %c0_86 = arith.constant 0 : index
    %c0_87 = arith.constant 0 : index
    %113 = vector.load %arg28[%c0_86, %c0_87] : memref<1x64xf32, #tpu.memory_space<vmem>>, vector<1x64xf32>
    %114 = vector.broadcast %113 : vector<1x64xf32> to vector<2x64xf32>
    %115 = arith.addf %112, %114 : vector<2x64xf32>
    %cst_88 = arith.constant 0.000000e+00 : f32
    %116 = vector.broadcast %cst_88 : f32 to vector<2x64xf32>
    %117 = arith.maximumf %115, %116 : vector<2x64xf32>
    %c0_89 = arith.constant 0 : index
    %c0_90 = arith.constant 0 : index
    %118 = vector.load %arg29[%c0_89, %c0_90] : memref<64x64xf32, #tpu.memory_space<vmem>>, vector<64x64xf32>
    %cst_91 = arith.constant dense<0.000000e+00> : vector<2x64xf32>
    %119 = tpu.matmul %117, %118, %cst_91 {dimension_numbers = #tpu.dot_dimension_numbers<[1], [0], [0], [1], [0, 0, 1, 1], [], []>} : vector<2x64xf32>, vector<64x64xf32>, vector<2x64xf32> -> vector<2x64xf32>
    %c0_92 = arith.constant 0 : index
    %c0_93 = arith.constant 0 : index
    %120 = vector.load %arg30[%c0_92, %c0_93] : memref<1x64xf32, #tpu.memory_space<vmem>>, vector<1x64xf32>
    %121 = vector.broadcast %120 : vector<1x64xf32> to vector<2x64xf32>
    %122 = arith.addf %119, %121 : vector<2x64xf32>
    %c0_94 = arith.constant 0 : index
    %c0_95 = arith.constant 0 : index
    %123 = vector.load %arg35[%c0_94, %c0_95] : memref<2x64xf32, #tpu.memory_space<vmem>>, vector<2x64xf32>
    tpu.vector_store %arg35[%c0_94, %c0_95], %122 {strides = array<i32>} : memref<2x64xf32, #tpu.memory_space<vmem>>, vector<2x64xf32>,
    return
  }
  func.func @transform_0(%arg0: i32) -> (i32, i32) {
    %c0_i32 = arith.constant 0 : i32
    %c0_i32_0 = arith.constant 0 : i32
    %c0_i32_1 = arith.constant 0 : i32
    return %c0_i32, %c0_i32_0 : i32, i32
  }
  func.func @transform_1(%arg0: i32) -> (i32, i32) {
    %c0_i32 = arith.constant 0 : i32
    %c0_i32_0 = arith.constant 0 : i32
    %c0_i32_1 = arith.constant 0 : i32
    return %c0_i32, %c0_i32_0 : i32, i32
  }
  func.func @transform_2(%arg0: i32) -> (i32, i32) {
    %c0_i32 = arith.constant 0 : i32
    %c0_i32_0 = arith.constant 0 : i32
    %c0_i32_1 = arith.constant 0 : i32
    return %c0_i32, %c0_i32_0 : i32, i32
  }
  func.func @transform_3(%arg0: i32) -> (i32, i32) {
    %c0_i32 = arith.constant 0 : i32
    %c0_i32_0 = arith.constant 0 : i32
    %c0_i32_1 = arith.constant 0 : i32
    return %c0_i32, %c0_i32_0 : i32, i32
  }
  func.func @transform_4(%arg0: i32) -> (i32, i32) {
    %c0_i32 = arith.constant 0 : i32
    %c0_i32_0 = arith.constant 0 : i32
    %c0_i32_1 = arith.constant 0 : i32
    return %c0_i32, %c0_i32_0 : i32, i32
  }
  func.func @transform_5(%arg0: i32) -> (i32, i32) {
    %c0_i32 = arith.constant 0 : i32
    %c0_i32_0 = arith.constant 0 : i32
    %c0_i32_1 = arith.constant 0 : i32
    return %c0_i32, %c0_i32_0 : i32, i32
  }
  func.func @transform_6(%arg0: i32) -> (i32, i32) {
    %c0_i32 = arith.constant 0 : i32
    %c0_i32_0 = arith.constant 0 : i32
    %c0_i32_1 = arith.constant 0 : i32
    return %c0_i32, %c0_i32_0 : i32, i32
  }
  func.func @transform_7(%arg0: i32) -> (i32, i32) {
    %c0_i32 = arith.constant 0 : i32
    %c0_i32_0 = arith.constant 0 : i32
    %c0_i32_1 = arith.constant 0 : i32
    return %c0_i32, %c0_i32_0 : i32, i32
  }
  func.func @transform_8(%arg0: i32) -> (i32, i32) {
    %c0_i32 = arith.constant 0 : i32
    %c0_i32_0 = arith.constant 0 : i32
    %c0_i32_1 = arith.constant 0 : i32
    return %c0_i32, %c0_i32_0 : i32, i32
  }
  func.func @transform_9(%arg0: i32) -> (i32, i32) {
    %c0_i32 = arith.constant 0 : i32
    %c0_i32_0 = arith.constant 0 : i32
    %c0_i32_1 = arith.constant 0 : i32
    return %c0_i32, %c0_i32_0 : i32, i32
  }
  func.func @transform_10(%arg0: i32) -> (i32, i32) {
    %c0_i32 = arith.constant 0 : i32
    %c0_i32_0 = arith.constant 0 : i32
    %c0_i32_1 = arith.constant 0 : i32
    return %c0_i32, %c0_i32_0 : i32, i32
  }
  func.func @transform_11(%arg0: i32) -> (i32, i32) {
    %c0_i32 = arith.constant 0 : i32
    %c0_i32_0 = arith.constant 0 : i32
    %c0_i32_1 = arith.constant 0 : i32
    return %c0_i32, %c0_i32_0 : i32, i32
  }
  func.func @transform_12(%arg0: i32) -> (i32, i32) {
    %c0_i32 = arith.constant 0 : i32
    %c0_i32_0 = arith.constant 0 : i32
    %c0_i32_1 = arith.constant 0 : i32
    return %c0_i32, %c0_i32_0 : i32, i32
  }
  func.func @transform_13(%arg0: i32) -> (i32, i32) {
    %c0_i32 = arith.constant 0 : i32
    %c0_i32_0 = arith.constant 0 : i32
    %c0_i32_1 = arith.constant 0 : i32
    return %c0_i32, %c0_i32_0 : i32, i32
  }
  func.func @transform_14(%arg0: i32) -> (i32, i32) {
    %c0_i32 = arith.constant 0 : i32
    %c0_i32_0 = arith.constant 0 : i32
    %c0_i32_1 = arith.constant 0 : i32
    return %c0_i32, %c0_i32_0 : i32, i32
  }
  func.func @transform_15(%arg0: i32) -> (i32, i32) {
    %c0_i32 = arith.constant 0 : i32
    %c0_i32_0 = arith.constant 0 : i32
    %c0_i32_1 = arith.constant 0 : i32
    return %c0_i32, %c0_i32_0 : i32, i32
  }
  func.func @transform_16(%arg0: i32) -> (i32, i32) {
    %c0_i32 = arith.constant 0 : i32
    %c0_i32_0 = arith.constant 0 : i32
    %c0_i32_1 = arith.constant 0 : i32
    return %c0_i32, %c0_i32_0 : i32, i32
  }
  func.func @transform_17(%arg0: i32) -> (i32, i32) {
    %c0_i32 = arith.constant 0 : i32
    %c0_i32_0 = arith.constant 0 : i32
    %c0_i32_1 = arith.constant 0 : i32
    return %c0_i32, %c0_i32_0 : i32, i32
  }
  func.func @transform_18(%arg0: i32) -> (i32, i32) {
    %c0_i32 = arith.constant 0 : i32
    %c0_i32_0 = arith.constant 0 : i32
    %c0_i32_1 = arith.constant 0 : i32
    return %c0_i32, %c0_i32_0 : i32, i32
  }
  func.func @transform_19(%arg0: i32) -> (i32, i32) {
    %c0_i32 = arith.constant 0 : i32
    %c0_i32_0 = arith.constant 0 : i32
    %c0_i32_1 = arith.constant 0 : i32
    return %c0_i32, %c0_i32_0 : i32, i32
  }
  func.func @transform_20(%arg0: i32) -> (i32, i32) {
    %c0_i32 = arith.constant 0 : i32
    %c0_i32_0 = arith.constant 0 : i32
    %c0_i32_1 = arith.constant 0 : i32
    return %c0_i32, %c0_i32_0 : i32, i32
  }
  func.func @transform_21(%arg0: i32) -> (i32, i32) {
    %c0_i32 = arith.constant 0 : i32
    %c0_i32_0 = arith.constant 0 : i32
    %c0_i32_1 = arith.constant 0 : i32
    return %c0_i32, %c0_i32_0 : i32, i32
  }
  func.func @transform_22(%arg0: i32) -> (i32, i32) {
    %c0_i32 = arith.constant 0 : i32
    %c0_i32_0 = arith.constant 0 : i32
    %c0_i32_1 = arith.constant 0 : i32
    return %c0_i32, %c0_i32_0 : i32, i32
  }
  func.func @transform_23(%arg0: i32) -> (i32, i32) {
    %c0_i32 = arith.constant 0 : i32
    %c0_i32_0 = arith.constant 0 : i32
    %c0_i32_1 = arith.constant 0 : i32
    return %c0_i32, %c0_i32_0 : i32, i32
  }
  func.func @transform_24(%arg0: i32) -> (i32, i32) {
    %c0_i32 = arith.constant 0 : i32
    %c0_i32_0 = arith.constant 0 : i32
    %c0_i32_1 = arith.constant 0 : i32
    return %c0_i32, %c0_i32_0 : i32, i32
  }
  func.func @transform_25(%arg0: i32) -> (i32, i32) {
    %c0_i32 = arith.constant 0 : i32
    %c0_i32_0 = arith.constant 0 : i32
    %c0_i32_1 = arith.constant 0 : i32
    return %c0_i32, %c0_i32_0 : i32, i32
  }
  func.func @transform_26(%arg0: i32) -> (i32, i32) {
    %c0_i32 = arith.constant 0 : i32
    %c0_i32_0 = arith.constant 0 : i32
    %c0_i32_1 = arith.constant 0 : i32
    return %c0_i32, %c0_i32_0 : i32, i32
  }
  func.func @transform_27(%arg0: i32) -> (i32, i32) {
    %c0_i32 = arith.constant 0 : i32
    %c0_i32_0 = arith.constant 0 : i32
    %c0_i32_1 = arith.constant 0 : i32
    return %c0_i32, %c0_i32_0 : i32, i32
  }
  func.func @transform_28(%arg0: i32) -> (i32, i32) {
    %c0_i32 = arith.constant 0 : i32
    %c0_i32_0 = arith.constant 0 : i32
    %c0_i32_1 = arith.constant 0 : i32
    return %c0_i32, %c0_i32_0 : i32, i32
  }
  func.func @transform_29(%arg0: i32) -> (i32, i32) {
    %c0_i32 = arith.constant 0 : i32
    %c0_i32_0 = arith.constant 0 : i32
    %c0_i32_1 = arith.constant 0 : i32
    return %c0_i32, %c0_i32_0 : i32, i32
  }
  func.func @transform_30(%arg0: i32) -> (i32, i32) {
    %c0_i32 = arith.constant 0 : i32
    %c0_i32_0 = arith.constant 0 : i32
    %c0_i32_1 = arith.constant 0 : i32
    return %c0_i32, %c0_i32_0 : i32, i32
  }
  func.func @transform_31(%arg0: i32) -> (i32, i32) {
    %c0_i32 = arith.constant 0 : i32
    %c0_i32_0 = arith.constant 0 : i32
    %c0_i32_1 = arith.constant 0 : i32
    return %c0_i32, %c0_i32_0 : i32, i32
  }
  func.func @transform_32(%arg0: i32) -> (i32, i32) {
    %c0_i32 = arith.constant 0 : i32
    %c0_i32_0 = arith.constant 0 : i32
    %c0_i32_1 = arith.constant 0 : i32
    return %c0_i32, %c0_i32_0 : i32, i32
  }
  func.func @transform_33(%arg0: i32) -> (i32, i32) {
    %c0_i32 = arith.constant 0 : i32
    %c0_i32_0 = arith.constant 0 : i32
    %c0_i32_1 = arith.constant 0 : i32
    return %c0_i32, %c0_i32_0 : i32, i32
  }
  func.func @transform_34(%arg0: i32) -> (i32, i32) {
    %c0_i32 = arith.constant 0 : i32
    %c0_i32_0 = arith.constant 0 : i32
    %c0_i32_1 = arith.constant 0 : i32
    return %c0_i32, %c0_i32_0 : i32, i32
  }
}

module attributes {stable_mosaic.version = 11 : i64} {
  func.func @_mha_self_kernel(%arg0: i32, %arg1: memref<1x8x128xf32, #tpu.memory_space<vmem>>, %arg2: memref<4x128x32xf32, #tpu.memory_space<vmem>>, %arg3: memref<4x1x32xf32, #tpu.memory_space<vmem>>, %arg4: memref<4x128x32xf32, #tpu.memory_space<vmem>>, %arg5: memref<4x1x32xf32, #tpu.memory_space<vmem>>, %arg6: memref<4x128x32xf32, #tpu.memory_space<vmem>>, %arg7: memref<4x1x32xf32, #tpu.memory_space<vmem>>, %arg8: memref<128x128xf32, #tpu.memory_space<vmem>>, %arg9: memref<1x128xf32, #tpu.memory_space<vmem>>, %arg10: memref<1x128xf32, #tpu.memory_space<vmem>>, %arg11: memref<1x128xf32, #tpu.memory_space<vmem>>, %arg12: memref<1x8x128xf32, #tpu.memory_space<vmem>>) attributes {dimension_semantics = [#tpu.dimension_semantics<parallel>], iteration_bounds = array<i64: 2>, scalar_prefetch = 0 : i64, scratch_operands = 0 : i64, tpu.core_type = #tpu.core_type<tc>, window_params = [{transform_indices = @transform_0, window_bounds = array<i64: 1, 8, 128>}, {pipeline_mode = #tpu.pipeline_mode<synchronous>, transform_indices = @transform_1, window_bounds = array<i64: 4, 128, 32>}, {pipeline_mode = #tpu.pipeline_mode<synchronous>, transform_indices = @transform_2, window_bounds = array<i64: 4, 1, 32>}, {pipeline_mode = #tpu.pipeline_mode<synchronous>, transform_indices = @transform_3, window_bounds = array<i64: 4, 128, 32>}, {pipeline_mode = #tpu.pipeline_mode<synchronous>, transform_indices = @transform_4, window_bounds = array<i64: 4, 1, 32>}, {pipeline_mode = #tpu.pipeline_mode<synchronous>, transform_indices = @transform_5, window_bounds = array<i64: 4, 128, 32>}, {pipeline_mode = #tpu.pipeline_mode<synchronous>, transform_indices = @transform_6, window_bounds = array<i64: 4, 1, 32>}, {pipeline_mode = #tpu.pipeline_mode<synchronous>, transform_indices = @transform_7, window_bounds = array<i64: 128, 128>}, {pipeline_mode = #tpu.pipeline_mode<synchronous>, transform_indices = @transform_8, window_bounds = array<i64: 1, 128>}, {pipeline_mode = #tpu.pipeline_mode<synchronous>, transform_indices = @transform_9, window_bounds = array<i64: 1, 128>}, {pipeline_mode = #tpu.pipeline_mode<synchronous>, transform_indices = @transform_10, window_bounds = array<i64: 1, 128>}, {transform_indices = @transform_11, window_bounds = array<i64: 1, 8, 128>}]} {
    %c0 = arith.constant 0 : index
    %c0_0 = arith.constant 0 : index
    %c0_1 = arith.constant 0 : index
    %0 = vector.load %arg1[%c0, %c0_0, %c0_1] : memref<1x8x128xf32, #tpu.memory_space<vmem>>, vector<1x8x128xf32>
    %1 = vector.shape_cast %0 : vector<1x8x128xf32> to vector<8x128xf32>
    %c0_2 = arith.constant 0 : index
    %c0_3 = arith.constant 0 : index
    %c0_4 = arith.constant 0 : index
    %2 = vector.load %arg2[%c0_2, %c0_3, %c0_4] : memref<4x128x32xf32, #tpu.memory_space<vmem>>, vector<1x128x32xf32>
    %3 = vector.shape_cast %2 : vector<1x128x32xf32> to vector<128x32xf32>
    %cst = arith.constant dense<0.000000e+00> : vector<8x32xf32>
    %4 = tpu.matmul %1, %3, %cst {dimension_numbers = #tpu.dot_dimension_numbers<[1], [0], [0], [1], [0, 0, 1, 1], [], []>} : vector<8x128xf32>, vector<128x32xf32>, vector<8x32xf32> -> vector<8x32xf32>
    %c0_5 = arith.constant 0 : index
    %c0_6 = arith.constant 0 : index
    %c0_7 = arith.constant 0 : index
    %5 = vector.load %arg3[%c0_5, %c0_6, %c0_7] : memref<4x1x32xf32, #tpu.memory_space<vmem>>, vector<1x1x32xf32>
    %6 = vector.shape_cast %5 : vector<1x1x32xf32> to vector<1x32xf32>
    %7 = vector.broadcast %6 : vector<1x32xf32> to vector<8x32xf32>
    %8 = arith.addf %4, %7 : vector<8x32xf32>
    %c0_8 = arith.constant 0 : index
    %c0_9 = arith.constant 0 : index
    %c0_10 = arith.constant 0 : index
    %9 = vector.load %arg4[%c0_8, %c0_9, %c0_10] : memref<4x128x32xf32, #tpu.memory_space<vmem>>, vector<1x128x32xf32>
    %10 = vector.shape_cast %9 : vector<1x128x32xf32> to vector<128x32xf32>
    %cst_11 = arith.constant dense<0.000000e+00> : vector<8x32xf32>
    %11 = tpu.matmul %1, %10, %cst_11 {dimension_numbers = #tpu.dot_dimension_numbers<[1], [0], [0], [1], [0, 0, 1, 1], [], []>} : vector<8x128xf32>, vector<128x32xf32>, vector<8x32xf32> -> vector<8x32xf32>
    %c0_12 = arith.constant 0 : index
    %c0_13 = arith.constant 0 : index
    %c0_14 = arith.constant 0 : index
    %12 = vector.load %arg5[%c0_12, %c0_13, %c0_14] : memref<4x1x32xf32, #tpu.memory_space<vmem>>, vector<1x1x32xf32>
    %13 = vector.shape_cast %12 : vector<1x1x32xf32> to vector<1x32xf32>
    %14 = vector.broadcast %13 : vector<1x32xf32> to vector<8x32xf32>
    %15 = arith.addf %11, %14 : vector<8x32xf32>
    %c0_15 = arith.constant 0 : index
    %c0_16 = arith.constant 0 : index
    %c0_17 = arith.constant 0 : index
    %16 = vector.load %arg6[%c0_15, %c0_16, %c0_17] : memref<4x128x32xf32, #tpu.memory_space<vmem>>, vector<1x128x32xf32>
    %17 = vector.shape_cast %16 : vector<1x128x32xf32> to vector<128x32xf32>
    %cst_18 = arith.constant dense<0.000000e+00> : vector<8x32xf32>
    %18 = tpu.matmul %1, %17, %cst_18 {dimension_numbers = #tpu.dot_dimension_numbers<[1], [0], [0], [1], [0, 0, 1, 1], [], []>} : vector<8x128xf32>, vector<128x32xf32>, vector<8x32xf32> -> vector<8x32xf32>
    %c0_19 = arith.constant 0 : index
    %c0_20 = arith.constant 0 : index
    %c0_21 = arith.constant 0 : index
    %19 = vector.load %arg7[%c0_19, %c0_20, %c0_21] : memref<4x1x32xf32, #tpu.memory_space<vmem>>, vector<1x1x32xf32>
    %20 = vector.shape_cast %19 : vector<1x1x32xf32> to vector<1x32xf32>
    %21 = vector.broadcast %20 : vector<1x32xf32> to vector<8x32xf32>
    %22 = arith.addf %18, %21 : vector<8x32xf32>
    %cst_22 = arith.constant dense<0.000000e+00> : vector<8x8xf32>
    %23 = tpu.matmul %8, %15, %cst_22 {dimension_numbers = #tpu.dot_dimension_numbers<[1], [1], [0], [0], [0, 0, 1, 0], [], []>} : vector<8x32xf32>, vector<8x32xf32>, vector<8x8xf32> -> vector<8x8xf32>
    %cst_23 = arith.constant dense<0xFF800000> : vector<8xf32>
    %24 = vector.multi_reduction <maximumf>, %23, %cst_23 [1] : vector<8x8xf32> to vector<8xf32>
    %25 = vector.shape_cast %24 : vector<8xf32> to vector<8x1xf32>
    %26 = vector.broadcast %25 : vector<8x1xf32> to vector<8x8xf32>
    %27 = arith.subf %23, %26 : vector<8x8xf32>
    %28 = math.exp %27 : vector<8x8xf32>
    %cst_24 = arith.constant dense<0.000000e+00> : vector<8xf32>
    %29 = vector.multi_reduction <add>, %28, %cst_24 [1] : vector<8x8xf32> to vector<8xf32>
    %30 = vector.shape_cast %29 : vector<8xf32> to vector<8x1xf32>
    %31 = vector.broadcast %30 : vector<8x1xf32> to vector<8x8xf32>
    %32 = arith.divf %28, %31 : vector<8x8xf32>
    %cst_25 = arith.constant dense<0.000000e+00> : vector<8x32xf32>
    %33 = tpu.matmul %32, %22, %cst_25 {dimension_numbers = #tpu.dot_dimension_numbers<[1], [0], [0], [1], [0, 0, 1, 1], [], []>} : vector<8x8xf32>, vector<8x32xf32>, vector<8x32xf32> -> vector<8x32xf32>
    %c1 = arith.constant 1 : index
    %c0_26 = arith.constant 0 : index
    %c0_27 = arith.constant 0 : index
    %34 = vector.load %arg2[%c1, %c0_26, %c0_27] : memref<4x128x32xf32, #tpu.memory_space<vmem>>, vector<1x128x32xf32>
    %35 = vector.shape_cast %34 : vector<1x128x32xf32> to vector<128x32xf32>
    %cst_28 = arith.constant dense<0.000000e+00> : vector<8x32xf32>
    %36 = tpu.matmul %1, %35, %cst_28 {dimension_numbers = #tpu.dot_dimension_numbers<[1], [0], [0], [1], [0, 0, 1, 1], [], []>} : vector<8x128xf32>, vector<128x32xf32>, vector<8x32xf32> -> vector<8x32xf32>
    %c1_29 = arith.constant 1 : index
    %c0_30 = arith.constant 0 : index
    %c0_31 = arith.constant 0 : index
    %37 = vector.load %arg3[%c1_29, %c0_30, %c0_31] : memref<4x1x32xf32, #tpu.memory_space<vmem>>, vector<1x1x32xf32>
    %38 = vector.shape_cast %37 : vector<1x1x32xf32> to vector<1x32xf32>
    %39 = vector.broadcast %38 : vector<1x32xf32> to vector<8x32xf32>
    %40 = arith.addf %36, %39 : vector<8x32xf32>
    %c1_32 = arith.constant 1 : index
    %c0_33 = arith.constant 0 : index
    %c0_34 = arith.constant 0 : index
    %41 = vector.load %arg4[%c1_32, %c0_33, %c0_34] : memref<4x128x32xf32, #tpu.memory_space<vmem>>, vector<1x128x32xf32>
    %42 = vector.shape_cast %41 : vector<1x128x32xf32> to vector<128x32xf32>
    %cst_35 = arith.constant dense<0.000000e+00> : vector<8x32xf32>
    %43 = tpu.matmul %1, %42, %cst_35 {dimension_numbers = #tpu.dot_dimension_numbers<[1], [0], [0], [1], [0, 0, 1, 1], [], []>} : vector<8x128xf32>, vector<128x32xf32>, vector<8x32xf32> -> vector<8x32xf32>
    %c1_36 = arith.constant 1 : index
    %c0_37 = arith.constant 0 : index
    %c0_38 = arith.constant 0 : index
    %44 = vector.load %arg5[%c1_36, %c0_37, %c0_38] : memref<4x1x32xf32, #tpu.memory_space<vmem>>, vector<1x1x32xf32>
    %45 = vector.shape_cast %44 : vector<1x1x32xf32> to vector<1x32xf32>
    %46 = vector.broadcast %45 : vector<1x32xf32> to vector<8x32xf32>
    %47 = arith.addf %43, %46 : vector<8x32xf32>
    %c1_39 = arith.constant 1 : index
    %c0_40 = arith.constant 0 : index
    %c0_41 = arith.constant 0 : index
    %48 = vector.load %arg6[%c1_39, %c0_40, %c0_41] : memref<4x128x32xf32, #tpu.memory_space<vmem>>, vector<1x128x32xf32>
    %49 = vector.shape_cast %48 : vector<1x128x32xf32> to vector<128x32xf32>
    %cst_42 = arith.constant dense<0.000000e+00> : vector<8x32xf32>
    %50 = tpu.matmul %1, %49, %cst_42 {dimension_numbers = #tpu.dot_dimension_numbers<[1], [0], [0], [1], [0, 0, 1, 1], [], []>} : vector<8x128xf32>, vector<128x32xf32>, vector<8x32xf32> -> vector<8x32xf32>
    %c1_43 = arith.constant 1 : index
    %c0_44 = arith.constant 0 : index
    %c0_45 = arith.constant 0 : index
    %51 = vector.load %arg7[%c1_43, %c0_44, %c0_45] : memref<4x1x32xf32, #tpu.memory_space<vmem>>, vector<1x1x32xf32>
    %52 = vector.shape_cast %51 : vector<1x1x32xf32> to vector<1x32xf32>
    %53 = vector.broadcast %52 : vector<1x32xf32> to vector<8x32xf32>
    %54 = arith.addf %50, %53 : vector<8x32xf32>
    %cst_46 = arith.constant dense<0.000000e+00> : vector<8x8xf32>
    %55 = tpu.matmul %40, %47, %cst_46 {dimension_numbers = #tpu.dot_dimension_numbers<[1], [1], [0], [0], [0, 0, 1, 0], [], []>} : vector<8x32xf32>, vector<8x32xf32>, vector<8x8xf32> -> vector<8x8xf32>
    %cst_47 = arith.constant dense<0xFF800000> : vector<8xf32>
    %56 = vector.multi_reduction <maximumf>, %55, %cst_47 [1] : vector<8x8xf32> to vector<8xf32>
    %57 = vector.shape_cast %56 : vector<8xf32> to vector<8x1xf32>
    %58 = vector.broadcast %57 : vector<8x1xf32> to vector<8x8xf32>
    %59 = arith.subf %55, %58 : vector<8x8xf32>
    %60 = math.exp %59 : vector<8x8xf32>
    %cst_48 = arith.constant dense<0.000000e+00> : vector<8xf32>
    %61 = vector.multi_reduction <add>, %60, %cst_48 [1] : vector<8x8xf32> to vector<8xf32>
    %62 = vector.shape_cast %61 : vector<8xf32> to vector<8x1xf32>
    %63 = vector.broadcast %62 : vector<8x1xf32> to vector<8x8xf32>
    %64 = arith.divf %60, %63 : vector<8x8xf32>
    %cst_49 = arith.constant dense<0.000000e+00> : vector<8x32xf32>
    %65 = tpu.matmul %64, %54, %cst_49 {dimension_numbers = #tpu.dot_dimension_numbers<[1], [0], [0], [1], [0, 0, 1, 1], [], []>} : vector<8x8xf32>, vector<8x32xf32>, vector<8x32xf32> -> vector<8x32xf32>
    %c2 = arith.constant 2 : index
    %c0_50 = arith.constant 0 : index
    %c0_51 = arith.constant 0 : index
    %66 = vector.load %arg2[%c2, %c0_50, %c0_51] : memref<4x128x32xf32, #tpu.memory_space<vmem>>, vector<1x128x32xf32>
    %67 = vector.shape_cast %66 : vector<1x128x32xf32> to vector<128x32xf32>
    %cst_52 = arith.constant dense<0.000000e+00> : vector<8x32xf32>
    %68 = tpu.matmul %1, %67, %cst_52 {dimension_numbers = #tpu.dot_dimension_numbers<[1], [0], [0], [1], [0, 0, 1, 1], [], []>} : vector<8x128xf32>, vector<128x32xf32>, vector<8x32xf32> -> vector<8x32xf32>
    %c2_53 = arith.constant 2 : index
    %c0_54 = arith.constant 0 : index
    %c0_55 = arith.constant 0 : index
    %69 = vector.load %arg3[%c2_53, %c0_54, %c0_55] : memref<4x1x32xf32, #tpu.memory_space<vmem>>, vector<1x1x32xf32>
    %70 = vector.shape_cast %69 : vector<1x1x32xf32> to vector<1x32xf32>
    %71 = vector.broadcast %70 : vector<1x32xf32> to vector<8x32xf32>
    %72 = arith.addf %68, %71 : vector<8x32xf32>
    %c2_56 = arith.constant 2 : index
    %c0_57 = arith.constant 0 : index
    %c0_58 = arith.constant 0 : index
    %73 = vector.load %arg4[%c2_56, %c0_57, %c0_58] : memref<4x128x32xf32, #tpu.memory_space<vmem>>, vector<1x128x32xf32>
    %74 = vector.shape_cast %73 : vector<1x128x32xf32> to vector<128x32xf32>
    %cst_59 = arith.constant dense<0.000000e+00> : vector<8x32xf32>
    %75 = tpu.matmul %1, %74, %cst_59 {dimension_numbers = #tpu.dot_dimension_numbers<[1], [0], [0], [1], [0, 0, 1, 1], [], []>} : vector<8x128xf32>, vector<128x32xf32>, vector<8x32xf32> -> vector<8x32xf32>
    %c2_60 = arith.constant 2 : index
    %c0_61 = arith.constant 0 : index
    %c0_62 = arith.constant 0 : index
    %76 = vector.load %arg5[%c2_60, %c0_61, %c0_62] : memref<4x1x32xf32, #tpu.memory_space<vmem>>, vector<1x1x32xf32>
    %77 = vector.shape_cast %76 : vector<1x1x32xf32> to vector<1x32xf32>
    %78 = vector.broadcast %77 : vector<1x32xf32> to vector<8x32xf32>
    %79 = arith.addf %75, %78 : vector<8x32xf32>
    %c2_63 = arith.constant 2 : index
    %c0_64 = arith.constant 0 : index
    %c0_65 = arith.constant 0 : index
    %80 = vector.load %arg6[%c2_63, %c0_64, %c0_65] : memref<4x128x32xf32, #tpu.memory_space<vmem>>, vector<1x128x32xf32>
    %81 = vector.shape_cast %80 : vector<1x128x32xf32> to vector<128x32xf32>
    %cst_66 = arith.constant dense<0.000000e+00> : vector<8x32xf32>
    %82 = tpu.matmul %1, %81, %cst_66 {dimension_numbers = #tpu.dot_dimension_numbers<[1], [0], [0], [1], [0, 0, 1, 1], [], []>} : vector<8x128xf32>, vector<128x32xf32>, vector<8x32xf32> -> vector<8x32xf32>
    %c2_67 = arith.constant 2 : index
    %c0_68 = arith.constant 0 : index
    %c0_69 = arith.constant 0 : index
    %83 = vector.load %arg7[%c2_67, %c0_68, %c0_69] : memref<4x1x32xf32, #tpu.memory_space<vmem>>, vector<1x1x32xf32>
    %84 = vector.shape_cast %83 : vector<1x1x32xf32> to vector<1x32xf32>
    %85 = vector.broadcast %84 : vector<1x32xf32> to vector<8x32xf32>
    %86 = arith.addf %82, %85 : vector<8x32xf32>
    %cst_70 = arith.constant dense<0.000000e+00> : vector<8x8xf32>
    %87 = tpu.matmul %72, %79, %cst_70 {dimension_numbers = #tpu.dot_dimension_numbers<[1], [1], [0], [0], [0, 0, 1, 0], [], []>} : vector<8x32xf32>, vector<8x32xf32>, vector<8x8xf32> -> vector<8x8xf32>
    %cst_71 = arith.constant dense<0xFF800000> : vector<8xf32>
    %88 = vector.multi_reduction <maximumf>, %87, %cst_71 [1] : vector<8x8xf32> to vector<8xf32>
    %89 = vector.shape_cast %88 : vector<8xf32> to vector<8x1xf32>
    %90 = vector.broadcast %89 : vector<8x1xf32> to vector<8x8xf32>
    %91 = arith.subf %87, %90 : vector<8x8xf32>
    %92 = math.exp %91 : vector<8x8xf32>
    %cst_72 = arith.constant dense<0.000000e+00> : vector<8xf32>
    %93 = vector.multi_reduction <add>, %92, %cst_72 [1] : vector<8x8xf32> to vector<8xf32>
    %94 = vector.shape_cast %93 : vector<8xf32> to vector<8x1xf32>
    %95 = vector.broadcast %94 : vector<8x1xf32> to vector<8x8xf32>
    %96 = arith.divf %92, %95 : vector<8x8xf32>
    %cst_73 = arith.constant dense<0.000000e+00> : vector<8x32xf32>
    %97 = tpu.matmul %96, %86, %cst_73 {dimension_numbers = #tpu.dot_dimension_numbers<[1], [0], [0], [1], [0, 0, 1, 1], [], []>} : vector<8x8xf32>, vector<8x32xf32>, vector<8x32xf32> -> vector<8x32xf32>
    %c3 = arith.constant 3 : index
    %c0_74 = arith.constant 0 : index
    %c0_75 = arith.constant 0 : index
    %98 = vector.load %arg2[%c3, %c0_74, %c0_75] : memref<4x128x32xf32, #tpu.memory_space<vmem>>, vector<1x128x32xf32>
    %99 = vector.shape_cast %98 : vector<1x128x32xf32> to vector<128x32xf32>
    %cst_76 = arith.constant dense<0.000000e+00> : vector<8x32xf32>
    %100 = tpu.matmul %1, %99, %cst_76 {dimension_numbers = #tpu.dot_dimension_numbers<[1], [0], [0], [1], [0, 0, 1, 1], [], []>} : vector<8x128xf32>, vector<128x32xf32>, vector<8x32xf32> -> vector<8x32xf32>
    %c3_77 = arith.constant 3 : index
    %c0_78 = arith.constant 0 : index
    %c0_79 = arith.constant 0 : index
    %101 = vector.load %arg3[%c3_77, %c0_78, %c0_79] : memref<4x1x32xf32, #tpu.memory_space<vmem>>, vector<1x1x32xf32>
    %102 = vector.shape_cast %101 : vector<1x1x32xf32> to vector<1x32xf32>
    %103 = vector.broadcast %102 : vector<1x32xf32> to vector<8x32xf32>
    %104 = arith.addf %100, %103 : vector<8x32xf32>
    %c3_80 = arith.constant 3 : index
    %c0_81 = arith.constant 0 : index
    %c0_82 = arith.constant 0 : index
    %105 = vector.load %arg4[%c3_80, %c0_81, %c0_82] : memref<4x128x32xf32, #tpu.memory_space<vmem>>, vector<1x128x32xf32>
    %106 = vector.shape_cast %105 : vector<1x128x32xf32> to vector<128x32xf32>
    %cst_83 = arith.constant dense<0.000000e+00> : vector<8x32xf32>
    %107 = tpu.matmul %1, %106, %cst_83 {dimension_numbers = #tpu.dot_dimension_numbers<[1], [0], [0], [1], [0, 0, 1, 1], [], []>} : vector<8x128xf32>, vector<128x32xf32>, vector<8x32xf32> -> vector<8x32xf32>
    %c3_84 = arith.constant 3 : index
    %c0_85 = arith.constant 0 : index
    %c0_86 = arith.constant 0 : index
    %108 = vector.load %arg5[%c3_84, %c0_85, %c0_86] : memref<4x1x32xf32, #tpu.memory_space<vmem>>, vector<1x1x32xf32>
    %109 = vector.shape_cast %108 : vector<1x1x32xf32> to vector<1x32xf32>
    %110 = vector.broadcast %109 : vector<1x32xf32> to vector<8x32xf32>
    %111 = arith.addf %107, %110 : vector<8x32xf32>
    %c3_87 = arith.constant 3 : index
    %c0_88 = arith.constant 0 : index
    %c0_89 = arith.constant 0 : index
    %112 = vector.load %arg6[%c3_87, %c0_88, %c0_89] : memref<4x128x32xf32, #tpu.memory_space<vmem>>, vector<1x128x32xf32>
    %113 = vector.shape_cast %112 : vector<1x128x32xf32> to vector<128x32xf32>
    %cst_90 = arith.constant dense<0.000000e+00> : vector<8x32xf32>
    %114 = tpu.matmul %1, %113, %cst_90 {dimension_numbers = #tpu.dot_dimension_numbers<[1], [0], [0], [1], [0, 0, 1, 1], [], []>} : vector<8x128xf32>, vector<128x32xf32>, vector<8x32xf32> -> vector<8x32xf32>
    %c3_91 = arith.constant 3 : index
    %c0_92 = arith.constant 0 : index
    %c0_93 = arith.constant 0 : index
    %115 = vector.load %arg7[%c3_91, %c0_92, %c0_93] : memref<4x1x32xf32, #tpu.memory_space<vmem>>, vector<1x1x32xf32>
    %116 = vector.shape_cast %115 : vector<1x1x32xf32> to vector<1x32xf32>
    %117 = vector.broadcast %116 : vector<1x32xf32> to vector<8x32xf32>
    %118 = arith.addf %114, %117 : vector<8x32xf32>
    %cst_94 = arith.constant dense<0.000000e+00> : vector<8x8xf32>
    %119 = tpu.matmul %104, %111, %cst_94 {dimension_numbers = #tpu.dot_dimension_numbers<[1], [1], [0], [0], [0, 0, 1, 0], [], []>} : vector<8x32xf32>, vector<8x32xf32>, vector<8x8xf32> -> vector<8x8xf32>
    %cst_95 = arith.constant dense<0xFF800000> : vector<8xf32>
    %120 = vector.multi_reduction <maximumf>, %119, %cst_95 [1] : vector<8x8xf32> to vector<8xf32>
    %121 = vector.shape_cast %120 : vector<8xf32> to vector<8x1xf32>
    %122 = vector.broadcast %121 : vector<8x1xf32> to vector<8x8xf32>
    %123 = arith.subf %119, %122 : vector<8x8xf32>
    %124 = math.exp %123 : vector<8x8xf32>
    %cst_96 = arith.constant dense<0.000000e+00> : vector<8xf32>
    %125 = vector.multi_reduction <add>, %124, %cst_96 [1] : vector<8x8xf32> to vector<8xf32>
    %126 = vector.shape_cast %125 : vector<8xf32> to vector<8x1xf32>
    %127 = vector.broadcast %126 : vector<8x1xf32> to vector<8x8xf32>
    %128 = arith.divf %124, %127 : vector<8x8xf32>
    %cst_97 = arith.constant dense<0.000000e+00> : vector<8x32xf32>
    %129 = tpu.matmul %128, %118, %cst_97 {dimension_numbers = #tpu.dot_dimension_numbers<[1], [0], [0], [1], [0, 0, 1, 1], [], []>} : vector<8x8xf32>, vector<8x32xf32>, vector<8x32xf32> -> vector<8x32xf32>
    %130 = tpu.concatenate %33, %65, %97, %129 in 1 : vector<8x32xf32>, vector<8x32xf32>, vector<8x32xf32>, vector<8x32xf32> -> vector<8x128xf32>
    %c0_98 = arith.constant 0 : index
    %c0_99 = arith.constant 0 : index
    %131 = vector.load %arg8[%c0_98, %c0_99] : memref<128x128xf32, #tpu.memory_space<vmem>>, vector<128x128xf32>
    %cst_100 = arith.constant dense<0.000000e+00> : vector<8x128xf32>
    %132 = tpu.matmul %130, %131, %cst_100 {dimension_numbers = #tpu.dot_dimension_numbers<[1], [0], [0], [1], [0, 0, 1, 1], [], []>} : vector<8x128xf32>, vector<128x128xf32>, vector<8x128xf32> -> vector<8x128xf32>
    %133 = arith.addf %1, %132 : vector<8x128xf32>
    %c0_101 = arith.constant 0 : index
    %c0_102 = arith.constant 0 : index
    %134 = vector.load %arg9[%c0_101, %c0_102] : memref<1x128xf32, #tpu.memory_space<vmem>>, vector<1x128xf32>
    %135 = vector.broadcast %134 : vector<1x128xf32> to vector<8x128xf32>
    %136 = arith.addf %133, %135 : vector<8x128xf32>
    %c0_103 = arith.constant 0 : index
    %c0_104 = arith.constant 0 : index
    %137 = vector.load %arg10[%c0_103, %c0_104] : memref<1x128xf32, #tpu.memory_space<vmem>>, vector<1x128xf32>
    %c0_105 = arith.constant 0 : index
    %c0_106 = arith.constant 0 : index
    %138 = vector.load %arg11[%c0_105, %c0_106] : memref<1x128xf32, #tpu.memory_space<vmem>>, vector<1x128xf32>
    %cst_107 = arith.constant dense<0.000000e+00> : vector<8xf32>
    %139 = vector.multi_reduction <add>, %136, %cst_107 [1] : vector<8x128xf32> to vector<8xf32>
    %140 = vector.shape_cast %139 : vector<8xf32> to vector<8x1xf32>
    %cst_108 = arith.constant 1.280000e+02 : f32
    %141 = vector.broadcast %cst_108 : f32 to vector<8x1xf32>
    %142 = arith.divf %140, %141 : vector<8x1xf32>
    %143 = vector.broadcast %142 : vector<8x1xf32> to vector<8x128xf32>
    %144 = arith.subf %136, %143 : vector<8x128xf32>
    %145 = arith.mulf %144, %144 : vector<8x128xf32>
    %cst_109 = arith.constant dense<0.000000e+00> : vector<8xf32>
    %146 = vector.multi_reduction <add>, %145, %cst_109 [1] : vector<8x128xf32> to vector<8xf32>
    %147 = vector.shape_cast %146 : vector<8xf32> to vector<8x1xf32>
    %cst_110 = arith.constant 1.280000e+02 : f32
    %148 = vector.broadcast %cst_110 : f32 to vector<8x1xf32>
    %149 = arith.divf %147, %148 : vector<8x1xf32>
    %150 = vector.broadcast %142 : vector<8x1xf32> to vector<8x128xf32>
    %151 = arith.subf %136, %150 : vector<8x128xf32>
    %cst_111 = arith.constant 9.99999974E-6 : f32
    %152 = vector.broadcast %cst_111 : f32 to vector<8x1xf32>
    %153 = arith.addf %149, %152 : vector<8x1xf32>
    %154 = math.rsqrt %153 : vector<8x1xf32>
    %155 = vector.broadcast %154 : vector<8x1xf32> to vector<8x128xf32>
    %156 = arith.mulf %151, %155 : vector<8x128xf32>
    %157 = vector.broadcast %137 : vector<1x128xf32> to vector<8x128xf32>
    %158 = arith.mulf %156, %157 : vector<8x128xf32>
    %159 = vector.broadcast %138 : vector<1x128xf32> to vector<8x128xf32>
    %160 = arith.addf %158, %159 : vector<8x128xf32>
    %c0_112 = arith.constant 0 : index
    %c0_113 = arith.constant 0 : index
    %c0_114 = arith.constant 0 : index
    %161 = vector.load %arg12[%c0_112, %c0_113, %c0_114] : memref<1x8x128xf32, #tpu.memory_space<vmem>>, vector<1x8x128xf32>
    %162 = vector.shape_cast %161 : vector<1x8x128xf32> to vector<8x128xf32>
    %163 = vector.shape_cast %160 : vector<8x128xf32> to vector<1x8x128xf32>
    tpu.vector_store %arg12[%c0_112, %c0_113, %c0_114], %163 {strides = array<i32>} : memref<1x8x128xf32, #tpu.memory_space<vmem>>, vector<1x8x128xf32>,
    return
  }
  func.func @transform_0(%arg0: i32) -> (i32, i32, i32) {
    %c0_i32 = arith.constant 0 : i32
    %c0_i32_0 = arith.constant 0 : i32
    %c0_i32_1 = arith.constant 0 : i32
    return %arg0, %c0_i32, %c0_i32_0 : i32, i32, i32
  }
  func.func @transform_1(%arg0: i32) -> (i32, i32, i32) {
    %c0_i32 = arith.constant 0 : i32
    %c0_i32_0 = arith.constant 0 : i32
    %c0_i32_1 = arith.constant 0 : i32
    %c0_i32_2 = arith.constant 0 : i32
    return %c0_i32, %c0_i32_0, %c0_i32_1 : i32, i32, i32
  }
  func.func @transform_2(%arg0: i32) -> (i32, i32, i32) {
    %c0_i32 = arith.constant 0 : i32
    %c0_i32_0 = arith.constant 0 : i32
    %c0_i32_1 = arith.constant 0 : i32
    %c0_i32_2 = arith.constant 0 : i32
    return %c0_i32, %c0_i32_0, %c0_i32_1 : i32, i32, i32
  }
  func.func @transform_3(%arg0: i32) -> (i32, i32, i32) {
    %c0_i32 = arith.constant 0 : i32
    %c0_i32_0 = arith.constant 0 : i32
    %c0_i32_1 = arith.constant 0 : i32
    %c0_i32_2 = arith.constant 0 : i32
    return %c0_i32, %c0_i32_0, %c0_i32_1 : i32, i32, i32
  }
  func.func @transform_4(%arg0: i32) -> (i32, i32, i32) {
    %c0_i32 = arith.constant 0 : i32
    %c0_i32_0 = arith.constant 0 : i32
    %c0_i32_1 = arith.constant 0 : i32
    %c0_i32_2 = arith.constant 0 : i32
    return %c0_i32, %c0_i32_0, %c0_i32_1 : i32, i32, i32
  }
  func.func @transform_5(%arg0: i32) -> (i32, i32, i32) {
    %c0_i32 = arith.constant 0 : i32
    %c0_i32_0 = arith.constant 0 : i32
    %c0_i32_1 = arith.constant 0 : i32
    %c0_i32_2 = arith.constant 0 : i32
    return %c0_i32, %c0_i32_0, %c0_i32_1 : i32, i32, i32
  }
  func.func @transform_6(%arg0: i32) -> (i32, i32, i32) {
    %c0_i32 = arith.constant 0 : i32
    %c0_i32_0 = arith.constant 0 : i32
    %c0_i32_1 = arith.constant 0 : i32
    %c0_i32_2 = arith.constant 0 : i32
    return %c0_i32, %c0_i32_0, %c0_i32_1 : i32, i32, i32
  }
  func.func @transform_7(%arg0: i32) -> (i32, i32) {
    %c0_i32 = arith.constant 0 : i32
    %c0_i32_0 = arith.constant 0 : i32
    %c0_i32_1 = arith.constant 0 : i32
    return %c0_i32, %c0_i32_0 : i32, i32
  }
  func.func @transform_8(%arg0: i32) -> (i32, i32) {
    %c0_i32 = arith.constant 0 : i32
    %c0_i32_0 = arith.constant 0 : i32
    %c0_i32_1 = arith.constant 0 : i32
    return %c0_i32, %c0_i32_0 : i32, i32
  }
  func.func @transform_9(%arg0: i32) -> (i32, i32) {
    %c0_i32 = arith.constant 0 : i32
    %c0_i32_0 = arith.constant 0 : i32
    %c0_i32_1 = arith.constant 0 : i32
    return %c0_i32, %c0_i32_0 : i32, i32
  }
  func.func @transform_10(%arg0: i32) -> (i32, i32) {
    %c0_i32 = arith.constant 0 : i32
    %c0_i32_0 = arith.constant 0 : i32
    %c0_i32_1 = arith.constant 0 : i32
    return %c0_i32, %c0_i32_0 : i32, i32
  }
  func.func @transform_11(%arg0: i32) -> (i32, i32, i32) {
    %c0_i32 = arith.constant 0 : i32
    %c0_i32_0 = arith.constant 0 : i32
    %c0_i32_1 = arith.constant 0 : i32
    return %arg0, %c0_i32, %c0_i32_0 : i32, i32, i32
  }
}

module attributes {stable_mosaic.version = 11 : i64} {
  func.func @_linear_tile_kernel(%arg0: i32, %arg1: i32, %arg2: memref<16x128xf32, #tpu.memory_space<vmem>>, %arg3: memref<128x256xf32, #tpu.memory_space<vmem>>, %arg4: memref<1x256xf32, #tpu.memory_space<vmem>>, %arg5: memref<16x256xf32, #tpu.memory_space<vmem>>) attributes {dimension_semantics = [#tpu.dimension_semantics<parallel>, #tpu.dimension_semantics<parallel>], iteration_bounds = array<i64: 2, 1>, scalar_prefetch = 0 : i64, scratch_operands = 0 : i64, tpu.core_type = #tpu.core_type<tc>, window_params = [{transform_indices = @transform_0, window_bounds = array<i64: 16, 128>}, {transform_indices = @transform_1, window_bounds = array<i64: 128, 256>}, {transform_indices = @transform_2, window_bounds = array<i64: 1, 256>}, {transform_indices = @transform_3, window_bounds = array<i64: 16, 256>}]} {
    %c0 = arith.constant 0 : index
    %c0_0 = arith.constant 0 : index
    %0 = vector.load %arg2[%c0, %c0_0] : memref<16x128xf32, #tpu.memory_space<vmem>>, vector<16x128xf32>
    %c0_1 = arith.constant 0 : index
    %c0_2 = arith.constant 0 : index
    %1 = vector.load %arg3[%c0_1, %c0_2] : memref<128x256xf32, #tpu.memory_space<vmem>>, vector<128x256xf32>
    %cst = arith.constant dense<0.000000e+00> : vector<16x256xf32>
    %2 = tpu.matmul %0, %1, %cst {dimension_numbers = #tpu.dot_dimension_numbers<[1], [0], [0], [1], [0, 0, 1, 1], [], []>} : vector<16x128xf32>, vector<128x256xf32>, vector<16x256xf32> -> vector<16x256xf32>
    %c0_3 = arith.constant 0 : index
    %c0_4 = arith.constant 0 : index
    %3 = vector.load %arg4[%c0_3, %c0_4] : memref<1x256xf32, #tpu.memory_space<vmem>>, vector<1x256xf32>
    %4 = vector.broadcast %3 : vector<1x256xf32> to vector<16x256xf32>
    %5 = arith.addf %2, %4 : vector<16x256xf32>
    %c0_5 = arith.constant 0 : index
    %c0_6 = arith.constant 0 : index
    %6 = vector.load %arg5[%c0_5, %c0_6] : memref<16x256xf32, #tpu.memory_space<vmem>>, vector<16x256xf32>
    tpu.vector_store %arg5[%c0_5, %c0_6], %5 {strides = array<i32>} : memref<16x256xf32, #tpu.memory_space<vmem>>, vector<16x256xf32>,
    return
  }
  func.func @transform_0(%arg0: i32, %arg1: i32) -> (i32, i32) {
    %c0_i32 = arith.constant 0 : i32
    %c0_i32_0 = arith.constant 0 : i32
    return %arg1, %c0_i32 : i32, i32
  }
  func.func @transform_1(%arg0: i32, %arg1: i32) -> (i32, i32) {
    %c0_i32 = arith.constant 0 : i32
    %c0_i32_0 = arith.constant 0 : i32
    return %c0_i32, %arg0 : i32, i32
  }
  func.func @transform_2(%arg0: i32, %arg1: i32) -> (i32, i32) {
    %c0_i32 = arith.constant 0 : i32
    %c0_i32_0 = arith.constant 0 : i32
    return %c0_i32, %arg0 : i32, i32
  }
  func.func @transform_3(%arg0: i32, %arg1: i32) -> (i32, i32) {
    %c0_i32 = arith.constant 0 : i32
    return %arg1, %arg0 : i32, i32
  }
}

</mosaic_0001>

<llo_original>
// kernel: content_generator_forward.11
$region0: #{content_generator_forward.11}
  #allocation0 [shape = 'u32[]', space=smem, size = 0x4, offset = 0x4, fixed_abs, tag = 'smem constant byte address 0x4 - core index']
  #allocation1 [shape = 'u32[72,128]{1,0:T(1,128)}', space=vmem, size = 0x9000, scoped, tag = 'internal scratch']
  %s0 = inlined_call_operand.vmem [shape: f32[16,128], index: 0, kind: input, shape index: {}]
  %s1 = inlined_call_operand.vmem [shape: f32[128,512], index: 1, kind: input, shape index: {}]
  %s2 = inlined_call_operand.vmem [shape: f32[1,512], index: 2, kind: input, shape index: {}]
  %s3 = inlined_call_operand.vmem [shape: f32[512,128], index: 3, kind: input, shape index: {}]
  %s4 = inlined_call_operand.vmem [shape: f32[1,128], index: 4, kind: input, shape index: {}]
  %s5 = inlined_call_operand.vmem [shape: f32[1,128], index: 5, kind: input, shape index: {}]
  %s6 = inlined_call_operand.vmem [shape: f32[1,128], index: 6, kind: input, shape index: {}]
  %s7 = inlined_call_operand.vmem [shape: f32[16,128], index: 7, kind: output, shape index: {}]
  %s8 = sld [smem:[#allocation0]]
  $region38: #{content_generator_forward.11} parent=0
    _
  %s10 = ssub.s32 1, %s8
  %s11 = scalar_select 0, %s10, %s8
  // Predicated region
  $region2: #{content_generator_forward.11} parent=0 // pred_check
    _
  $region3: #{content_generator_forward.11} parent=0 // pred_check_branch
    %13 = sbr.rel (0) target = $region5
  $region4: #{content_generator_forward.11} parent=0 // pred_region
    _
  $region5: #{content_generator_forward.11} parent=0 // pred_fallthru
    _
  // Predicated region
  $region6: #{content_generator_forward.11} parent=0 // pred_check
    _
  $region7: #{content_generator_forward.11} parent=0 // pred_check_branch
    %15 = sbr.rel (0) target = $region9
  $region8: #{content_generator_forward.11} parent=0 // pred_region
    _
  $region9: #{content_generator_forward.11} parent=0 // pred_fallthru
    _
  // Predicated region
  $region10: #{content_generator_forward.11} parent=0 // pred_check
    _
  $region11: #{content_generator_forward.11} parent=0 // pred_check_branch
    %17 = sbr.rel (0) target = $region13
  $region12: #{content_generator_forward.11} parent=0 // pred_region
    _
  $region13: #{content_generator_forward.11} parent=0 // pred_fallthru
    _
  // Predicated region
  $region14: #{content_generator_forward.11} parent=0 // pred_check
    _
  $region15: #{content_generator_forward.11} parent=0 // pred_check_branch
    %19 = sbr.rel (0) target = $region17
  $region16: #{content_generator_forward.11} parent=0 // pred_region
    _
  $region17: #{content_generator_forward.11} parent=0 // pred_fallthru
    _
  // Predicated region
  $region18: #{content_generator_forward.11} parent=0 // pred_check
    _
  $region19: #{content_generator_forward.11} parent=0 // pred_check_branch
    %21 = sbr.rel (0) target = $region21
  $region20: #{content_generator_forward.11} parent=0 // pred_region
    _
  $region21: #{content_generator_forward.11} parent=0 // pred_fallthru
    _
  // Predicated region
  $region22: #{content_generator_forward.11} parent=0 // pred_check
    _
  $region23: #{content_generator_forward.11} parent=0 // pred_check_branch
    %23 = sbr.rel (0) target = $region25
  $region24: #{content_generator_forward.11} parent=0 // pred_region
    _
  $region25: #{content_generator_forward.11} parent=0 // pred_fallthru
    _
  // Predicated region
  $region26: #{content_generator_forward.11} parent=0 // pred_check
    _
  $region27: #{content_generator_forward.11} parent=0 // pred_check_branch
    %25 = sbr.rel (0) target = $region29
  $region28: #{content_generator_forward.11} parent=0 // pred_region
    _
  $region29: #{content_generator_forward.11} parent=0 // pred_fallthru
    _
  %v26 = vld [vmem:[%s0] sm:$0xff]
  %v27 = vld [vmem:[%s0 + $0x8] sm:$0xff]
  %v28 = vld [vmem:[%s1] sm:$0xff]
  %v29 = vld [vmem:[%s1 + $0x8] sm:$0xff]
  %v30 = vld [vmem:[%s1 + $0x10] sm:$0xff]
  %v31 = vld [vmem:[%s1 + $0x18] sm:$0xff]
  %v32 = vld [vmem:[%s1 + $0x20] sm:$0xff]
  %v33 = vld [vmem:[%s1 + $0x28] sm:$0xff]
  %v34 = vld [vmem:[%s1 + $0x30] sm:$0xff]
  %v35 = vld [vmem:[%s1 + $0x38] sm:$0xff]
  %v36 = vld [vmem:[%s1 + $0x40] sm:$0xff]
  %v37 = vld [vmem:[%s1 + $0x48] sm:$0xff]
  %v38 = vld [vmem:[%s1 + $0x50] sm:$0xff]
  %v39 = vld [vmem:[%s1 + $0x58] sm:$0xff]
  %v40 = vld [vmem:[%s1 + $0x60] sm:$0xff]
  %v41 = vld [vmem:[%s1 + $0x68] sm:$0xff]
  %v42 = vld [vmem:[%s1 + $0x70] sm:$0xff]
  %v43 = vld [vmem:[%s1 + $0x78] sm:$0xff]
  %v44 = vld [vmem:[%s1 + $0x80] sm:$0xff]
  %v45 = vld [vmem:[%s1 + $0x88] sm:$0xff]
  %v46 = vld [vmem:[%s1 + $0x90] sm:$0xff]
  %v47 = vld [vmem:[%s1 + $0x98] sm:$0xff]
  %v48 = vld [vmem:[%s1 + $0xa0] sm:$0xff]
  %v49 = vld [vmem:[%s1 + $0xa8] sm:$0xff]
  %v50 = vld [vmem:[%s1 + $0xb0] sm:$0xff]
  %v51 = vld [vmem:[%s1 + $0xb8] sm:$0xff]
  %v52 = vld [vmem:[%s1 + $0xc0] sm:$0xff]
  %v53 = vld [vmem:[%s1 + $0xc8] sm:$0xff]
  %v54 = vld [vmem:[%s1 + $0xd0] sm:$0xff]
  %v55 = vld [vmem:[%s1 + $0xd8] sm:$0xff]
  %v56 = vld [vmem:[%s1 + $0xe0] sm:$0xff]
  %v57 = vld [vmem:[%s1 + $0xe8] sm:$0xff]
  %v58 = vld [vmem:[%s1 + $0xf0] sm:$0xff]
  %v59 = vld [vmem:[%s1 + $0xf8] sm:$0xff]
  %v60 = vld [vmem:[%s1 + $0x100] sm:$0xff]
  %v61 = vld [vmem:[%s1 + $0x108] sm:$0xff]
  %v62 = vld [vmem:[%s1 + $0x110] sm:$0xff]
  %v63 = vld [vmem:[%s1 + $0x118] sm:$0xff]
  %v64 = vld [vmem:[%s1 + $0x120] sm:$0xff]
  %v65 = vld [vmem:[%s1 + $0x128] sm:$0xff]
  %v66 = vld [vmem:[%s1 + $0x130] sm:$0xff]
  %v67 = vld [vmem:[%s1 + $0x138] sm:$0xff]
  %v68 = vld [vmem:[%s1 + $0x140] sm:$0xff]
  %v69 = vld [vmem:[%s1 + $0x148] sm:$0xff]
  %v70 = vld [vmem:[%s1 + $0x150] sm:$0xff]
  %v71 = vld [vmem:[%s1 + $0x158] sm:$0xff]
  %v72 = vld [vmem:[%s1 + $0x160] sm:$0xff]
  %v73 = vld [vmem:[%s1 + $0x168] sm:$0xff]
  %v74 = vld [vmem:[%s1 + $0x170] sm:$0xff]
  %v75 = vld [vmem:[%s1 + $0x178] sm:$0xff]
  %v76 = vld [vmem:[%s1 + $0x180] sm:$0xff]
  %v77 = vld [vmem:[%s1 + $0x188] sm:$0xff]
  %v78 = vld [vmem:[%s1 + $0x190] sm:$0xff]
  %v79 = vld [vmem:[%s1 + $0x198] sm:$0xff]
  %v80 = vld [vmem:[%s1 + $0x1a0] sm:$0xff]
  %v81 = vld [vmem:[%s1 + $0x1a8] sm:$0xff]
  %v82 = vld [vmem:[%s1 + $0x1b0] sm:$0xff]
  %v83 = vld [vmem:[%s1 + $0x1b8] sm:$0xff]
  %v84 = vld [vmem:[%s1 + $0x1c0] sm:$0xff]
  %v85 = vld [vmem:[%s1 + $0x1c8] sm:$0xff]
  %v86 = vld [vmem:[%s1 + $0x1d0] sm:$0xff]
  %v87 = vld [vmem:[%s1 + $0x1d8] sm:$0xff]
  %v88 = vld [vmem:[%s1 + $0x1e0] sm:$0xff]
  %v89 = vld [vmem:[%s1 + $0x1e8] sm:$0xff]
  %v90 = vld [vmem:[%s1 + $0x1f0] sm:$0xff]
  %v91 = vld [vmem:[%s1 + $0x1f8] sm:$0xff]
  %v92 = vld [vmem:[%s2] sm:$0xf]
  %v94 = vperm.slane %v92, 0
  %v95 = vperm.slane %v92, 1
  %v96 = vperm.slane %v92, 2
  %v97 = vperm.slane %v92, 3
  %102 = vmatpush.msra.mxu0 %v88
  %103 = vmatpush.msra.mxu0 %v84
  %104 = vmatpush.msra.mxu0 %v80
  %105 = vmatpush.msra.mxu0 %v76
  %106 = vmatpush.msra.mxu0 %v72
  %107 = vmatpush.msra.mxu0 %v68
  %108 = vmatpush.msra.mxu0 %v64
  %109 = vmatpush.msra.mxu0 %v60
  %110 = vmatpush.msra.mxu0 %v56
  %111 = vmatpush.msra.mxu0 %v52
  %112 = vmatpush.msra.mxu0 %v48
  %113 = vmatpush.msra.mxu0 %v44
  %114 = vmatpush.msra.mxu0 %v40
  %115 = vmatpush.msra.mxu0 %v36
  %116 = vmatpush.msra.mxu0 %v32
  %117 = vmatpush.msra.mxu0 %v28
  %118 = vmatmul.f32.gmra.mxu0 %v26
  %v119 = vpop.f32.mrf.mxu0
  %v120 = vadd.f32 %v94, %v119
  %121 = vmatmul.f32.gmra.mxu0 %v27
  %v122 = vpop.f32.mrf.mxu0
  %v123 = vadd.f32 %v94, %v122
  %124 = vdwg.mxu0
  %125 = vmatpush.msra.mxu0 %v89
  %126 = vmatpush.msra.mxu0 %v85
  %127 = vmatpush.msra.mxu0 %v81
  %128 = vmatpush.msra.mxu0 %v77
  %129 = vmatpush.msra.mxu0 %v73
  %130 = vmatpush.msra.mxu0 %v69
  %131 = vmatpush.msra.mxu0 %v65
  %132 = vmatpush.msra.mxu0 %v61
  %133 = vmatpush.msra.mxu0 %v57
  %134 = vmatpush.msra.mxu0 %v53
  %135 = vmatpush.msra.mxu0 %v49
  %136 = vmatpush.msra.mxu0 %v45
  %137 = vmatpush.msra.mxu0 %v41
  %138 = vmatpush.msra.mxu0 %v37
  %139 = vmatpush.msra.mxu0 %v33
  %140 = vmatpush.msra.mxu0 %v29
  %141 = vmatmul.f32.gmra.mxu0 %v26
  %v142 = vpop.f32.mrf.mxu0
  %v143 = vadd.f32 %v95, %v142
  %144 = vmatmul.f32.gmra.mxu0 %v27
  %v145 = vpop.f32.mrf.mxu0
  %v146 = vadd.f32 %v95, %v145
  %147 = vdwg.mxu0
  %148 = vmatpush.msra.mxu0 %v90
  %149 = vmatpush.msra.mxu0 %v86
  %150 = vmatpush.msra.mxu0 %v82
  %151 = vmatpush.msra.mxu0 %v78
  %152 = vmatpush.msra.mxu0 %v74
  %153 = vmatpush.msra.mxu0 %v70
  %154 = vmatpush.msra.mxu0 %v66
  %155 = vmatpush.msra.mxu0 %v62
  %156 = vmatpush.msra.mxu0 %v58
  %157 = vmatpush.msra.mxu0 %v54
  %158 = vmatpush.msra.mxu0 %v50
  %159 = vmatpush.msra.mxu0 %v46
  %160 = vmatpush.msra.mxu0 %v42
  %161 = vmatpush.msra.mxu0 %v38
  %162 = vmatpush.msra.mxu0 %v34
  %163 = vmatpush.msra.mxu0 %v30
  %164 = vmatmul.f32.gmra.mxu0 %v26
  %v165 = vpop.f32.mrf.mxu0
  %v166 = vadd.f32 %v96, %v165
  %167 = vmatmul.f32.gmra.mxu0 %v27
  %v168 = vpop.f32.mrf.mxu0
  %v169 = vadd.f32 %v96, %v168
  %170 = vdwg.mxu0
  %171 = vmatpush.msra.mxu0 %v91
  %172 = vmatpush.msra.mxu0 %v87
  %173 = vmatpush.msra.mxu0 %v83
  %174 = vmatpush.msra.mxu0 %v79
  %175 = vmatpush.msra.mxu0 %v75
  %176 = vmatpush.msra.mxu0 %v71
  %177 = vmatpush.msra.mxu0 %v67
  %178 = vmatpush.msra.mxu0 %v63
  %179 = vmatpush.msra.mxu0 %v59
  %180 = vmatpush.msra.mxu0 %v55
  %181 = vmatpush.msra.mxu0 %v51
  %182 = vmatpush.msra.mxu0 %v47
  %183 = vmatpush.msra.mxu0 %v43
  %184 = vmatpush.msra.mxu0 %v39
  %185 = vmatpush.msra.mxu0 %v35
  %186 = vmatpush.msra.mxu0 %v31
  %187 = vmatmul.f32.gmra.mxu0 %v26
  %v188 = vpop.f32.mrf.mxu0
  %v189 = vadd.f32 %v97, %v188
  %190 = vmatmul.f32.gmra.mxu0 %v27
  %v191 = vpop.f32.mrf.mxu0
  %v192 = vadd.f32 %v97, %v191
  %193 = vdwg.mxu0
  %v194 = vmax.f32 %v120, 0.0
  %v195 = vmax.f32 %v143, 0.0
  %v196 = vmax.f32 %v166, 0.0
  %v197 = vmax.f32 %v189, 0.0
  %v198 = vmax.f32 %v123, 0.0
  %v199 = vmax.f32 %v146, 0.0
  %v200 = vmax.f32 %v169, 0.0
  %v201 = vmax.f32 %v192, 0.0
  %v202 = vld [vmem:[%s3] sm:$0xff]
  %v203 = vld [vmem:[%s3 + $0x8] sm:$0xff]
  %v204 = vld [vmem:[%s3 + $0x10] sm:$0xff]
  %v205 = vld [vmem:[%s3 + $0x18] sm:$0xff]
  %v206 = vld [vmem:[%s3 + $0x20] sm:$0xff]
  %v207 = vld [vmem:[%s3 + $0x28] sm:$0xff]
  %v208 = vld [vmem:[%s3 + $0x30] sm:$0xff]
  %v209 = vld [vmem:[%s3 + $0x38] sm:$0xff]
  %v210 = vld [vmem:[%s3 + $0x40] sm:$0xff]
  %v211 = vld [vmem:[%s3 + $0x48] sm:$0xff]
  %v212 = vld [vmem:[%s3 + $0x50] sm:$0xff]
  %v213 = vld [vmem:[%s3 + $0x58] sm:$0xff]
  %v214 = vld [vmem:[%s3 + $0x60] sm:$0xff]
  %v215 = vld [vmem:[%s3 + $0x68] sm:$0xff]
  %v216 = vld [vmem:[%s3 + $0x70] sm:$0xff]
  %v217 = vld [vmem:[%s3 + $0x78] sm:$0xff]
  %v218 = vld [vmem:[%s3 + $0x80] sm:$0xff]
  %v219 = vld [vmem:[%s3 + $0x88] sm:$0xff]
  %v220 = vld [vmem:[%s3 + $0x90] sm:$0xff]
  %v221 = vld [vmem:[%s3 + $0x98] sm:$0xff]
  %v222 = vld [vmem:[%s3 + $0xa0] sm:$0xff]
  %v223 = vld [vmem:[%s3 + $0xa8] sm:$0xff]
  %v224 = vld [vmem:[%s3 + $0xb0] sm:$0xff]
  %v225 = vld [vmem:[%s3 + $0xb8] sm:$0xff]
  %v226 = vld [vmem:[%s3 + $0xc0] sm:$0xff]
  %v227 = vld [vmem:[%s3 + $0xc8] sm:$0xff]
  %v228 = vld [vmem:[%s3 + $0xd0] sm:$0xff]
  %v229 = vld [vmem:[%s3 + $0xd8] sm:$0xff]
  %v230 = vld [vmem:[%s3 + $0xe0] sm:$0xff]
  %v231 = vld [vmem:[%s3 + $0xe8] sm:$0xff]
  %v232 = vld [vmem:[%s3 + $0xf0] sm:$0xff]
  %v233 = vld [vmem:[%s3 + $0xf8] sm:$0xff]
  %v234 = vld [vmem:[%s3 + $0x100] sm:$0xff]
  %v235 = vld [vmem:[%s3 + $0x108] sm:$0xff]
  %v236 = vld [vmem:[%s3 + $0x110] sm:$0xff]
  %v237 = vld [vmem:[%s3 + $0x118] sm:$0xff]
  %v238 = vld [vmem:[%s3 + $0x120] sm:$0xff]
  %v239 = vld [vmem:[%s3 + $0x128] sm:$0xff]
  %v240 = vld [vmem:[%s3 + $0x130] sm:$0xff]
  %v241 = vld [vmem:[%s3 + $0x138] sm:$0xff]
  %v242 = vld [vmem:[%s3 + $0x140] sm:$0xff]
  %v243 = vld [vmem:[%s3 + $0x148] sm:$0xff]
  %v244 = vld [vmem:[%s3 + $0x150] sm:$0xff]
  %v245 = vld [vmem:[%s3 + $0x158] sm:$0xff]
  %v246 = vld [vmem:[%s3 + $0x160] sm:$0xff]
  %v247 = vld [vmem:[%s3 + $0x168] sm:$0xff]
  %v248 = vld [vmem:[%s3 + $0x170] sm:$0xff]
  %v249 = vld [vmem:[%s3 + $0x178] sm:$0xff]
  %v250 = vld [vmem:[%s3 + $0x180] sm:$0xff]
  %v251 = vld [vmem:[%s3 + $0x188] sm:$0xff]
  %v252 = vld [vmem:[%s3 + $0x190] sm:$0xff]
  %v253 = vld [vmem:[%s3 + $0x198] sm:$0xff]
  %v254 = vld [vmem:[%s3 + $0x1a0] sm:$0xff]
  %v255 = vld [vmem:[%s3 + $0x1a8] sm:$0xff]
  %v256 = vld [vmem:[%s3 + $0x1b0] sm:$0xff]
  %v257 = vld [vmem:[%s3 + $0x1b8] sm:$0xff]
  %v258 = vld [vmem:[%s3 + $0x1c0] sm:$0xff]
  %v259 = vld [vmem:[%s3 + $0x1c8] sm:$0xff]
  %v260 = vld [vmem:[%s3 + $0x1d0] sm:$0xff]
  %v261 = vld [vmem:[%s3 + $0x1d8] sm:$0xff]
  %v262 = vld [vmem:[%s3 + $0x1e0] sm:$0xff]
  %v263 = vld [vmem:[%s3 + $0x1e8] sm:$0xff]
  %v264 = vld [vmem:[%s3 + $0x1f0] sm:$0xff]
  %v265 = vld [vmem:[%s3 + $0x1f8] sm:$0xff]
  %v266 = vld [vmem:[%s4] sm:$0x1]
  %v268 = vperm.slane %v266, 0
  %270 = vmatpush.msra.mxu0 %v217
  %271 = vmatpush.msra.mxu0 %v216
  %272 = vmatpush.msra.mxu0 %v215
  %273 = vmatpush.msra.mxu0 %v214
  %274 = vmatpush.msra.mxu0 %v213
  %275 = vmatpush.msra.mxu0 %v212
  %276 = vmatpush.msra.mxu0 %v211
  %277 = vmatpush.msra.mxu0 %v210
  %278 = vmatpush.msra.mxu0 %v209
  %279 = vmatpush.msra.mxu0 %v208
  %280 = vmatpush.msra.mxu0 %v207
  %281 = vmatpush.msra.mxu0 %v206
  %282 = vmatpush.msra.mxu0 %v205
  %283 = vmatpush.msra.mxu0 %v204
  %284 = vmatpush.msra.mxu0 %v203
  %285 = vmatpush.msra.mxu0 %v202
  %286 = vmatmul.f32.gmra.mxu0 %v194
  %v287 = vpop.f32.mrf.mxu0
  %v288 = vadd.f32 %v268, %v287
  %289 = vmatmul.f32.gmra.mxu0 %v198
  %v290 = vpop.f32.mrf.mxu0
  %v291 = vadd.f32 %v268, %v290
  %292 = vdwg.mxu0
  %293 = vmatpush.msra.mxu0 %v233
  %294 = vmatpush.msra.mxu0 %v232
  %295 = vmatpush.msra.mxu0 %v231
  %296 = vmatpush.msra.mxu0 %v230
  %297 = vmatpush.msra.mxu0 %v229
  %298 = vmatpush.msra.mxu0 %v228
  %299 = vmatpush.msra.mxu0 %v227
  %300 = vmatpush.msra.mxu0 %v226
  %301 = vmatpush.msra.mxu0 %v225
  %302 = vmatpush.msra.mxu0 %v224
  %303 = vmatpush.msra.mxu0 %v223
  %304 = vmatpush.msra.mxu0 %v222
  %305 = vmatpush.msra.mxu0 %v221
  %306 = vmatpush.msra.mxu0 %v220
  %307 = vmatpush.msra.mxu0 %v219
  %308 = vmatpush.msra.mxu0 %v218
  %309 = vmatmul.f32.gmra.mxu0 %v195
  %v310 = vpop.f32.mrf.mxu0
  %v311 = vadd.f32 %v288, %v310
  %312 = vmatmul.f32.gmra.mxu0 %v199
  %v313 = vpop.f32.mrf.mxu0
  %v314 = vadd.f32 %v291, %v313
  %315 = vdwg.mxu0
  %316 = vmatpush.msra.mxu0 %v249
  %317 = vmatpush.msra.mxu0 %v248
  %318 = vmatpush.msra.mxu0 %v247
  %319 = vmatpush.msra.mxu0 %v246
  %320 = vmatpush.msra.mxu0 %v245
  %321 = vmatpush.msra.mxu0 %v244
  %322 = vmatpush.msra.mxu0 %v243
  %323 = vmatpush.msra.mxu0 %v242
  %324 = vmatpush.msra.mxu0 %v241
  %325 = vmatpush.msra.mxu0 %v240
  %326 = vmatpush.msra.mxu0 %v239
  %327 = vmatpush.msra.mxu0 %v238
  %328 = vmatpush.msra.mxu0 %v237
  %329 = vmatpush.msra.mxu0 %v236
  %330 = vmatpush.msra.mxu0 %v235
  %331 = vmatpush.msra.mxu0 %v234
  %332 = vmatmul.f32.gmra.mxu0 %v196
  %v333 = vpop.f32.mrf.mxu0
  %v334 = vadd.f32 %v311, %v333
  %335 = vmatmul.f32.gmra.mxu0 %v200
  %v336 = vpop.f32.mrf.mxu0
  %v337 = vadd.f32 %v314, %v336
  %338 = vdwg.mxu0
  %339 = vmatpush.msra.mxu0 %v265
  %340 = vmatpush.msra.mxu0 %v264
  %341 = vmatpush.msra.mxu0 %v263
  %342 = vmatpush.msra.mxu0 %v262
  %343 = vmatpush.msra.mxu0 %v261
  %344 = vmatpush.msra.mxu0 %v260
  %345 = vmatpush.msra.mxu0 %v259
  %346 = vmatpush.msra.mxu0 %v258
  %347 = vmatpush.msra.mxu0 %v257
  %348 = vmatpush.msra.mxu0 %v256
  %349 = vmatpush.msra.mxu0 %v255
  %350 = vmatpush.msra.mxu0 %v254
  %351 = vmatpush.msra.mxu0 %v253
  %352 = vmatpush.msra.mxu0 %v252
  %353 = vmatpush.msra.mxu0 %v251
  %354 = vmatpush.msra.mxu0 %v250
  %355 = vmatmul.f32.gmra.mxu0 %v197
  %v356 = vpop.f32.mrf.mxu0
  %v357 = vadd.f32 %v334, %v356
  %358 = vmatmul.f32.gmra.mxu0 %v201
  %v359 = vpop.f32.mrf.mxu0
  %v360 = vadd.f32 %v337, %v359
  %361 = vdwg.mxu0
  %v362 = vadd.f32 %v357, %v26
  %v363 = vadd.f32 %v360, %v27
  %v364 = vld [vmem:[%s5] sm:$0x1]
  %v365 = vld [vmem:[%s6] sm:$0x1]
  %366 = vadd.xlane.f32.xlu0 %v362
  %v367 = vpop.xlane.xlu0 %366
  %368 = vadd.xlane.f32.xlu0 %v363
  %v369 = vpop.xlane.xlu0 %368
  %v370 = vrcp.pop 128.0
  %v371 = vmul.f32 128.0, %v370
  %v372 = vsub.f32 1.0, %v371
  %v373 = vmul.f32 %v370, %v372
  %v374 = vadd.f32 %v370, %v373
  %vm375 = vweird.f32 %v370
  %v376 = vsel %vm375, %v370, %v374
  %v377 = vmul.f32 %v367, %v376
  %v378 = vmul.f32 %v369, %v376
  %v379 = vsub.f32 %v362, %v377
  %v380 = vsub.f32 %v363, %v378
  %v381 = vmul.f32 %v379, %v379
  %v382 = vmul.f32 %v380, %v380
  %383 = vadd.xlane.f32.xlu0 %v381
  %v384 = vpop.xlane.xlu0 %383
  %385 = vadd.xlane.f32.xlu0 %v382
  %v386 = vpop.xlane.xlu0 %385
  %v387 = vmul.f32 %v384, %v376
  %v388 = vmul.f32 %v386, %v376
  %v389 = vadd.f32 %v387, 1e-05
  %v390 = vadd.f32 %v388, 1e-05
  %v391 = vrsqrt.pop %v389
  %v392 = vmul.f32 %v391, %v389
  %v393 = vmul.f32 %v392, %v391
  %v394 = vmul.f32 0.5, %v393
  %v395 = vsub.f32 1.5, %v394
  %v396 = vmul.f32 %v391, %v395
  %vm397 = vweird.f32 %v389
  %vm398 = vweird.f32 %v391
  %vm399 = vmor %vm397, %vm398
  %v400 = vsel %vm399, %v391, %v396
  %v401 = vrsqrt.pop %v390
  %v402 = vmul.f32 %v401, %v390
  %v403 = vmul.f32 %v402, %v401
  %v404 = vmul.f32 0.5, %v403
  %v405 = vsub.f32 1.5, %v404
  %v406 = vmul.f32 %v401, %v405
  %vm407 = vweird.f32 %v390
  %vm408 = vweird.f32 %v401
  %vm409 = vmor %vm407, %vm408
  %v410 = vsel %vm409, %v401, %v406
  %v411 = vmul.f32 %v379, %v400
  %v412 = vmul.f32 %v380, %v410
  %v414 = vperm.slane %v364, 0
  %v416 = vmul.f32 %v411, %v414
  %v417 = vmul.f32 %v412, %v414
  %v419 = vperm.slane %v365, 0
  %v421 = vadd.f32 %v416, %v419
  %v422 = vadd.f32 %v417, %v419
  %423 = vst [vmem:[%s7] sm:$0xff] %v421
  %424 = vst [vmem:[%s7 + $0x8] sm:$0xff] %v422
  // Predicated region
  $region30: #{content_generator_forward.11} parent=0 // pred_check
    _
  $region31: #{content_generator_forward.11} parent=0 // pred_check_branch
    %426 = sbr.rel (0) target = $region33
  $region32: #{content_generator_forward.11} parent=0 // pred_region
    _
  $region33: #{content_generator_forward.11} parent=0 // pred_fallthru
    _
  // Predicated region
  $region34: #{content_generator_forward.11} parent=0 // pred_check
    _
  $region35: #{content_generator_forward.11} parent=0 // pred_check_branch
    %428 = sbr.rel (0) target = $region37
  $region36: #{content_generator_forward.11} parent=0 // pred_region
    _
  $region37: #{content_generator_forward.11} parent=0 // pred_fallthru
    _

// kernel: content_generator_forward.10
$region0: #{content_generator_forward.10}
  #allocation0 [shape = 'u32[]', space=smem, size = 0x4, offset = 0x4, fixed_abs, tag = 'smem constant byte address 0x4 - core index']
  #allocation1 [shape = 'u32[72,128]{1,0:T(1,128)}', space=vmem, size = 0x9000, scoped, tag = 'internal scratch']
  %s0 = inlined_call_operand.vmem [shape: f32[2,8,128], index: 0, kind: input, shape index: {}]
  %s1 = inlined_call_operand.vmem [shape: f32[2,8,128], index: 1, kind: input, shape index: {}]
  %s2 = inlined_call_operand.vmem [shape: f32[4,128,32], index: 2, kind: input, shape index: {}]
  %s3 = inlined_call_operand.vmem [shape: f32[4,1,32], index: 3, kind: input, shape index: {}]
  %s4 = inlined_call_operand.vmem [shape: f32[4,128,32], index: 4, kind: input, shape index: {}]
  %s5 = inlined_call_operand.vmem [shape: f32[4,1,32], index: 5, kind: input, shape index: {}]
  %s6 = inlined_call_operand.vmem [shape: f32[4,128,32], index: 6, kind: input, shape index: {}]
  %s7 = inlined_call_operand.vmem [shape: f32[4,1,32], index: 7, kind: input, shape index: {}]
  %s8 = inlined_call_operand.vmem [shape: f32[128,128], index: 8, kind: input, shape index: {}]
  %s9 = inlined_call_operand.vmem [shape: f32[1,128], index: 9, kind: input, shape index: {}]
  %s10 = inlined_call_operand.vmem [shape: f32[1,128], index: 10, kind: input, shape index: {}]
  %s11 = inlined_call_operand.vmem [shape: f32[1,128], index: 11, kind: input, shape index: {}]
  %s12 = inlined_call_operand.vmem [shape: f32[2,8,128], index: 12, kind: output, shape index: {}]
  %s13 = sld [smem:[#allocation0]]
  $region81: #{content_generator_forward.10} parent=0
    _
  %s15 = ssub.s32 1, %s13
  %s16 = scalar_select 0, %s15, %s13
  loop: start=0, step=1, limit=4
  $region2: #{content_generator_forward.10} parent=0 // loop_pre_header
    _
  $region3: #{content_generator_forward.10} parent=0 // loop_header
    %s18 = sphi 0, %s22
    %p19 = scmp.ge.s32.totalorder %s18, 4
    %s28 = sphi 0, %s30
    %s31 = sphi 0, %s28
    %s32 = sphi 0, %s31
    %s48 = sphi 0, %s32
    %s54 = sphi 0, %s56
    %s57 = sphi 0, %s54
    %s58 = sphi 0, %s57
    %s74 = sphi 0, %s58
    %s78 = sphi 0, %s78
    %s80 = sphi 0, %s78
    %s81 = sphi 0, %s80
    %s95 = sphi 0, %s81
    %s99 = sphi 0, %s99
    %s101 = sphi 0, %s99
    %s102 = sphi 0, %s101
    %s116 = sphi 0, %s102
    %s120 = sphi 0, %s120
    %s122 = sphi 0, %s120
    %s123 = sphi 0, %s122
    %s137 = sphi 0, %s123
    %s141 = sphi 0, %s141
    %s143 = sphi 0, %s141
    %s144 = sphi 0, %s143
    %s158 = sphi 0, %s144
    %s162 = sphi 0, %s162
    %s164 = sphi 0, %s162
    %s165 = sphi 0, %s164
    %s179 = sphi 0, %s165
    %s183 = sphi 0, %s183
    %s185 = sphi 0, %s183
    %s186 = sphi 0, %s185
    %s200 = sphi 0, %s186
    %s204 = sphi 0, %s204
    %s206 = sphi 0, %s204
    %s207 = sphi 0, %s206
    %s221 = sphi 0, %s207
    %s225 = sphi 0, %s225
    %s227 = sphi 0, %s225
    %s228 = sphi 0, %s227
    %s242 = sphi 0, %s228
    %s246 = sphi 0, %s246
    %s248 = sphi 0, %s246
    %s249 = sphi 0, %s248
    %s263 = sphi 0, %s249
    %s267 = sphi 0, %s267
    %s269 = sphi 0, %s267
    %s270 = sphi 0, %s269
    %s284 = sphi 0, %s270
    %s290 = sphi 0, %s292
    %s293 = sphi 0, %s290
    %s294 = sphi 0, %s293
    %s310 = sphi 0, %s294
  $region4: #{content_generator_forward.10} parent=0 // loop_header_branch
    %21 = sbr.rel (%p19) target = $region8
  $region5: #{content_generator_forward.10} parent=0 // loop_body
    %s23 = ssub.s32 %s18, 1
    %s24 = ssub.s32 %s18, 2
    %s25 = sadd.s32 %s18, 1
    %s26 = ssub.s32 %s18, %s25
    %p27 = scmp.eq.s32.totalorder %s26, 0
    %s29 = sadd.s32 %s28, 1
    %s30 = scalar_select %p27, %s28, %s29
    %p33 = pneg %p27
    %p34 = scmp.eq.s32.totalorder %s18, 1
    %p35 = por %p33, %p34
    %p36 = scmp.ne.s32.totalorder %s28, %s31
    %p37 = scmp.eq.s32.totalorder %s18, 0
    %p38 = por %p36, %p37
    %p39 = scmp.ne.s32.totalorder %s28, %s31
    %p40 = scmp.eq.s32.totalorder %s23, 1
    %p41 = por %p39, %p40
    %p42 = scmp.ne.s32.totalorder %s31, %s32
    %p43 = scmp.eq.s32.totalorder %s23, 0
    %p44 = por %p42, %p43
    %p45 = scmp.ne.s32.totalorder %s31, %s32
    %p46 = scmp.eq.s32.totalorder %s24, 1
    %p47 = por %p45, %p46
    %p49 = scmp.ne.s32.totalorder %s32, %s48
    %p50 = scmp.eq.s32.totalorder %s24, 0
    %p51 = por %p49, %p50
    %s52 = ssub.s32 %s18, %s25
    %p53 = scmp.eq.s32.totalorder %s52, 0
    %s55 = sadd.s32 %s54, 1
    %s56 = scalar_select %p53, %s54, %s55
    %p59 = pneg %p53
    %p60 = scmp.eq.s32.totalorder %s18, 1
    %p61 = por %p59, %p60
    %p62 = scmp.ne.s32.totalorder %s54, %s57
    %p63 = scmp.eq.s32.totalorder %s18, 0
    %p64 = por %p62, %p63
    %p65 = scmp.ne.s32.totalorder %s54, %s57
    %p66 = scmp.eq.s32.totalorder %s23, 1
    %p67 = por %p65, %p66
    %p68 = scmp.ne.s32.totalorder %s57, %s58
    %p69 = scmp.eq.s32.totalorder %s23, 0
    %p70 = por %p68, %p69
    %p71 = scmp.ne.s32.totalorder %s57, %s58
    %p72 = scmp.eq.s32.totalorder %s24, 1
    %p73 = por %p71, %p72
    %p75 = scmp.ne.s32.totalorder %s58, %s74
    %p76 = scmp.eq.s32.totalorder %s24, 0
    %p77 = por %p75, %p76
    %s79 = sadd.s32 %s78, 1
    %p82 = scmp.eq.s32.totalorder %s18, 1
    %p83 = scmp.ne.s32.totalorder %s78, %s80
    %p84 = scmp.eq.s32.totalorder %s18, 0
    %p85 = por %p83, %p84
    %p86 = scmp.ne.s32.totalorder %s78, %s80
    %p87 = scmp.eq.s32.totalorder %s23, 1
    %p88 = por %p86, %p87
    %p89 = scmp.ne.s32.totalorder %s80, %s81
    %p90 = scmp.eq.s32.totalorder %s23, 0
    %p91 = por %p89, %p90
    %p92 = scmp.ne.s32.totalorder %s80, %s81
    %p93 = scmp.eq.s32.totalorder %s24, 1
    %p94 = por %p92, %p93
    %p96 = scmp.ne.s32.totalorder %s81, %s95
    %p97 = scmp.eq.s32.totalorder %s24, 0
    %p98 = por %p96, %p97
    %s100 = sadd.s32 %s99, 1
    %p103 = scmp.eq.s32.totalorder %s18, 1
    %p104 = scmp.ne.s32.totalorder %s99, %s101
    %p105 = scmp.eq.s32.totalorder %s18, 0
    %p106 = por %p104, %p105
    %p107 = scmp.ne.s32.totalorder %s99, %s101
    %p108 = scmp.eq.s32.totalorder %s23, 1
    %p109 = por %p107, %p108
    %p110 = scmp.ne.s32.totalorder %s101, %s102
    %p111 = scmp.eq.s32.totalorder %s23, 0
    %p112 = por %p110, %p111
    %p113 = scmp.ne.s32.totalorder %s101, %s102
    %p114 = scmp.eq.s32.totalorder %s24, 1
    %p115 = por %p113, %p114
    %p117 = scmp.ne.s32.totalorder %s102, %s116
    %p118 = scmp.eq.s32.totalorder %s24, 0
    %p119 = por %p117, %p118
    %s121 = sadd.s32 %s120, 1
    %p124 = scmp.eq.s32.totalorder %s18, 1
    %p125 = scmp.ne.s32.totalorder %s120, %s122
    %p126 = scmp.eq.s32.totalorder %s18, 0
    %p127 = por %p125, %p126
    %p128 = scmp.ne.s32.totalorder %s120, %s122
    %p129 = scmp.eq.s32.totalorder %s23, 1
    %p130 = por %p128, %p129
    %p131 = scmp.ne.s32.totalorder %s122, %s123
    %p132 = scmp.eq.s32.totalorder %s23, 0
    %p133 = por %p131, %p132
    %p134 = scmp.ne.s32.totalorder %s122, %s123
    %p135 = scmp.eq.s32.totalorder %s24, 1
    %p136 = por %p134, %p135
    %p138 = scmp.ne.s32.totalorder %s123, %s137
    %p139 = scmp.eq.s32.totalorder %s24, 0
    %p140 = por %p138, %p139
    %s142 = sadd.s32 %s141, 1
    %p145 = scmp.eq.s32.totalorder %s18, 1
    %p146 = scmp.ne.s32.totalorder %s141, %s143
    %p147 = scmp.eq.s32.totalorder %s18, 0
    %p148 = por %p146, %p147
    %p149 = scmp.ne.s32.totalorder %s141, %s143
    %p150 = scmp.eq.s32.totalorder %s23, 1
    %p151 = por %p149, %p150
    %p152 = scmp.ne.s32.totalorder %s143, %s144
    %p153 = scmp.eq.s32.totalorder %s23, 0
    %p154 = por %p152, %p153
    %p155 = scmp.ne.s32.totalorder %s143, %s144
    %p156 = scmp.eq.s32.totalorder %s24, 1
    %p157 = por %p155, %p156
    %p159 = scmp.ne.s32.totalorder %s144, %s158
    %p160 = scmp.eq.s32.totalorder %s24, 0
    %p161 = por %p159, %p160
    %s163 = sadd.s32 %s162, 1
    %p166 = scmp.eq.s32.totalorder %s18, 1
    %p167 = scmp.ne.s32.totalorder %s162, %s164
    %p168 = scmp.eq.s32.totalorder %s18, 0
    %p169 = por %p167, %p168
    %p170 = scmp.ne.s32.totalorder %s162, %s164
    %p171 = scmp.eq.s32.totalorder %s23, 1
    %p172 = por %p170, %p171
    %p173 = scmp.ne.s32.totalorder %s164, %s165
    %p174 = scmp.eq.s32.totalorder %s23, 0
    %p175 = por %p173, %p174
    %p176 = scmp.ne.s32.totalorder %s164, %s165
    %p177 = scmp.eq.s32.totalorder %s24, 1
    %p178 = por %p176, %p177
    %p180 = scmp.ne.s32.totalorder %s165, %s179
    %p181 = scmp.eq.s32.totalorder %s24, 0
    %p182 = por %p180, %p181
    %s184 = sadd.s32 %s183, 1
    %p187 = scmp.eq.s32.totalorder %s18, 1
    %p188 = scmp.ne.s32.totalorder %s183, %s185
    %p189 = scmp.eq.s32.totalorder %s18, 0
    %p190 = por %p188, %p189
    %p191 = scmp.ne.s32.totalorder %s183, %s185
    %p192 = scmp.eq.s32.totalorder %s23, 1
    %p193 = por %p191, %p192
    %p194 = scmp.ne.s32.totalorder %s185, %s186
    %p195 = scmp.eq.s32.totalorder %s23, 0
    %p196 = por %p194, %p195
    %p197 = scmp.ne.s32.totalorder %s185, %s186
    %p198 = scmp.eq.s32.totalorder %s24, 1
    %p199 = por %p197, %p198
    %p201 = scmp.ne.s32.totalorder %s186, %s200
    %p202 = scmp.eq.s32.totalorder %s24, 0
    %p203 = por %p201, %p202
    %s205 = sadd.s32 %s204, 1
    %p208 = scmp.eq.s32.totalorder %s18, 1
    %p209 = scmp.ne.s32.totalorder %s204, %s206
    %p210 = scmp.eq.s32.totalorder %s18, 0
    %p211 = por %p209, %p210
    %p212 = scmp.ne.s32.totalorder %s204, %s206
    %p213 = scmp.eq.s32.totalorder %s23, 1
    %p214 = por %p212, %p213
    %p215 = scmp.ne.s32.totalorder %s206, %s207
    %p216 = scmp.eq.s32.totalorder %s23, 0
    %p217 = por %p215, %p216
    %p218 = scmp.ne.s32.totalorder %s206, %s207
    %p219 = scmp.eq.s32.totalorder %s24, 1
    %p220 = por %p218, %p219
    %p222 = scmp.ne.s32.totalorder %s207, %s221
    %p223 = scmp.eq.s32.totalorder %s24, 0
    %p224 = por %p222, %p223
    %s226 = sadd.s32 %s225, 1
    %p229 = scmp.eq.s32.totalorder %s18, 1
    %p230 = scmp.ne.s32.totalorder %s225, %s227
    %p231 = scmp.eq.s32.totalorder %s18, 0
    %p232 = por %p230, %p231
    %p233 = scmp.ne.s32.totalorder %s225, %s227
    %p234 = scmp.eq.s32.totalorder %s23, 1
    %p235 = por %p233, %p234
    %p236 = scmp.ne.s32.totalorder %s227, %s228
    %p237 = scmp.eq.s32.totalorder %s23, 0
    %p238 = por %p236, %p237
    %p239 = scmp.ne.s32.totalorder %s227, %s228
    %p240 = scmp.eq.s32.totalorder %s24, 1
    %p241 = por %p239, %p240
    %p243 = scmp.ne.s32.totalorder %s228, %s242
    %p244 = scmp.eq.s32.totalorder %s24, 0
    %p245 = por %p243, %p244
    %s247 = sadd.s32 %s246, 1
    %p250 = scmp.eq.s32.totalorder %s18, 1
    %p251 = scmp.ne.s32.totalorder %s246, %s248
    %p252 = scmp.eq.s32.totalorder %s18, 0
    %p253 = por %p251, %p252
    %p254 = scmp.ne.s32.totalorder %s246, %s248
    %p255 = scmp.eq.s32.totalorder %s23, 1
    %p256 = por %p254, %p255
    %p257 = scmp.ne.s32.totalorder %s248, %s249
    %p258 = scmp.eq.s32.totalorder %s23, 0
    %p259 = por %p257, %p258
    %p260 = scmp.ne.s32.totalorder %s248, %s249
    %p261 = scmp.eq.s32.totalorder %s24, 1
    %p262 = por %p260, %p261
    %p264 = scmp.ne.s32.totalorder %s249, %s263
    %p265 = scmp.eq.s32.totalorder %s24, 0
    %p266 = por %p264, %p265
    %s268 = sadd.s32 %s267, 1
    %p271 = scmp.eq.s32.totalorder %s18, 1
    %p272 = scmp.ne.s32.totalorder %s267, %s269
    %p273 = scmp.eq.s32.totalorder %s18, 0
    %p274 = por %p272, %p273
    %p275 = scmp.ne.s32.totalorder %s267, %s269
    %p276 = scmp.eq.s32.totalorder %s23, 1
    %p277 = por %p275, %p276
    %p278 = scmp.ne.s32.totalorder %s269, %s270
    %p279 = scmp.eq.s32.totalorder %s23, 0
    %p280 = por %p278, %p279
    %p281 = scmp.ne.s32.totalorder %s269, %s270
    %p282 = scmp.eq.s32.totalorder %s24, 1
    %p283 = por %p281, %p282
    %p285 = scmp.ne.s32.totalorder %s270, %s284
    %p286 = scmp.eq.s32.totalorder %s24, 0
    %p287 = por %p285, %p286
    %s288 = ssub.s32 %s18, %s25
    %p289 = scmp.eq.s32.totalorder %s288, 0
    %s291 = sadd.s32 %s290, 1
    %s292 = scalar_select %p289, %s290, %s291
    %p295 = pneg %p289
    %p296 = scmp.eq.s32.totalorder %s18, 1
    %p297 = por %p295, %p296
    %p298 = scmp.ne.s32.totalorder %s290, %s293
    %p299 = scmp.eq.s32.totalorder %s18, 0
    %p300 = por %p298, %p299
    %p301 = scmp.ne.s32.totalorder %s290, %s293
    %p302 = scmp.eq.s32.totalorder %s23, 1
    %p303 = por %p301, %p302
    %p304 = scmp.ne.s32.totalorder %s293, %s294
    %p305 = scmp.eq.s32.totalorder %s23, 0
    %p306 = por %p304, %p305
    %p307 = scmp.ne.s32.totalorder %s293, %s294
    %p308 = scmp.eq.s32.totalorder %s24, 1
    %p309 = por %p307, %p308
    %p311 = scmp.ne.s32.totalorder %s294, %s310
    %p312 = scmp.eq.s32.totalorder %s24, 0
    %p313 = por %p311, %p312
    %p314 = scmp.le.s32.totalorder 1, %s18
    %p315 = scmp.lt.s32.totalorder %s18, 3
    %p316 = pnand %p314, %p315
    %p317 = pneg %p316
    // Predicated region
    $region9: #{content_generator_forward.10} parent=5 // pred_check
      _
    $region10: #{content_generator_forward.10} parent=5 // pred_check_branch
      %319 = sbr.rel (%p316) target = $region12
    $region11: #{content_generator_forward.10} parent=5 // pred_region
      %s320 = ssub.s32 %s18, 1
      // Predicated region
      $region13: #{content_generator_forward.10} parent=11 // pred_check
        %p321 = pneg %p91
      $region14: #{content_generator_forward.10} parent=11 // pred_check_branch
        %323 = sbr.rel (%p321) target = $region16
      $region15: #{content_generator_forward.10} parent=11 // pred_region
        _
      $region16: #{content_generator_forward.10} parent=11 // pred_fallthru
        _
      // Predicated region
      $region17: #{content_generator_forward.10} parent=11 // pred_check
        %p324 = pneg %p112
      $region18: #{content_generator_forward.10} parent=11 // pred_check_branch
        %326 = sbr.rel (%p324) target = $region20
      $region19: #{content_generator_forward.10} parent=11 // pred_region
        _
      $region20: #{content_generator_forward.10} parent=11 // pred_fallthru
        _
      // Predicated region
      $region21: #{content_generator_forward.10} parent=11 // pred_check
        %p327 = pneg %p133
      $region22: #{content_generator_forward.10} parent=11 // pred_check_branch
        %329 = sbr.rel (%p327) target = $region24
      $region23: #{content_generator_forward.10} parent=11 // pred_region
        _
      $region24: #{content_generator_forward.10} parent=11 // pred_fallthru
        _
      // Predicated region
      $region25: #{content_generator_forward.10} parent=11 // pred_check
        %p330 = pneg %p154
      $region26: #{content_generator_forward.10} parent=11 // pred_check_branch
        %332 = sbr.rel (%p330) target = $region28
      $region27: #{content_generator_forward.10} parent=11 // pred_region
        _
      $region28: #{content_generator_forward.10} parent=11 // pred_fallthru
        _
      // Predicated region
      $region29: #{content_generator_forward.10} parent=11 // pred_check
        %p333 = pneg %p175
      $region30: #{content_generator_forward.10} parent=11 // pred_check_branch
        %335 = sbr.rel (%p333) target = $region32
      $region31: #{content_generator_forward.10} parent=11 // pred_region
        _
      $region32: #{content_generator_forward.10} parent=11 // pred_fallthru
        _
      // Predicated region
      $region33: #{content_generator_forward.10} parent=11 // pred_check
        %p336 = pneg %p196
      $region34: #{content_generator_forward.10} parent=11 // pred_check_branch
        %338 = sbr.rel (%p336) target = $region36
      $region35: #{content_generator_forward.10} parent=11 // pred_region
        _
      $region36: #{content_generator_forward.10} parent=11 // pred_fallthru
        _
      // Predicated region
      $region37: #{content_generator_forward.10} parent=11 // pred_check
        %p339 = pneg %p217
      $region38: #{content_generator_forward.10} parent=11 // pred_check_branch
        %341 = sbr.rel (%p339) target = $region40
      $region39: #{content_generator_forward.10} parent=11 // pred_region
        _
      $region40: #{content_generator_forward.10} parent=11 // pred_fallthru
        _
      // Predicated region
      $region41: #{content_generator_forward.10} parent=11 // pred_check
        %p342 = pneg %p238
      $region42: #{content_generator_forward.10} parent=11 // pred_check_branch
        %344 = sbr.rel (%p342) target = $region44
      $region43: #{content_generator_forward.10} parent=11 // pred_region
        _
      $region44: #{content_generator_forward.10} parent=11 // pred_fallthru
        _
      // Predicated region
      $region45: #{content_generator_forward.10} parent=11 // pred_check
        %p345 = pneg %p259
      $region46: #{content_generator_forward.10} parent=11 // pred_check_branch
        %347 = sbr.rel (%p345) target = $region48
      $region47: #{content_generator_forward.10} parent=11 // pred_region
        _
      $region48: #{content_generator_forward.10} parent=11 // pred_fallthru
        _
      // Predicated region
      $region49: #{content_generator_forward.10} parent=11 // pred_check
        %p348 = pneg %p280
      $region50: #{content_generator_forward.10} parent=11 // pred_check_branch
        %350 = sbr.rel (%p348) target = $region52
      $region51: #{content_generator_forward.10} parent=11 // pred_region
        _
      $region52: #{content_generator_forward.10} parent=11 // pred_fallthru
        _
    $region12: #{content_generator_forward.10} parent=5 // pred_fallthru
      _
    %p351 = scmp.lt.s32.totalorder %s18, 2
    // Predicated region
    $region53: #{content_generator_forward.10} parent=5 // pred_check
      %p352 = pneg %p351
    $region54: #{content_generator_forward.10} parent=5 // pred_check_branch
      %354 = sbr.rel (%p352) target = $region56
    $region55: #{content_generator_forward.10} parent=5 // pred_region
      // Predicated region
      $region57: #{content_generator_forward.10} parent=55 // pred_check
        %p355 = pneg %p38
      $region58: #{content_generator_forward.10} parent=55 // pred_check_branch
        %357 = sbr.rel (%p355) target = $region60
      $region59: #{content_generator_forward.10} parent=55 // pred_region
        %p358 = scmp.lt.s32.totalorder %s18, 1
        %s359 = scalar_select %p358, %s18, 1
        %s360 = smul.addr %s359, 8
        %s361 = scalar_lea.vmem %s0, %s360
      $region60: #{content_generator_forward.10} parent=55 // pred_fallthru
        _
      // Predicated region
      $region61: #{content_generator_forward.10} parent=55 // pred_check
        %p362 = pneg %p64
      $region62: #{content_generator_forward.10} parent=55 // pred_check_branch
        %364 = sbr.rel (%p362) target = $region64
      $region63: #{content_generator_forward.10} parent=55 // pred_region
        %p365 = scmp.lt.s32.totalorder %s18, 1
        %s366 = scalar_select %p365, %s18, 1
        %s367 = smul.addr %s366, 8
        %s368 = scalar_lea.vmem %s1, %s367
      $region64: #{content_generator_forward.10} parent=55 // pred_fallthru
        _
    $region56: #{content_generator_forward.10} parent=5 // pred_fallthru
      _
    %p369 = scmp.le.s32.totalorder 1, %s18
    %p370 = scmp.lt.s32.totalorder %s18, 3
    %p371 = pnand %p369, %p370
    %p372 = pneg %p371
    // Predicated region
    $region65: #{content_generator_forward.10} parent=5 // pred_check
      _
    $region66: #{content_generator_forward.10} parent=5 // pred_check_branch
      %374 = sbr.rel (%p371) target = $region68
    $region67: #{content_generator_forward.10} parent=5 // pred_region
      %s375 = ssub.s32 %s18, 1
      %p376 = scmp.lt.s32.totalorder %s23, 1
      %s377 = scalar_select %p376, %s23, 1
      %s378 = smul.addr %s377, 8
      %s379 = scalar_lea.vmem %s0, %s378
      %p380 = pneg %p44
      %p381 = pneg %p41
      %p382 = scmp.lt.s32.totalorder %s23, 1
      %s383 = scalar_select %p382, %s23, 1
      %s384 = smul.addr %s383, 8
      %s385 = scalar_lea.vmem %s1, %s384
      %p386 = pneg %p70
      %p387 = pneg %p67
      %p388 = pneg %p91
      %p389 = pneg %p88
      %p390 = pneg %p112
      %p391 = pneg %p109
      %p392 = pneg %p133
      %p393 = pneg %p130
      %p394 = pneg %p154
      %p395 = pneg %p151
      %p396 = pneg %p175
      %p397 = pneg %p172
      %p398 = pneg %p196
      %p399 = pneg %p193
      %p400 = pneg %p217
      %p401 = pneg %p214
      %p402 = pneg %p238
      %p403 = pneg %p235
      %p404 = pneg %p259
      %p405 = pneg %p256
      %p406 = pneg %p280
      %p407 = pneg %p277
      %p408 = pneg %p306
      %p409 = pneg %p303
      %p410 = scmp.lt.s32.totalorder %s23, 1
      %s411 = scalar_select %p410, %s23, 1
      %s412 = smul.addr %s411, 8
      %s413 = scalar_lea.vmem %s12, %s412
      %p414 = scmp.lt.s32.totalorder %s23, 1
      %s415 = scalar_select %p414, %s23, 1
      %s416 = smul.addr %s415, 8
      %s417 = scalar_lea.vmem %s0, %s416
      %p418 = scmp.lt.s32.totalorder %s23, 1
      %s419 = scalar_select %p418, %s23, 1
      %s420 = smul.addr %s419, 8
      %s421 = scalar_lea.vmem %s1, %s420
      %p422 = scmp.lt.s32.totalorder %s23, 1
      %s423 = scalar_select %p422, %s23, 1
      %s424 = smul.addr %s423, 8
      %s425 = scalar_lea.vmem %s12, %s424
      %v426 = vld [vmem:[%s417] sm:$0xff]
      %v427 = vld [vmem:[%s421] sm:$0xff]
      %v428 = vld [vmem:[%s2] sm:$0xff]
      %v429 = vld [vmem:[%s2 + $0x8] sm:$0xff]
      %v430 = vld [vmem:[%s2 + $0x10] sm:$0xff]
      %v431 = vld [vmem:[%s2 + $0x18] sm:$0xff]
      %v432 = vld [vmem:[%s2 + $0x20] sm:$0xff]
      %v433 = vld [vmem:[%s2 + $0x28] sm:$0xff]
      %v434 = vld [vmem:[%s2 + $0x30] sm:$0xff]
      %v435 = vld [vmem:[%s2 + $0x38] sm:$0xff]
      %v436 = vld [vmem:[%s2 + $0x40] sm:$0xff]
      %v437 = vld [vmem:[%s2 + $0x48] sm:$0xff]
      %v438 = vld [vmem:[%s2 + $0x50] sm:$0xff]
      %v439 = vld [vmem:[%s2 + $0x58] sm:$0xff]
      %v440 = vld [vmem:[%s2 + $0x60] sm:$0xff]
      %v441 = vld [vmem:[%s2 + $0x68] sm:$0xff]
      %v442 = vld [vmem:[%s2 + $0x70] sm:$0xff]
      %v443 = vld [vmem:[%s2 + $0x78] sm:$0xff]
      %v444 = vld [vmem:[%s3] sm:$0x1]
      %v446 = vperm.slane %v444, 0
      %448 = vmatpush.msra.mxu0 %v443
      %449 = vmatpush.msra.mxu0 %v442
      %450 = vmatpush.msra.mxu0 %v441
      %451 = vmatpush.msra.mxu0 %v440
      %452 = vmatpush.msra.mxu0 %v439
      %453 = vmatpush.msra.mxu0 %v438
      %454 = vmatpush.msra.mxu0 %v437
      %455 = vmatpush.msra.mxu0 %v436
      %456 = vmatpush.msra.mxu0 %v435
      %457 = vmatpush.msra.mxu0 %v434
      %458 = vmatpush.msra.mxu0 %v433
      %459 = vmatpush.msra.mxu0 %v432
      %460 = vmatpush.msra.mxu0 %v431
      %461 = vmatpush.msra.mxu0 %v430
      %462 = vmatpush.msra.mxu0 %v429
      %463 = vmatpush.msra.mxu0 %v428
      %464 = vmatmul.f32.gmra.mxu0 %v426
      %v465 = vpop.f32.mrf.mxu0
      %v466 = vadd.f32 %v446, %v465
      %467 = vdwg.mxu0
      %v468 = vld [vmem:[%s4] sm:$0xff]
      %v469 = vld [vmem:[%s4 + $0x8] sm:$0xff]
      %v470 = vld [vmem:[%s4 + $0x10] sm:$0xff]
      %v471 = vld [vmem:[%s4 + $0x18] sm:$0xff]
      %v472 = vld [vmem:[%s4 + $0x20] sm:$0xff]
      %v473 = vld [vmem:[%s4 + $0x28] sm:$0xff]
      %v474 = vld [vmem:[%s4 + $0x30] sm:$0xff]
      %v475 = vld [vmem:[%s4 + $0x38] sm:$0xff]
      %v476 = vld [vmem:[%s4 + $0x40] sm:$0xff]
      %v477 = vld [vmem:[%s4 + $0x48] sm:$0xff]
      %v478 = vld [vmem:[%s4 + $0x50] sm:$0xff]
      %v479 = vld [vmem:[%s4 + $0x58] sm:$0xff]
      %v480 = vld [vmem:[%s4 + $0x60] sm:$0xff]
      %v481 = vld [vmem:[%s4 + $0x68] sm:$0xff]
      %v482 = vld [vmem:[%s4 + $0x70] sm:$0xff]
      %v483 = vld [vmem:[%s4 + $0x78] sm:$0xff]
      %v484 = vld [vmem:[%s5] sm:$0x1]
      %v486 = vperm.slane %v484, 0
      %488 = vmatpush.msra.mxu0 %v483
      %489 = vmatpush.msra.mxu0 %v482
      %490 = vmatpush.msra.mxu0 %v481
      %491 = vmatpush.msra.mxu0 %v480
      %492 = vmatpush.msra.mxu0 %v479
      %493 = vmatpush.msra.mxu0 %v478
      %494 = vmatpush.msra.mxu0 %v477
      %495 = vmatpush.msra.mxu0 %v476
      %496 = vmatpush.msra.mxu0 %v475
      %497 = vmatpush.msra.mxu0 %v474
      %498 = vmatpush.msra.mxu0 %v473
      %499 = vmatpush.msra.mxu0 %v472
      %500 = vmatpush.msra.mxu0 %v471
      %501 = vmatpush.msra.mxu0 %v470
      %502 = vmatpush.msra.mxu0 %v469
      %503 = vmatpush.msra.mxu0 %v468
      %504 = vmatmul.f32.gmra.mxu0 %v427
      %v505 = vpop.f32.mrf.mxu0
      %v506 = vadd.f32 %v486, %v505
      %507 = vdwg.mxu0
      %v508 = vld [vmem:[%s6] sm:$0xff]
      %v509 = vld [vmem:[%s6 + $0x8] sm:$0xff]
      %v510 = vld [vmem:[%s6 + $0x10] sm:$0xff]
      %v511 = vld [vmem:[%s6 + $0x18] sm:$0xff]
      %v512 = vld [vmem:[%s6 + $0x20] sm:$0xff]
      %v513 = vld [vmem:[%s6 + $0x28] sm:$0xff]
      %v514 = vld [vmem:[%s6 + $0x30] sm:$0xff]
      %v515 = vld [vmem:[%s6 + $0x38] sm:$0xff]
      %v516 = vld [vmem:[%s6 + $0x40] sm:$0xff]
      %v517 = vld [vmem:[%s6 + $0x48] sm:$0xff]
      %v518 = vld [vmem:[%s6 + $0x50] sm:$0xff]
      %v519 = vld [vmem:[%s6 + $0x58] sm:$0xff]
      %v520 = vld [vmem:[%s6 + $0x60] sm:$0xff]
      %v521 = vld [vmem:[%s6 + $0x68] sm:$0xff]
      %v522 = vld [vmem:[%s6 + $0x70] sm:$0xff]
      %v523 = vld [vmem:[%s6 + $0x78] sm:$0xff]
      %v524 = vld [vmem:[%s7] sm:$0x1]
      %v526 = vperm.slane %v524, 0
      %528 = vmatpush.msra.mxu0 %v523
      %529 = vmatpush.msra.mxu0 %v522
      %530 = vmatpush.msra.mxu0 %v521
      %531 = vmatpush.msra.mxu0 %v520
      %532 = vmatpush.msra.mxu0 %v519
      %533 = vmatpush.msra.mxu0 %v518
      %534 = vmatpush.msra.mxu0 %v517
      %535 = vmatpush.msra.mxu0 %v516
      %536 = vmatpush.msra.mxu0 %v515
      %537 = vmatpush.msra.mxu0 %v514
      %538 = vmatpush.msra.mxu0 %v513
      %539 = vmatpush.msra.mxu0 %v512
      %540 = vmatpush.msra.mxu0 %v511
      %541 = vmatpush.msra.mxu0 %v510
      %542 = vmatpush.msra.mxu0 %v509
      %543 = vmatpush.msra.mxu0 %v508
      %544 = vmatmul.f32.gmra.mxu0 %v427
      %v545 = vpop.f32.mrf.mxu0
      %v546 = vadd.f32 %v526, %v545
      %547 = vdwg.mxu0
      %vm548 = vcmask 261120
      %v550 = vsel %vm548, %v466, 0
      %v553 = vsel %vm548, %v506, 0
      %555 = vmatpush.xpose.msra.mxu0 0.0
      %556 = vmatpush.xpose.msra.mxu0 0.0
      %557 = vmatpush.xpose.msra.mxu0 0.0
      %558 = vmatpush.xpose.msra.mxu0 0.0
      %559 = vmatpush.xpose.msra.mxu0 0.0
      %560 = vmatpush.xpose.msra.mxu0 0.0
      %561 = vmatpush.xpose.msra.mxu0 0.0
      %562 = vmatpush.xpose.msra.mxu0 0.0
      %563 = vmatpush.xpose.msra.mxu0 0.0
      %564 = vmatpush.xpose.msra.mxu0 0.0
      %565 = vmatpush.xpose.msra.mxu0 0.0
      %566 = vmatpush.xpose.msra.mxu0 0.0
      %567 = vmatpush.xpose.msra.mxu0 0.0
      %568 = vmatpush.xpose.msra.mxu0 0.0
      %569 = vmatpush.xpose.msra.mxu0 0.0
      %570 = vmatpush.xpose.msra.mxu0 %v553
      %571 = vmatmul.f32.gmra.mxu0 %v550
      %v572 = vpop.f32.mrf.mxu0
      %v573 = vadd.f32 0.0, %v572
      %574 = vdwg.mxu0
      %vm575 = vcmask 64512
      %v576 = vsel %vm575, %v573, -inf
      %577 = vmax.xlane.f32.xlu0 %v576
      %v578 = vpop.xlane.xlu0 %577
      %v579 = vsub.f32 %v573, %v578
      %v580 = vmul.f32 %v579, 1.442695
      %v581 = vpow.pop %v580
      %v582 = vsel %vm575, %v581, 0.0
      %583 = vadd.xlane.f32.xlu0 %v582
      %v584 = vpop.xlane.xlu0 %583
      %v585 = vrcp.pop %v584
      %v586 = vmul.f32 %v584, %v585
      %v587 = vsub.f32 1.0, %v586
      %v588 = vmul.f32 %v585, %v587
      %v589 = vadd.f32 %v585, %v588
      %vm590 = vweird.f32 %v584
      %vm591 = vweird.f32 %v585
      %vm592 = vmor %vm590, %vm591
      %v593 = vsel %vm592, %v585, %v589
      %v594 = vand.u32 2147483647, %v584
      %vm595 = vcmp.eq.f32.partialorder %v594, 8.507059e+37
      %v596 = vand.u32 %v584, 2147483648
      %v597 = vor.u32 1.1754944e-38, %v596
      %v598 = vsel %vm595, %v597, %v593
      %v599 = vmul.f32 %v581, %v598
      %v601 = vsel %vm575, %v599, 0
      %603 = vmatpush.msra.mxu0 0.0
      %604 = vmatpush.msra.mxu0 0.0
      %605 = vmatpush.msra.mxu0 0.0
      %606 = vmatpush.msra.mxu0 0.0
      %607 = vmatpush.msra.mxu0 0.0
      %608 = vmatpush.msra.mxu0 0.0
      %609 = vmatpush.msra.mxu0 0.0
      %610 = vmatpush.msra.mxu0 0.0
      %611 = vmatpush.msra.mxu0 0.0
      %612 = vmatpush.msra.mxu0 0.0
      %613 = vmatpush.msra.mxu0 0.0
      %614 = vmatpush.msra.mxu0 0.0
      %615 = vmatpush.msra.mxu0 0.0
      %616 = vmatpush.msra.mxu0 0.0
      %617 = vmatpush.msra.mxu0 0.0
      %618 = vmatpush.msra.mxu0 %v546
      %619 = vmatmul.f32.gmra.mxu0 %v601
      %v620 = vpop.f32.mrf.mxu0
      %v621 = vadd.f32 0.0, %v620
      %622 = vdwg.mxu0
      %s623 = scalar_lea.vmem %s2, 128
      %v624 = vld [vmem:[%s623] sm:$0xff]
      %v625 = vld [vmem:[%s623 + $0x8] sm:$0xff]
      %v626 = vld [vmem:[%s623 + $0x10] sm:$0xff]
      %v627 = vld [vmem:[%s623 + $0x18] sm:$0xff]
      %v628 = vld [vmem:[%s623 + $0x20] sm:$0xff]
      %v629 = vld [vmem:[%s623 + $0x28] sm:$0xff]
      %v630 = vld [vmem:[%s623 + $0x30] sm:$0xff]
      %v631 = vld [vmem:[%s623 + $0x38] sm:$0xff]
      %v632 = vld [vmem:[%s623 + $0x40] sm:$0xff]
      %v633 = vld [vmem:[%s623 + $0x48] sm:$0xff]
      %v634 = vld [vmem:[%s623 + $0x50] sm:$0xff]
      %v635 = vld [vmem:[%s623 + $0x58] sm:$0xff]
      %v636 = vld [vmem:[%s623 + $0x60] sm:$0xff]
      %v637 = vld [vmem:[%s623 + $0x68] sm:$0xff]
      %v638 = vld [vmem:[%s623 + $0x70] sm:$0xff]
      %v639 = vld [vmem:[%s623 + $0x78] sm:$0xff]
      %s640 = scalar_lea.vmem %s3, 1
      %v641 = vld [vmem:[%s640] sm:$0x1]
      %v643 = vperm.slane %v641, 0
      %645 = vmatpush.msra.mxu0 %v639
      %646 = vmatpush.msra.mxu0 %v638
      %647 = vmatpush.msra.mxu0 %v637
      %648 = vmatpush.msra.mxu0 %v636
      %649 = vmatpush.msra.mxu0 %v635
      %650 = vmatpush.msra.mxu0 %v634
      %651 = vmatpush.msra.mxu0 %v633
      %652 = vmatpush.msra.mxu0 %v632
      %653 = vmatpush.msra.mxu0 %v631
      %654 = vmatpush.msra.mxu0 %v630
      %655 = vmatpush.msra.mxu0 %v629
      %656 = vmatpush.msra.mxu0 %v628
      %657 = vmatpush.msra.mxu0 %v627
      %658 = vmatpush.msra.mxu0 %v626
      %659 = vmatpush.msra.mxu0 %v625
      %660 = vmatpush.msra.mxu0 %v624
      %661 = vmatmul.f32.gmra.mxu0 %v426
      %v662 = vpop.f32.mrf.mxu0
      %v663 = vadd.f32 %v643, %v662
      %664 = vdwg.mxu0
      %s665 = scalar_lea.vmem %s4, 128
      %v666 = vld [vmem:[%s665] sm:$0xff]
      %v667 = vld [vmem:[%s665 + $0x8] sm:$0xff]
      %v668 = vld [vmem:[%s665 + $0x10] sm:$0xff]
      %v669 = vld [vmem:[%s665 + $0x18] sm:$0xff]
      %v670 = vld [vmem:[%s665 + $0x20] sm:$0xff]
      %v671 = vld [vmem:[%s665 + $0x28] sm:$0xff]
      %v672 = vld [vmem:[%s665 + $0x30] sm:$0xff]
      %v673 = vld [vmem:[%s665 + $0x38] sm:$0xff]
      %v674 = vld [vmem:[%s665 + $0x40] sm:$0xff]
      %v675 = vld [vmem:[%s665 + $0x48] sm:$0xff]
      %v676 = vld [vmem:[%s665 + $0x50] sm:$0xff]
      %v677 = vld [vmem:[%s665 + $0x58] sm:$0xff]
      %v678 = vld [vmem:[%s665 + $0x60] sm:$0xff]
      %v679 = vld [vmem:[%s665 + $0x68] sm:$0xff]
      %v680 = vld [vmem:[%s665 + $0x70] sm:$0xff]
      %v681 = vld [vmem:[%s665 + $0x78] sm:$0xff]
      %s682 = scalar_lea.vmem %s5, 1
      %v683 = vld [vmem:[%s682] sm:$0x1]
      %v685 = vperm.slane %v683, 0
      %687 = vmatpush.msra.mxu0 %v681
      %688 = vmatpush.msra.mxu0 %v680
      %689 = vmatpush.msra.mxu0 %v679
      %690 = vmatpush.msra.mxu0 %v678
      %691 = vmatpush.msra.mxu0 %v677
      %692 = vmatpush.msra.mxu0 %v676
      %693 = vmatpush.msra.mxu0 %v675
      %694 = vmatpush.msra.mxu0 %v674
      %695 = vmatpush.msra.mxu0 %v673
      %696 = vmatpush.msra.mxu0 %v672
      %697 = vmatpush.msra.mxu0 %v671
      %698 = vmatpush.msra.mxu0 %v670
      %699 = vmatpush.msra.mxu0 %v669
      %700 = vmatpush.msra.mxu0 %v668
      %701 = vmatpush.msra.mxu0 %v667
      %702 = vmatpush.msra.mxu0 %v666
      %703 = vmatmul.f32.gmra.mxu0 %v427
      %v704 = vpop.f32.mrf.mxu0
      %v705 = vadd.f32 %v685, %v704
      %706 = vdwg.mxu0
      %s707 = scalar_lea.vmem %s6, 128
      %v708 = vld [vmem:[%s707] sm:$0xff]
      %v709 = vld [vmem:[%s707 + $0x8] sm:$0xff]
      %v710 = vld [vmem:[%s707 + $0x10] sm:$0xff]
      %v711 = vld [vmem:[%s707 + $0x18] sm:$0xff]
      %v712 = vld [vmem:[%s707 + $0x20] sm:$0xff]
      %v713 = vld [vmem:[%s707 + $0x28] sm:$0xff]
      %v714 = vld [vmem:[%s707 + $0x30] sm:$0xff]
      %v715 = vld [vmem:[%s707 + $0x38] sm:$0xff]
      %v716 = vld [vmem:[%s707 + $0x40] sm:$0xff]
      %v717 = vld [vmem:[%s707 + $0x48] sm:$0xff]
      %v718 = vld [vmem:[%s707 + $0x50] sm:$0xff]
      %v719 = vld [vmem:[%s707 + $0x58] sm:$0xff]
      %v720 = vld [vmem:[%s707 + $0x60] sm:$0xff]
      %v721 = vld [vmem:[%s707 + $0x68] sm:$0xff]
      %v722 = vld [vmem:[%s707 + $0x70] sm:$0xff]
      %v723 = vld [vmem:[%s707 + $0x78] sm:$0xff]
      %s724 = scalar_lea.vmem %s7, 1
      %v725 = vld [vmem:[%s724] sm:$0x1]
      %v727 = vperm.slane %v725, 0
      %729 = vmatpush.msra.mxu0 %v723
      %730 = vmatpush.msra.mxu0 %v722
      %731 = vmatpush.msra.mxu0 %v721
      %732 = vmatpush.msra.mxu0 %v720
      %733 = vmatpush.msra.mxu0 %v719
      %734 = vmatpush.msra.mxu0 %v718
      %735 = vmatpush.msra.mxu0 %v717
      %736 = vmatpush.msra.mxu0 %v716
      %737 = vmatpush.msra.mxu0 %v715
      %738 = vmatpush.msra.mxu0 %v714
      %739 = vmatpush.msra.mxu0 %v713
      %740 = vmatpush.msra.mxu0 %v712
      %741 = vmatpush.msra.mxu0 %v711
      %742 = vmatpush.msra.mxu0 %v710
      %743 = vmatpush.msra.mxu0 %v709
      %744 = vmatpush.msra.mxu0 %v708
      %745 = vmatmul.f32.gmra.mxu0 %v427
      %v746 = vpop.f32.mrf.mxu0
      %v747 = vadd.f32 %v727, %v746
      %748 = vdwg.mxu0
      %v750 = vsel %vm548, %v663, 0
      %v753 = vsel %vm548, %v705, 0
      %755 = vmatpush.xpose.msra.mxu0 0.0
      %756 = vmatpush.xpose.msra.mxu0 0.0
      %757 = vmatpush.xpose.msra.mxu0 0.0
      %758 = vmatpush.xpose.msra.mxu0 0.0
      %759 = vmatpush.xpose.msra.mxu0 0.0
      %760 = vmatpush.xpose.msra.mxu0 0.0
      %761 = vmatpush.xpose.msra.mxu0 0.0
      %762 = vmatpush.xpose.msra.mxu0 0.0
      %763 = vmatpush.xpose.msra.mxu0 0.0
      %764 = vmatpush.xpose.msra.mxu0 0.0
      %765 = vmatpush.xpose.msra.mxu0 0.0
      %766 = vmatpush.xpose.msra.mxu0 0.0
      %767 = vmatpush.xpose.msra.mxu0 0.0
      %768 = vmatpush.xpose.msra.mxu0 0.0
      %769 = vmatpush.xpose.msra.mxu0 0.0
      %770 = vmatpush.xpose.msra.mxu0 %v753
      %771 = vmatmul.f32.gmra.mxu0 %v750
      %v772 = vpop.f32.mrf.mxu0
      %v773 = vadd.f32 0.0, %v772
      %774 = vdwg.mxu0
      %v775 = vsel %vm575, %v773, -inf
      %776 = vmax.xlane.f32.xlu0 %v775
      %v777 = vpop.xlane.xlu0 %776
      %v778 = vsub.f32 %v773, %v777
      %v779 = vmul.f32 %v778, 1.442695
      %v780 = vpow.pop %v779
      %v781 = vsel %vm575, %v780, 0.0
      %782 = vadd.xlane.f32.xlu0 %v781
      %v783 = vpop.xlane.xlu0 %782
      %v784 = vrcp.pop %v783
      %v785 = vmul.f32 %v783, %v784
      %v786 = vsub.f32 1.0, %v785
      %v787 = vmul.f32 %v784, %v786
      %v788 = vadd.f32 %v784, %v787
      %vm789 = vweird.f32 %v783
      %vm790 = vweird.f32 %v784
      %vm791 = vmor %vm789, %vm790
      %v792 = vsel %vm791, %v784, %v788
      %v793 = vand.u32 2147483647, %v783
      %vm794 = vcmp.eq.f32.partialorder %v793, 8.507059e+37
      %v795 = vand.u32 %v783, 2147483648
      %v796 = vor.u32 1.1754944e-38, %v795
      %v797 = vsel %vm794, %v796, %v792
      %v798 = vmul.f32 %v780, %v797
      %v800 = vsel %vm575, %v798, 0
      %802 = vmatpush.msra.mxu0 0.0
      %803 = vmatpush.msra.mxu0 0.0
      %804 = vmatpush.msra.mxu0 0.0
      %805 = vmatpush.msra.mxu0 0.0
      %806 = vmatpush.msra.mxu0 0.0
      %807 = vmatpush.msra.mxu0 0.0
      %808 = vmatpush.msra.mxu0 0.0
      %809 = vmatpush.msra.mxu0 0.0
      %810 = vmatpush.msra.mxu0 0.0
      %811 = vmatpush.msra.mxu0 0.0
      %812 = vmatpush.msra.mxu0 0.0
      %813 = vmatpush.msra.mxu0 0.0
      %814 = vmatpush.msra.mxu0 0.0
      %815 = vmatpush.msra.mxu0 0.0
      %816 = vmatpush.msra.mxu0 0.0
      %817 = vmatpush.msra.mxu0 %v747
      %818 = vmatmul.f32.gmra.mxu0 %v800
      %v819 = vpop.f32.mrf.mxu0
      %v820 = vadd.f32 0.0, %v819
      %821 = vdwg.mxu0
      %s822 = scalar_lea.vmem %s2, 256
      %v823 = vld [vmem:[%s822] sm:$0xff]
      %v824 = vld [vmem:[%s822 + $0x8] sm:$0xff]
      %v825 = vld [vmem:[%s822 + $0x10] sm:$0xff]
      %v826 = vld [vmem:[%s822 + $0x18] sm:$0xff]
      %v827 = vld [vmem:[%s822 + $0x20] sm:$0xff]
      %v828 = vld [vmem:[%s822 + $0x28] sm:$0xff]
      %v829 = vld [vmem:[%s822 + $0x30] sm:$0xff]
      %v830 = vld [vmem:[%s822 + $0x38] sm:$0xff]
      %v831 = vld [vmem:[%s822 + $0x40] sm:$0xff]
      %v832 = vld [vmem:[%s822 + $0x48] sm:$0xff]
      %v833 = vld [vmem:[%s822 + $0x50] sm:$0xff]
      %v834 = vld [vmem:[%s822 + $0x58] sm:$0xff]
      %v835 = vld [vmem:[%s822 + $0x60] sm:$0xff]
      %v836 = vld [vmem:[%s822 + $0x68] sm:$0xff]
      %v837 = vld [vmem:[%s822 + $0x70] sm:$0xff]
      %v838 = vld [vmem:[%s822 + $0x78] sm:$0xff]
      %s839 = scalar_lea.vmem %s3, 2
      %v840 = vld [vmem:[%s839] sm:$0x1]
      %v842 = vperm.slane %v840, 0
      %844 = vmatpush.msra.mxu0 %v838
      %845 = vmatpush.msra.mxu0 %v837
      %846 = vmatpush.msra.mxu0 %v836
      %847 = vmatpush.msra.mxu0 %v835
      %848 = vmatpush.msra.mxu0 %v834
      %849 = vmatpush.msra.mxu0 %v833
      %850 = vmatpush.msra.mxu0 %v832
      %851 = vmatpush.msra.mxu0 %v831
      %852 = vmatpush.msra.mxu0 %v830
      %853 = vmatpush.msra.mxu0 %v829
      %854 = vmatpush.msra.mxu0 %v828
      %855 = vmatpush.msra.mxu0 %v827
      %856 = vmatpush.msra.mxu0 %v826
      %857 = vmatpush.msra.mxu0 %v825
      %858 = vmatpush.msra.mxu0 %v824
      %859 = vmatpush.msra.mxu0 %v823
      %860 = vmatmul.f32.gmra.mxu0 %v426
      %v861 = vpop.f32.mrf.mxu0
      %v862 = vadd.f32 %v842, %v861
      %863 = vdwg.mxu0
      %s864 = scalar_lea.vmem %s4, 256
      %v865 = vld [vmem:[%s864] sm:$0xff]
      %v866 = vld [vmem:[%s864 + $0x8] sm:$0xff]
      %v867 = vld [vmem:[%s864 + $0x10] sm:$0xff]
      %v868 = vld [vmem:[%s864 + $0x18] sm:$0xff]
      %v869 = vld [vmem:[%s864 + $0x20] sm:$0xff]
      %v870 = vld [vmem:[%s864 + $0x28] sm:$0xff]
      %v871 = vld [vmem:[%s864 + $0x30] sm:$0xff]
      %v872 = vld [vmem:[%s864 + $0x38] sm:$0xff]
      %v873 = vld [vmem:[%s864 + $0x40] sm:$0xff]
      %v874 = vld [vmem:[%s864 + $0x48] sm:$0xff]
      %v875 = vld [vmem:[%s864 + $0x50] sm:$0xff]
      %v876 = vld [vmem:[%s864 + $0x58] sm:$0xff]
      %v877 = vld [vmem:[%s864 + $0x60] sm:$0xff]
      %v878 = vld [vmem:[%s864 + $0x68] sm:$0xff]
      %v879 = vld [vmem:[%s864 + $0x70] sm:$0xff]
      %v880 = vld [vmem:[%s864 + $0x78] sm:$0xff]
      %s881 = scalar_lea.vmem %s5, 2
      %v882 = vld [vmem:[%s881] sm:$0x1]
      %v884 = vperm.slane %v882, 0
      %886 = vmatpush.msra.mxu0 %v880
      %887 = vmatpush.msra.mxu0 %v879
      %888 = vmatpush.msra.mxu0 %v878
      %889 = vmatpush.msra.mxu0 %v877
      %890 = vmatpush.msra.mxu0 %v876
      %891 = vmatpush.msra.mxu0 %v875
      %892 = vmatpush.msra.mxu0 %v874
      %893 = vmatpush.msra.mxu0 %v873
      %894 = vmatpush.msra.mxu0 %v872
      %895 = vmatpush.msra.mxu0 %v871
      %896 = vmatpush.msra.mxu0 %v870
      %897 = vmatpush.msra.mxu0 %v869
      %898 = vmatpush.msra.mxu0 %v868
      %899 = vmatpush.msra.mxu0 %v867
      %900 = vmatpush.msra.mxu0 %v866
      %901 = vmatpush.msra.mxu0 %v865
      %902 = vmatmul.f32.gmra.mxu0 %v427
      %v903 = vpop.f32.mrf.mxu0
      %v904 = vadd.f32 %v884, %v903
      %905 = vdwg.mxu0
      %s906 = scalar_lea.vmem %s6, 256
      %v907 = vld [vmem:[%s906] sm:$0xff]
      %v908 = vld [vmem:[%s906 + $0x8] sm:$0xff]
      %v909 = vld [vmem:[%s906 + $0x10] sm:$0xff]
      %v910 = vld [vmem:[%s906 + $0x18] sm:$0xff]
      %v911 = vld [vmem:[%s906 + $0x20] sm:$0xff]
      %v912 = vld [vmem:[%s906 + $0x28] sm:$0xff]
      %v913 = vld [vmem:[%s906 + $0x30] sm:$0xff]
      %v914 = vld [vmem:[%s906 + $0x38] sm:$0xff]
      %v915 = vld [vmem:[%s906 + $0x40] sm:$0xff]
      %v916 = vld [vmem:[%s906 + $0x48] sm:$0xff]
      %v917 = vld [vmem:[%s906 + $0x50] sm:$0xff]
      %v918 = vld [vmem:[%s906 + $0x58] sm:$0xff]
      %v919 = vld [vmem:[%s906 + $0x60] sm:$0xff]
      %v920 = vld [vmem:[%s906 + $0x68] sm:$0xff]
      %v921 = vld [vmem:[%s906 + $0x70] sm:$0xff]
      %v922 = vld [vmem:[%s906 + $0x78] sm:$0xff]
      %s923 = scalar_lea.vmem %s7, 2
      %v924 = vld [vmem:[%s923] sm:$0x1]
      %v926 = vperm.slane %v924, 0
      %928 = vmatpush.msra.mxu0 %v922
      %929 = vmatpush.msra.mxu0 %v921
      %930 = vmatpush.msra.mxu0 %v920
      %931 = vmatpush.msra.mxu0 %v919
      %932 = vmatpush.msra.mxu0 %v918
      %933 = vmatpush.msra.mxu0 %v917
      %934 = vmatpush.msra.mxu0 %v916
      %935 = vmatpush.msra.mxu0 %v915
      %936 = vmatpush.msra.mxu0 %v914
      %937 = vmatpush.msra.mxu0 %v913
      %938 = vmatpush.msra.mxu0 %v912
      %939 = vmatpush.msra.mxu0 %v911
      %940 = vmatpush.msra.mxu0 %v910
      %941 = vmatpush.msra.mxu0 %v909
      %942 = vmatpush.msra.mxu0 %v908
      %943 = vmatpush.msra.mxu0 %v907
      %944 = vmatmul.f32.gmra.mxu0 %v427
      %v945 = vpop.f32.mrf.mxu0
      %v946 = vadd.f32 %v926, %v945
      %947 = vdwg.mxu0
      %v949 = vsel %vm548, %v862, 0
      %v952 = vsel %vm548, %v904, 0
      %954 = vmatpush.xpose.msra.mxu0 0.0
      %955 = vmatpush.xpose.msra.mxu0 0.0
      %956 = vmatpush.xpose.msra.mxu0 0.0
      %957 = vmatpush.xpose.msra.mxu0 0.0
      %958 = vmatpush.xpose.msra.mxu0 0.0
      %959 = vmatpush.xpose.msra.mxu0 0.0
      %960 = vmatpush.xpose.msra.mxu0 0.0
      %961 = vmatpush.xpose.msra.mxu0 0.0
      %962 = vmatpush.xpose.msra.mxu0 0.0
      %963 = vmatpush.xpose.msra.mxu0 0.0
      %964 = vmatpush.xpose.msra.mxu0 0.0
      %965 = vmatpush.xpose.msra.mxu0 0.0
      %966 = vmatpush.xpose.msra.mxu0 0.0
      %967 = vmatpush.xpose.msra.mxu0 0.0
      %968 = vmatpush.xpose.msra.mxu0 0.0
      %969 = vmatpush.xpose.msra.mxu0 %v952
      %970 = vmatmul.f32.gmra.mxu0 %v949
      %v971 = vpop.f32.mrf.mxu0
      %v972 = vadd.f32 0.0, %v971
      %973 = vdwg.mxu0
      %v974 = vsel %vm575, %v972, -inf
      %975 = vmax.xlane.f32.xlu0 %v974
      %v976 = vpop.xlane.xlu0 %975
      %v977 = vsub.f32 %v972, %v976
      %v978 = vmul.f32 %v977, 1.442695
      %v979 = vpow.pop %v978
      %v980 = vsel %vm575, %v979, 0.0
      %981 = vadd.xlane.f32.xlu0 %v980
      %v982 = vpop.xlane.xlu0 %981
      %v983 = vrcp.pop %v982
      %v984 = vmul.f32 %v982, %v983
      %v985 = vsub.f32 1.0, %v984
      %v986 = vmul.f32 %v983, %v985
      %v987 = vadd.f32 %v983, %v986
      %vm988 = vweird.f32 %v982
      %vm989 = vweird.f32 %v983
      %vm990 = vmor %vm988, %vm989
      %v991 = vsel %vm990, %v983, %v987
      %v992 = vand.u32 2147483647, %v982
      %vm993 = vcmp.eq.f32.partialorder %v992, 8.507059e+37
      %v994 = vand.u32 %v982, 2147483648
      %v995 = vor.u32 1.1754944e-38, %v994
      %v996 = vsel %vm993, %v995, %v991
      %v997 = vmul.f32 %v979, %v996
      %v999 = vsel %vm575, %v997, 0
      %1001 = vmatpush.msra.mxu0 0.0
      %1002 = vmatpush.msra.mxu0 0.0
      %1003 = vmatpush.msra.mxu0 0.0
      %1004 = vmatpush.msra.mxu0 0.0
      %1005 = vmatpush.msra.mxu0 0.0
      %1006 = vmatpush.msra.mxu0 0.0
      %1007 = vmatpush.msra.mxu0 0.0
      %1008 = vmatpush.msra.mxu0 0.0
      %1009 = vmatpush.msra.mxu0 0.0
      %1010 = vmatpush.msra.mxu0 0.0
      %1011 = vmatpush.msra.mxu0 0.0
      %1012 = vmatpush.msra.mxu0 0.0
      %1013 = vmatpush.msra.mxu0 0.0
      %1014 = vmatpush.msra.mxu0 0.0
      %1015 = vmatpush.msra.mxu0 0.0
      %1016 = vmatpush.msra.mxu0 %v946
      %1017 = vmatmul.f32.gmra.mxu0 %v999
      %v1018 = vpop.f32.mrf.mxu0
      %v1019 = vadd.f32 0.0, %v1018
      %1020 = vdwg.mxu0
      %s1021 = scalar_lea.vmem %s2, 384
      %v1022 = vld [vmem:[%s1021] sm:$0xff]
      %v1023 = vld [vmem:[%s1021 + $0x8] sm:$0xff]
      %v1024 = vld [vmem:[%s1021 + $0x10] sm:$0xff]
      %v1025 = vld [vmem:[%s1021 + $0x18] sm:$0xff]
      %v1026 = vld [vmem:[%s1021 + $0x20] sm:$0xff]
      %v1027 = vld [vmem:[%s1021 + $0x28] sm:$0xff]
      %v1028 = vld [vmem:[%s1021 + $0x30] sm:$0xff]
      %v1029 = vld [vmem:[%s1021 + $0x38] sm:$0xff]
      %v1030 = vld [vmem:[%s1021 + $0x40] sm:$0xff]
      %v1031 = vld [vmem:[%s1021 + $0x48] sm:$0xff]
      %v1032 = vld [vmem:[%s1021 + $0x50] sm:$0xff]
      %v1033 = vld [vmem:[%s1021 + $0x58] sm:$0xff]
      %v1034 = vld [vmem:[%s1021 + $0x60] sm:$0xff]
      %v1035 = vld [vmem:[%s1021 + $0x68] sm:$0xff]
      %v1036 = vld [vmem:[%s1021 + $0x70] sm:$0xff]
      %v1037 = vld [vmem:[%s1021 + $0x78] sm:$0xff]
      %s1038 = scalar_lea.vmem %s3, 3
      %v1039 = vld [vmem:[%s1038] sm:$0x1]
      %v1041 = vperm.slane %v1039, 0
      %1043 = vmatpush.msra.mxu0 %v1037
      %1044 = vmatpush.msra.mxu0 %v1036
      %1045 = vmatpush.msra.mxu0 %v1035
      %1046 = vmatpush.msra.mxu0 %v1034
      %1047 = vmatpush.msra.mxu0 %v1033
      %1048 = vmatpush.msra.mxu0 %v1032
      %1049 = vmatpush.msra.mxu0 %v1031
      %1050 = vmatpush.msra.mxu0 %v1030
      %1051 = vmatpush.msra.mxu0 %v1029
      %1052 = vmatpush.msra.mxu0 %v1028
      %1053 = vmatpush.msra.mxu0 %v1027
      %1054 = vmatpush.msra.mxu0 %v1026
      %1055 = vmatpush.msra.mxu0 %v1025
      %1056 = vmatpush.msra.mxu0 %v1024
      %1057 = vmatpush.msra.mxu0 %v1023
      %1058 = vmatpush.msra.mxu0 %v1022
      %1059 = vmatmul.f32.gmra.mxu0 %v426
      %v1060 = vpop.f32.mrf.mxu0
      %v1061 = vadd.f32 %v1041, %v1060
      %1062 = vdwg.mxu0
      %s1063 = scalar_lea.vmem %s4, 384
      %v1064 = vld [vmem:[%s1063] sm:$0xff]
      %v1065 = vld [vmem:[%s1063 + $0x8] sm:$0xff]
      %v1066 = vld [vmem:[%s1063 + $0x10] sm:$0xff]
      %v1067 = vld [vmem:[%s1063 + $0x18] sm:$0xff]
      %v1068 = vld [vmem:[%s1063 + $0x20] sm:$0xff]
      %v1069 = vld [vmem:[%s1063 + $0x28] sm:$0xff]
      %v1070 = vld [vmem:[%s1063 + $0x30] sm:$0xff]
      %v1071 = vld [vmem:[%s1063 + $0x38] sm:$0xff]
      %v1072 = vld [vmem:[%s1063 + $0x40] sm:$0xff]
      %v1073 = vld [vmem:[%s1063 + $0x48] sm:$0xff]
      %v1074 = vld [vmem:[%s1063 + $0x50] sm:$0xff]
      %v1075 = vld [vmem:[%s1063 + $0x58] sm:$0xff]
      %v1076 = vld [vmem:[%s1063 + $0x60] sm:$0xff]
      %v1077 = vld [vmem:[%s1063 + $0x68] sm:$0xff]
      %v1078 = vld [vmem:[%s1063 + $0x70] sm:$0xff]
      %v1079 = vld [vmem:[%s1063 + $0x78] sm:$0xff]
      %s1080 = scalar_lea.vmem %s5, 3
      %v1081 = vld [vmem:[%s1080] sm:$0x1]
      %v1083 = vperm.slane %v1081, 0
      %1085 = vmatpush.msra.mxu0 %v1079
      %1086 = vmatpush.msra.mxu0 %v1078
      %1087 = vmatpush.msra.mxu0 %v1077
      %1088 = vmatpush.msra.mxu0 %v1076
      %1089 = vmatpush.msra.mxu0 %v1075
      %1090 = vmatpush.msra.mxu0 %v1074
      %1091 = vmatpush.msra.mxu0 %v1073
      %1092 = vmatpush.msra.mxu0 %v1072
      %1093 = vmatpush.msra.mxu0 %v1071
      %1094 = vmatpush.msra.mxu0 %v1070
      %1095 = vmatpush.msra.mxu0 %v1069
      %1096 = vmatpush.msra.mxu0 %v1068
      %1097 = vmatpush.msra.mxu0 %v1067
      %1098 = vmatpush.msra.mxu0 %v1066
      %1099 = vmatpush.msra.mxu0 %v1065
      %1100 = vmatpush.msra.mxu0 %v1064
      %1101 = vmatmul.f32.gmra.mxu0 %v427
      %v1102 = vpop.f32.mrf.mxu0
      %v1103 = vadd.f32 %v1083, %v1102
      %1104 = vdwg.mxu0
      %s1105 = scalar_lea.vmem %s6, 384
      %v1106 = vld [vmem:[%s1105] sm:$0xff]
      %v1107 = vld [vmem:[%s1105 + $0x8] sm:$0xff]
      %v1108 = vld [vmem:[%s1105 + $0x10] sm:$0xff]
      %v1109 = vld [vmem:[%s1105 + $0x18] sm:$0xff]
      %v1110 = vld [vmem:[%s1105 + $0x20] sm:$0xff]
      %v1111 = vld [vmem:[%s1105 + $0x28] sm:$0xff]
      %v1112 = vld [vmem:[%s1105 + $0x30] sm:$0xff]
      %v1113 = vld [vmem:[%s1105 + $0x38] sm:$0xff]
      %v1114 = vld [vmem:[%s1105 + $0x40] sm:$0xff]
      %v1115 = vld [vmem:[%s1105 + $0x48] sm:$0xff]
      %v1116 = vld [vmem:[%s1105 + $0x50] sm:$0xff]
      %v1117 = vld [vmem:[%s1105 + $0x58] sm:$0xff]
      %v1118 = vld [vmem:[%s1105 + $0x60] sm:$0xff]
      %v1119 = vld [vmem:[%s1105 + $0x68] sm:$0xff]
      %v1120 = vld [vmem:[%s1105 + $0x70] sm:$0xff]
      %v1121 = vld [vmem:[%s1105 + $0x78] sm:$0xff]
      %s1122 = scalar_lea.vmem %s7, 3
      %v1123 = vld [vmem:[%s1122] sm:$0x1]
      %v1125 = vperm.slane %v1123, 0
      %1127 = vmatpush.msra.mxu0 %v1121
      %1128 = vmatpush.msra.mxu0 %v1120
      %1129 = vmatpush.msra.mxu0 %v1119
      %1130 = vmatpush.msra.mxu0 %v1118
      %1131 = vmatpush.msra.mxu0 %v1117
      %1132 = vmatpush.msra.mxu0 %v1116
      %1133 = vmatpush.msra.mxu0 %v1115
      %1134 = vmatpush.msra.mxu0 %v1114
      %1135 = vmatpush.msra.mxu0 %v1113
      %1136 = vmatpush.msra.mxu0 %v1112
      %1137 = vmatpush.msra.mxu0 %v1111
      %1138 = vmatpush.msra.mxu0 %v1110
      %1139 = vmatpush.msra.mxu0 %v1109
      %1140 = vmatpush.msra.mxu0 %v1108
      %1141 = vmatpush.msra.mxu0 %v1107
      %1142 = vmatpush.msra.mxu0 %v1106
      %1143 = vmatmul.f32.gmra.mxu0 %v427
      %v1144 = vpop.f32.mrf.mxu0
      %v1145 = vadd.f32 %v1125, %v1144
      %1146 = vdwg.mxu0
      %v1148 = vsel %vm548, %v1061, 0
      %v1151 = vsel %vm548, %v1103, 0
      %1153 = vmatpush.xpose.msra.mxu0 0.0
      %1154 = vmatpush.xpose.msra.mxu0 0.0
      %1155 = vmatpush.xpose.msra.mxu0 0.0
      %1156 = vmatpush.xpose.msra.mxu0 0.0
      %1157 = vmatpush.xpose.msra.mxu0 0.0
      %1158 = vmatpush.xpose.msra.mxu0 0.0
      %1159 = vmatpush.xpose.msra.mxu0 0.0
      %1160 = vmatpush.xpose.msra.mxu0 0.0
      %1161 = vmatpush.xpose.msra.mxu0 0.0
      %1162 = vmatpush.xpose.msra.mxu0 0.0
      %1163 = vmatpush.xpose.msra.mxu0 0.0
      %1164 = vmatpush.xpose.msra.mxu0 0.0
      %1165 = vmatpush.xpose.msra.mxu0 0.0
      %1166 = vmatpush.xpose.msra.mxu0 0.0
      %1167 = vmatpush.xpose.msra.mxu0 0.0
      %1168 = vmatpush.xpose.msra.mxu0 %v1151
      %1169 = vmatmul.f32.gmra.mxu0 %v1148
      %v1170 = vpop.f32.mrf.mxu0
      %v1171 = vadd.f32 0.0, %v1170
      %1172 = vdwg.mxu0
      %v1173 = vsel %vm575, %v1171, -inf
      %1174 = vmax.xlane.f32.xlu0 %v1173
      %v1175 = vpop.xlane.xlu0 %1174
      %v1176 = vsub.f32 %v1171, %v1175
      %v1177 = vmul.f32 %v1176, 1.442695
      %v1178 = vpow.pop %v1177
      %v1179 = vsel %vm575, %v1178, 0.0
      %1180 = vadd.xlane.f32.xlu0 %v1179
      %v1181 = vpop.xlane.xlu0 %1180
      %v1182 = vrcp.pop %v1181
      %v1183 = vmul.f32 %v1181, %v1182
      %v1184 = vsub.f32 1.0, %v1183
      %v1185 = vmul.f32 %v1182, %v1184
      %v1186 = vadd.f32 %v1182, %v1185
      %vm1187 = vweird.f32 %v1181
      %vm1188 = vweird.f32 %v1182
      %vm1189 = vmor %vm1187, %vm1188
      %v1190 = vsel %vm1189, %v1182, %v1186
      %v1191 = vand.u32 2147483647, %v1181
      %vm1192 = vcmp.eq.f32.partialorder %v1191, 8.507059e+37
      %v1193 = vand.u32 %v1181, 2147483648
      %v1194 = vor.u32 1.1754944e-38, %v1193
      %v1195 = vsel %vm1192, %v1194, %v1190
      %v1196 = vmul.f32 %v1178, %v1195
      %v1198 = vsel %vm575, %v1196, 0
      %1200 = vmatpush.msra.mxu0 0.0
      %1201 = vmatpush.msra.mxu0 0.0
      %1202 = vmatpush.msra.mxu0 0.0
      %1203 = vmatpush.msra.mxu0 0.0
      %1204 = vmatpush.msra.mxu0 0.0
      %1205 = vmatpush.msra.mxu0 0.0
      %1206 = vmatpush.msra.mxu0 0.0
      %1207 = vmatpush.msra.mxu0 0.0
      %1208 = vmatpush.msra.mxu0 0.0
      %1209 = vmatpush.msra.mxu0 0.0
      %1210 = vmatpush.msra.mxu0 0.0
      %1211 = vmatpush.msra.mxu0 0.0
      %1212 = vmatpush.msra.mxu0 0.0
      %1213 = vmatpush.msra.mxu0 0.0
      %1214 = vmatpush.msra.mxu0 0.0
      %1215 = vmatpush.msra.mxu0 %v1145
      %1216 = vmatmul.f32.gmra.mxu0 %v1198
      %v1217 = vpop.f32.mrf.mxu0
      %v1218 = vadd.f32 0.0, %v1217
      %1219 = vdwg.mxu0
      %1221 = vrot.lane.b32.xlu0 %v820, 32
      %v1222 = vpop.permute.xlu0 %1221
      %1225 = vrot.lane.b32.xlu0 %v1019, 64
      %v1226 = vpop.permute.xlu0 %1225
      %1229 = vrot.lane.b32.xlu0 %v1218, 96
      %v1230 = vpop.permute.xlu0 %1229
      %v1232 = vsel %vm548, %v621, %v1222
      %vm1233 = vcmask 523264
      %v1234 = vsel %vm1233, %v1232, %v1226
      %vm1235 = vcmask 785408
      %v1236 = vsel %vm1235, %v1234, %v1230
      %v1237 = vld [vmem:[%s8] sm:$0xff]
      %v1238 = vld [vmem:[%s8 + $0x8] sm:$0xff]
      %v1239 = vld [vmem:[%s8 + $0x10] sm:$0xff]
      %v1240 = vld [vmem:[%s8 + $0x18] sm:$0xff]
      %v1241 = vld [vmem:[%s8 + $0x20] sm:$0xff]
      %v1242 = vld [vmem:[%s8 + $0x28] sm:$0xff]
      %v1243 = vld [vmem:[%s8 + $0x30] sm:$0xff]
      %v1244 = vld [vmem:[%s8 + $0x38] sm:$0xff]
      %v1245 = vld [vmem:[%s8 + $0x40] sm:$0xff]
      %v1246 = vld [vmem:[%s8 + $0x48] sm:$0xff]
      %v1247 = vld [vmem:[%s8 + $0x50] sm:$0xff]
      %v1248 = vld [vmem:[%s8 + $0x58] sm:$0xff]
      %v1249 = vld [vmem:[%s8 + $0x60] sm:$0xff]
      %v1250 = vld [vmem:[%s8 + $0x68] sm:$0xff]
      %v1251 = vld [vmem:[%s8 + $0x70] sm:$0xff]
      %v1252 = vld [vmem:[%s8 + $0x78] sm:$0xff]
      %1253 = vmatpush.msra.mxu0 %v1252
      %1254 = vmatpush.msra.mxu0 %v1251
      %1255 = vmatpush.msra.mxu0 %v1250
      %1256 = vmatpush.msra.mxu0 %v1249
      %1257 = vmatpush.msra.mxu0 %v1248
      %1258 = vmatpush.msra.mxu0 %v1247
      %1259 = vmatpush.msra.mxu0 %v1246
      %1260 = vmatpush.msra.mxu0 %v1245
      %1261 = vmatpush.msra.mxu0 %v1244
      %1262 = vmatpush.msra.mxu0 %v1243
      %1263 = vmatpush.msra.mxu0 %v1242
      %1264 = vmatpush.msra.mxu0 %v1241
      %1265 = vmatpush.msra.mxu0 %v1240
      %1266 = vmatpush.msra.mxu0 %v1239
      %1267 = vmatpush.msra.mxu0 %v1238
      %1268 = vmatpush.msra.mxu0 %v1237
      %1269 = vmatmul.f32.gmra.mxu0 %v1236
      %v1270 = vpop.f32.mrf.mxu0
      %v1271 = vadd.f32 0.0, %v1270
      %1272 = vdwg.mxu0
      %v1273 = vadd.f32 %v426, %v1271
      %v1274 = vld [vmem:[%s9] sm:$0x1]
      %v1276 = vperm.slane %v1274, 0
      %v1278 = vadd.f32 %v1273, %v1276
      %v1279 = vld [vmem:[%s10] sm:$0x1]
      %v1280 = vld [vmem:[%s11] sm:$0x1]
      %1281 = vadd.xlane.f32.xlu0 %v1278
      %v1282 = vpop.xlane.xlu0 %1281
      %v1283 = vrcp.pop 128.0
      %v1284 = vmul.f32 128.0, %v1283
      %v1285 = vsub.f32 1.0, %v1284
      %v1286 = vmul.f32 %v1283, %v1285
      %v1287 = vadd.f32 %v1283, %v1286
      %vm1288 = vweird.f32 %v1283
      %v1289 = vsel %vm1288, %v1283, %v1287
      %v1290 = vmul.f32 %v1282, %v1289
      %v1291 = vsub.f32 %v1278, %v1290
      %v1292 = vmul.f32 %v1291, %v1291
      %1293 = vadd.xlane.f32.xlu0 %v1292
      %v1294 = vpop.xlane.xlu0 %1293
      %v1295 = vmul.f32 %v1294, %v1289
      %v1296 = vadd.f32 %v1295, 1e-05
      %v1297 = vrsqrt.pop %v1296
      %v1298 = vmul.f32 %v1297, %v1296
      %v1299 = vmul.f32 %v1298, %v1297
      %v1300 = vmul.f32 0.5, %v1299
      %v1301 = vsub.f32 1.5, %v1300
      %v1302 = vmul.f32 %v1297, %v1301
      %vm1303 = vweird.f32 %v1296
      %vm1304 = vweird.f32 %v1297
      %vm1305 = vmor %vm1303, %vm1304
      %v1306 = vsel %vm1305, %v1297, %v1302
      %v1307 = vmul.f32 %v1291, %v1306
      %v1309 = vperm.slane %v1279, 0
      %v1311 = vmul.f32 %v1307, %v1309
      %v1313 = vperm.slane %v1280, 0
      %v1315 = vadd.f32 %v1311, %v1313
      %1316 = vst [vmem:[%s425] sm:$0xff] %v1315
      %p1317 = scmp.lt.s32.totalorder %s23, 1
      %s1318 = scalar_select %p1317, %s23, 1
      %s1319 = smul.addr %s1318, 8
      %s1320 = scalar_lea.vmem %s12, %s1319
      // Predicated region
      $region69: #{content_generator_forward.10} parent=67 // pred_check
        %p1321 = pneg %p303
      $region70: #{content_generator_forward.10} parent=67 // pred_check_branch
        %1323 = sbr.rel (%p1321) target = $region72
      $region71: #{content_generator_forward.10} parent=67 // pred_region
        _
      $region72: #{content_generator_forward.10} parent=67 // pred_fallthru
        _
    $region68: #{content_generator_forward.10} parent=5 // pred_fallthru
      _
    %p1324 = scmp.le.s32.totalorder 2, %s18
    // Predicated region
    $region73: #{content_generator_forward.10} parent=5 // pred_check
      %p1325 = pneg %p1324
    $region74: #{content_generator_forward.10} parent=5 // pred_check_branch
      %1327 = sbr.rel (%p1325) target = $region76
    $region75: #{content_generator_forward.10} parent=5 // pred_region
      %s1328 = ssub.s32 %s18, 2
      // Predicated region
      $region77: #{content_generator_forward.10} parent=75 // pred_check
        %p1329 = pneg %p309
      $region78: #{content_generator_forward.10} parent=75 // pred_check_branch
        %1331 = sbr.rel (%p1329) target = $region80
      $region79: #{content_generator_forward.10} parent=75 // pred_region
        %p1332 = scmp.lt.s32.totalorder %s24, 1
        %s1333 = scalar_select %p1332, %s24, 1
        %s1334 = smul.addr %s1333, 8
        %s1335 = scalar_lea.vmem %s12, %s1334
      $region80: #{content_generator_forward.10} parent=75 // pred_fallthru
        _
    $region76: #{content_generator_forward.10} parent=5 // pred_fallthru
      _
  $region6: #{content_generator_forward.10} parent=0 // loop_footer
    %s22 = sadd.s32 1, %s18
  $region7: #{content_generator_forward.10} parent=0 // loop_footer_branch
    %17 = sbr.rel target = $region3
  $region8: #{content_generator_forward.10} parent=0 // loop_exit
    _

// kernel: content_generator_forward.8
$region0: #{content_generator_forward.8}
  #allocation0 [shape = 'u32[]', space=smem, size = 0x4, offset = 0x4, fixed_abs, tag = 'smem constant byte address 0x4 - core index']
  #allocation1 [shape = 'u32[72,128]{1,0:T(1,128)}', space=vmem, size = 0x9000, scoped, tag = 'internal scratch']
  #allocation2 [shape = 'f32[1,1]{1,0:T(1,128)S(1)}', space=vmem, size = 0x200, scoped, tag = 'scoped memory for content_generator_forward.8']
  %s0 = inlined_call_operand.smem [shape: u32[35], index: -1, kind: input, shape index: {}]
  %s1 = sld [smem:[%s0]]
  %s2 = scalar_lea.smem %s0, 1
  %s3 = sld [smem:[%s2]]
  %s4 = scalar_lea.smem %s0, 2
  %s5 = sld [smem:[%s4]]
  %s6 = scalar_lea.smem %s0, 3
  %s7 = sld [smem:[%s6]]
  %s8 = scalar_lea.smem %s0, 4
  %s9 = sld [smem:[%s8]]
  %s10 = scalar_lea.smem %s0, 5
  %s11 = sld [smem:[%s10]]
  %s12 = scalar_lea.smem %s0, 6
  %s13 = sld [smem:[%s12]]
  %s14 = scalar_lea.smem %s0, 7
  %s15 = sld [smem:[%s14]]
  %s16 = scalar_lea.smem %s0, 8
  %s17 = sld [smem:[%s16]]
  %s18 = scalar_lea.smem %s0, 9
  %s19 = sld [smem:[%s18]]
  %s20 = scalar_lea.smem %s0, 10
  %s21 = sld [smem:[%s20]]
  %s22 = scalar_lea.smem %s0, 11
  %s23 = sld [smem:[%s22]]
  %s24 = scalar_lea.smem %s0, 12
  %s25 = sld [smem:[%s24]]
  %s26 = scalar_lea.smem %s0, 13
  %s27 = sld [smem:[%s26]]
  %s28 = scalar_lea.smem %s0, 14
  %s29 = sld [smem:[%s28]]
  %s30 = scalar_lea.smem %s0, 15
  %s31 = sld [smem:[%s30]]
  %s32 = scalar_lea.smem %s0, 16
  %s33 = sld [smem:[%s32]]
  %s34 = scalar_lea.smem %s0, 17
  %s35 = sld [smem:[%s34]]
  %s36 = scalar_lea.smem %s0, 18
  %s37 = sld [smem:[%s36]]
  %s38 = scalar_lea.smem %s0, 19
  %s39 = sld [smem:[%s38]]
  %s40 = scalar_lea.smem %s0, 20
  %s41 = sld [smem:[%s40]]
  %s42 = scalar_lea.smem %s0, 21
  %s43 = sld [smem:[%s42]]
  %s44 = scalar_lea.smem %s0, 22
  %s45 = sld [smem:[%s44]]
  %s46 = scalar_lea.smem %s0, 23
  %s47 = sld [smem:[%s46]]
  %s48 = scalar_lea.smem %s0, 24
  %s49 = sld [smem:[%s48]]
  %s50 = scalar_lea.smem %s0, 25
  %s51 = sld [smem:[%s50]]
  %s52 = scalar_lea.smem %s0, 26
  %s53 = sld [smem:[%s52]]
  %s54 = scalar_lea.smem %s0, 27
  %s55 = sld [smem:[%s54]]
  %s56 = scalar_lea.smem %s0, 28
  %s57 = sld [smem:[%s56]]
  %s58 = scalar_lea.smem %s0, 29
  %s59 = sld [smem:[%s58]]
  %s60 = scalar_lea.smem %s0, 30
  %s61 = sld [smem:[%s60]]
  %s62 = scalar_lea.smem %s0, 31
  %s63 = sld [smem:[%s62]]
  %s64 = scalar_lea.smem %s0, 32
  %s65 = sld [smem:[%s64]]
  %s66 = scalar_lea.smem %s0, 33
  %s67 = sld [smem:[%s66]]
  %s68 = scalar_lea.smem %s0, 34
  %s69 = sld [smem:[%s68]]
  %70 = xla_tuple %s61, %s63, %s65, %s67, %s69
  %s71 = sld [smem:[#allocation0]]
  $region162: #{content_generator_forward.8} parent=0
    _
  %s73 = ssub.s32 1, %s71
  %s74 = scalar_select 0, %s73, %s71
  %v75 = vstv %s31
  %76 = vst [vmem:[#allocation2] sm:$0x1] %v75
  $region1: #{content_generator_forward.8} parent=0
    #allocation3 [shape = 'u8[1024]{0}', space=vmem, size = 0x400, scoped, tag = 'output window, operand 2, single buffered']
    #allocation4 [shape = 's32[1]{0}', space=sflag, size = 0x4, scoped, tag = 'scoped memory for content_generator_forward.8']
    #allocation5 [shape = 'u8[1024]{0}', space=vmem, size = 0x400, scoped, tag = 'output window, operand 4, single buffered']
    #allocation6 [shape = 's32[1]{0}', space=sflag, size = 0x4, scoped, tag = 'scoped memory for content_generator_forward.8']
    %77 = vsyncpa [#allocation4], 0
    %78 = vsyncpa [#allocation6], 0
    // Predicated region
    $region2: #{content_generator_forward.8} parent=1 // pred_check
      _
    $region3: #{content_generator_forward.8} parent=1 // pred_check_branch
      %80 = sbr.rel (0) target = $region5
    $region4: #{content_generator_forward.8} parent=1 // pred_region
      _
    $region5: #{content_generator_forward.8} parent=1 // pred_fallthru
      _
    // Predicated region
    $region6: #{content_generator_forward.8} parent=1 // pred_check
      _
    $region7: #{content_generator_forward.8} parent=1 // pred_check_branch
      %82 = sbr.rel (0) target = $region9
    $region8: #{content_generator_forward.8} parent=1 // pred_region
      _
    $region9: #{content_generator_forward.8} parent=1 // pred_fallthru
      _
    // Predicated region
    $region10: #{content_generator_forward.8} parent=1 // pred_check
      _
    $region11: #{content_generator_forward.8} parent=1 // pred_check_branch
      %84 = sbr.rel (0) target = $region13
    $region12: #{content_generator_forward.8} parent=1 // pred_region
      _
    $region13: #{content_generator_forward.8} parent=1 // pred_fallthru
      _
    // Predicated region
    $region14: #{content_generator_forward.8} parent=1 // pred_check
      _
    $region15: #{content_generator_forward.8} parent=1 // pred_check_branch
      %86 = sbr.rel (0) target = $region17
    $region16: #{content_generator_forward.8} parent=1 // pred_region
      _
    $region17: #{content_generator_forward.8} parent=1 // pred_fallthru
      _
    // Predicated region
    $region18: #{content_generator_forward.8} parent=1 // pred_check
      _
    $region19: #{content_generator_forward.8} parent=1 // pred_check_branch
      %88 = sbr.rel (0) target = $region21
    $region20: #{content_generator_forward.8} parent=1 // pred_region
      _
    $region21: #{content_generator_forward.8} parent=1 // pred_fallthru
      _
    // Predicated region
    $region22: #{content_generator_forward.8} parent=1 // pred_check
      _
    $region23: #{content_generator_forward.8} parent=1 // pred_check_branch
      %90 = sbr.rel (0) target = $region25
    $region24: #{content_generator_forward.8} parent=1 // pred_region
      _
    $region25: #{content_generator_forward.8} parent=1 // pred_fallthru
      _
    // Predicated region
    $region26: #{content_generator_forward.8} parent=1 // pred_check
      _
    $region27: #{content_generator_forward.8} parent=1 // pred_check_branch
      %92 = sbr.rel (0) target = $region29
    $region28: #{content_generator_forward.8} parent=1 // pred_region
      _
    $region29: #{content_generator_forward.8} parent=1 // pred_fallthru
      _
    // Predicated region
    $region30: #{content_generator_forward.8} parent=1 // pred_check
      _
    $region31: #{content_generator_forward.8} parent=1 // pred_check_branch
      %94 = sbr.rel (0) target = $region33
    $region32: #{content_generator_forward.8} parent=1 // pred_region
      _
    $region33: #{content_generator_forward.8} parent=1 // pred_fallthru
      _
    // Predicated region
    $region34: #{content_generator_forward.8} parent=1 // pred_check
      _
    $region35: #{content_generator_forward.8} parent=1 // pred_check_branch
      %96 = sbr.rel (0) target = $region37
    $region36: #{content_generator_forward.8} parent=1 // pred_region
      _
    $region37: #{content_generator_forward.8} parent=1 // pred_fallthru
      _
    // Predicated region
    $region38: #{content_generator_forward.8} parent=1 // pred_check
      _
    $region39: #{content_generator_forward.8} parent=1 // pred_check_branch
      %98 = sbr.rel (0) target = $region41
    $region40: #{content_generator_forward.8} parent=1 // pred_region
      _
    $region41: #{content_generator_forward.8} parent=1 // pred_fallthru
      _
    // Predicated region
    $region42: #{content_generator_forward.8} parent=1 // pred_check
      _
    $region43: #{content_generator_forward.8} parent=1 // pred_check_branch
      %100 = sbr.rel (0) target = $region45
    $region44: #{content_generator_forward.8} parent=1 // pred_region
      _
    $region45: #{content_generator_forward.8} parent=1 // pred_fallthru
      _
    // Predicated region
    $region46: #{content_generator_forward.8} parent=1 // pred_check
      _
    $region47: #{content_generator_forward.8} parent=1 // pred_check_branch
      %102 = sbr.rel (0) target = $region49
    $region48: #{content_generator_forward.8} parent=1 // pred_region
      _
    $region49: #{content_generator_forward.8} parent=1 // pred_fallthru
      _
    // Predicated region
    $region50: #{content_generator_forward.8} parent=1 // pred_check
      _
    $region51: #{content_generator_forward.8} parent=1 // pred_check_branch
      %104 = sbr.rel (0) target = $region53
    $region52: #{content_generator_forward.8} parent=1 // pred_region
      _
    $region53: #{content_generator_forward.8} parent=1 // pred_fallthru
      _
    // Predicated region
    $region54: #{content_generator_forward.8} parent=1 // pred_check
      _
    $region55: #{content_generator_forward.8} parent=1 // pred_check_branch
      %106 = sbr.rel (0) target = $region57
    $region56: #{content_generator_forward.8} parent=1 // pred_region
      _
    $region57: #{content_generator_forward.8} parent=1 // pred_fallthru
      _
    // Predicated region
    $region58: #{content_generator_forward.8} parent=1 // pred_check
      _
    $region59: #{content_generator_forward.8} parent=1 // pred_check_branch
      %108 = sbr.rel (0) target = $region61
    $region60: #{content_generator_forward.8} parent=1 // pred_region
      _
    $region61: #{content_generator_forward.8} parent=1 // pred_fallthru
      _
    // Predicated region
    $region62: #{content_generator_forward.8} parent=1 // pred_check
      _
    $region63: #{content_generator_forward.8} parent=1 // pred_check_branch
      %110 = sbr.rel (0) target = $region65
    $region64: #{content_generator_forward.8} parent=1 // pred_region
      _
    $region65: #{content_generator_forward.8} parent=1 // pred_fallthru
      _
    // Predicated region
    $region66: #{content_generator_forward.8} parent=1 // pred_check
      _
    $region67: #{content_generator_forward.8} parent=1 // pred_check_branch
      %112 = sbr.rel (0) target = $region69
    $region68: #{content_generator_forward.8} parent=1 // pred_region
      _
    $region69: #{content_generator_forward.8} parent=1 // pred_fallthru
      _
    // Predicated region
    $region70: #{content_generator_forward.8} parent=1 // pred_check
      _
    $region71: #{content_generator_forward.8} parent=1 // pred_check_branch
      %114 = sbr.rel (0) target = $region73
    $region72: #{content_generator_forward.8} parent=1 // pred_region
      _
    $region73: #{content_generator_forward.8} parent=1 // pred_fallthru
      _
    // Predicated region
    $region74: #{content_generator_forward.8} parent=1 // pred_check
      _
    $region75: #{content_generator_forward.8} parent=1 // pred_check_branch
      %116 = sbr.rel (0) target = $region77
    $region76: #{content_generator_forward.8} parent=1 // pred_region
      _
    $region77: #{content_generator_forward.8} parent=1 // pred_fallthru
      _
    // Predicated region
    $region78: #{content_generator_forward.8} parent=1 // pred_check
      _
    $region79: #{content_generator_forward.8} parent=1 // pred_check_branch
      %118 = sbr.rel (0) target = $region81
    $region80: #{content_generator_forward.8} parent=1 // pred_region
      _
    $region81: #{content_generator_forward.8} parent=1 // pred_fallthru
      _
    // Predicated region
    $region82: #{content_generator_forward.8} parent=1 // pred_check
      _
    $region83: #{content_generator_forward.8} parent=1 // pred_check_branch
      %120 = sbr.rel (0) target = $region85
    $region84: #{content_generator_forward.8} parent=1 // pred_region
      _
    $region85: #{content_generator_forward.8} parent=1 // pred_fallthru
      _
    // Predicated region
    $region86: #{content_generator_forward.8} parent=1 // pred_check
      _
    $region87: #{content_generator_forward.8} parent=1 // pred_check_branch
      %122 = sbr.rel (0) target = $region89
    $region88: #{content_generator_forward.8} parent=1 // pred_region
      _
    $region89: #{content_generator_forward.8} parent=1 // pred_fallthru
      _
    // Predicated region
    $region90: #{content_generator_forward.8} parent=1 // pred_check
      _
    $region91: #{content_generator_forward.8} parent=1 // pred_check_branch
      %124 = sbr.rel (0) target = $region93
    $region92: #{content_generator_forward.8} parent=1 // pred_region
      _
    $region93: #{content_generator_forward.8} parent=1 // pred_fallthru
      _
    // Predicated region
    $region94: #{content_generator_forward.8} parent=1 // pred_check
      _
    $region95: #{content_generator_forward.8} parent=1 // pred_check_branch
      %126 = sbr.rel (0) target = $region97
    $region96: #{content_generator_forward.8} parent=1 // pred_region
      _
    $region97: #{content_generator_forward.8} parent=1 // pred_fallthru
      _
    // Predicated region
    $region98: #{content_generator_forward.8} parent=1 // pred_check
      _
    $region99: #{content_generator_forward.8} parent=1 // pred_check_branch
      %128 = sbr.rel (0) target = $region101
    $region100: #{content_generator_forward.8} parent=1 // pred_region
      _
    $region101: #{content_generator_forward.8} parent=1 // pred_fallthru
      _
    // Predicated region
    $region102: #{content_generator_forward.8} parent=1 // pred_check
      _
    $region103: #{content_generator_forward.8} parent=1 // pred_check_branch
      %130 = sbr.rel (0) target = $region105
    $region104: #{content_generator_forward.8} parent=1 // pred_region
      _
    $region105: #{content_generator_forward.8} parent=1 // pred_fallthru
      _
    // Predicated region
    $region106: #{content_generator_forward.8} parent=1 // pred_check
      _
    $region107: #{content_generator_forward.8} parent=1 // pred_check_branch
      %132 = sbr.rel (0) target = $region109
    $region108: #{content_generator_forward.8} parent=1 // pred_region
      _
    $region109: #{content_generator_forward.8} parent=1 // pred_fallthru
      _
    // Predicated region
    $region110: #{content_generator_forward.8} parent=1 // pred_check
      _
    $region111: #{content_generator_forward.8} parent=1 // pred_check_branch
      %134 = sbr.rel (0) target = $region113
    $region112: #{content_generator_forward.8} parent=1 // pred_region
      _
    $region113: #{content_generator_forward.8} parent=1 // pred_fallthru
      _
    // Predicated region
    $region114: #{content_generator_forward.8} parent=1 // pred_check
      _
    $region115: #{content_generator_forward.8} parent=1 // pred_check_branch
      %136 = sbr.rel (0) target = $region117
    $region116: #{content_generator_forward.8} parent=1 // pred_region
      _
    $region117: #{content_generator_forward.8} parent=1 // pred_fallthru
      _
    // Predicated region
    $region118: #{content_generator_forward.8} parent=1 // pred_check
      _
    $region119: #{content_generator_forward.8} parent=1 // pred_check_branch
      %138 = sbr.rel (0) target = $region121
    $region120: #{content_generator_forward.8} parent=1 // pred_region
      _
    $region121: #{content_generator_forward.8} parent=1 // pred_fallthru
      _
    %v139 = vld [vmem:[%s1] sm:$0x3]
    %v140 = vld [vmem:[%s3] sm:$0x3]
    %v141 = vld [vmem:[%s5] sm:$0xff]
    %v142 = vld [vmem:[%s5 + $0x8] sm:$0xff]
    %v143 = vld [vmem:[%s5 + $0x10] sm:$0xff]
    %v144 = vld [vmem:[%s5 + $0x18] sm:$0xff]
    %v145 = vld [vmem:[%s5 + $0x20] sm:$0xff]
    %v146 = vld [vmem:[%s5 + $0x28] sm:$0xff]
    %v147 = vld [vmem:[%s5 + $0x30] sm:$0xff]
    %v148 = vld [vmem:[%s5 + $0x38] sm:$0xff]
    %v149 = vld [vmem:[%s5 + $0x40] sm:$0xff]
    %v150 = vld [vmem:[%s5 + $0x48] sm:$0xff]
    %v151 = vld [vmem:[%s5 + $0x50] sm:$0xff]
    %v152 = vld [vmem:[%s5 + $0x58] sm:$0xff]
    %v153 = vld [vmem:[%s5 + $0x60] sm:$0xff]
    %v154 = vld [vmem:[%s5 + $0x68] sm:$0xff]
    %v155 = vld [vmem:[%s5 + $0x70] sm:$0xff]
    %v156 = vld [vmem:[%s5 + $0x78] sm:$0xff]
    %v157 = vld [vmem:[%s7] sm:$0x1]
    %v159 = vperm.slane %v157, 0
    %161 = vmatpush.msra.mxu0 %v156
    %162 = vmatpush.msra.mxu0 %v155
    %163 = vmatpush.msra.mxu0 %v154
    %164 = vmatpush.msra.mxu0 %v153
    %165 = vmatpush.msra.mxu0 %v152
    %166 = vmatpush.msra.mxu0 %v151
    %167 = vmatpush.msra.mxu0 %v150
    %168 = vmatpush.msra.mxu0 %v149
    %169 = vmatpush.msra.mxu0 %v148
    %170 = vmatpush.msra.mxu0 %v147
    %171 = vmatpush.msra.mxu0 %v146
    %172 = vmatpush.msra.mxu0 %v145
    %173 = vmatpush.msra.mxu0 %v144
    %174 = vmatpush.msra.mxu0 %v143
    %175 = vmatpush.msra.mxu0 %v142
    %176 = vmatpush.msra.mxu0 %v141
    %177 = vmatmul.f32.gmra.mxu0 %v139
    %v178 = vpop.f32.mrf.mxu0
    %v179 = vadd.f32 %v159, %v178
    %180 = vdwg.mxu0
    %v181 = vmax.f32 %v179, 0.0
    %v182 = vld [vmem:[%s9] sm:$0xff]
    %v183 = vld [vmem:[%s9 + $0x8] sm:$0xff]
    %v184 = vld [vmem:[%s9 + $0x10] sm:$0xff]
    %v185 = vld [vmem:[%s9 + $0x18] sm:$0xff]
    %v186 = vld [vmem:[%s9 + $0x20] sm:$0xff]
    %v187 = vld [vmem:[%s9 + $0x28] sm:$0xff]
    %v188 = vld [vmem:[%s9 + $0x30] sm:$0xff]
    %v189 = vld [vmem:[%s9 + $0x38] sm:$0xff]
    %v190 = vld [vmem:[%s9 + $0x40] sm:$0xff]
    %v191 = vld [vmem:[%s9 + $0x48] sm:$0xff]
    %v192 = vld [vmem:[%s9 + $0x50] sm:$0xff]
    %v193 = vld [vmem:[%s9 + $0x58] sm:$0xff]
    %v194 = vld [vmem:[%s9 + $0x60] sm:$0xff]
    %v195 = vld [vmem:[%s9 + $0x68] sm:$0xff]
    %v196 = vld [vmem:[%s9 + $0x70] sm:$0xff]
    %v197 = vld [vmem:[%s9 + $0x78] sm:$0xff]
    %v198 = vld [vmem:[%s11] sm:$0x1]
    %v200 = vperm.slane %v198, 0
    %202 = vmatpush.msra.mxu0 %v197
    %203 = vmatpush.msra.mxu0 %v196
    %204 = vmatpush.msra.mxu0 %v195
    %205 = vmatpush.msra.mxu0 %v194
    %206 = vmatpush.msra.mxu0 %v193
    %207 = vmatpush.msra.mxu0 %v192
    %208 = vmatpush.msra.mxu0 %v191
    %209 = vmatpush.msra.mxu0 %v190
    %210 = vmatpush.msra.mxu0 %v189
    %211 = vmatpush.msra.mxu0 %v188
    %212 = vmatpush.msra.mxu0 %v187
    %213 = vmatpush.msra.mxu0 %v186
    %214 = vmatpush.msra.mxu0 %v185
    %215 = vmatpush.msra.mxu0 %v184
    %216 = vmatpush.msra.mxu0 %v183
    %217 = vmatpush.msra.mxu0 %v182
    %218 = vmatmul.f32.gmra.mxu0 %v181
    %v219 = vpop.f32.mrf.mxu0
    %v220 = vadd.f32 %v200, %v219
    %221 = vdwg.mxu0
    %v222 = vld [vmem:[%s13] sm:$0x1]
    %v223 = vld [vmem:[%s15] sm:$0x1]
    %vm224 = vcmask 517120
    %v225 = vsel %vm224, %v220, 0.0
    %226 = vadd.xlane.f32.xlu0 %v225
    %v227 = vpop.xlane.xlu0 %226
    %v228 = vrcp.pop 64.0
    %v229 = vmul.f32 64.0, %v228
    %v230 = vsub.f32 1.0, %v229
    %v231 = vmul.f32 %v228, %v230
    %v232 = vadd.f32 %v228, %v231
    %vm233 = vweird.f32 %v228
    %v234 = vsel %vm233, %v228, %v232
    %v235 = vmul.f32 %v227, %v234
    %v236 = vsub.f32 %v220, %v235
    %v237 = vmul.f32 %v236, %v236
    %v238 = vsel %vm224, %v237, 0.0
    %239 = vadd.xlane.f32.xlu0 %v238
    %v240 = vpop.xlane.xlu0 %239
    %v241 = vmul.f32 %v240, %v234
    %v242 = vadd.f32 %v241, 1e-05
    %v243 = vrsqrt.pop %v242
    %v244 = vmul.f32 %v243, %v242
    %v245 = vmul.f32 %v244, %v243
    %v246 = vmul.f32 0.5, %v245
    %v247 = vsub.f32 1.5, %v246
    %v248 = vmul.f32 %v243, %v247
    %vm249 = vweird.f32 %v242
    %vm250 = vweird.f32 %v243
    %vm251 = vmor %vm249, %vm250
    %v252 = vsel %vm251, %v243, %v248
    %v253 = vmul.f32 %v236, %v252
    %v255 = vperm.slane %v222, 0
    %v257 = vmul.f32 %v253, %v255
    %v259 = vperm.slane %v223, 0
    %v261 = vadd.f32 %v257, %v259
    %v262 = vld [vmem:[%s17] sm:$0xff]
    %v263 = vld [vmem:[%s17 + $0x8] sm:$0xff]
    %v264 = vld [vmem:[%s17 + $0x10] sm:$0xff]
    %v265 = vld [vmem:[%s17 + $0x18] sm:$0xff]
    %v266 = vld [vmem:[%s17 + $0x20] sm:$0xff]
    %v267 = vld [vmem:[%s17 + $0x28] sm:$0xff]
    %v268 = vld [vmem:[%s17 + $0x30] sm:$0xff]
    %v269 = vld [vmem:[%s17 + $0x38] sm:$0xff]
    %v270 = vld [vmem:[%s17 + $0x40] sm:$0xff]
    %v271 = vld [vmem:[%s17 + $0x48] sm:$0xff]
    %v272 = vld [vmem:[%s17 + $0x50] sm:$0xff]
    %v273 = vld [vmem:[%s17 + $0x58] sm:$0xff]
    %v274 = vld [vmem:[%s17 + $0x60] sm:$0xff]
    %v275 = vld [vmem:[%s17 + $0x68] sm:$0xff]
    %v276 = vld [vmem:[%s17 + $0x70] sm:$0xff]
    %v277 = vld [vmem:[%s17 + $0x78] sm:$0xff]
    %vm278 = vcmask 523264
    %v280 = vsel %vm278, %v140, 0
    %282 = vmatpush.msra.mxu0 0.0
    %283 = vmatpush.msra.mxu0 0.0
    %284 = vmatpush.msra.mxu0 0.0
    %285 = vmatpush.msra.mxu0 0.0
    %286 = vmatpush.msra.mxu0 0.0
    %287 = vmatpush.msra.mxu0 0.0
    %288 = vmatpush.msra.mxu0 0.0
    %289 = vmatpush.msra.mxu0 0.0
    %290 = vmatpush.msra.mxu0 %v277
    %291 = vmatpush.msra.mxu0 %v276
    %292 = vmatpush.msra.mxu0 %v275
    %293 = vmatpush.msra.mxu0 %v274
    %294 = vmatpush.msra.mxu0 %v273
    %295 = vmatpush.msra.mxu0 %v272
    %296 = vmatpush.msra.mxu0 %v271
    %297 = vmatpush.msra.mxu0 %v270
    %298 = vmatmul.f32.gmra.mxu0 %v280
    %v299 = vpop.f32.mrf.mxu0
    %v300 = vadd.f32 0.0, %v299
    %301 = vdwg.mxu0
    %v303 = vsel %vm278, %v261, 0
    %305 = vmatpush.msra.mxu0 0.0
    %306 = vmatpush.msra.mxu0 0.0
    %307 = vmatpush.msra.mxu0 0.0
    %308 = vmatpush.msra.mxu0 0.0
    %309 = vmatpush.msra.mxu0 0.0
    %310 = vmatpush.msra.mxu0 0.0
    %311 = vmatpush.msra.mxu0 0.0
    %312 = vmatpush.msra.mxu0 0.0
    %313 = vmatpush.msra.mxu0 %v269
    %314 = vmatpush.msra.mxu0 %v268
    %315 = vmatpush.msra.mxu0 %v267
    %316 = vmatpush.msra.mxu0 %v266
    %317 = vmatpush.msra.mxu0 %v265
    %318 = vmatpush.msra.mxu0 %v264
    %319 = vmatpush.msra.mxu0 %v263
    %320 = vmatpush.msra.mxu0 %v262
    %321 = vmatmul.f32.gmra.mxu0 %v303
    %v322 = vpop.f32.mrf.mxu0
    %v323 = vadd.f32 %v300, %v322
    %324 = vdwg.mxu0
    %v325 = vld [vmem:[%s19] sm:$0x1]
    %v327 = vperm.slane %v325, 0
    %v329 = vadd.f32 %v323, %v327
    %v330 = vmax.f32 %v329, 0.0
    %v331 = vld [vmem:[%s21] sm:$0xff]
    %v332 = vld [vmem:[%s21 + $0x8] sm:$0xff]
    %v333 = vld [vmem:[%s21 + $0x10] sm:$0xff]
    %v334 = vld [vmem:[%s21 + $0x18] sm:$0xff]
    %v335 = vld [vmem:[%s21 + $0x20] sm:$0xff]
    %v336 = vld [vmem:[%s21 + $0x28] sm:$0xff]
    %v337 = vld [vmem:[%s21 + $0x30] sm:$0xff]
    %v338 = vld [vmem:[%s21 + $0x38] sm:$0xff]
    %v339 = vld [vmem:[%s21 + $0x40] sm:$0xff]
    %v340 = vld [vmem:[%s21 + $0x48] sm:$0xff]
    %v341 = vld [vmem:[%s21 + $0x50] sm:$0xff]
    %v342 = vld [vmem:[%s21 + $0x58] sm:$0xff]
    %v343 = vld [vmem:[%s21 + $0x60] sm:$0xff]
    %v344 = vld [vmem:[%s21 + $0x68] sm:$0xff]
    %v345 = vld [vmem:[%s21 + $0x70] sm:$0xff]
    %v346 = vld [vmem:[%s21 + $0x78] sm:$0xff]
    %v347 = vld [vmem:[%s23] sm:$0x1]
    %v349 = vperm.slane %v347, 0
    %351 = vmatpush.msra.mxu0 %v346
    %352 = vmatpush.msra.mxu0 %v345
    %353 = vmatpush.msra.mxu0 %v344
    %354 = vmatpush.msra.mxu0 %v343
    %355 = vmatpush.msra.mxu0 %v342
    %356 = vmatpush.msra.mxu0 %v341
    %357 = vmatpush.msra.mxu0 %v340
    %358 = vmatpush.msra.mxu0 %v339
    %359 = vmatpush.msra.mxu0 %v338
    %360 = vmatpush.msra.mxu0 %v337
    %361 = vmatpush.msra.mxu0 %v336
    %362 = vmatpush.msra.mxu0 %v335
    %363 = vmatpush.msra.mxu0 %v334
    %364 = vmatpush.msra.mxu0 %v333
    %365 = vmatpush.msra.mxu0 %v332
    %366 = vmatpush.msra.mxu0 %v331
    %367 = vmatmul.f32.gmra.mxu0 %v330
    %v368 = vpop.f32.mrf.mxu0
    %v369 = vadd.f32 %v349, %v368
    %370 = vdwg.mxu0
    %371 = vst [vmem:[%s61] sm:$0x3] %v369
    %v372 = vld [vmem:[%s25] sm:$0xff]
    %v373 = vld [vmem:[%s25 + $0x8] sm:$0xff]
    %v374 = vld [vmem:[%s25 + $0x10] sm:$0xff]
    %v375 = vld [vmem:[%s25 + $0x18] sm:$0xff]
    %v376 = vld [vmem:[%s25 + $0x20] sm:$0xff]
    %v377 = vld [vmem:[%s25 + $0x28] sm:$0xff]
    %v378 = vld [vmem:[%s25 + $0x30] sm:$0xff]
    %v379 = vld [vmem:[%s25 + $0x38] sm:$0xff]
    %v380 = vld [vmem:[%s25 + $0x40] sm:$0xff]
    %v381 = vld [vmem:[%s25 + $0x48] sm:$0xff]
    %v382 = vld [vmem:[%s25 + $0x50] sm:$0xff]
    %v383 = vld [vmem:[%s25 + $0x58] sm:$0xff]
    %v384 = vld [vmem:[%s25 + $0x60] sm:$0xff]
    %v385 = vld [vmem:[%s25 + $0x68] sm:$0xff]
    %v386 = vld [vmem:[%s25 + $0x70] sm:$0xff]
    %v387 = vld [vmem:[%s25 + $0x78] sm:$0xff]
    %v388 = vld [vmem:[%s27] sm:$0x1]
    %v390 = vperm.slane %v388, 0
    %392 = vmatpush.msra.mxu0 %v387
    %393 = vmatpush.msra.mxu0 %v386
    %394 = vmatpush.msra.mxu0 %v385
    %395 = vmatpush.msra.mxu0 %v384
    %396 = vmatpush.msra.mxu0 %v383
    %397 = vmatpush.msra.mxu0 %v382
    %398 = vmatpush.msra.mxu0 %v381
    %399 = vmatpush.msra.mxu0 %v380
    %400 = vmatpush.msra.mxu0 %v379
    %401 = vmatpush.msra.mxu0 %v378
    %402 = vmatpush.msra.mxu0 %v377
    %403 = vmatpush.msra.mxu0 %v376
    %404 = vmatpush.msra.mxu0 %v375
    %405 = vmatpush.msra.mxu0 %v374
    %406 = vmatpush.msra.mxu0 %v373
    %407 = vmatpush.msra.mxu0 %v372
    %408 = vmatmul.f32.gmra.mxu0 %v369
    %v409 = vpop.f32.mrf.mxu0
    %v410 = vadd.f32 %v390, %v409
    %411 = vdwg.mxu0
    %v412 = vmax.f32 %v410, 0.0
    %v413 = vld [vmem:[%s29] sm:$0xff]
    %v414 = vld [vmem:[%s29 + $0x8] sm:$0xff]
    %v415 = vld [vmem:[%s29 + $0x10] sm:$0xff]
    %v416 = vld [vmem:[%s29 + $0x18] sm:$0xff]
    %v417 = vld [vmem:[%s29 + $0x20] sm:$0xff]
    %v418 = vld [vmem:[%s29 + $0x28] sm:$0xff]
    %v419 = vld [vmem:[%s29 + $0x30] sm:$0xff]
    %v420 = vld [vmem:[%s29 + $0x38] sm:$0xff]
    %v421 = vld [vmem:[#allocation2] sm:$0x1]
    %v423 = vperm.slane %v421, 0
    %v426 = vsel %vm278, %v412, 0
    %428 = vmatpush.msra.mxu0 0.0
    %429 = vmatpush.msra.mxu0 0.0
    %430 = vmatpush.msra.mxu0 0.0
    %431 = vmatpush.msra.mxu0 0.0
    %432 = vmatpush.msra.mxu0 0.0
    %433 = vmatpush.msra.mxu0 0.0
    %434 = vmatpush.msra.mxu0 0.0
    %435 = vmatpush.msra.mxu0 0.0
    %436 = vmatpush.msra.mxu0 %v420
    %437 = vmatpush.msra.mxu0 %v419
    %438 = vmatpush.msra.mxu0 %v418
    %439 = vmatpush.msra.mxu0 %v417
    %440 = vmatpush.msra.mxu0 %v416
    %441 = vmatpush.msra.mxu0 %v415
    %442 = vmatpush.msra.mxu0 %v414
    %443 = vmatpush.msra.mxu0 %v413
    %444 = vmatmul.f32.gmra.mxu0 %v426
    %v445 = vpop.f32.mrf.mxu0
    %v446 = vadd.f32 %v423, %v445
    %447 = vdwg.mxu0
    %v448 = vxor.u32 %v446, 2147483648
    %v449 = vmul.f32 %v448, 1.442695
    %v450 = vpow.pop %v449
    %v451 = vadd.f32 %v450, 1.0
    %v452 = vrcp.pop %v451
    %v453 = vmul.f32 %v451, %v452
    %v454 = vsub.f32 1.0, %v453
    %v455 = vmul.f32 %v452, %v454
    %v456 = vadd.f32 %v452, %v455
    %vm457 = vweird.f32 %v451
    %vm458 = vweird.f32 %v452
    %vm459 = vmor %vm457, %vm458
    %v460 = vsel %vm459, %v452, %v456
    %v461 = vand.u32 2147483647, %v451
    %vm462 = vcmp.eq.f32.partialorder %v461, 8.507059e+37
    %v463 = vand.u32 %v451, 2147483648
    %v464 = vor.u32 1.1754944e-38, %v463
    %v465 = vsel %vm462, %v464, %v460
    %v466 = vmul.f32 1.0, %v465
    %vm467 = vcmask 1024
    %468 = vst.msk [vmem:[%s63] sm:$0x3] %vm467, %v466
    %v469 = vld [vmem:[%s33] sm:$0xff]
    %v470 = vld [vmem:[%s33 + $0x8] sm:$0xff]
    %v471 = vld [vmem:[%s33 + $0x10] sm:$0xff]
    %v472 = vld [vmem:[%s33 + $0x18] sm:$0xff]
    %v473 = vld [vmem:[%s33 + $0x20] sm:$0xff]
    %v474 = vld [vmem:[%s33 + $0x28] sm:$0xff]
    %v475 = vld [vmem:[%s33 + $0x30] sm:$0xff]
    %v476 = vld [vmem:[%s33 + $0x38] sm:$0xff]
    %v477 = vld [vmem:[%s33 + $0x40] sm:$0xff]
    %v478 = vld [vmem:[%s33 + $0x48] sm:$0xff]
    %v479 = vld [vmem:[%s33 + $0x50] sm:$0xff]
    %v480 = vld [vmem:[%s33 + $0x58] sm:$0xff]
    %v481 = vld [vmem:[%s33 + $0x60] sm:$0xff]
    %v482 = vld [vmem:[%s33 + $0x68] sm:$0xff]
    %v483 = vld [vmem:[%s33 + $0x70] sm:$0xff]
    %v484 = vld [vmem:[%s33 + $0x78] sm:$0xff]
    %v485 = vld [vmem:[%s35] sm:$0x1]
    %v487 = vperm.slane %v485, 0
    %489 = vmatpush.msra.mxu0 %v484
    %490 = vmatpush.msra.mxu0 %v483
    %491 = vmatpush.msra.mxu0 %v482
    %492 = vmatpush.msra.mxu0 %v481
    %493 = vmatpush.msra.mxu0 %v480
    %494 = vmatpush.msra.mxu0 %v479
    %495 = vmatpush.msra.mxu0 %v478
    %496 = vmatpush.msra.mxu0 %v477
    %497 = vmatpush.msra.mxu0 %v476
    %498 = vmatpush.msra.mxu0 %v475
    %499 = vmatpush.msra.mxu0 %v474
    %500 = vmatpush.msra.mxu0 %v473
    %501 = vmatpush.msra.mxu0 %v472
    %502 = vmatpush.msra.mxu0 %v471
    %503 = vmatpush.msra.mxu0 %v470
    %504 = vmatpush.msra.mxu0 %v469
    %505 = vmatmul.f32.gmra.mxu0 %v369
    %v506 = vpop.f32.mrf.mxu0
    %v507 = vadd.f32 %v487, %v506
    %508 = vdwg.mxu0
    %v509 = vmax.f32 %v507, 0.0
    %v510 = vld [vmem:[%s37] sm:$0xff]
    %v511 = vld [vmem:[%s37 + $0x8] sm:$0xff]
    %v512 = vld [vmem:[%s37 + $0x10] sm:$0xff]
    %v513 = vld [vmem:[%s37 + $0x18] sm:$0xff]
    %v514 = vld [vmem:[%s37 + $0x20] sm:$0xff]
    %v515 = vld [vmem:[%s37 + $0x28] sm:$0xff]
    %v516 = vld [vmem:[%s37 + $0x30] sm:$0xff]
    %v517 = vld [vmem:[%s37 + $0x38] sm:$0xff]
    %v518 = vld [vmem:[%s37 + $0x40] sm:$0xff]
    %v519 = vld [vmem:[%s37 + $0x48] sm:$0xff]
    %v520 = vld [vmem:[%s37 + $0x50] sm:$0xff]
    %v521 = vld [vmem:[%s37 + $0x58] sm:$0xff]
    %v522 = vld [vmem:[%s37 + $0x60] sm:$0xff]
    %v523 = vld [vmem:[%s37 + $0x68] sm:$0xff]
    %v524 = vld [vmem:[%s37 + $0x70] sm:$0xff]
    %v525 = vld [vmem:[%s37 + $0x78] sm:$0xff]
    %v526 = vld [vmem:[%s39] sm:$0x1]
    %v528 = vperm.slane %v526, 0
    %530 = vmatpush.msra.mxu0 %v525
    %531 = vmatpush.msra.mxu0 %v524
    %532 = vmatpush.msra.mxu0 %v523
    %533 = vmatpush.msra.mxu0 %v522
    %534 = vmatpush.msra.mxu0 %v521
    %535 = vmatpush.msra.mxu0 %v520
    %536 = vmatpush.msra.mxu0 %v519
    %537 = vmatpush.msra.mxu0 %v518
    %538 = vmatpush.msra.mxu0 %v517
    %539 = vmatpush.msra.mxu0 %v516
    %540 = vmatpush.msra.mxu0 %v515
    %541 = vmatpush.msra.mxu0 %v514
    %542 = vmatpush.msra.mxu0 %v513
    %543 = vmatpush.msra.mxu0 %v512
    %544 = vmatpush.msra.mxu0 %v511
    %545 = vmatpush.msra.mxu0 %v510
    %546 = vmatmul.f32.gmra.mxu0 %v509
    %v547 = vpop.f32.mrf.mxu0
    %v548 = vadd.f32 %v528, %v547
    %549 = vdwg.mxu0
    %v550 = vmax.f32 %v548, 0.0
    %v551 = vld [vmem:[%s41] sm:$0xff]
    %v552 = vld [vmem:[%s41 + $0x8] sm:$0xff]
    %v553 = vld [vmem:[%s41 + $0x10] sm:$0xff]
    %v554 = vld [vmem:[%s41 + $0x18] sm:$0xff]
    %v555 = vld [vmem:[%s41 + $0x20] sm:$0xff]
    %v556 = vld [vmem:[%s41 + $0x28] sm:$0xff]
    %v557 = vld [vmem:[%s41 + $0x30] sm:$0xff]
    %v558 = vld [vmem:[%s41 + $0x38] sm:$0xff]
    %v559 = vld [vmem:[%s43] sm:$0x1]
    %v561 = vperm.slane %v559, 0
    %v564 = vsel %vm278, %v550, 0
    %566 = vmatpush.msra.mxu0 0.0
    %567 = vmatpush.msra.mxu0 0.0
    %568 = vmatpush.msra.mxu0 0.0
    %569 = vmatpush.msra.mxu0 0.0
    %570 = vmatpush.msra.mxu0 0.0
    %571 = vmatpush.msra.mxu0 0.0
    %572 = vmatpush.msra.mxu0 0.0
    %573 = vmatpush.msra.mxu0 0.0
    %574 = vmatpush.msra.mxu0 %v558
    %575 = vmatpush.msra.mxu0 %v557
    %576 = vmatpush.msra.mxu0 %v556
    %577 = vmatpush.msra.mxu0 %v555
    %578 = vmatpush.msra.mxu0 %v554
    %579 = vmatpush.msra.mxu0 %v553
    %580 = vmatpush.msra.mxu0 %v552
    %581 = vmatpush.msra.mxu0 %v551
    %582 = vmatmul.f32.gmra.mxu0 %v564
    %v583 = vpop.f32.mrf.mxu0
    %v584 = vadd.f32 %v561, %v583
    %585 = vdwg.mxu0
    %586 = vst [vmem:[#allocation3] sm:$0x3] %v584
    %v587 = vld [vmem:[%s45] sm:$0xff]
    %v588 = vld [vmem:[%s45 + $0x8] sm:$0xff]
    %v589 = vld [vmem:[%s45 + $0x10] sm:$0xff]
    %v590 = vld [vmem:[%s45 + $0x18] sm:$0xff]
    %v591 = vld [vmem:[%s45 + $0x20] sm:$0xff]
    %v592 = vld [vmem:[%s45 + $0x28] sm:$0xff]
    %v593 = vld [vmem:[%s45 + $0x30] sm:$0xff]
    %v594 = vld [vmem:[%s45 + $0x38] sm:$0xff]
    %v595 = vld [vmem:[%s45 + $0x40] sm:$0xff]
    %v596 = vld [vmem:[%s45 + $0x48] sm:$0xff]
    %v597 = vld [vmem:[%s45 + $0x50] sm:$0xff]
    %v598 = vld [vmem:[%s45 + $0x58] sm:$0xff]
    %v599 = vld [vmem:[%s45 + $0x60] sm:$0xff]
    %v600 = vld [vmem:[%s45 + $0x68] sm:$0xff]
    %v601 = vld [vmem:[%s45 + $0x70] sm:$0xff]
    %v602 = vld [vmem:[%s45 + $0x78] sm:$0xff]
    %v603 = vld [vmem:[%s47] sm:$0x1]
    %v605 = vperm.slane %v603, 0
    %607 = vmatpush.msra.mxu0 %v602
    %608 = vmatpush.msra.mxu0 %v601
    %609 = vmatpush.msra.mxu0 %v600
    %610 = vmatpush.msra.mxu0 %v599
    %611 = vmatpush.msra.mxu0 %v598
    %612 = vmatpush.msra.mxu0 %v597
    %613 = vmatpush.msra.mxu0 %v596
    %614 = vmatpush.msra.mxu0 %v595
    %615 = vmatpush.msra.mxu0 %v594
    %616 = vmatpush.msra.mxu0 %v593
    %617 = vmatpush.msra.mxu0 %v592
    %618 = vmatpush.msra.mxu0 %v591
    %619 = vmatpush.msra.mxu0 %v590
    %620 = vmatpush.msra.mxu0 %v589
    %621 = vmatpush.msra.mxu0 %v588
    %622 = vmatpush.msra.mxu0 %v587
    %623 = vmatmul.f32.gmra.mxu0 %v369
    %v624 = vpop.f32.mrf.mxu0
    %v625 = vadd.f32 %v605, %v624
    %626 = vdwg.mxu0
    %v627 = vmax.f32 %v625, 0.0
    %v628 = vld [vmem:[%s49] sm:$0xff]
    %v629 = vld [vmem:[%s49 + $0x8] sm:$0xff]
    %v630 = vld [vmem:[%s49 + $0x10] sm:$0xff]
    %v631 = vld [vmem:[%s49 + $0x18] sm:$0xff]
    %v632 = vld [vmem:[%s49 + $0x20] sm:$0xff]
    %v633 = vld [vmem:[%s49 + $0x28] sm:$0xff]
    %v634 = vld [vmem:[%s49 + $0x30] sm:$0xff]
    %v635 = vld [vmem:[%s49 + $0x38] sm:$0xff]
    %v636 = vld [vmem:[%s51] sm:$0x1]
    %v638 = vperm.slane %v636, 0
    %v641 = vsel %vm278, %v627, 0
    %643 = vmatpush.msra.mxu0 0.0
    %644 = vmatpush.msra.mxu0 0.0
    %645 = vmatpush.msra.mxu0 0.0
    %646 = vmatpush.msra.mxu0 0.0
    %647 = vmatpush.msra.mxu0 0.0
    %648 = vmatpush.msra.mxu0 0.0
    %649 = vmatpush.msra.mxu0 0.0
    %650 = vmatpush.msra.mxu0 0.0
    %651 = vmatpush.msra.mxu0 %v635
    %652 = vmatpush.msra.mxu0 %v634
    %653 = vmatpush.msra.mxu0 %v633
    %654 = vmatpush.msra.mxu0 %v632
    %655 = vmatpush.msra.mxu0 %v631
    %656 = vmatpush.msra.mxu0 %v630
    %657 = vmatpush.msra.mxu0 %v629
    %658 = vmatpush.msra.mxu0 %v628
    %659 = vmatmul.f32.gmra.mxu0 %v641
    %v660 = vpop.f32.mrf.mxu0
    %v661 = vadd.f32 %v638, %v660
    %662 = vdwg.mxu0
    %v663 = vxor.u32 %v661, 2147483648
    %v664 = vmul.f32 %v663, 1.442695
    %v665 = vpow.pop %v664
    %v666 = vadd.f32 %v665, 1.0
    %v667 = vrcp.pop %v666
    %v668 = vmul.f32 %v666, %v667
    %v669 = vsub.f32 1.0, %v668
    %v670 = vmul.f32 %v667, %v669
    %v671 = vadd.f32 %v667, %v670
    %vm672 = vweird.f32 %v666
    %vm673 = vweird.f32 %v667
    %vm674 = vmor %vm672, %vm673
    %v675 = vsel %vm674, %v667, %v671
    %v676 = vand.u32 2147483647, %v666
    %vm677 = vcmp.eq.f32.partialorder %v676, 8.507059e+37
    %v678 = vand.u32 %v666, 2147483648
    %v679 = vor.u32 1.1754944e-38, %v678
    %v680 = vsel %vm677, %v679, %v675
    %v681 = vmul.f32 1.0, %v680
    %vm682 = vcmask 115712
    %683 = vst.msk [vmem:[%s67] sm:$0x3] %vm682, %v681
    %v684 = vld [vmem:[%s53] sm:$0xff]
    %v685 = vld [vmem:[%s53 + $0x8] sm:$0xff]
    %v686 = vld [vmem:[%s53 + $0x10] sm:$0xff]
    %v687 = vld [vmem:[%s53 + $0x18] sm:$0xff]
    %v688 = vld [vmem:[%s53 + $0x20] sm:$0xff]
    %v689 = vld [vmem:[%s53 + $0x28] sm:$0xff]
    %v690 = vld [vmem:[%s53 + $0x30] sm:$0xff]
    %v691 = vld [vmem:[%s53 + $0x38] sm:$0xff]
    %v692 = vld [vmem:[%s53 + $0x40] sm:$0xff]
    %v693 = vld [vmem:[%s53 + $0x48] sm:$0xff]
    %v694 = vld [vmem:[%s53 + $0x50] sm:$0xff]
    %v695 = vld [vmem:[%s53 + $0x58] sm:$0xff]
    %v696 = vld [vmem:[%s53 + $0x60] sm:$0xff]
    %v697 = vld [vmem:[%s53 + $0x68] sm:$0xff]
    %v698 = vld [vmem:[%s53 + $0x70] sm:$0xff]
    %v699 = vld [vmem:[%s53 + $0x78] sm:$0xff]
    %v700 = vld [vmem:[%s55] sm:$0x1]
    %v702 = vperm.slane %v700, 0
    %704 = vmatpush.msra.mxu0 %v699
    %705 = vmatpush.msra.mxu0 %v698
    %706 = vmatpush.msra.mxu0 %v697
    %707 = vmatpush.msra.mxu0 %v696
    %708 = vmatpush.msra.mxu0 %v695
    %709 = vmatpush.msra.mxu0 %v694
    %710 = vmatpush.msra.mxu0 %v693
    %711 = vmatpush.msra.mxu0 %v692
    %712 = vmatpush.msra.mxu0 %v691
    %713 = vmatpush.msra.mxu0 %v690
    %714 = vmatpush.msra.mxu0 %v689
    %715 = vmatpush.msra.mxu0 %v688
    %716 = vmatpush.msra.mxu0 %v687
    %717 = vmatpush.msra.mxu0 %v686
    %718 = vmatpush.msra.mxu0 %v685
    %719 = vmatpush.msra.mxu0 %v684
    %720 = vmatmul.f32.gmra.mxu0 %v369
    %v721 = vpop.f32.mrf.mxu0
    %v722 = vadd.f32 %v702, %v721
    %723 = vdwg.mxu0
    %v724 = vmax.f32 %v722, 0.0
    %v725 = vld [vmem:[%s57] sm:$0xff]
    %v726 = vld [vmem:[%s57 + $0x8] sm:$0xff]
    %v727 = vld [vmem:[%s57 + $0x10] sm:$0xff]
    %v728 = vld [vmem:[%s57 + $0x18] sm:$0xff]
    %v729 = vld [vmem:[%s57 + $0x20] sm:$0xff]
    %v730 = vld [vmem:[%s57 + $0x28] sm:$0xff]
    %v731 = vld [vmem:[%s57 + $0x30] sm:$0xff]
    %v732 = vld [vmem:[%s57 + $0x38] sm:$0xff]
    %v733 = vld [vmem:[%s59] sm:$0x1]
    %v735 = vperm.slane %v733, 0
    %v738 = vsel %vm278, %v724, 0
    %740 = vmatpush.msra.mxu0 0.0
    %741 = vmatpush.msra.mxu0 0.0
    %742 = vmatpush.msra.mxu0 0.0
    %743 = vmatpush.msra.mxu0 0.0
    %744 = vmatpush.msra.mxu0 0.0
    %745 = vmatpush.msra.mxu0 0.0
    %746 = vmatpush.msra.mxu0 0.0
    %747 = vmatpush.msra.mxu0 0.0
    %748 = vmatpush.msra.mxu0 %v732
    %749 = vmatpush.msra.mxu0 %v731
    %750 = vmatpush.msra.mxu0 %v730
    %751 = vmatpush.msra.mxu0 %v729
    %752 = vmatpush.msra.mxu0 %v728
    %753 = vmatpush.msra.mxu0 %v727
    %754 = vmatpush.msra.mxu0 %v726
    %755 = vmatpush.msra.mxu0 %v725
    %756 = vmatmul.f32.gmra.mxu0 %v738
    %v757 = vpop.f32.mrf.mxu0
    %v758 = vadd.f32 %v735, %v757
    %759 = vdwg.mxu0
    %760 = vst.msk [vmem:[#allocation5] sm:$0x3] %vm224, %v758
    // Predicated region
    $region122: #{content_generator_forward.8} parent=1 // pred_check
      _
    $region123: #{content_generator_forward.8} parent=1 // pred_check_branch
      %762 = sbr.rel (0) target = $region125
    $region124: #{content_generator_forward.8} parent=1 // pred_region
      _
    $region125: #{content_generator_forward.8} parent=1 // pred_fallthru
      _
    // Predicated region
    $region126: #{content_generator_forward.8} parent=1 // pred_check
      _
    $region127: #{content_generator_forward.8} parent=1 // pred_check_branch
      %764 = sbr.rel (0) target = $region129
    $region128: #{content_generator_forward.8} parent=1 // pred_region
      _
    $region129: #{content_generator_forward.8} parent=1 // pred_fallthru
      _
    // Predicated region
    $region130: #{content_generator_forward.8} parent=1 // pred_check
      _
    $region131: #{content_generator_forward.8} parent=1 // pred_check_branch
      %766 = sbr.rel (0) target = $region133
    $region132: #{content_generator_forward.8} parent=1 // pred_region
      %768 = vsyncadd [#allocation4], 0
      %s770 = sshll.u32 [#allocation3], 4
      %s771 = int_to_ptr.vmem [resolvable:$true] %s770
      %s772 = sshll.u32 %s65, 4
      %s773 = int_to_ptr.hbm [resolvable:$true] %s772
      %775 = dma.vmem_to_hbm [thread:$0]  %s771, 32, %s773, [#allocation4]
    $region133: #{content_generator_forward.8} parent=1 // pred_fallthru
      _
    // Predicated region
    $region134: #{content_generator_forward.8} parent=1 // pred_check
      _
    $region135: #{content_generator_forward.8} parent=1 // pred_check_branch
      %777 = sbr.rel (0) target = $region137
    $region136: #{content_generator_forward.8} parent=1 // pred_region
      _
    $region137: #{content_generator_forward.8} parent=1 // pred_fallthru
      _
    // Predicated region
    $region138: #{content_generator_forward.8} parent=1 // pred_check
      _
    $region139: #{content_generator_forward.8} parent=1 // pred_check_branch
      %779 = sbr.rel (0) target = $region141
    $region140: #{content_generator_forward.8} parent=1 // pred_region
      %781 = vsyncadd [#allocation6], 0
      %s783 = sshll.u32 [#allocation5], 4
      %s784 = int_to_ptr.vmem [resolvable:$true] %s783
      %s785 = sshll.u32 %s69, 4
      %s786 = int_to_ptr.hbm [resolvable:$true] %s785
      %788 = dma.vmem_to_hbm [thread:$0]  %s784, 32, %s786, [#allocation6]
    $region141: #{content_generator_forward.8} parent=1 // pred_fallthru
      _
    // Predicated region
    $region142: #{content_generator_forward.8} parent=1 // pred_check
      _
    $region143: #{content_generator_forward.8} parent=1 // pred_check_branch
      %790 = sbr.rel (0) target = $region145
    $region144: #{content_generator_forward.8} parent=1 // pred_region
      _
    $region145: #{content_generator_forward.8} parent=1 // pred_fallthru
      _
    // Predicated region
    $region146: #{content_generator_forward.8} parent=1 // pred_check
      _
    $region147: #{content_generator_forward.8} parent=1 // pred_check_branch
      %792 = sbr.rel (0) target = $region149
    $region148: #{content_generator_forward.8} parent=1 // pred_region
      _
    $region149: #{content_generator_forward.8} parent=1 // pred_fallthru
      _
    // Predicated region
    $region150: #{content_generator_forward.8} parent=1 // pred_check
      _
    $region151: #{content_generator_forward.8} parent=1 // pred_check_branch
      %794 = sbr.rel (0) target = $region153
    $region152: #{content_generator_forward.8} parent=1 // pred_region
      %796 = dma.done [#allocation4], 32
    $region153: #{content_generator_forward.8} parent=1 // pred_fallthru
      _
    // Predicated region
    $region154: #{content_generator_forward.8} parent=1 // pred_check
      _
    $region155: #{content_generator_forward.8} parent=1 // pred_check_branch
      %798 = sbr.rel (0) target = $region157
    $region156: #{content_generator_forward.8} parent=1 // pred_region
      _
    $region157: #{content_generator_forward.8} parent=1 // pred_fallthru
      _
    // Predicated region
    $region158: #{content_generator_forward.8} parent=1 // pred_check
      _
    $region159: #{content_generator_forward.8} parent=1 // pred_check_branch
      %800 = sbr.rel (0) target = $region161
    $region160: #{content_generator_forward.8} parent=1 // pred_region
      %802 = dma.done [#allocation6], 32
    $region161: #{content_generator_forward.8} parent=1 // pred_fallthru
      _
    %803 = vsyncpa [#allocation4], 1
    %804 = vsyncpa [#allocation6], 1

// kernel: content_generator_forward.9
$region0: #{content_generator_forward.9}
  #allocation0 [shape = 'u32[]', space=smem, size = 0x4, offset = 0x4, fixed_abs, tag = 'smem constant byte address 0x4 - core index']
  #allocation1 [shape = 'u32[72,128]{1,0:T(1,128)}', space=vmem, size = 0x9000, scoped, tag = 'internal scratch']
  %s0 = inlined_call_operand.vmem [shape: f32[2,8,128], index: 0, kind: input, shape index: {}]
  %s1 = inlined_call_operand.vmem [shape: f32[4,128,32], index: 1, kind: input, shape index: {}]
  %s2 = inlined_call_operand.vmem [shape: f32[4,1,32], index: 2, kind: input, shape index: {}]
  %s3 = inlined_call_operand.vmem [shape: f32[4,128,32], index: 3, kind: input, shape index: {}]
  %s4 = inlined_call_operand.vmem [shape: f32[4,1,32], index: 4, kind: input, shape index: {}]
  %s5 = inlined_call_operand.vmem [shape: f32[4,128,32], index: 5, kind: input, shape index: {}]
  %s6 = inlined_call_operand.vmem [shape: f32[4,1,32], index: 6, kind: input, shape index: {}]
  %s7 = inlined_call_operand.vmem [shape: f32[128,128], index: 7, kind: input, shape index: {}]
  %s8 = inlined_call_operand.vmem [shape: f32[1,128], index: 8, kind: input, shape index: {}]
  %s9 = inlined_call_operand.vmem [shape: f32[1,128], index: 9, kind: input, shape index: {}]
  %s10 = inlined_call_operand.vmem [shape: f32[1,128], index: 10, kind: input, shape index: {}]
  %s11 = inlined_call_operand.vmem [shape: f32[2,8,128], index: 11, kind: output, shape index: {}]
  %s12 = sld [smem:[#allocation0]]
  $region77: #{content_generator_forward.9} parent=0
    _
  %s14 = ssub.s32 1, %s12
  %s15 = scalar_select 0, %s14, %s12
  loop: start=0, step=1, limit=4
  $region2: #{content_generator_forward.9} parent=0 // loop_pre_header
    _
  $region3: #{content_generator_forward.9} parent=0 // loop_header
    %s17 = sphi 0, %s21
    %p18 = scmp.ge.s32.totalorder %s17, 4
    %s27 = sphi 0, %s29
    %s30 = sphi 0, %s27
    %s31 = sphi 0, %s30
    %s47 = sphi 0, %s31
    %s51 = sphi 0, %s51
    %s53 = sphi 0, %s51
    %s54 = sphi 0, %s53
    %s68 = sphi 0, %s54
    %s72 = sphi 0, %s72
    %s74 = sphi 0, %s72
    %s75 = sphi 0, %s74
    %s89 = sphi 0, %s75
    %s93 = sphi 0, %s93
    %s95 = sphi 0, %s93
    %s96 = sphi 0, %s95
    %s110 = sphi 0, %s96
    %s114 = sphi 0, %s114
    %s116 = sphi 0, %s114
    %s117 = sphi 0, %s116
    %s131 = sphi 0, %s117
    %s135 = sphi 0, %s135
    %s137 = sphi 0, %s135
    %s138 = sphi 0, %s137
    %s152 = sphi 0, %s138
    %s156 = sphi 0, %s156
    %s158 = sphi 0, %s156
    %s159 = sphi 0, %s158
    %s173 = sphi 0, %s159
    %s177 = sphi 0, %s177
    %s179 = sphi 0, %s177
    %s180 = sphi 0, %s179
    %s194 = sphi 0, %s180
    %s198 = sphi 0, %s198
    %s200 = sphi 0, %s198
    %s201 = sphi 0, %s200
    %s215 = sphi 0, %s201
    %s219 = sphi 0, %s219
    %s221 = sphi 0, %s219
    %s222 = sphi 0, %s221
    %s236 = sphi 0, %s222
    %s240 = sphi 0, %s240
    %s242 = sphi 0, %s240
    %s243 = sphi 0, %s242
    %s257 = sphi 0, %s243
    %s263 = sphi 0, %s265
    %s266 = sphi 0, %s263
    %s267 = sphi 0, %s266
    %s283 = sphi 0, %s267
  $region4: #{content_generator_forward.9} parent=0 // loop_header_branch
    %20 = sbr.rel (%p18) target = $region8
  $region5: #{content_generator_forward.9} parent=0 // loop_body
    %s22 = ssub.s32 %s17, 1
    %s23 = ssub.s32 %s17, 2
    %s24 = sadd.s32 %s17, 1
    %s25 = ssub.s32 %s17, %s24
    %p26 = scmp.eq.s32.totalorder %s25, 0
    %s28 = sadd.s32 %s27, 1
    %s29 = scalar_select %p26, %s27, %s28
    %p32 = pneg %p26
    %p33 = scmp.eq.s32.totalorder %s17, 1
    %p34 = por %p32, %p33
    %p35 = scmp.ne.s32.totalorder %s27, %s30
    %p36 = scmp.eq.s32.totalorder %s17, 0
    %p37 = por %p35, %p36
    %p38 = scmp.ne.s32.totalorder %s27, %s30
    %p39 = scmp.eq.s32.totalorder %s22, 1
    %p40 = por %p38, %p39
    %p41 = scmp.ne.s32.totalorder %s30, %s31
    %p42 = scmp.eq.s32.totalorder %s22, 0
    %p43 = por %p41, %p42
    %p44 = scmp.ne.s32.totalorder %s30, %s31
    %p45 = scmp.eq.s32.totalorder %s23, 1
    %p46 = por %p44, %p45
    %p48 = scmp.ne.s32.totalorder %s31, %s47
    %p49 = scmp.eq.s32.totalorder %s23, 0
    %p50 = por %p48, %p49
    %s52 = sadd.s32 %s51, 1
    %p55 = scmp.eq.s32.totalorder %s17, 1
    %p56 = scmp.ne.s32.totalorder %s51, %s53
    %p57 = scmp.eq.s32.totalorder %s17, 0
    %p58 = por %p56, %p57
    %p59 = scmp.ne.s32.totalorder %s51, %s53
    %p60 = scmp.eq.s32.totalorder %s22, 1
    %p61 = por %p59, %p60
    %p62 = scmp.ne.s32.totalorder %s53, %s54
    %p63 = scmp.eq.s32.totalorder %s22, 0
    %p64 = por %p62, %p63
    %p65 = scmp.ne.s32.totalorder %s53, %s54
    %p66 = scmp.eq.s32.totalorder %s23, 1
    %p67 = por %p65, %p66
    %p69 = scmp.ne.s32.totalorder %s54, %s68
    %p70 = scmp.eq.s32.totalorder %s23, 0
    %p71 = por %p69, %p70
    %s73 = sadd.s32 %s72, 1
    %p76 = scmp.eq.s32.totalorder %s17, 1
    %p77 = scmp.ne.s32.totalorder %s72, %s74
    %p78 = scmp.eq.s32.totalorder %s17, 0
    %p79 = por %p77, %p78
    %p80 = scmp.ne.s32.totalorder %s72, %s74
    %p81 = scmp.eq.s32.totalorder %s22, 1
    %p82 = por %p80, %p81
    %p83 = scmp.ne.s32.totalorder %s74, %s75
    %p84 = scmp.eq.s32.totalorder %s22, 0
    %p85 = por %p83, %p84
    %p86 = scmp.ne.s32.totalorder %s74, %s75
    %p87 = scmp.eq.s32.totalorder %s23, 1
    %p88 = por %p86, %p87
    %p90 = scmp.ne.s32.totalorder %s75, %s89
    %p91 = scmp.eq.s32.totalorder %s23, 0
    %p92 = por %p90, %p91
    %s94 = sadd.s32 %s93, 1
    %p97 = scmp.eq.s32.totalorder %s17, 1
    %p98 = scmp.ne.s32.totalorder %s93, %s95
    %p99 = scmp.eq.s32.totalorder %s17, 0
    %p100 = por %p98, %p99
    %p101 = scmp.ne.s32.totalorder %s93, %s95
    %p102 = scmp.eq.s32.totalorder %s22, 1
    %p103 = por %p101, %p102
    %p104 = scmp.ne.s32.totalorder %s95, %s96
    %p105 = scmp.eq.s32.totalorder %s22, 0
    %p106 = por %p104, %p105
    %p107 = scmp.ne.s32.totalorder %s95, %s96
    %p108 = scmp.eq.s32.totalorder %s23, 1
    %p109 = por %p107, %p108
    %p111 = scmp.ne.s32.totalorder %s96, %s110
    %p112 = scmp.eq.s32.totalorder %s23, 0
    %p113 = por %p111, %p112
    %s115 = sadd.s32 %s114, 1
    %p118 = scmp.eq.s32.totalorder %s17, 1
    %p119 = scmp.ne.s32.totalorder %s114, %s116
    %p120 = scmp.eq.s32.totalorder %s17, 0
    %p121 = por %p119, %p120
    %p122 = scmp.ne.s32.totalorder %s114, %s116
    %p123 = scmp.eq.s32.totalorder %s22, 1
    %p124 = por %p122, %p123
    %p125 = scmp.ne.s32.totalorder %s116, %s117
    %p126 = scmp.eq.s32.totalorder %s22, 0
    %p127 = por %p125, %p126
    %p128 = scmp.ne.s32.totalorder %s116, %s117
    %p129 = scmp.eq.s32.totalorder %s23, 1
    %p130 = por %p128, %p129
    %p132 = scmp.ne.s32.totalorder %s117, %s131
    %p133 = scmp.eq.s32.totalorder %s23, 0
    %p134 = por %p132, %p133
    %s136 = sadd.s32 %s135, 1
    %p139 = scmp.eq.s32.totalorder %s17, 1
    %p140 = scmp.ne.s32.totalorder %s135, %s137
    %p141 = scmp.eq.s32.totalorder %s17, 0
    %p142 = por %p140, %p141
    %p143 = scmp.ne.s32.totalorder %s135, %s137
    %p144 = scmp.eq.s32.totalorder %s22, 1
    %p145 = por %p143, %p144
    %p146 = scmp.ne.s32.totalorder %s137, %s138
    %p147 = scmp.eq.s32.totalorder %s22, 0
    %p148 = por %p146, %p147
    %p149 = scmp.ne.s32.totalorder %s137, %s138
    %p150 = scmp.eq.s32.totalorder %s23, 1
    %p151 = por %p149, %p150
    %p153 = scmp.ne.s32.totalorder %s138, %s152
    %p154 = scmp.eq.s32.totalorder %s23, 0
    %p155 = por %p153, %p154
    %s157 = sadd.s32 %s156, 1
    %p160 = scmp.eq.s32.totalorder %s17, 1
    %p161 = scmp.ne.s32.totalorder %s156, %s158
    %p162 = scmp.eq.s32.totalorder %s17, 0
    %p163 = por %p161, %p162
    %p164 = scmp.ne.s32.totalorder %s156, %s158
    %p165 = scmp.eq.s32.totalorder %s22, 1
    %p166 = por %p164, %p165
    %p167 = scmp.ne.s32.totalorder %s158, %s159
    %p168 = scmp.eq.s32.totalorder %s22, 0
    %p169 = por %p167, %p168
    %p170 = scmp.ne.s32.totalorder %s158, %s159
    %p171 = scmp.eq.s32.totalorder %s23, 1
    %p172 = por %p170, %p171
    %p174 = scmp.ne.s32.totalorder %s159, %s173
    %p175 = scmp.eq.s32.totalorder %s23, 0
    %p176 = por %p174, %p175
    %s178 = sadd.s32 %s177, 1
    %p181 = scmp.eq.s32.totalorder %s17, 1
    %p182 = scmp.ne.s32.totalorder %s177, %s179
    %p183 = scmp.eq.s32.totalorder %s17, 0
    %p184 = por %p182, %p183
    %p185 = scmp.ne.s32.totalorder %s177, %s179
    %p186 = scmp.eq.s32.totalorder %s22, 1
    %p187 = por %p185, %p186
    %p188 = scmp.ne.s32.totalorder %s179, %s180
    %p189 = scmp.eq.s32.totalorder %s22, 0
    %p190 = por %p188, %p189
    %p191 = scmp.ne.s32.totalorder %s179, %s180
    %p192 = scmp.eq.s32.totalorder %s23, 1
    %p193 = por %p191, %p192
    %p195 = scmp.ne.s32.totalorder %s180, %s194
    %p196 = scmp.eq.s32.totalorder %s23, 0
    %p197 = por %p195, %p196
    %s199 = sadd.s32 %s198, 1
    %p202 = scmp.eq.s32.totalorder %s17, 1
    %p203 = scmp.ne.s32.totalorder %s198, %s200
    %p204 = scmp.eq.s32.totalorder %s17, 0
    %p205 = por %p203, %p204
    %p206 = scmp.ne.s32.totalorder %s198, %s200
    %p207 = scmp.eq.s32.totalorder %s22, 1
    %p208 = por %p206, %p207
    %p209 = scmp.ne.s32.totalorder %s200, %s201
    %p210 = scmp.eq.s32.totalorder %s22, 0
    %p211 = por %p209, %p210
    %p212 = scmp.ne.s32.totalorder %s200, %s201
    %p213 = scmp.eq.s32.totalorder %s23, 1
    %p214 = por %p212, %p213
    %p216 = scmp.ne.s32.totalorder %s201, %s215
    %p217 = scmp.eq.s32.totalorder %s23, 0
    %p218 = por %p216, %p217
    %s220 = sadd.s32 %s219, 1
    %p223 = scmp.eq.s32.totalorder %s17, 1
    %p224 = scmp.ne.s32.totalorder %s219, %s221
    %p225 = scmp.eq.s32.totalorder %s17, 0
    %p226 = por %p224, %p225
    %p227 = scmp.ne.s32.totalorder %s219, %s221
    %p228 = scmp.eq.s32.totalorder %s22, 1
    %p229 = por %p227, %p228
    %p230 = scmp.ne.s32.totalorder %s221, %s222
    %p231 = scmp.eq.s32.totalorder %s22, 0
    %p232 = por %p230, %p231
    %p233 = scmp.ne.s32.totalorder %s221, %s222
    %p234 = scmp.eq.s32.totalorder %s23, 1
    %p235 = por %p233, %p234
    %p237 = scmp.ne.s32.totalorder %s222, %s236
    %p238 = scmp.eq.s32.totalorder %s23, 0
    %p239 = por %p237, %p238
    %s241 = sadd.s32 %s240, 1
    %p244 = scmp.eq.s32.totalorder %s17, 1
    %p245 = scmp.ne.s32.totalorder %s240, %s242
    %p246 = scmp.eq.s32.totalorder %s17, 0
    %p247 = por %p245, %p246
    %p248 = scmp.ne.s32.totalorder %s240, %s242
    %p249 = scmp.eq.s32.totalorder %s22, 1
    %p250 = por %p248, %p249
    %p251 = scmp.ne.s32.totalorder %s242, %s243
    %p252 = scmp.eq.s32.totalorder %s22, 0
    %p253 = por %p251, %p252
    %p254 = scmp.ne.s32.totalorder %s242, %s243
    %p255 = scmp.eq.s32.totalorder %s23, 1
    %p256 = por %p254, %p255
    %p258 = scmp.ne.s32.totalorder %s243, %s257
    %p259 = scmp.eq.s32.totalorder %s23, 0
    %p260 = por %p258, %p259
    %s261 = ssub.s32 %s17, %s24
    %p262 = scmp.eq.s32.totalorder %s261, 0
    %s264 = sadd.s32 %s263, 1
    %s265 = scalar_select %p262, %s263, %s264
    %p268 = pneg %p262
    %p269 = scmp.eq.s32.totalorder %s17, 1
    %p270 = por %p268, %p269
    %p271 = scmp.ne.s32.totalorder %s263, %s266
    %p272 = scmp.eq.s32.totalorder %s17, 0
    %p273 = por %p271, %p272
    %p274 = scmp.ne.s32.totalorder %s263, %s266
    %p275 = scmp.eq.s32.totalorder %s22, 1
    %p276 = por %p274, %p275
    %p277 = scmp.ne.s32.totalorder %s266, %s267
    %p278 = scmp.eq.s32.totalorder %s22, 0
    %p279 = por %p277, %p278
    %p280 = scmp.ne.s32.totalorder %s266, %s267
    %p281 = scmp.eq.s32.totalorder %s23, 1
    %p282 = por %p280, %p281
    %p284 = scmp.ne.s32.totalorder %s267, %s283
    %p285 = scmp.eq.s32.totalorder %s23, 0
    %p286 = por %p284, %p285
    %p287 = scmp.le.s32.totalorder 1, %s17
    %p288 = scmp.lt.s32.totalorder %s17, 3
    %p289 = pnand %p287, %p288
    %p290 = pneg %p289
    // Predicated region
    $region9: #{content_generator_forward.9} parent=5 // pred_check
      _
    $region10: #{content_generator_forward.9} parent=5 // pred_check_branch
      %292 = sbr.rel (%p289) target = $region12
    $region11: #{content_generator_forward.9} parent=5 // pred_region
      %s293 = ssub.s32 %s17, 1
      // Predicated region
      $region13: #{content_generator_forward.9} parent=11 // pred_check
        %p294 = pneg %p64
      $region14: #{content_generator_forward.9} parent=11 // pred_check_branch
        %296 = sbr.rel (%p294) target = $region16
      $region15: #{content_generator_forward.9} parent=11 // pred_region
        _
      $region16: #{content_generator_forward.9} parent=11 // pred_fallthru
        _
      // Predicated region
      $region17: #{content_generator_forward.9} parent=11 // pred_check
        %p297 = pneg %p85
      $region18: #{content_generator_forward.9} parent=11 // pred_check_branch
        %299 = sbr.rel (%p297) target = $region20
      $region19: #{content_generator_forward.9} parent=11 // pred_region
        _
      $region20: #{content_generator_forward.9} parent=11 // pred_fallthru
        _
      // Predicated region
      $region21: #{content_generator_forward.9} parent=11 // pred_check
        %p300 = pneg %p106
      $region22: #{content_generator_forward.9} parent=11 // pred_check_branch
        %302 = sbr.rel (%p300) target = $region24
      $region23: #{content_generator_forward.9} parent=11 // pred_region
        _
      $region24: #{content_generator_forward.9} parent=11 // pred_fallthru
        _
      // Predicated region
      $region25: #{content_generator_forward.9} parent=11 // pred_check
        %p303 = pneg %p127
      $region26: #{content_generator_forward.9} parent=11 // pred_check_branch
        %305 = sbr.rel (%p303) target = $region28
      $region27: #{content_generator_forward.9} parent=11 // pred_region
        _
      $region28: #{content_generator_forward.9} parent=11 // pred_fallthru
        _
      // Predicated region
      $region29: #{content_generator_forward.9} parent=11 // pred_check
        %p306 = pneg %p148
      $region30: #{content_generator_forward.9} parent=11 // pred_check_branch
        %308 = sbr.rel (%p306) target = $region32
      $region31: #{content_generator_forward.9} parent=11 // pred_region
        _
      $region32: #{content_generator_forward.9} parent=11 // pred_fallthru
        _
      // Predicated region
      $region33: #{content_generator_forward.9} parent=11 // pred_check
        %p309 = pneg %p169
      $region34: #{content_generator_forward.9} parent=11 // pred_check_branch
        %311 = sbr.rel (%p309) target = $region36
      $region35: #{content_generator_forward.9} parent=11 // pred_region
        _
      $region36: #{content_generator_forward.9} parent=11 // pred_fallthru
        _
      // Predicated region
      $region37: #{content_generator_forward.9} parent=11 // pred_check
        %p312 = pneg %p190
      $region38: #{content_generator_forward.9} parent=11 // pred_check_branch
        %314 = sbr.rel (%p312) target = $region40
      $region39: #{content_generator_forward.9} parent=11 // pred_region
        _
      $region40: #{content_generator_forward.9} parent=11 // pred_fallthru
        _
      // Predicated region
      $region41: #{content_generator_forward.9} parent=11 // pred_check
        %p315 = pneg %p211
      $region42: #{content_generator_forward.9} parent=11 // pred_check_branch
        %317 = sbr.rel (%p315) target = $region44
      $region43: #{content_generator_forward.9} parent=11 // pred_region
        _
      $region44: #{content_generator_forward.9} parent=11 // pred_fallthru
        _
      // Predicated region
      $region45: #{content_generator_forward.9} parent=11 // pred_check
        %p318 = pneg %p232
      $region46: #{content_generator_forward.9} parent=11 // pred_check_branch
        %320 = sbr.rel (%p318) target = $region48
      $region47: #{content_generator_forward.9} parent=11 // pred_region
        _
      $region48: #{content_generator_forward.9} parent=11 // pred_fallthru
        _
      // Predicated region
      $region49: #{content_generator_forward.9} parent=11 // pred_check
        %p321 = pneg %p253
      $region50: #{content_generator_forward.9} parent=11 // pred_check_branch
        %323 = sbr.rel (%p321) target = $region52
      $region51: #{content_generator_forward.9} parent=11 // pred_region
        _
      $region52: #{content_generator_forward.9} parent=11 // pred_fallthru
        _
    $region12: #{content_generator_forward.9} parent=5 // pred_fallthru
      _
    %p324 = scmp.lt.s32.totalorder %s17, 2
    // Predicated region
    $region53: #{content_generator_forward.9} parent=5 // pred_check
      %p325 = pneg %p324
    $region54: #{content_generator_forward.9} parent=5 // pred_check_branch
      %327 = sbr.rel (%p325) target = $region56
    $region55: #{content_generator_forward.9} parent=5 // pred_region
      // Predicated region
      $region57: #{content_generator_forward.9} parent=55 // pred_check
        %p328 = pneg %p37
      $region58: #{content_generator_forward.9} parent=55 // pred_check_branch
        %330 = sbr.rel (%p328) target = $region60
      $region59: #{content_generator_forward.9} parent=55 // pred_region
        %p331 = scmp.lt.s32.totalorder %s17, 1
        %s332 = scalar_select %p331, %s17, 1
        %s333 = smul.addr %s332, 8
        %s334 = scalar_lea.vmem %s0, %s333
      $region60: #{content_generator_forward.9} parent=55 // pred_fallthru
        _
    $region56: #{content_generator_forward.9} parent=5 // pred_fallthru
      _
    %p335 = scmp.le.s32.totalorder 1, %s17
    %p336 = scmp.lt.s32.totalorder %s17, 3
    %p337 = pnand %p335, %p336
    %p338 = pneg %p337
    // Predicated region
    $region61: #{content_generator_forward.9} parent=5 // pred_check
      _
    $region62: #{content_generator_forward.9} parent=5 // pred_check_branch
      %340 = sbr.rel (%p337) target = $region64
    $region63: #{content_generator_forward.9} parent=5 // pred_region
      %s341 = ssub.s32 %s17, 1
      %p342 = scmp.lt.s32.totalorder %s22, 1
      %s343 = scalar_select %p342, %s22, 1
      %s344 = smul.addr %s343, 8
      %s345 = scalar_lea.vmem %s0, %s344
      %p346 = pneg %p43
      %p347 = pneg %p40
      %p348 = pneg %p64
      %p349 = pneg %p61
      %p350 = pneg %p85
      %p351 = pneg %p82
      %p352 = pneg %p106
      %p353 = pneg %p103
      %p354 = pneg %p127
      %p355 = pneg %p124
      %p356 = pneg %p148
      %p357 = pneg %p145
      %p358 = pneg %p169
      %p359 = pneg %p166
      %p360 = pneg %p190
      %p361 = pneg %p187
      %p362 = pneg %p211
      %p363 = pneg %p208
      %p364 = pneg %p232
      %p365 = pneg %p229
      %p366 = pneg %p253
      %p367 = pneg %p250
      %p368 = pneg %p279
      %p369 = pneg %p276
      %p370 = scmp.lt.s32.totalorder %s22, 1
      %s371 = scalar_select %p370, %s22, 1
      %s372 = smul.addr %s371, 8
      %s373 = scalar_lea.vmem %s11, %s372
      %p374 = scmp.lt.s32.totalorder %s22, 1
      %s375 = scalar_select %p374, %s22, 1
      %s376 = smul.addr %s375, 8
      %s377 = scalar_lea.vmem %s0, %s376
      %p378 = scmp.lt.s32.totalorder %s22, 1
      %s379 = scalar_select %p378, %s22, 1
      %s380 = smul.addr %s379, 8
      %s381 = scalar_lea.vmem %s11, %s380
      %v382 = vld [vmem:[%s377] sm:$0xff]
      %v383 = vld [vmem:[%s1] sm:$0xff]
      %v384 = vld [vmem:[%s1 + $0x8] sm:$0xff]
      %v385 = vld [vmem:[%s1 + $0x10] sm:$0xff]
      %v386 = vld [vmem:[%s1 + $0x18] sm:$0xff]
      %v387 = vld [vmem:[%s1 + $0x20] sm:$0xff]
      %v388 = vld [vmem:[%s1 + $0x28] sm:$0xff]
      %v389 = vld [vmem:[%s1 + $0x30] sm:$0xff]
      %v390 = vld [vmem:[%s1 + $0x38] sm:$0xff]
      %v391 = vld [vmem:[%s1 + $0x40] sm:$0xff]
      %v392 = vld [vmem:[%s1 + $0x48] sm:$0xff]
      %v393 = vld [vmem:[%s1 + $0x50] sm:$0xff]
      %v394 = vld [vmem:[%s1 + $0x58] sm:$0xff]
      %v395 = vld [vmem:[%s1 + $0x60] sm:$0xff]
      %v396 = vld [vmem:[%s1 + $0x68] sm:$0xff]
      %v397 = vld [vmem:[%s1 + $0x70] sm:$0xff]
      %v398 = vld [vmem:[%s1 + $0x78] sm:$0xff]
      %v399 = vld [vmem:[%s2] sm:$0x1]
      %v401 = vperm.slane %v399, 0
      %403 = vmatpush.msra.mxu0 %v398
      %404 = vmatpush.msra.mxu0 %v397
      %405 = vmatpush.msra.mxu0 %v396
      %406 = vmatpush.msra.mxu0 %v395
      %407 = vmatpush.msra.mxu0 %v394
      %408 = vmatpush.msra.mxu0 %v393
      %409 = vmatpush.msra.mxu0 %v392
      %410 = vmatpush.msra.mxu0 %v391
      %411 = vmatpush.msra.mxu0 %v390
      %412 = vmatpush.msra.mxu0 %v389
      %413 = vmatpush.msra.mxu0 %v388
      %414 = vmatpush.msra.mxu0 %v387
      %415 = vmatpush.msra.mxu0 %v386
      %416 = vmatpush.msra.mxu0 %v385
      %417 = vmatpush.msra.mxu0 %v384
      %418 = vmatpush.msra.mxu0 %v383
      %419 = vmatmul.f32.gmra.mxu0 %v382
      %v420 = vpop.f32.mrf.mxu0
      %v421 = vadd.f32 %v401, %v420
      %422 = vdwg.mxu0
      %v423 = vld [vmem:[%s3] sm:$0xff]
      %v424 = vld [vmem:[%s3 + $0x8] sm:$0xff]
      %v425 = vld [vmem:[%s3 + $0x10] sm:$0xff]
      %v426 = vld [vmem:[%s3 + $0x18] sm:$0xff]
      %v427 = vld [vmem:[%s3 + $0x20] sm:$0xff]
      %v428 = vld [vmem:[%s3 + $0x28] sm:$0xff]
      %v429 = vld [vmem:[%s3 + $0x30] sm:$0xff]
      %v430 = vld [vmem:[%s3 + $0x38] sm:$0xff]
      %v431 = vld [vmem:[%s3 + $0x40] sm:$0xff]
      %v432 = vld [vmem:[%s3 + $0x48] sm:$0xff]
      %v433 = vld [vmem:[%s3 + $0x50] sm:$0xff]
      %v434 = vld [vmem:[%s3 + $0x58] sm:$0xff]
      %v435 = vld [vmem:[%s3 + $0x60] sm:$0xff]
      %v436 = vld [vmem:[%s3 + $0x68] sm:$0xff]
      %v437 = vld [vmem:[%s3 + $0x70] sm:$0xff]
      %v438 = vld [vmem:[%s3 + $0x78] sm:$0xff]
      %v439 = vld [vmem:[%s4] sm:$0x1]
      %v441 = vperm.slane %v439, 0
      %443 = vmatpush.msra.mxu0 %v438
      %444 = vmatpush.msra.mxu0 %v437
      %445 = vmatpush.msra.mxu0 %v436
      %446 = vmatpush.msra.mxu0 %v435
      %447 = vmatpush.msra.mxu0 %v434
      %448 = vmatpush.msra.mxu0 %v433
      %449 = vmatpush.msra.mxu0 %v432
      %450 = vmatpush.msra.mxu0 %v431
      %451 = vmatpush.msra.mxu0 %v430
      %452 = vmatpush.msra.mxu0 %v429
      %453 = vmatpush.msra.mxu0 %v428
      %454 = vmatpush.msra.mxu0 %v427
      %455 = vmatpush.msra.mxu0 %v426
      %456 = vmatpush.msra.mxu0 %v425
      %457 = vmatpush.msra.mxu0 %v424
      %458 = vmatpush.msra.mxu0 %v423
      %459 = vmatmul.f32.gmra.mxu0 %v382
      %v460 = vpop.f32.mrf.mxu0
      %v461 = vadd.f32 %v441, %v460
      %462 = vdwg.mxu0
      %v463 = vld [vmem:[%s5] sm:$0xff]
      %v464 = vld [vmem:[%s5 + $0x8] sm:$0xff]
      %v465 = vld [vmem:[%s5 + $0x10] sm:$0xff]
      %v466 = vld [vmem:[%s5 + $0x18] sm:$0xff]
      %v467 = vld [vmem:[%s5 + $0x20] sm:$0xff]
      %v468 = vld [vmem:[%s5 + $0x28] sm:$0xff]
      %v469 = vld [vmem:[%s5 + $0x30] sm:$0xff]
      %v470 = vld [vmem:[%s5 + $0x38] sm:$0xff]
      %v471 = vld [vmem:[%s5 + $0x40] sm:$0xff]
      %v472 = vld [vmem:[%s5 + $0x48] sm:$0xff]
      %v473 = vld [vmem:[%s5 + $0x50] sm:$0xff]
      %v474 = vld [vmem:[%s5 + $0x58] sm:$0xff]
      %v475 = vld [vmem:[%s5 + $0x60] sm:$0xff]
      %v476 = vld [vmem:[%s5 + $0x68] sm:$0xff]
      %v477 = vld [vmem:[%s5 + $0x70] sm:$0xff]
      %v478 = vld [vmem:[%s5 + $0x78] sm:$0xff]
      %v479 = vld [vmem:[%s6] sm:$0x1]
      %v481 = vperm.slane %v479, 0
      %483 = vmatpush.msra.mxu0 %v478
      %484 = vmatpush.msra.mxu0 %v477
      %485 = vmatpush.msra.mxu0 %v476
      %486 = vmatpush.msra.mxu0 %v475
      %487 = vmatpush.msra.mxu0 %v474
      %488 = vmatpush.msra.mxu0 %v473
      %489 = vmatpush.msra.mxu0 %v472
      %490 = vmatpush.msra.mxu0 %v471
      %491 = vmatpush.msra.mxu0 %v470
      %492 = vmatpush.msra.mxu0 %v469
      %493 = vmatpush.msra.mxu0 %v468
      %494 = vmatpush.msra.mxu0 %v467
      %495 = vmatpush.msra.mxu0 %v466
      %496 = vmatpush.msra.mxu0 %v465
      %497 = vmatpush.msra.mxu0 %v464
      %498 = vmatpush.msra.mxu0 %v463
      %499 = vmatmul.f32.gmra.mxu0 %v382
      %v500 = vpop.f32.mrf.mxu0
      %v501 = vadd.f32 %v481, %v500
      %502 = vdwg.mxu0
      %vm503 = vcmask 261120
      %v505 = vsel %vm503, %v421, 0
      %v508 = vsel %vm503, %v461, 0
      %510 = vmatpush.xpose.msra.mxu0 0.0
      %511 = vmatpush.xpose.msra.mxu0 0.0
      %512 = vmatpush.xpose.msra.mxu0 0.0
      %513 = vmatpush.xpose.msra.mxu0 0.0
      %514 = vmatpush.xpose.msra.mxu0 0.0
      %515 = vmatpush.xpose.msra.mxu0 0.0
      %516 = vmatpush.xpose.msra.mxu0 0.0
      %517 = vmatpush.xpose.msra.mxu0 0.0
      %518 = vmatpush.xpose.msra.mxu0 0.0
      %519 = vmatpush.xpose.msra.mxu0 0.0
      %520 = vmatpush.xpose.msra.mxu0 0.0
      %521 = vmatpush.xpose.msra.mxu0 0.0
      %522 = vmatpush.xpose.msra.mxu0 0.0
      %523 = vmatpush.xpose.msra.mxu0 0.0
      %524 = vmatpush.xpose.msra.mxu0 0.0
      %525 = vmatpush.xpose.msra.mxu0 %v508
      %526 = vmatmul.f32.gmra.mxu0 %v505
      %v527 = vpop.f32.mrf.mxu0
      %v528 = vadd.f32 0.0, %v527
      %529 = vdwg.mxu0
      %vm530 = vcmask 64512
      %v531 = vsel %vm530, %v528, -inf
      %532 = vmax.xlane.f32.xlu0 %v531
      %v533 = vpop.xlane.xlu0 %532
      %v534 = vsub.f32 %v528, %v533
      %v535 = vmul.f32 %v534, 1.442695
      %v536 = vpow.pop %v535
      %v537 = vsel %vm530, %v536, 0.0
      %538 = vadd.xlane.f32.xlu0 %v537
      %v539 = vpop.xlane.xlu0 %538
      %v540 = vrcp.pop %v539
      %v541 = vmul.f32 %v539, %v540
      %v542 = vsub.f32 1.0, %v541
      %v543 = vmul.f32 %v540, %v542
      %v544 = vadd.f32 %v540, %v543
      %vm545 = vweird.f32 %v539
      %vm546 = vweird.f32 %v540
      %vm547 = vmor %vm545, %vm546
      %v548 = vsel %vm547, %v540, %v544
      %v549 = vand.u32 2147483647, %v539
      %vm550 = vcmp.eq.f32.partialorder %v549, 8.507059e+37
      %v551 = vand.u32 %v539, 2147483648
      %v552 = vor.u32 1.1754944e-38, %v551
      %v553 = vsel %vm550, %v552, %v548
      %v554 = vmul.f32 %v536, %v553
      %v556 = vsel %vm530, %v554, 0
      %558 = vmatpush.msra.mxu0 0.0
      %559 = vmatpush.msra.mxu0 0.0
      %560 = vmatpush.msra.mxu0 0.0
      %561 = vmatpush.msra.mxu0 0.0
      %562 = vmatpush.msra.mxu0 0.0
      %563 = vmatpush.msra.mxu0 0.0
      %564 = vmatpush.msra.mxu0 0.0
      %565 = vmatpush.msra.mxu0 0.0
      %566 = vmatpush.msra.mxu0 0.0
      %567 = vmatpush.msra.mxu0 0.0
      %568 = vmatpush.msra.mxu0 0.0
      %569 = vmatpush.msra.mxu0 0.0
      %570 = vmatpush.msra.mxu0 0.0
      %571 = vmatpush.msra.mxu0 0.0
      %572 = vmatpush.msra.mxu0 0.0
      %573 = vmatpush.msra.mxu0 %v501
      %574 = vmatmul.f32.gmra.mxu0 %v556
      %v575 = vpop.f32.mrf.mxu0
      %v576 = vadd.f32 0.0, %v575
      %577 = vdwg.mxu0
      %s578 = scalar_lea.vmem %s1, 128
      %v579 = vld [vmem:[%s578] sm:$0xff]
      %v580 = vld [vmem:[%s578 + $0x8] sm:$0xff]
      %v581 = vld [vmem:[%s578 + $0x10] sm:$0xff]
      %v582 = vld [vmem:[%s578 + $0x18] sm:$0xff]
      %v583 = vld [vmem:[%s578 + $0x20] sm:$0xff]
      %v584 = vld [vmem:[%s578 + $0x28] sm:$0xff]
      %v585 = vld [vmem:[%s578 + $0x30] sm:$0xff]
      %v586 = vld [vmem:[%s578 + $0x38] sm:$0xff]
      %v587 = vld [vmem:[%s578 + $0x40] sm:$0xff]
      %v588 = vld [vmem:[%s578 + $0x48] sm:$0xff]
      %v589 = vld [vmem:[%s578 + $0x50] sm:$0xff]
      %v590 = vld [vmem:[%s578 + $0x58] sm:$0xff]
      %v591 = vld [vmem:[%s578 + $0x60] sm:$0xff]
      %v592 = vld [vmem:[%s578 + $0x68] sm:$0xff]
      %v593 = vld [vmem:[%s578 + $0x70] sm:$0xff]
      %v594 = vld [vmem:[%s578 + $0x78] sm:$0xff]
      %s595 = scalar_lea.vmem %s2, 1
      %v596 = vld [vmem:[%s595] sm:$0x1]
      %v598 = vperm.slane %v596, 0
      %600 = vmatpush.msra.mxu0 %v594
      %601 = vmatpush.msra.mxu0 %v593
      %602 = vmatpush.msra.mxu0 %v592
      %603 = vmatpush.msra.mxu0 %v591
      %604 = vmatpush.msra.mxu0 %v590
      %605 = vmatpush.msra.mxu0 %v589
      %606 = vmatpush.msra.mxu0 %v588
      %607 = vmatpush.msra.mxu0 %v587
      %608 = vmatpush.msra.mxu0 %v586
      %609 = vmatpush.msra.mxu0 %v585
      %610 = vmatpush.msra.mxu0 %v584
      %611 = vmatpush.msra.mxu0 %v583
      %612 = vmatpush.msra.mxu0 %v582
      %613 = vmatpush.msra.mxu0 %v581
      %614 = vmatpush.msra.mxu0 %v580
      %615 = vmatpush.msra.mxu0 %v579
      %616 = vmatmul.f32.gmra.mxu0 %v382
      %v617 = vpop.f32.mrf.mxu0
      %v618 = vadd.f32 %v598, %v617
      %619 = vdwg.mxu0
      %s620 = scalar_lea.vmem %s3, 128
      %v621 = vld [vmem:[%s620] sm:$0xff]
      %v622 = vld [vmem:[%s620 + $0x8] sm:$0xff]
      %v623 = vld [vmem:[%s620 + $0x10] sm:$0xff]
      %v624 = vld [vmem:[%s620 + $0x18] sm:$0xff]
      %v625 = vld [vmem:[%s620 + $0x20] sm:$0xff]
      %v626 = vld [vmem:[%s620 + $0x28] sm:$0xff]
      %v627 = vld [vmem:[%s620 + $0x30] sm:$0xff]
      %v628 = vld [vmem:[%s620 + $0x38] sm:$0xff]
      %v629 = vld [vmem:[%s620 + $0x40] sm:$0xff]
      %v630 = vld [vmem:[%s620 + $0x48] sm:$0xff]
      %v631 = vld [vmem:[%s620 + $0x50] sm:$0xff]
      %v632 = vld [vmem:[%s620 + $0x58] sm:$0xff]
      %v633 = vld [vmem:[%s620 + $0x60] sm:$0xff]
      %v634 = vld [vmem:[%s620 + $0x68] sm:$0xff]
      %v635 = vld [vmem:[%s620 + $0x70] sm:$0xff]
      %v636 = vld [vmem:[%s620 + $0x78] sm:$0xff]
      %s637 = scalar_lea.vmem %s4, 1
      %v638 = vld [vmem:[%s637] sm:$0x1]
      %v640 = vperm.slane %v638, 0
      %642 = vmatpush.msra.mxu0 %v636
      %643 = vmatpush.msra.mxu0 %v635
      %644 = vmatpush.msra.mxu0 %v634
      %645 = vmatpush.msra.mxu0 %v633
      %646 = vmatpush.msra.mxu0 %v632
      %647 = vmatpush.msra.mxu0 %v631
      %648 = vmatpush.msra.mxu0 %v630
      %649 = vmatpush.msra.mxu0 %v629
      %650 = vmatpush.msra.mxu0 %v628
      %651 = vmatpush.msra.mxu0 %v627
      %652 = vmatpush.msra.mxu0 %v626
      %653 = vmatpush.msra.mxu0 %v625
      %654 = vmatpush.msra.mxu0 %v624
      %655 = vmatpush.msra.mxu0 %v623
      %656 = vmatpush.msra.mxu0 %v622
      %657 = vmatpush.msra.mxu0 %v621
      %658 = vmatmul.f32.gmra.mxu0 %v382
      %v659 = vpop.f32.mrf.mxu0
      %v660 = vadd.f32 %v640, %v659
      %661 = vdwg.mxu0
      %s662 = scalar_lea.vmem %s5, 128
      %v663 = vld [vmem:[%s662] sm:$0xff]
      %v664 = vld [vmem:[%s662 + $0x8] sm:$0xff]
      %v665 = vld [vmem:[%s662 + $0x10] sm:$0xff]
      %v666 = vld [vmem:[%s662 + $0x18] sm:$0xff]
      %v667 = vld [vmem:[%s662 + $0x20] sm:$0xff]
      %v668 = vld [vmem:[%s662 + $0x28] sm:$0xff]
      %v669 = vld [vmem:[%s662 + $0x30] sm:$0xff]
      %v670 = vld [vmem:[%s662 + $0x38] sm:$0xff]
      %v671 = vld [vmem:[%s662 + $0x40] sm:$0xff]
      %v672 = vld [vmem:[%s662 + $0x48] sm:$0xff]
      %v673 = vld [vmem:[%s662 + $0x50] sm:$0xff]
      %v674 = vld [vmem:[%s662 + $0x58] sm:$0xff]
      %v675 = vld [vmem:[%s662 + $0x60] sm:$0xff]
      %v676 = vld [vmem:[%s662 + $0x68] sm:$0xff]
      %v677 = vld [vmem:[%s662 + $0x70] sm:$0xff]
      %v678 = vld [vmem:[%s662 + $0x78] sm:$0xff]
      %s679 = scalar_lea.vmem %s6, 1
      %v680 = vld [vmem:[%s679] sm:$0x1]
      %v682 = vperm.slane %v680, 0
      %684 = vmatpush.msra.mxu0 %v678
      %685 = vmatpush.msra.mxu0 %v677
      %686 = vmatpush.msra.mxu0 %v676
      %687 = vmatpush.msra.mxu0 %v675
      %688 = vmatpush.msra.mxu0 %v674
      %689 = vmatpush.msra.mxu0 %v673
      %690 = vmatpush.msra.mxu0 %v672
      %691 = vmatpush.msra.mxu0 %v671
      %692 = vmatpush.msra.mxu0 %v670
      %693 = vmatpush.msra.mxu0 %v669
      %694 = vmatpush.msra.mxu0 %v668
      %695 = vmatpush.msra.mxu0 %v667
      %696 = vmatpush.msra.mxu0 %v666
      %697 = vmatpush.msra.mxu0 %v665
      %698 = vmatpush.msra.mxu0 %v664
      %699 = vmatpush.msra.mxu0 %v663
      %700 = vmatmul.f32.gmra.mxu0 %v382
      %v701 = vpop.f32.mrf.mxu0
      %v702 = vadd.f32 %v682, %v701
      %703 = vdwg.mxu0
      %v705 = vsel %vm503, %v618, 0
      %v708 = vsel %vm503, %v660, 0
      %710 = vmatpush.xpose.msra.mxu0 0.0
      %711 = vmatpush.xpose.msra.mxu0 0.0
      %712 = vmatpush.xpose.msra.mxu0 0.0
      %713 = vmatpush.xpose.msra.mxu0 0.0
      %714 = vmatpush.xpose.msra.mxu0 0.0
      %715 = vmatpush.xpose.msra.mxu0 0.0
      %716 = vmatpush.xpose.msra.mxu0 0.0
      %717 = vmatpush.xpose.msra.mxu0 0.0
      %718 = vmatpush.xpose.msra.mxu0 0.0
      %719 = vmatpush.xpose.msra.mxu0 0.0
      %720 = vmatpush.xpose.msra.mxu0 0.0
      %721 = vmatpush.xpose.msra.mxu0 0.0
      %722 = vmatpush.xpose.msra.mxu0 0.0
      %723 = vmatpush.xpose.msra.mxu0 0.0
      %724 = vmatpush.xpose.msra.mxu0 0.0
      %725 = vmatpush.xpose.msra.mxu0 %v708
      %726 = vmatmul.f32.gmra.mxu0 %v705
      %v727 = vpop.f32.mrf.mxu0
      %v728 = vadd.f32 0.0, %v727
      %729 = vdwg.mxu0
      %v730 = vsel %vm530, %v728, -inf
      %731 = vmax.xlane.f32.xlu0 %v730
      %v732 = vpop.xlane.xlu0 %731
      %v733 = vsub.f32 %v728, %v732
      %v734 = vmul.f32 %v733, 1.442695
      %v735 = vpow.pop %v734
      %v736 = vsel %vm530, %v735, 0.0
      %737 = vadd.xlane.f32.xlu0 %v736
      %v738 = vpop.xlane.xlu0 %737
      %v739 = vrcp.pop %v738
      %v740 = vmul.f32 %v738, %v739
      %v741 = vsub.f32 1.0, %v740
      %v742 = vmul.f32 %v739, %v741
      %v743 = vadd.f32 %v739, %v742
      %vm744 = vweird.f32 %v738
      %vm745 = vweird.f32 %v739
      %vm746 = vmor %vm744, %vm745
      %v747 = vsel %vm746, %v739, %v743
      %v748 = vand.u32 2147483647, %v738
      %vm749 = vcmp.eq.f32.partialorder %v748, 8.507059e+37
      %v750 = vand.u32 %v738, 2147483648
      %v751 = vor.u32 1.1754944e-38, %v750
      %v752 = vsel %vm749, %v751, %v747
      %v753 = vmul.f32 %v735, %v752
      %v755 = vsel %vm530, %v753, 0
      %757 = vmatpush.msra.mxu0 0.0
      %758 = vmatpush.msra.mxu0 0.0
      %759 = vmatpush.msra.mxu0 0.0
      %760 = vmatpush.msra.mxu0 0.0
      %761 = vmatpush.msra.mxu0 0.0
      %762 = vmatpush.msra.mxu0 0.0
      %763 = vmatpush.msra.mxu0 0.0
      %764 = vmatpush.msra.mxu0 0.0
      %765 = vmatpush.msra.mxu0 0.0
      %766 = vmatpush.msra.mxu0 0.0
      %767 = vmatpush.msra.mxu0 0.0
      %768 = vmatpush.msra.mxu0 0.0
      %769 = vmatpush.msra.mxu0 0.0
      %770 = vmatpush.msra.mxu0 0.0
      %771 = vmatpush.msra.mxu0 0.0
      %772 = vmatpush.msra.mxu0 %v702
      %773 = vmatmul.f32.gmra.mxu0 %v755
      %v774 = vpop.f32.mrf.mxu0
      %v775 = vadd.f32 0.0, %v774
      %776 = vdwg.mxu0
      %s777 = scalar_lea.vmem %s1, 256
      %v778 = vld [vmem:[%s777] sm:$0xff]
      %v779 = vld [vmem:[%s777 + $0x8] sm:$0xff]
      %v780 = vld [vmem:[%s777 + $0x10] sm:$0xff]
      %v781 = vld [vmem:[%s777 + $0x18] sm:$0xff]
      %v782 = vld [vmem:[%s777 + $0x20] sm:$0xff]
      %v783 = vld [vmem:[%s777 + $0x28] sm:$0xff]
      %v784 = vld [vmem:[%s777 + $0x30] sm:$0xff]
      %v785 = vld [vmem:[%s777 + $0x38] sm:$0xff]
      %v786 = vld [vmem:[%s777 + $0x40] sm:$0xff]
      %v787 = vld [vmem:[%s777 + $0x48] sm:$0xff]
      %v788 = vld [vmem:[%s777 + $0x50] sm:$0xff]
      %v789 = vld [vmem:[%s777 + $0x58] sm:$0xff]
      %v790 = vld [vmem:[%s777 + $0x60] sm:$0xff]
      %v791 = vld [vmem:[%s777 + $0x68] sm:$0xff]
      %v792 = vld [vmem:[%s777 + $0x70] sm:$0xff]
      %v793 = vld [vmem:[%s777 + $0x78] sm:$0xff]
      %s794 = scalar_lea.vmem %s2, 2
      %v795 = vld [vmem:[%s794] sm:$0x1]
      %v797 = vperm.slane %v795, 0
      %799 = vmatpush.msra.mxu0 %v793
      %800 = vmatpush.msra.mxu0 %v792
      %801 = vmatpush.msra.mxu0 %v791
      %802 = vmatpush.msra.mxu0 %v790
      %803 = vmatpush.msra.mxu0 %v789
      %804 = vmatpush.msra.mxu0 %v788
      %805 = vmatpush.msra.mxu0 %v787
      %806 = vmatpush.msra.mxu0 %v786
      %807 = vmatpush.msra.mxu0 %v785
      %808 = vmatpush.msra.mxu0 %v784
      %809 = vmatpush.msra.mxu0 %v783
      %810 = vmatpush.msra.mxu0 %v782
      %811 = vmatpush.msra.mxu0 %v781
      %812 = vmatpush.msra.mxu0 %v780
      %813 = vmatpush.msra.mxu0 %v779
      %814 = vmatpush.msra.mxu0 %v778
      %815 = vmatmul.f32.gmra.mxu0 %v382
      %v816 = vpop.f32.mrf.mxu0
      %v817 = vadd.f32 %v797, %v816
      %818 = vdwg.mxu0
      %s819 = scalar_lea.vmem %s3, 256
      %v820 = vld [vmem:[%s819] sm:$0xff]
      %v821 = vld [vmem:[%s819 + $0x8] sm:$0xff]
      %v822 = vld [vmem:[%s819 + $0x10] sm:$0xff]
      %v823 = vld [vmem:[%s819 + $0x18] sm:$0xff]
      %v824 = vld [vmem:[%s819 + $0x20] sm:$0xff]
      %v825 = vld [vmem:[%s819 + $0x28] sm:$0xff]
      %v826 = vld [vmem:[%s819 + $0x30] sm:$0xff]
      %v827 = vld [vmem:[%s819 + $0x38] sm:$0xff]
      %v828 = vld [vmem:[%s819 + $0x40] sm:$0xff]
      %v829 = vld [vmem:[%s819 + $0x48] sm:$0xff]
      %v830 = vld [vmem:[%s819 + $0x50] sm:$0xff]
      %v831 = vld [vmem:[%s819 + $0x58] sm:$0xff]
      %v832 = vld [vmem:[%s819 + $0x60] sm:$0xff]
      %v833 = vld [vmem:[%s819 + $0x68] sm:$0xff]
      %v834 = vld [vmem:[%s819 + $0x70] sm:$0xff]
      %v835 = vld [vmem:[%s819 + $0x78] sm:$0xff]
      %s836 = scalar_lea.vmem %s4, 2
      %v837 = vld [vmem:[%s836] sm:$0x1]
      %v839 = vperm.slane %v837, 0
      %841 = vmatpush.msra.mxu0 %v835
      %842 = vmatpush.msra.mxu0 %v834
      %843 = vmatpush.msra.mxu0 %v833
      %844 = vmatpush.msra.mxu0 %v832
      %845 = vmatpush.msra.mxu0 %v831
      %846 = vmatpush.msra.mxu0 %v830
      %847 = vmatpush.msra.mxu0 %v829
      %848 = vmatpush.msra.mxu0 %v828
      %849 = vmatpush.msra.mxu0 %v827
      %850 = vmatpush.msra.mxu0 %v826
      %851 = vmatpush.msra.mxu0 %v825
      %852 = vmatpush.msra.mxu0 %v824
      %853 = vmatpush.msra.mxu0 %v823
      %854 = vmatpush.msra.mxu0 %v822
      %855 = vmatpush.msra.mxu0 %v821
      %856 = vmatpush.msra.mxu0 %v820
      %857 = vmatmul.f32.gmra.mxu0 %v382
      %v858 = vpop.f32.mrf.mxu0
      %v859 = vadd.f32 %v839, %v858
      %860 = vdwg.mxu0
      %s861 = scalar_lea.vmem %s5, 256
      %v862 = vld [vmem:[%s861] sm:$0xff]
      %v863 = vld [vmem:[%s861 + $0x8] sm:$0xff]
      %v864 = vld [vmem:[%s861 + $0x10] sm:$0xff]
      %v865 = vld [vmem:[%s861 + $0x18] sm:$0xff]
      %v866 = vld [vmem:[%s861 + $0x20] sm:$0xff]
      %v867 = vld [vmem:[%s861 + $0x28] sm:$0xff]
      %v868 = vld [vmem:[%s861 + $0x30] sm:$0xff]
      %v869 = vld [vmem:[%s861 + $0x38] sm:$0xff]
      %v870 = vld [vmem:[%s861 + $0x40] sm:$0xff]
      %v871 = vld [vmem:[%s861 + $0x48] sm:$0xff]
      %v872 = vld [vmem:[%s861 + $0x50] sm:$0xff]
      %v873 = vld [vmem:[%s861 + $0x58] sm:$0xff]
      %v874 = vld [vmem:[%s861 + $0x60] sm:$0xff]
      %v875 = vld [vmem:[%s861 + $0x68] sm:$0xff]
      %v876 = vld [vmem:[%s861 + $0x70] sm:$0xff]
      %v877 = vld [vmem:[%s861 + $0x78] sm:$0xff]
      %s878 = scalar_lea.vmem %s6, 2
      %v879 = vld [vmem:[%s878] sm:$0x1]
      %v881 = vperm.slane %v879, 0
      %883 = vmatpush.msra.mxu0 %v877
      %884 = vmatpush.msra.mxu0 %v876
      %885 = vmatpush.msra.mxu0 %v875
      %886 = vmatpush.msra.mxu0 %v874
      %887 = vmatpush.msra.mxu0 %v873
      %888 = vmatpush.msra.mxu0 %v872
      %889 = vmatpush.msra.mxu0 %v871
      %890 = vmatpush.msra.mxu0 %v870
      %891 = vmatpush.msra.mxu0 %v869
      %892 = vmatpush.msra.mxu0 %v868
      %893 = vmatpush.msra.mxu0 %v867
      %894 = vmatpush.msra.mxu0 %v866
      %895 = vmatpush.msra.mxu0 %v865
      %896 = vmatpush.msra.mxu0 %v864
      %897 = vmatpush.msra.mxu0 %v863
      %898 = vmatpush.msra.mxu0 %v862
      %899 = vmatmul.f32.gmra.mxu0 %v382
      %v900 = vpop.f32.mrf.mxu0
      %v901 = vadd.f32 %v881, %v900
      %902 = vdwg.mxu0
      %v904 = vsel %vm503, %v817, 0
      %v907 = vsel %vm503, %v859, 0
      %909 = vmatpush.xpose.msra.mxu0 0.0
      %910 = vmatpush.xpose.msra.mxu0 0.0
      %911 = vmatpush.xpose.msra.mxu0 0.0
      %912 = vmatpush.xpose.msra.mxu0 0.0
      %913 = vmatpush.xpose.msra.mxu0 0.0
      %914 = vmatpush.xpose.msra.mxu0 0.0
      %915 = vmatpush.xpose.msra.mxu0 0.0
      %916 = vmatpush.xpose.msra.mxu0 0.0
      %917 = vmatpush.xpose.msra.mxu0 0.0
      %918 = vmatpush.xpose.msra.mxu0 0.0
      %919 = vmatpush.xpose.msra.mxu0 0.0
      %920 = vmatpush.xpose.msra.mxu0 0.0
      %921 = vmatpush.xpose.msra.mxu0 0.0
      %922 = vmatpush.xpose.msra.mxu0 0.0
      %923 = vmatpush.xpose.msra.mxu0 0.0
      %924 = vmatpush.xpose.msra.mxu0 %v907
      %925 = vmatmul.f32.gmra.mxu0 %v904
      %v926 = vpop.f32.mrf.mxu0
      %v927 = vadd.f32 0.0, %v926
      %928 = vdwg.mxu0
      %v929 = vsel %vm530, %v927, -inf
      %930 = vmax.xlane.f32.xlu0 %v929
      %v931 = vpop.xlane.xlu0 %930
      %v932 = vsub.f32 %v927, %v931
      %v933 = vmul.f32 %v932, 1.442695
      %v934 = vpow.pop %v933
      %v935 = vsel %vm530, %v934, 0.0
      %936 = vadd.xlane.f32.xlu0 %v935
      %v937 = vpop.xlane.xlu0 %936
      %v938 = vrcp.pop %v937
      %v939 = vmul.f32 %v937, %v938
      %v940 = vsub.f32 1.0, %v939
      %v941 = vmul.f32 %v938, %v940
      %v942 = vadd.f32 %v938, %v941
      %vm943 = vweird.f32 %v937
      %vm944 = vweird.f32 %v938
      %vm945 = vmor %vm943, %vm944
      %v946 = vsel %vm945, %v938, %v942
      %v947 = vand.u32 2147483647, %v937
      %vm948 = vcmp.eq.f32.partialorder %v947, 8.507059e+37
      %v949 = vand.u32 %v937, 2147483648
      %v950 = vor.u32 1.1754944e-38, %v949
      %v951 = vsel %vm948, %v950, %v946
      %v952 = vmul.f32 %v934, %v951
      %v954 = vsel %vm530, %v952, 0
      %956 = vmatpush.msra.mxu0 0.0
      %957 = vmatpush.msra.mxu0 0.0
      %958 = vmatpush.msra.mxu0 0.0
      %959 = vmatpush.msra.mxu0 0.0
      %960 = vmatpush.msra.mxu0 0.0
      %961 = vmatpush.msra.mxu0 0.0
      %962 = vmatpush.msra.mxu0 0.0
      %963 = vmatpush.msra.mxu0 0.0
      %964 = vmatpush.msra.mxu0 0.0
      %965 = vmatpush.msra.mxu0 0.0
      %966 = vmatpush.msra.mxu0 0.0
      %967 = vmatpush.msra.mxu0 0.0
      %968 = vmatpush.msra.mxu0 0.0
      %969 = vmatpush.msra.mxu0 0.0
      %970 = vmatpush.msra.mxu0 0.0
      %971 = vmatpush.msra.mxu0 %v901
      %972 = vmatmul.f32.gmra.mxu0 %v954
      %v973 = vpop.f32.mrf.mxu0
      %v974 = vadd.f32 0.0, %v973
      %975 = vdwg.mxu0
      %s976 = scalar_lea.vmem %s1, 384
      %v977 = vld [vmem:[%s976] sm:$0xff]
      %v978 = vld [vmem:[%s976 + $0x8] sm:$0xff]
      %v979 = vld [vmem:[%s976 + $0x10] sm:$0xff]
      %v980 = vld [vmem:[%s976 + $0x18] sm:$0xff]
      %v981 = vld [vmem:[%s976 + $0x20] sm:$0xff]
      %v982 = vld [vmem:[%s976 + $0x28] sm:$0xff]
      %v983 = vld [vmem:[%s976 + $0x30] sm:$0xff]
      %v984 = vld [vmem:[%s976 + $0x38] sm:$0xff]
      %v985 = vld [vmem:[%s976 + $0x40] sm:$0xff]
      %v986 = vld [vmem:[%s976 + $0x48] sm:$0xff]
      %v987 = vld [vmem:[%s976 + $0x50] sm:$0xff]
      %v988 = vld [vmem:[%s976 + $0x58] sm:$0xff]
      %v989 = vld [vmem:[%s976 + $0x60] sm:$0xff]
      %v990 = vld [vmem:[%s976 + $0x68] sm:$0xff]
      %v991 = vld [vmem:[%s976 + $0x70] sm:$0xff]
      %v992 = vld [vmem:[%s976 + $0x78] sm:$0xff]
      %s993 = scalar_lea.vmem %s2, 3
      %v994 = vld [vmem:[%s993] sm:$0x1]
      %v996 = vperm.slane %v994, 0
      %998 = vmatpush.msra.mxu0 %v992
      %999 = vmatpush.msra.mxu0 %v991
      %1000 = vmatpush.msra.mxu0 %v990
      %1001 = vmatpush.msra.mxu0 %v989
      %1002 = vmatpush.msra.mxu0 %v988
      %1003 = vmatpush.msra.mxu0 %v987
      %1004 = vmatpush.msra.mxu0 %v986
      %1005 = vmatpush.msra.mxu0 %v985
      %1006 = vmatpush.msra.mxu0 %v984
      %1007 = vmatpush.msra.mxu0 %v983
      %1008 = vmatpush.msra.mxu0 %v982
      %1009 = vmatpush.msra.mxu0 %v981
      %1010 = vmatpush.msra.mxu0 %v980
      %1011 = vmatpush.msra.mxu0 %v979
      %1012 = vmatpush.msra.mxu0 %v978
      %1013 = vmatpush.msra.mxu0 %v977
      %1014 = vmatmul.f32.gmra.mxu0 %v382
      %v1015 = vpop.f32.mrf.mxu0
      %v1016 = vadd.f32 %v996, %v1015
      %1017 = vdwg.mxu0
      %s1018 = scalar_lea.vmem %s3, 384
      %v1019 = vld [vmem:[%s1018] sm:$0xff]
      %v1020 = vld [vmem:[%s1018 + $0x8] sm:$0xff]
      %v1021 = vld [vmem:[%s1018 + $0x10] sm:$0xff]
      %v1022 = vld [vmem:[%s1018 + $0x18] sm:$0xff]
      %v1023 = vld [vmem:[%s1018 + $0x20] sm:$0xff]
      %v1024 = vld [vmem:[%s1018 + $0x28] sm:$0xff]
      %v1025 = vld [vmem:[%s1018 + $0x30] sm:$0xff]
      %v1026 = vld [vmem:[%s1018 + $0x38] sm:$0xff]
      %v1027 = vld [vmem:[%s1018 + $0x40] sm:$0xff]
      %v1028 = vld [vmem:[%s1018 + $0x48] sm:$0xff]
      %v1029 = vld [vmem:[%s1018 + $0x50] sm:$0xff]
      %v1030 = vld [vmem:[%s1018 + $0x58] sm:$0xff]
      %v1031 = vld [vmem:[%s1018 + $0x60] sm:$0xff]
      %v1032 = vld [vmem:[%s1018 + $0x68] sm:$0xff]
      %v1033 = vld [vmem:[%s1018 + $0x70] sm:$0xff]
      %v1034 = vld [vmem:[%s1018 + $0x78] sm:$0xff]
      %s1035 = scalar_lea.vmem %s4, 3
      %v1036 = vld [vmem:[%s1035] sm:$0x1]
      %v1038 = vperm.slane %v1036, 0
      %1040 = vmatpush.msra.mxu0 %v1034
      %1041 = vmatpush.msra.mxu0 %v1033
      %1042 = vmatpush.msra.mxu0 %v1032
      %1043 = vmatpush.msra.mxu0 %v1031
      %1044 = vmatpush.msra.mxu0 %v1030
      %1045 = vmatpush.msra.mxu0 %v1029
      %1046 = vmatpush.msra.mxu0 %v1028
      %1047 = vmatpush.msra.mxu0 %v1027
      %1048 = vmatpush.msra.mxu0 %v1026
      %1049 = vmatpush.msra.mxu0 %v1025
      %1050 = vmatpush.msra.mxu0 %v1024
      %1051 = vmatpush.msra.mxu0 %v1023
      %1052 = vmatpush.msra.mxu0 %v1022
      %1053 = vmatpush.msra.mxu0 %v1021
      %1054 = vmatpush.msra.mxu0 %v1020
      %1055 = vmatpush.msra.mxu0 %v1019
      %1056 = vmatmul.f32.gmra.mxu0 %v382
      %v1057 = vpop.f32.mrf.mxu0
      %v1058 = vadd.f32 %v1038, %v1057
      %1059 = vdwg.mxu0
      %s1060 = scalar_lea.vmem %s5, 384
      %v1061 = vld [vmem:[%s1060] sm:$0xff]
      %v1062 = vld [vmem:[%s1060 + $0x8] sm:$0xff]
      %v1063 = vld [vmem:[%s1060 + $0x10] sm:$0xff]
      %v1064 = vld [vmem:[%s1060 + $0x18] sm:$0xff]
      %v1065 = vld [vmem:[%s1060 + $0x20] sm:$0xff]
      %v1066 = vld [vmem:[%s1060 + $0x28] sm:$0xff]
      %v1067 = vld [vmem:[%s1060 + $0x30] sm:$0xff]
      %v1068 = vld [vmem:[%s1060 + $0x38] sm:$0xff]
      %v1069 = vld [vmem:[%s1060 + $0x40] sm:$0xff]
      %v1070 = vld [vmem:[%s1060 + $0x48] sm:$0xff]
      %v1071 = vld [vmem:[%s1060 + $0x50] sm:$0xff]
      %v1072 = vld [vmem:[%s1060 + $0x58] sm:$0xff]
      %v1073 = vld [vmem:[%s1060 + $0x60] sm:$0xff]
      %v1074 = vld [vmem:[%s1060 + $0x68] sm:$0xff]
      %v1075 = vld [vmem:[%s1060 + $0x70] sm:$0xff]
      %v1076 = vld [vmem:[%s1060 + $0x78] sm:$0xff]
      %s1077 = scalar_lea.vmem %s6, 3
      %v1078 = vld [vmem:[%s1077] sm:$0x1]
      %v1080 = vperm.slane %v1078, 0
      %1082 = vmatpush.msra.mxu0 %v1076
      %1083 = vmatpush.msra.mxu0 %v1075
      %1084 = vmatpush.msra.mxu0 %v1074
      %1085 = vmatpush.msra.mxu0 %v1073
      %1086 = vmatpush.msra.mxu0 %v1072
      %1087 = vmatpush.msra.mxu0 %v1071
      %1088 = vmatpush.msra.mxu0 %v1070
      %1089 = vmatpush.msra.mxu0 %v1069
      %1090 = vmatpush.msra.mxu0 %v1068
      %1091 = vmatpush.msra.mxu0 %v1067
      %1092 = vmatpush.msra.mxu0 %v1066
      %1093 = vmatpush.msra.mxu0 %v1065
      %1094 = vmatpush.msra.mxu0 %v1064
      %1095 = vmatpush.msra.mxu0 %v1063
      %1096 = vmatpush.msra.mxu0 %v1062
      %1097 = vmatpush.msra.mxu0 %v1061
      %1098 = vmatmul.f32.gmra.mxu0 %v382
      %v1099 = vpop.f32.mrf.mxu0
      %v1100 = vadd.f32 %v1080, %v1099
      %1101 = vdwg.mxu0
      %v1103 = vsel %vm503, %v1016, 0
      %v1106 = vsel %vm503, %v1058, 0
      %1108 = vmatpush.xpose.msra.mxu0 0.0
      %1109 = vmatpush.xpose.msra.mxu0 0.0
      %1110 = vmatpush.xpose.msra.mxu0 0.0
      %1111 = vmatpush.xpose.msra.mxu0 0.0
      %1112 = vmatpush.xpose.msra.mxu0 0.0
      %1113 = vmatpush.xpose.msra.mxu0 0.0
      %1114 = vmatpush.xpose.msra.mxu0 0.0
      %1115 = vmatpush.xpose.msra.mxu0 0.0
      %1116 = vmatpush.xpose.msra.mxu0 0.0
      %1117 = vmatpush.xpose.msra.mxu0 0.0
      %1118 = vmatpush.xpose.msra.mxu0 0.0
      %1119 = vmatpush.xpose.msra.mxu0 0.0
      %1120 = vmatpush.xpose.msra.mxu0 0.0
      %1121 = vmatpush.xpose.msra.mxu0 0.0
      %1122 = vmatpush.xpose.msra.mxu0 0.0
      %1123 = vmatpush.xpose.msra.mxu0 %v1106
      %1124 = vmatmul.f32.gmra.mxu0 %v1103
      %v1125 = vpop.f32.mrf.mxu0
      %v1126 = vadd.f32 0.0, %v1125
      %1127 = vdwg.mxu0
      %v1128 = vsel %vm530, %v1126, -inf
      %1129 = vmax.xlane.f32.xlu0 %v1128
      %v1130 = vpop.xlane.xlu0 %1129
      %v1131 = vsub.f32 %v1126, %v1130
      %v1132 = vmul.f32 %v1131, 1.442695
      %v1133 = vpow.pop %v1132
      %v1134 = vsel %vm530, %v1133, 0.0
      %1135 = vadd.xlane.f32.xlu0 %v1134
      %v1136 = vpop.xlane.xlu0 %1135
      %v1137 = vrcp.pop %v1136
      %v1138 = vmul.f32 %v1136, %v1137
      %v1139 = vsub.f32 1.0, %v1138
      %v1140 = vmul.f32 %v1137, %v1139
      %v1141 = vadd.f32 %v1137, %v1140
      %vm1142 = vweird.f32 %v1136
      %vm1143 = vweird.f32 %v1137
      %vm1144 = vmor %vm1142, %vm1143
      %v1145 = vsel %vm1144, %v1137, %v1141
      %v1146 = vand.u32 2147483647, %v1136
      %vm1147 = vcmp.eq.f32.partialorder %v1146, 8.507059e+37
      %v1148 = vand.u32 %v1136, 2147483648
      %v1149 = vor.u32 1.1754944e-38, %v1148
      %v1150 = vsel %vm1147, %v1149, %v1145
      %v1151 = vmul.f32 %v1133, %v1150
      %v1153 = vsel %vm530, %v1151, 0
      %1155 = vmatpush.msra.mxu0 0.0
      %1156 = vmatpush.msra.mxu0 0.0
      %1157 = vmatpush.msra.mxu0 0.0
      %1158 = vmatpush.msra.mxu0 0.0
      %1159 = vmatpush.msra.mxu0 0.0
      %1160 = vmatpush.msra.mxu0 0.0
      %1161 = vmatpush.msra.mxu0 0.0
      %1162 = vmatpush.msra.mxu0 0.0
      %1163 = vmatpush.msra.mxu0 0.0
      %1164 = vmatpush.msra.mxu0 0.0
      %1165 = vmatpush.msra.mxu0 0.0
      %1166 = vmatpush.msra.mxu0 0.0
      %1167 = vmatpush.msra.mxu0 0.0
      %1168 = vmatpush.msra.mxu0 0.0
      %1169 = vmatpush.msra.mxu0 0.0
      %1170 = vmatpush.msra.mxu0 %v1100
      %1171 = vmatmul.f32.gmra.mxu0 %v1153
      %v1172 = vpop.f32.mrf.mxu0
      %v1173 = vadd.f32 0.0, %v1172
      %1174 = vdwg.mxu0
      %1176 = vrot.lane.b32.xlu0 %v775, 32
      %v1177 = vpop.permute.xlu0 %1176
      %1180 = vrot.lane.b32.xlu0 %v974, 64
      %v1181 = vpop.permute.xlu0 %1180
      %1184 = vrot.lane.b32.xlu0 %v1173, 96
      %v1185 = vpop.permute.xlu0 %1184
      %v1187 = vsel %vm503, %v576, %v1177
      %vm1188 = vcmask 523264
      %v1189 = vsel %vm1188, %v1187, %v1181
      %vm1190 = vcmask 785408
      %v1191 = vsel %vm1190, %v1189, %v1185
      %v1192 = vld [vmem:[%s7] sm:$0xff]
      %v1193 = vld [vmem:[%s7 + $0x8] sm:$0xff]
      %v1194 = vld [vmem:[%s7 + $0x10] sm:$0xff]
      %v1195 = vld [vmem:[%s7 + $0x18] sm:$0xff]
      %v1196 = vld [vmem:[%s7 + $0x20] sm:$0xff]
      %v1197 = vld [vmem:[%s7 + $0x28] sm:$0xff]
      %v1198 = vld [vmem:[%s7 + $0x30] sm:$0xff]
      %v1199 = vld [vmem:[%s7 + $0x38] sm:$0xff]
      %v1200 = vld [vmem:[%s7 + $0x40] sm:$0xff]
      %v1201 = vld [vmem:[%s7 + $0x48] sm:$0xff]
      %v1202 = vld [vmem:[%s7 + $0x50] sm:$0xff]
      %v1203 = vld [vmem:[%s7 + $0x58] sm:$0xff]
      %v1204 = vld [vmem:[%s7 + $0x60] sm:$0xff]
      %v1205 = vld [vmem:[%s7 + $0x68] sm:$0xff]
      %v1206 = vld [vmem:[%s7 + $0x70] sm:$0xff]
      %v1207 = vld [vmem:[%s7 + $0x78] sm:$0xff]
      %1208 = vmatpush.msra.mxu0 %v1207
      %1209 = vmatpush.msra.mxu0 %v1206
      %1210 = vmatpush.msra.mxu0 %v1205
      %1211 = vmatpush.msra.mxu0 %v1204
      %1212 = vmatpush.msra.mxu0 %v1203
      %1213 = vmatpush.msra.mxu0 %v1202
      %1214 = vmatpush.msra.mxu0 %v1201
      %1215 = vmatpush.msra.mxu0 %v1200
      %1216 = vmatpush.msra.mxu0 %v1199
      %1217 = vmatpush.msra.mxu0 %v1198
      %1218 = vmatpush.msra.mxu0 %v1197
      %1219 = vmatpush.msra.mxu0 %v1196
      %1220 = vmatpush.msra.mxu0 %v1195
      %1221 = vmatpush.msra.mxu0 %v1194
      %1222 = vmatpush.msra.mxu0 %v1193
      %1223 = vmatpush.msra.mxu0 %v1192
      %1224 = vmatmul.f32.gmra.mxu0 %v1191
      %v1225 = vpop.f32.mrf.mxu0
      %v1226 = vadd.f32 0.0, %v1225
      %1227 = vdwg.mxu0
      %v1228 = vadd.f32 %v382, %v1226
      %v1229 = vld [vmem:[%s8] sm:$0x1]
      %v1231 = vperm.slane %v1229, 0
      %v1233 = vadd.f32 %v1228, %v1231
      %v1234 = vld [vmem:[%s9] sm:$0x1]
      %v1235 = vld [vmem:[%s10] sm:$0x1]
      %1236 = vadd.xlane.f32.xlu0 %v1233
      %v1237 = vpop.xlane.xlu0 %1236
      %v1238 = vrcp.pop 128.0
      %v1239 = vmul.f32 128.0, %v1238
      %v1240 = vsub.f32 1.0, %v1239
      %v1241 = vmul.f32 %v1238, %v1240
      %v1242 = vadd.f32 %v1238, %v1241
      %vm1243 = vweird.f32 %v1238
      %v1244 = vsel %vm1243, %v1238, %v1242
      %v1245 = vmul.f32 %v1237, %v1244
      %v1246 = vsub.f32 %v1233, %v1245
      %v1247 = vmul.f32 %v1246, %v1246
      %1248 = vadd.xlane.f32.xlu0 %v1247
      %v1249 = vpop.xlane.xlu0 %1248
      %v1250 = vmul.f32 %v1249, %v1244
      %v1251 = vadd.f32 %v1250, 1e-05
      %v1252 = vrsqrt.pop %v1251
      %v1253 = vmul.f32 %v1252, %v1251
      %v1254 = vmul.f32 %v1253, %v1252
      %v1255 = vmul.f32 0.5, %v1254
      %v1256 = vsub.f32 1.5, %v1255
      %v1257 = vmul.f32 %v1252, %v1256
      %vm1258 = vweird.f32 %v1251
      %vm1259 = vweird.f32 %v1252
      %vm1260 = vmor %vm1258, %vm1259
      %v1261 = vsel %vm1260, %v1252, %v1257
      %v1262 = vmul.f32 %v1246, %v1261
      %v1264 = vperm.slane %v1234, 0
      %v1266 = vmul.f32 %v1262, %v1264
      %v1268 = vperm.slane %v1235, 0
      %v1270 = vadd.f32 %v1266, %v1268
      %1271 = vst [vmem:[%s381] sm:$0xff] %v1270
      %p1272 = scmp.lt.s32.totalorder %s22, 1
      %s1273 = scalar_select %p1272, %s22, 1
      %s1274 = smul.addr %s1273, 8
      %s1275 = scalar_lea.vmem %s11, %s1274
      // Predicated region
      $region65: #{content_generator_forward.9} parent=63 // pred_check
        %p1276 = pneg %p276
      $region66: #{content_generator_forward.9} parent=63 // pred_check_branch
        %1278 = sbr.rel (%p1276) target = $region68
      $region67: #{content_generator_forward.9} parent=63 // pred_region
        _
      $region68: #{content_generator_forward.9} parent=63 // pred_fallthru
        _
    $region64: #{content_generator_forward.9} parent=5 // pred_fallthru
      _
    %p1279 = scmp.le.s32.totalorder 2, %s17
    // Predicated region
    $region69: #{content_generator_forward.9} parent=5 // pred_check
      %p1280 = pneg %p1279
    $region70: #{content_generator_forward.9} parent=5 // pred_check_branch
      %1282 = sbr.rel (%p1280) target = $region72
    $region71: #{content_generator_forward.9} parent=5 // pred_region
      %s1283 = ssub.s32 %s17, 2
      // Predicated region
      $region73: #{content_generator_forward.9} parent=71 // pred_check
        %p1284 = pneg %p282
      $region74: #{content_generator_forward.9} parent=71 // pred_check_branch
        %1286 = sbr.rel (%p1284) target = $region76
      $region75: #{content_generator_forward.9} parent=71 // pred_region
        %p1287 = scmp.lt.s32.totalorder %s23, 1
        %s1288 = scalar_select %p1287, %s23, 1
        %s1289 = smul.addr %s1288, 8
        %s1290 = scalar_lea.vmem %s11, %s1289
      $region76: #{content_generator_forward.9} parent=71 // pred_fallthru
        _
    $region72: #{content_generator_forward.9} parent=5 // pred_fallthru
      _
  $region6: #{content_generator_forward.9} parent=0 // loop_footer
    %s21 = sadd.s32 1, %s17
  $region7: #{content_generator_forward.9} parent=0 // loop_footer_branch
    %16 = sbr.rel target = $region3
  $region8: #{content_generator_forward.9} parent=0 // loop_exit
    _

// kernel: content_generator_forward.15
$region0: #{content_generator_forward.15}
  #allocation0 [shape = 'u32[]', space=smem, size = 0x4, offset = 0x4, fixed_abs, tag = 'smem constant byte address 0x4 - core index']
  #allocation1 [shape = 'u32[72,128]{1,0:T(1,128)}', space=vmem, size = 0x9000, scoped, tag = 'internal scratch']
  %s0 = inlined_call_operand.vmem [shape: f32[16,128], index: 0, kind: input, shape index: {}]
  %s1 = inlined_call_operand.vmem [shape: f32[128,512], index: 1, kind: input, shape index: {}]
  %s2 = inlined_call_operand.vmem [shape: f32[1,512], index: 2, kind: input, shape index: {}]
  %s3 = inlined_call_operand.hbm [shape: f32[16,512], index: 3, kind: output, shape index: {}]
  %s4 = sld [smem:[#allocation0]]
  $region68: #{content_generator_forward.15} parent=0
    _
  %s6 = ssub.s32 1, %s4
  %s7 = scalar_select 0, %s6, %s4
  $region1: #{content_generator_forward.15} parent=0
    #allocation2 [shape = 'u8[262144]{0}', space=vmem, size = 0x40000, scoped, tag = 'input window, operand 1']
    #allocation3 [shape = 'u8[32768]{0}', space=vmem, size = 0x8000, scoped, tag = 'output window, operand 0']
    #allocation4 [shape = 's32[2]{0}', space=sflag, size = 0x8, scoped, tag = 'scoped memory for content_generator_forward.15']
    %8 = vsyncpa [#allocation4], 0
    %s9 = scalar_lea.sflag [#allocation4], 1
    %10 = vsyncpa %s9, 0
    loop: start=0, step=1, limit=4
    $region2: #{content_generator_forward.15} parent=1 // loop_pre_header
      _
    $region3: #{content_generator_forward.15} parent=1 // loop_header
      %s12 = sphi 0, %s16
      %p13 = scmp.ge.s32.totalorder %s12, 4
      %s19 = sphi 0, %s31
      %s20 = sphi 0, %s27
      %s21 = sphi 0, %s19
      %s22 = sphi 0, %s20
      %s23 = sphi 0, %s21
      %s24 = sphi 0, %s22
      %s34 = sphi 0, %s36
      %s37 = sphi 0, %s34
      %s38 = sphi 0, %s37
      %s54 = sphi 0, %s38
      %s60 = sphi 0, %s62
      %s63 = sphi 0, %s60
      %s64 = sphi 0, %s63
      %s80 = sphi 0, %s64
      %s86 = sphi 0, %s88
      %s89 = sphi 0, %s86
      %s90 = sphi 0, %s89
      %s106 = sphi 0, %s90
      %s114 = sphi 0, %s116
      %s117 = sphi 0, %s114
      %s118 = sphi 0, %s117
      %s134 = sphi 0, %s118
    $region4: #{content_generator_forward.15} parent=1 // loop_header_branch
      %15 = sbr.rel (%p13) target = $region8
    $region5: #{content_generator_forward.15} parent=1 // loop_body
      %s17 = ssub.s32 %s12, 1
      %s18 = ssub.s32 %s12, 2
      %s25 = sadd.s32 1, %s20
      %p26 = scmp.ge.s32.totalorder %s25, 1
      %s27 = scalar_select %p26, 0, %s25
      %s28 = sadd.s32 1, %s19
      %s29 = scalar_select %p26, %s28, %s19
      %p30 = scmp.ge.s32.totalorder %s29, 2
      %s31 = scalar_select %p30, 0, %s29
      %s32 = ssub.s32 %s20, %s27
      %p33 = scmp.eq.s32.totalorder %s32, 0
      %s35 = sadd.s32 %s34, 1
      %s36 = scalar_select %p33, %s34, %s35
      %p39 = pneg %p33
      %p40 = scmp.eq.s32.totalorder %s12, 1
      %p41 = por %p39, %p40
      %p42 = scmp.ne.s32.totalorder %s34, %s37
      %p43 = scmp.eq.s32.totalorder %s12, 0
      %p44 = por %p42, %p43
      %p45 = scmp.ne.s32.totalorder %s34, %s37
      %p46 = scmp.eq.s32.totalorder %s17, 1
      %p47 = por %p45, %p46
      %p48 = scmp.ne.s32.totalorder %s37, %s38
      %p49 = scmp.eq.s32.totalorder %s17, 0
      %p50 = por %p48, %p49
      %p51 = scmp.ne.s32.totalorder %s37, %s38
      %p52 = scmp.eq.s32.totalorder %s18, 1
      %p53 = por %p51, %p52
      %p55 = scmp.ne.s32.totalorder %s38, %s54
      %p56 = scmp.eq.s32.totalorder %s18, 0
      %p57 = por %p55, %p56
      %s58 = ssub.s32 %s19, %s31
      %p59 = scmp.eq.s32.totalorder %s58, 0
      %s61 = sadd.s32 %s60, 1
      %s62 = scalar_select %p59, %s60, %s61
      %p65 = pneg %p59
      %p66 = scmp.eq.s32.totalorder %s12, 1
      %p67 = por %p65, %p66
      %p68 = scmp.ne.s32.totalorder %s60, %s63
      %p69 = scmp.eq.s32.totalorder %s12, 0
      %p70 = por %p68, %p69
      %p71 = scmp.ne.s32.totalorder %s60, %s63
      %p72 = scmp.eq.s32.totalorder %s17, 1
      %p73 = por %p71, %p72
      %p74 = scmp.ne.s32.totalorder %s63, %s64
      %p75 = scmp.eq.s32.totalorder %s17, 0
      %p76 = por %p74, %p75
      %p77 = scmp.ne.s32.totalorder %s63, %s64
      %p78 = scmp.eq.s32.totalorder %s18, 1
      %p79 = por %p77, %p78
      %p81 = scmp.ne.s32.totalorder %s64, %s80
      %p82 = scmp.eq.s32.totalorder %s18, 0
      %p83 = por %p81, %p82
      %s84 = ssub.s32 %s19, %s31
      %p85 = scmp.eq.s32.totalorder %s84, 0
      %s87 = sadd.s32 %s86, 1
      %s88 = scalar_select %p85, %s86, %s87
      %p91 = pneg %p85
      %p92 = scmp.eq.s32.totalorder %s12, 1
      %p93 = por %p91, %p92
      %p94 = scmp.ne.s32.totalorder %s86, %s89
      %p95 = scmp.eq.s32.totalorder %s12, 0
      %p96 = por %p94, %p95
      %p97 = scmp.ne.s32.totalorder %s86, %s89
      %p98 = scmp.eq.s32.totalorder %s17, 1
      %p99 = por %p97, %p98
      %p100 = scmp.ne.s32.totalorder %s89, %s90
      %p101 = scmp.eq.s32.totalorder %s17, 0
      %p102 = por %p100, %p101
      %p103 = scmp.ne.s32.totalorder %s89, %s90
      %p104 = scmp.eq.s32.totalorder %s18, 1
      %p105 = por %p103, %p104
      %p107 = scmp.ne.s32.totalorder %s90, %s106
      %p108 = scmp.eq.s32.totalorder %s18, 0
      %p109 = por %p107, %p108
      %s110 = ssub.s32 %s20, %s27
      %s111 = ssub.s32 %s19, %s31
      %s112 = sor.u32 %s110, %s111
      %p113 = scmp.eq.s32.totalorder %s112, 0
      %s115 = sadd.s32 %s114, 1
      %s116 = scalar_select %p113, %s114, %s115
      %p119 = pneg %p113
      %p120 = scmp.eq.s32.totalorder %s12, 1
      %p121 = por %p119, %p120
      %p122 = scmp.ne.s32.totalorder %s114, %s117
      %p123 = scmp.eq.s32.totalorder %s12, 0
      %p124 = por %p122, %p123
      %p125 = scmp.ne.s32.totalorder %s114, %s117
      %p126 = scmp.eq.s32.totalorder %s17, 1
      %p127 = por %p125, %p126
      %p128 = scmp.ne.s32.totalorder %s117, %s118
      %p129 = scmp.eq.s32.totalorder %s17, 0
      %p130 = por %p128, %p129
      %p131 = scmp.ne.s32.totalorder %s117, %s118
      %p132 = scmp.eq.s32.totalorder %s18, 1
      %p133 = por %p131, %p132
      %p135 = scmp.ne.s32.totalorder %s118, %s134
      %p136 = scmp.eq.s32.totalorder %s18, 0
      %p137 = por %p135, %p136
      %p138 = scmp.le.s32.totalorder 1, %s12
      %p139 = scmp.lt.s32.totalorder %s12, 3
      %p140 = pnand %p138, %p139
      %p141 = pneg %p140
      // Predicated region
      $region9: #{content_generator_forward.15} parent=5 // pred_check
        _
      $region10: #{content_generator_forward.15} parent=5 // pred_check_branch
        %143 = sbr.rel (%p140) target = $region12
      $region11: #{content_generator_forward.15} parent=5 // pred_region
        %s144 = ssub.s32 %s12, 1
        // Predicated region
        $region13: #{content_generator_forward.15} parent=11 // pred_check
          %p145 = pneg %p50
        $region14: #{content_generator_forward.15} parent=11 // pred_check_branch
          %147 = sbr.rel (%p145) target = $region16
        $region15: #{content_generator_forward.15} parent=11 // pred_region
          %s148 = smul.u32 2, %s22
          %p149 = scmp.lt.s32.totalorder %s148, 1
          %s150 = scalar_select %p149, %s148, 1
          %s151 = smul.addr %s150, 8
          %s152 = scalar_lea.vmem %s0, %s151
          %s153 = smul.u32 2, %s22
        $region16: #{content_generator_forward.15} parent=11 // pred_fallthru
          _
      $region12: #{content_generator_forward.15} parent=5 // pred_fallthru
        _
      %p154 = scmp.lt.s32.totalorder %s12, 2
      // Predicated region
      $region17: #{content_generator_forward.15} parent=5 // pred_check
        %p155 = pneg %p154
      $region18: #{content_generator_forward.15} parent=5 // pred_check_branch
        %157 = sbr.rel (%p155) target = $region20
      $region19: #{content_generator_forward.15} parent=5 // pred_region
        // Predicated region
        $region21: #{content_generator_forward.15} parent=19 // pred_check
          %p158 = pneg %p70
        $region22: #{content_generator_forward.15} parent=19 // pred_check_branch
          %160 = sbr.rel (%p158) target = $region24
        $region23: #{content_generator_forward.15} parent=19 // pred_region
          %s161 = sand.u32 %s60, 1
          %s162 = sand.u32 %s60, 1
          %s163 = smul.addr %s162, 256
          %s164 = scalar_lea.vmem [#allocation2], %s163
          %s165 = smul.u32 2, %s19
          %s166 = smul.addr %s165, 8
          %s167 = scalar_lea.vmem %s1, %s166
          // Predicated region
          $region25: #{content_generator_forward.15} parent=23 // pred_check
            _
          $region26: #{content_generator_forward.15} parent=23 // pred_check_branch
            %169 = sbr.rel (0) target = $region28
          $region27: #{content_generator_forward.15} parent=23 // pred_region
            // Predicated region
            $region29: #{content_generator_forward.15} parent=27 // pred_check
              _
            $region30: #{content_generator_forward.15} parent=27 // pred_check_branch
              %171 = sbr.rel (0) target = $region32
            $region31: #{content_generator_forward.15} parent=27 // pred_region
              loop: start=0, step=1, limit=1
              $region33: #{content_generator_forward.15} parent=31 // loop_pre_header
                _
              $region34: #{content_generator_forward.15} parent=31 // loop_header
                %s173 = sphi 0, %s177
                %p174 = scmp.ge.s32.totalorder %s173, 1
                %s178 = sphi %s167, %s167
                %s179 = sphi %s164, %s164
              $region35: #{content_generator_forward.15} parent=31 // loop_header_branch
                %176 = sbr.rel (%p174) target = $region39
              $region36: #{content_generator_forward.15} parent=31 // loop_body
                %v180 = vld [vmem:[%s178] sm:$0xff]
                %181 = vst [vmem:[%s179] sm:$0xff] %v180
                %v182 = vld [vmem:[%s178 + $0x8] sm:$0xff]
                %183 = vst [vmem:[%s179 + $0x8] sm:$0xff] %v182
                %v184 = vld [vmem:[%s178 + $0x20] sm:$0xff]
                %185 = vst [vmem:[%s179 + $0x10] sm:$0xff] %v184
                %v186 = vld [vmem:[%s178 + $0x28] sm:$0xff]
                %187 = vst [vmem:[%s179 + $0x18] sm:$0xff] %v186
                %v188 = vld [vmem:[%s178 + $0x40] sm:$0xff]
                %189 = vst [vmem:[%s179 + $0x20] sm:$0xff] %v188
                %v190 = vld [vmem:[%s178 + $0x48] sm:$0xff]
                %191 = vst [vmem:[%s179 + $0x28] sm:$0xff] %v190
                %v192 = vld [vmem:[%s178 + $0x60] sm:$0xff]
                %193 = vst [vmem:[%s179 + $0x30] sm:$0xff] %v192
                %v194 = vld [vmem:[%s178 + $0x68] sm:$0xff]
                %195 = vst [vmem:[%s179 + $0x38] sm:$0xff] %v194
                %v196 = vld [vmem:[%s178 + $0x80] sm:$0xff]
                %197 = vst [vmem:[%s179 + $0x40] sm:$0xff] %v196
                %v198 = vld [vmem:[%s178 + $0x88] sm:$0xff]
                %199 = vst [vmem:[%s179 + $0x48] sm:$0xff] %v198
                %v200 = vld [vmem:[%s178 + $0xa0] sm:$0xff]
                %201 = vst [vmem:[%s179 + $0x50] sm:$0xff] %v200
                %v202 = vld [vmem:[%s178 + $0xa8] sm:$0xff]
                %203 = vst [vmem:[%s179 + $0x58] sm:$0xff] %v202
                %v204 = vld [vmem:[%s178 + $0xc0] sm:$0xff]
                %205 = vst [vmem:[%s179 + $0x60] sm:$0xff] %v204
                %v206 = vld [vmem:[%s178 + $0xc8] sm:$0xff]
                %207 = vst [vmem:[%s179 + $0x68] sm:$0xff] %v206
                %v208 = vld [vmem:[%s178 + $0xe0] sm:$0xff]
                %209 = vst [vmem:[%s179 + $0x70] sm:$0xff] %v208
                %v210 = vld [vmem:[%s178 + $0xe8] sm:$0xff]
                %211 = vst [vmem:[%s179 + $0x78] sm:$0xff] %v210
                %v212 = vld [vmem:[%s178 + $0x100] sm:$0xff]
                %213 = vst [vmem:[%s179 + $0x80] sm:$0xff] %v212
                %v214 = vld [vmem:[%s178 + $0x108] sm:$0xff]
                %215 = vst [vmem:[%s179 + $0x88] sm:$0xff] %v214
                %v216 = vld [vmem:[%s178 + $0x120] sm:$0xff]
                %217 = vst [vmem:[%s179 + $0x90] sm:$0xff] %v216
                %v218 = vld [vmem:[%s178 + $0x128] sm:$0xff]
                %219 = vst [vmem:[%s179 + $0x98] sm:$0xff] %v218
                %v220 = vld [vmem:[%s178 + $0x140] sm:$0xff]
                %221 = vst [vmem:[%s179 + $0xa0] sm:$0xff] %v220
                %v222 = vld [vmem:[%s178 + $0x148] sm:$0xff]
                %223 = vst [vmem:[%s179 + $0xa8] sm:$0xff] %v222
                %v224 = vld [vmem:[%s178 + $0x160] sm:$0xff]
                %225 = vst [vmem:[%s179 + $0xb0] sm:$0xff] %v224
                %v226 = vld [vmem:[%s178 + $0x168] sm:$0xff]
                %227 = vst [vmem:[%s179 + $0xb8] sm:$0xff] %v226
                %v228 = vld [vmem:[%s178 + $0x180] sm:$0xff]
                %229 = vst [vmem:[%s179 + $0xc0] sm:$0xff] %v228
                %v230 = vld [vmem:[%s178 + $0x188] sm:$0xff]
                %231 = vst [vmem:[%s179 + $0xc8] sm:$0xff] %v230
                %v232 = vld [vmem:[%s178 + $0x1a0] sm:$0xff]
                %233 = vst [vmem:[%s179 + $0xd0] sm:$0xff] %v232
                %v234 = vld [vmem:[%s178 + $0x1a8] sm:$0xff]
                %235 = vst [vmem:[%s179 + $0xd8] sm:$0xff] %v234
                %v236 = vld [vmem:[%s178 + $0x1c0] sm:$0xff]
                %237 = vst [vmem:[%s179 + $0xe0] sm:$0xff] %v236
                %v238 = vld [vmem:[%s178 + $0x1c8] sm:$0xff]
                %239 = vst [vmem:[%s179 + $0xe8] sm:$0xff] %v238
                %v240 = vld [vmem:[%s178 + $0x1e0] sm:$0xff]
                %241 = vst [vmem:[%s179 + $0xf0] sm:$0xff] %v240
                %v242 = vld [vmem:[%s178 + $0x1e8] sm:$0xff]
                %243 = vst [vmem:[%s179 + $0xf8] sm:$0xff] %v242
              $region37: #{content_generator_forward.15} parent=31 // loop_footer
                %s177 = sadd.s32 1, %s173
              $region38: #{content_generator_forward.15} parent=31 // loop_footer_branch
                %172 = sbr.rel target = $region34
              $region39: #{content_generator_forward.15} parent=31 // loop_exit
                _
            $region32: #{content_generator_forward.15} parent=27 // pred_fallthru
              _
            // Predicated region
            $region40: #{content_generator_forward.15} parent=27 // pred_check
              _
            $region41: #{content_generator_forward.15} parent=27 // pred_check_branch
              %245 = sbr.rel target = $region43
            $region42: #{content_generator_forward.15} parent=27 // pred_region
              _
            $region43: #{content_generator_forward.15} parent=27 // pred_fallthru
              _
          $region28: #{content_generator_forward.15} parent=23 // pred_fallthru
            _
          %246 = vnop
        $region24: #{content_generator_forward.15} parent=19 // pred_fallthru
          _
        // Predicated region
        $region44: #{content_generator_forward.15} parent=19 // pred_check
          %p247 = pneg %p96
        $region45: #{content_generator_forward.15} parent=19 // pred_check_branch
          %249 = sbr.rel (%p247) target = $region47
        $region46: #{content_generator_forward.15} parent=19 // pred_region
          %s250 = smul.u32 2, %s19
          %p251 = scmp.lt.s32.totalorder %s250, 3
          %s252 = scalar_select %p251, %s250, 3
          %s253 = scalar_lea.vmem %s2, %s252
          %s254 = smul.u32 2, %s19
        $region47: #{content_generator_forward.15} parent=19 // pred_fallthru
          _
      $region20: #{content_generator_forward.15} parent=5 // pred_fallthru
        _
      %p255 = scmp.le.s32.totalorder 1, %s12
      %p256 = scmp.lt.s32.totalorder %s12, 3
      %p257 = pnand %p255, %p256
      %p258 = pneg %p257
      // Predicated region
      $region48: #{content_generator_forward.15} parent=5 // pred_check
        _
      $region49: #{content_generator_forward.15} parent=5 // pred_check_branch
        %260 = sbr.rel (%p257) target = $region51
      $region50: #{content_generator_forward.15} parent=5 // pred_region
        %s261 = ssub.s32 %s12, 1
        %s262 = sand.u32 %s63, 1
        %s263 = sand.u32 %s63, 1
        %s264 = smul.addr %s263, 256
        %s265 = scalar_lea.vmem [#allocation2], %s264
        // Predicated region
        $region52: #{content_generator_forward.15} parent=50 // pred_check
          %p266 = pneg %p76
        $region53: #{content_generator_forward.15} parent=50 // pred_check_branch
          %268 = sbr.rel (%p266) target = $region55
        $region54: #{content_generator_forward.15} parent=50 // pred_region
          _
        $region55: #{content_generator_forward.15} parent=50 // pred_fallthru
          _
        %s269 = smul.u32 2, %s22
        %p270 = scmp.lt.s32.totalorder %s269, 1
        %s271 = scalar_select %p270, %s269, 1
        %s272 = smul.addr %s271, 8
        %s273 = scalar_lea.vmem %s0, %s272
        %p274 = pneg %p50
        %p275 = pneg %p47
        %s276 = sand.u32 %s63, 1
        %s277 = sand.u32 %s63, 1
        %s278 = smul.addr %s277, 256
        %s279 = scalar_lea.vmem [#allocation2], %s278
        %p280 = pneg %p76
        %p281 = pneg %p73
        %s282 = smul.u32 2, %s21
        %p283 = scmp.lt.s32.totalorder %s282, 3
        %s284 = scalar_select %p283, %s282, 3
        %s285 = scalar_lea.vmem %s2, %s284
        %p286 = pneg %p102
        %p287 = pneg %p99
        %p288 = pneg %p130
        %p289 = pneg %p127
        %s290 = sand.u32 %s117, 1
        %s291 = scalar_lea.sflag [#allocation4], %s290
        %s292 = sand.u32 %s117, 1
        %s293 = smul.addr %s292, 32
        %s294 = scalar_lea.vmem [#allocation3], %s293
        %s295 = smul.u32 2, %s22
        %p296 = scmp.lt.s32.totalorder %s295, 1
        %s297 = scalar_select %p296, %s295, 1
        %s298 = smul.addr %s297, 8
        %s299 = scalar_lea.vmem %s0, %s298
        %s300 = smul.u32 2, %s22
        %s301 = smul.u32 2, %s21
        %s302 = smul.u32 2, %s21
        %p303 = scmp.lt.s32.totalorder %s302, 3
        %s304 = scalar_select %p303, %s302, 3
        %s305 = scalar_lea.vmem %s2, %s304
        %s306 = smul.u32 2, %s21
        %s307 = smul.u32 2, %s22
        %s308 = smul.u32 2, %s21
        %v309 = vld [vmem:[%s299] sm:$0xff]
        %v310 = vld [vmem:[%s299 + $0x8] sm:$0xff]
        %v311 = vld [vmem:[%s265] sm:$0xff]
        %v312 = vld [vmem:[%s265 + $0x8] sm:$0xff]
        %v313 = vld [vmem:[%s265 + $0x10] sm:$0xff]
        %v314 = vld [vmem:[%s265 + $0x18] sm:$0xff]
        %v315 = vld [vmem:[%s265 + $0x20] sm:$0xff]
        %v316 = vld [vmem:[%s265 + $0x28] sm:$0xff]
        %v317 = vld [vmem:[%s265 + $0x30] sm:$0xff]
        %v318 = vld [vmem:[%s265 + $0x38] sm:$0xff]
        %v319 = vld [vmem:[%s265 + $0x40] sm:$0xff]
        %v320 = vld [vmem:[%s265 + $0x48] sm:$0xff]
        %v321 = vld [vmem:[%s265 + $0x50] sm:$0xff]
        %v322 = vld [vmem:[%s265 + $0x58] sm:$0xff]
        %v323 = vld [vmem:[%s265 + $0x60] sm:$0xff]
        %v324 = vld [vmem:[%s265 + $0x68] sm:$0xff]
        %v325 = vld [vmem:[%s265 + $0x70] sm:$0xff]
        %v326 = vld [vmem:[%s265 + $0x78] sm:$0xff]
        %v327 = vld [vmem:[%s265 + $0x80] sm:$0xff]
        %v328 = vld [vmem:[%s265 + $0x88] sm:$0xff]
        %v329 = vld [vmem:[%s265 + $0x90] sm:$0xff]
        %v330 = vld [vmem:[%s265 + $0x98] sm:$0xff]
        %v331 = vld [vmem:[%s265 + $0xa0] sm:$0xff]
        %v332 = vld [vmem:[%s265 + $0xa8] sm:$0xff]
        %v333 = vld [vmem:[%s265 + $0xb0] sm:$0xff]
        %v334 = vld [vmem:[%s265 + $0xb8] sm:$0xff]
        %v335 = vld [vmem:[%s265 + $0xc0] sm:$0xff]
        %v336 = vld [vmem:[%s265 + $0xc8] sm:$0xff]
        %v337 = vld [vmem:[%s265 + $0xd0] sm:$0xff]
        %v338 = vld [vmem:[%s265 + $0xd8] sm:$0xff]
        %v339 = vld [vmem:[%s265 + $0xe0] sm:$0xff]
        %v340 = vld [vmem:[%s265 + $0xe8] sm:$0xff]
        %v341 = vld [vmem:[%s265 + $0xf0] sm:$0xff]
        %v342 = vld [vmem:[%s265 + $0xf8] sm:$0xff]
        %v343 = vld [vmem:[%s305] sm:$0x3]
        %v345 = vperm.slane %v343, 0
        %v346 = vperm.slane %v343, 1
        %349 = vmatpush.msra.mxu0 %v341
        %350 = vmatpush.msra.mxu0 %v339
        %351 = vmatpush.msra.mxu0 %v337
        %352 = vmatpush.msra.mxu0 %v335
        %353 = vmatpush.msra.mxu0 %v333
        %354 = vmatpush.msra.mxu0 %v331
        %355 = vmatpush.msra.mxu0 %v329
        %356 = vmatpush.msra.mxu0 %v327
        %357 = vmatpush.msra.mxu0 %v325
        %358 = vmatpush.msra.mxu0 %v323
        %359 = vmatpush.msra.mxu0 %v321
        %360 = vmatpush.msra.mxu0 %v319
        %361 = vmatpush.msra.mxu0 %v317
        %362 = vmatpush.msra.mxu0 %v315
        %363 = vmatpush.msra.mxu0 %v313
        %364 = vmatpush.msra.mxu0 %v311
        %365 = vmatmul.f32.gmra.mxu0 %v309
        %v366 = vpop.f32.mrf.mxu0
        %v367 = vadd.f32 %v345, %v366
        %368 = vmatmul.f32.gmra.mxu0 %v310
        %v369 = vpop.f32.mrf.mxu0
        %v370 = vadd.f32 %v345, %v369
        %371 = vdwg.mxu0
        %372 = vmatpush.msra.mxu0 %v342
        %373 = vmatpush.msra.mxu0 %v340
        %374 = vmatpush.msra.mxu0 %v338
        %375 = vmatpush.msra.mxu0 %v336
        %376 = vmatpush.msra.mxu0 %v334
        %377 = vmatpush.msra.mxu0 %v332
        %378 = vmatpush.msra.mxu0 %v330
        %379 = vmatpush.msra.mxu0 %v328
        %380 = vmatpush.msra.mxu0 %v326
        %381 = vmatpush.msra.mxu0 %v324
        %382 = vmatpush.msra.mxu0 %v322
        %383 = vmatpush.msra.mxu0 %v320
        %384 = vmatpush.msra.mxu0 %v318
        %385 = vmatpush.msra.mxu0 %v316
        %386 = vmatpush.msra.mxu0 %v314
        %387 = vmatpush.msra.mxu0 %v312
        %388 = vmatmul.f32.gmra.mxu0 %v309
        %v389 = vpop.f32.mrf.mxu0
        %v390 = vadd.f32 %v346, %v389
        %391 = vmatmul.f32.gmra.mxu0 %v310
        %v392 = vpop.f32.mrf.mxu0
        %v393 = vadd.f32 %v346, %v392
        %394 = vdwg.mxu0
        %395 = vst [vmem:[%s294] sm:$0xff] %v367
        %396 = vst [vmem:[%s294 + $0x8] sm:$0xff] %v390
        %397 = vst [vmem:[%s294 + $0x10] sm:$0xff] %v370
        %398 = vst [vmem:[%s294 + $0x18] sm:$0xff] %v393
        %s399 = sand.u32 %s117, 1
        %s400 = scalar_lea.sflag [#allocation4], %s399
        %s401 = sand.u32 %s117, 1
        %s402 = smul.addr %s401, 32
        %s403 = scalar_lea.vmem [#allocation3], %s402
        // Predicated region
        $region56: #{content_generator_forward.15} parent=50 // pred_check
          %p404 = pneg %p127
        $region57: #{content_generator_forward.15} parent=50 // pred_check_branch
          %406 = sbr.rel (%p404) target = $region59
        $region58: #{content_generator_forward.15} parent=50 // pred_region
          %s407 = smul.u32 2, %s22
          %s408 = smul.u32 2, %s21
          %410 = vsyncadd %s400, 0
          %s411 = smul.addr %s407, 4
          %s412 = sadd.s32 %s408, %s411
          %s413 = smul.addr %s412, 8
          %s414 = scalar_lea.hbm %s3, %s413
          %s415 = sshll.u32 %s403, 4
          %s416 = int_to_ptr.vmem [resolvable:$true] %s415
          %s417 = sshll.u32 %s414, 4
          %s418 = int_to_ptr.hbm [resolvable:$true] %s417
          %423 = dma.vmem_to_hbm [thread:$0]  %s416, 512, %s418, %s400, 256, 512, 16
        $region59: #{content_generator_forward.15} parent=50 // pred_fallthru
          _
      $region51: #{content_generator_forward.15} parent=5 // pred_fallthru
        _
      %p424 = scmp.le.s32.totalorder 2, %s12
      // Predicated region
      $region60: #{content_generator_forward.15} parent=5 // pred_check
        %p425 = pneg %p424
      $region61: #{content_generator_forward.15} parent=5 // pred_check_branch
        %427 = sbr.rel (%p425) target = $region63
      $region62: #{content_generator_forward.15} parent=5 // pred_region
        %s428 = ssub.s32 %s12, 2
        // Predicated region
        $region64: #{content_generator_forward.15} parent=62 // pred_check
          %p429 = pneg %p133
        $region65: #{content_generator_forward.15} parent=62 // pred_check_branch
          %431 = sbr.rel (%p429) target = $region67
        $region66: #{content_generator_forward.15} parent=62 // pred_region
          %s432 = sand.u32 %s118, 1
          %s433 = scalar_lea.sflag [#allocation4], %s432
          %s434 = sand.u32 %s118, 1
          %s435 = smul.addr %s434, 32
          %s436 = scalar_lea.vmem [#allocation3], %s435
          %438 = dma.done %s433, 512
        $region67: #{content_generator_forward.15} parent=62 // pred_fallthru
          _
      $region63: #{content_generator_forward.15} parent=5 // pred_fallthru
        _
    $region6: #{content_generator_forward.15} parent=1 // loop_footer
      %s16 = sadd.s32 1, %s12
    $region7: #{content_generator_forward.15} parent=1 // loop_footer_branch
      %11 = sbr.rel target = $region3
    $region8: #{content_generator_forward.15} parent=1 // loop_exit
      _
    %439 = vsyncpa [#allocation4], 1
    %s440 = scalar_lea.sflag [#allocation4], 1
    %441 = vsyncpa %s440, 1

</llo_original>
